<compile_context>
chip_gen: v6e
topology: v6e:2x2x1
jax: 0.10.0
libtpu: 0.0.40
codegen_flags: <defaults>
</compile_context>

<pallas_src>
import functools

import jax
import jax.numpy as jnp
from jax.experimental import pallas as pl
from jax.experimental.pallas import tpu as pltpu  # noqa: F401  (TPU backend)

# ----------------------------- config ---------------------------------------
NDF = 8            # cfg.GAN.NDF
NT_D = 16          # cfg.TEXT.TXT_FEATURE_DIM
KP = 16            # cfg.KEYPOINT.DIM  (spatial size of imgGlobal / locs)
NUM_ELT = 4        # cfg.KEYPOINT.NUM_ELT
BATCH = 2
SLOPE = 0.2
BN_EPS = 1e-5

C_IMG = 2 * NDF            # imgGlobal channels
C_CAT = C_IMG + NT_D       # keyMulD conv input channels (img ++ txt)
C_KM = 2 * NDF             # keyMulD conv output channels
C_R1IN = C_KM + NUM_ELT    # regionD 1x1 conv input channels
C_R1 = 2 * NDF             # regionD 1x1 conv output channels
C_OUT = NDF                # regionD 2x2 conv output channels
PAD_ROWS = KP + 1          # row padding so every 3x3 tap shift is a static slice


# --------------------------- Pallas kernel ----------------------------------
def _bn_lrelu(x, gamma, beta):
    """Train-mode BatchNorm over rows (N*H*W) per column (channel) + LeakyReLU."""
    mean = jnp.mean(x, axis=0, keepdims=True)
    var = jnp.mean(jnp.square(x - mean), axis=0, keepdims=True)   # biased var
    y = (x - mean) * jax.lax.rsqrt(var + BN_EPS) * gamma + beta
    return jnp.where(y > 0, y, SLOPE * y)


def _regiond_kernel(xp_ref, locs_ref, tapmask_ref, sel_ref,
                    wkm_ref, bkm_ref, gkm_ref, bekm_ref,
                    wr1_ref, br1_ref, gr1_ref, ber1_ref,
                    wr2_ref, br2_ref,
                    out_ref, *, kp, pad_rows):
    f32 = jnp.float32
    npix = xp_ref.shape[0] - 2 * pad_rows
    c_cat = xp_ref.shape[1]
    c_km = wkm_ref.shape[1]
    num_elt = locs_ref.shape[1]
    c_r1 = wr1_ref.shape[1]
    bsz, c_out = out_ref.shape

    # ---- keyMulD: 3x3 pad-1 conv as 9 shifted matmuls (no im2col) ----------
    acc = jnp.zeros((npix, c_km), f32)
    taps = [(di, dj) for di in (-1, 0, 1) for dj in (-1, 0, 1)]
    for t, (di, dj) in enumerate(taps):
        start = pad_rows + di * kp + dj                 # static row shift
        x_tap = xp_ref[pl.ds(start, npix), :]           # (npix, c_cat)
        w_tap = wkm_ref[pl.ds(t * c_cat, c_cat), :]     # (c_cat, c_km)
        part = jnp.dot(x_tap, w_tap, preferred_element_type=f32)
        if (di, dj) != (0, 0):                          # zero the padded taps
            part = part * tapmask_ref[:, pl.ds(t, 1)]   # (npix, 1) boundary mask
        acc = acc + part
    y = _bn_lrelu(acc + bkm_ref[...], gkm_ref[...], bekm_ref[...])

    # keyMulD tail: mask = clamp(sum_k locs, 0, 1); broadcast over channels
    locs = locs_ref[...]                                # (npix, num_elt)
    kmask = jnp.clip(jnp.sum(locs, axis=1, keepdims=True), 0.0, 1.0)
    y = y * kmask

    # ---- regionD 1x1 conv over concat(keyMul, locs): split-weight matmuls --
    z = (jnp.dot(y, wr1_ref[pl.ds(0, c_km), :], preferred_element_type=f32)
         + jnp.dot(locs, wr1_ref[pl.ds(c_km, num_elt), :],
                   preferred_element_type=f32)
         + br1_ref[...])
    z = _bn_lrelu(z, gr1_ref[...], ber1_ref[...])       # (npix, c_r1)

    # ---- regionD 2x2 valid conv + spatial mean, via windowed sums ----------
    #   mean_ij conv(z) = bias + (1/225) * sum_t ( sum_window_t z ) @ W_t
    m = jnp.zeros((bsz, c_out), f32)
    for t in range(4):
        sel_t = sel_ref[pl.ds(t * bsz, bsz), :]                         # (B, npix)
        s_t = jnp.dot(sel_t, z, preferred_element_type=f32)             # (B, c_r1)
        m = m + jnp.dot(s_t, wr2_ref[pl.ds(t * c_r1, c_r1), :],
                        preferred_element_type=f32)
    m = m * (1.0 / float((kp - 1) * (kp - 1))) + br2_ref[...]
    out_ref[...] = jnp.where(m > 0, m, SLOPE * m)


# ------------------------------ glue ----------------------------------------
def _tap_masks(bsz):
    """(npix, 9) 0/1 mask: tap (di,dj) valid (inside the zero padding) per pixel."""
    r = jnp.arange(bsz * KP * KP)
    i, j = (r // KP) % KP, r % KP
    cols = []
    for di in (-1, 0, 1):
        for dj in (-1, 0, 1):
            ok = (i + di >= 0) & (i + di < KP) & (j + dj >= 0) & (j + dj < KP)
            cols.append(ok.astype(jnp.float32))
    return jnp.stack(cols, axis=1)


def _window_sel(bsz):
    """(4*bsz, npix) 0/1 selection: row t*bsz+b sums the (KP-1)^2 window of
    image b offset by tap t of the 2x2 valid conv."""
    r = jnp.arange(bsz * KP * KP)
    b_of, i_of, j_of = r // (KP * KP), (r // KP) % KP, r % KP
    rows = []
    for ki in range(2):
        for kj in range(2):
            for b in range(bsz):
                rows.append(((b_of == b)
                             & (i_of >= ki) & (i_of <= ki + KP - 2)
                             & (j_of >= kj) & (j_of <= kj + KP - 2)
                             ).astype(jnp.float32))
    return jnp.stack(rows, axis=0)


@jax.jit
def regiond_forward(p, img_global, prep_txt, locs):
    """img_global: (B, 2*NDF, KP, KP) NCHW; prep_txt: (B, NT_D);
    locs: (B, NUM_ELT, KP, KP).  Returns (B, NDF)."""
    bsz = img_global.shape[0]
    npix = bsz * KP * KP

    # layout prep (tiny, XLA): NCHW -> flattened NHWC rows (b, i, j)
    img2d = jnp.transpose(img_global, (0, 2, 3, 1)).reshape(npix, C_IMG)
    txt2d = jnp.broadcast_to(prep_txt[:, None, :],
                             (bsz, KP * KP, NT_D)).reshape(npix, NT_D)
    xcat = jnp.concatenate([img2d, txt2d], axis=1)                  # (npix, C_CAT)
    xpad = jnp.pad(xcat, ((PAD_ROWS, PAD_ROWS), (0, 0)))
    locs2d = jnp.transpose(locs, (0, 2, 3, 1)).reshape(npix, NUM_ELT)

    # conv weights, PyTorch (O, I, kh, kw) -> tap-major (kh*kw*I, O) matrices
    wkm = jnp.transpose(p["km_w"], (2, 3, 1, 0)).reshape(9 * C_CAT, C_KM)
    wr1 = jnp.transpose(p["r1_w"], (2, 3, 1, 0)).reshape(C_R1IN, C_R1)
    wr2 = jnp.transpose(p["r2_w"], (2, 3, 1, 0)).reshape(4 * C_R1, C_OUT)
    row = lambda v: v.reshape(1, -1)

    kernel = functools.partial(_regiond_kernel, kp=KP, pad_rows=PAD_ROWS)
    # Single un-gridded call: every operand (< 1 MiB total) lives whole in VMEM.
    return pl.pallas_call(
        kernel,
        out_shape=jax.ShapeDtypeStruct((bsz, NDF), jnp.float32),
    )(xpad, locs2d, _tap_masks(bsz), _window_sel(bsz),
      wkm, row(p["km_b"]), row(p["km_g"]), row(p["km_be"]),
      wr1, row(p["r1_b"]), row(p["r1_g"]), row(p["r1_be"]),
      wr2, row(p["r2_b"]))


# --------------------- pure-JAX reference (for checking) --------------------
def _conv_nchw(x, w, b, padding):
    y = jax.lax.conv_general_dilated(
        x, w, window_strides=(1, 1),
        padding=((padding, padding), (padding, padding)),
        dimension_numbers=("NCHW", "OIHW", "NCHW"))
    return y + b[None, :, None, None]


def _bn_lrelu_ref(x, g, be):
    mean = jnp.mean(x, axis=(0, 2, 3), keepdims=True)
    var = jnp.mean(jnp.square(x - mean), axis=(0, 2, 3), keepdims=True)
    y = ((x - mean) * jax.lax.rsqrt(var + BN_EPS)
         * g[None, :, None, None] + be[None, :, None, None])
    return jnp.where(y > 0, y, SLOPE * y)


@jax.jit
def regiond_reference(p, img_global, prep_txt, locs):
    bsz = img_global.shape[0]
    txt = jnp.broadcast_to(prep_txt[:, :, None, None], (bsz, NT_D, KP, KP))
    x = jnp.concatenate([img_global, txt], axis=1)
    x = _bn_lrelu_ref(_conv_nchw(x, p["km_w"], p["km_b"], 1),
                      p["km_g"], p["km_be"])
    mask = jnp.clip(jnp.sum(locs, axis=1, keepdims=True), 0.0, 1.0)
    x = x * mask
    x = jnp.concatenate([x, locs], axis=1)
    x = _bn_lrelu_ref(_conv_nchw(x, p["r1_w"], p["r1_b"], 0),
                      p["r1_g"], p["r1_be"])
    x = _conv_nchw(x, p["r2_w"], p["r2_b"], 0)          # (B, NDF, 15, 15)
    x = jnp.mean(x, axis=3)
    x = jnp.mean(x, axis=2)
    return jnp.where(x > 0, x, SLOPE * x)


# --------------------------- parameters -------------------------------------
def init_params(key):
    ks = jax.random.split(key, 10)
    n = lambda i, shape, s=0.1: s * jax.random.normal(ks[i], shape, jnp.float32)
    return {
        "km_w": n(0, (C_KM, C_CAT, 3, 3)), "km_b": n(1, (C_KM,)),
        "km_g": 1.0 + n(2, (C_KM,)), "km_be": n(3, (C_KM,)),
        "r1_w": n(4, (C_R1, C_R1IN, 1, 1)), "r1_b": n(5, (C_R1,)),
        "r1_g": 1.0 + n(6, (C_R1,)), "r1_be": n(7, (C_R1,)),
        "r2_w": n(8, (C_OUT, C_R1, 2, 2)), "r2_b": n(9, (C_OUT,)),
    }


# ------------------------------ main -----------------------------------------
if __name__ == "__main__":
    root = jax.random.PRNGKey(0)
    k_p, k_img, k_txt, k_loc = jax.random.split(root, 4)

    params = init_params(k_p)
    img_global = jax.random.normal(k_img, (BATCH, C_IMG, KP, KP), jnp.float32)
    prep_txt = jax.random.normal(k_txt, (BATCH, NT_D), jnp.float32)
    locs = (jax.random.uniform(k_loc, (BATCH, NUM_ELT, KP, KP)) < 0.2
            ).astype(jnp.float32)

    # Round test data to bf16-representable values so the MXU's bf16 input
    # pass and the XLA reference conv see identical products (tight check).
    to_bf16_grid = lambda t: jax.tree_util.tree_map(
        lambda a: a.astype(jnp.bfloat16).astype(jnp.float32), t)
    params = to_bf16_grid(params)
    img_global = to_bf16_grid(img_global)
    prep_txt = to_bf16_grid(prep_txt)

    out = jax.block_until_ready(regiond_forward(params, img_global, prep_txt, locs))
    ref = jax.block_until_ready(regiond_reference(params, img_global, prep_txt, locs))

    assert out.shape == (BATCH, NDF), out.shape
    assert bool(jnp.all(jnp.isfinite(out)))
    err = float(jnp.max(jnp.abs(out - ref)))
    scale = float(jnp.max(jnp.abs(ref)))
    assert err <= 0.1 * scale + 1e-4, (err, scale)

    print("KERNEL_OK")
</pallas_src>

<mosaic_0001>
module attributes {stable_mosaic.version = 11 : i64} {
  func.func @_regiond_kernel(%arg0: memref<546x32xf32, #tpu.memory_space<vmem>>, %arg1: memref<512x4xf32, #tpu.memory_space<vmem>>, %arg2: memref<512x9xf32, #tpu.memory_space<vmem>>, %arg3: memref<8x512xf32, #tpu.memory_space<vmem>>, %arg4: memref<288x16xf32, #tpu.memory_space<vmem>>, %arg5: memref<1x16xf32, #tpu.memory_space<vmem>>, %arg6: memref<1x16xf32, #tpu.memory_space<vmem>>, %arg7: memref<1x16xf32, #tpu.memory_space<vmem>>, %arg8: memref<20x16xf32, #tpu.memory_space<vmem>>, %arg9: memref<1x16xf32, #tpu.memory_space<vmem>>, %arg10: memref<1x16xf32, #tpu.memory_space<vmem>>, %arg11: memref<1x16xf32, #tpu.memory_space<vmem>>, %arg12: memref<64x8xf32, #tpu.memory_space<vmem>>, %arg13: memref<1x8xf32, #tpu.memory_space<vmem>>, %arg14: memref<2x8xf32, #tpu.memory_space<vmem>>) attributes {dimension_semantics = [], scalar_prefetch = 0 : i64, scratch_operands = 0 : i64, tpu.core_type = #tpu.core_type<tc>} {
    %cst = arith.constant 0.000000e+00 : f32
    %0 = vector.broadcast %cst : f32 to vector<512x16xf32>
    %c0 = arith.constant 0 : index
    %c0_0 = arith.constant 0 : index
    %1 = vector.load %arg0[%c0, %c0_0] : memref<546x32xf32, #tpu.memory_space<vmem>>, vector<512x32xf32>
    %c0_1 = arith.constant 0 : index
    %c0_2 = arith.constant 0 : index
    %2 = vector.load %arg4[%c0_1, %c0_2] : memref<288x16xf32, #tpu.memory_space<vmem>>, vector<32x16xf32>
    %cst_3 = arith.constant dense<0.000000e+00> : vector<512x16xf32>
    %3 = tpu.matmul %1, %2, %cst_3 {dimension_numbers = #tpu.dot_dimension_numbers<[1], [0], [0], [1], [0, 0, 1, 1], [], []>} : vector<512x32xf32>, vector<32x16xf32>, vector<512x16xf32> -> vector<512x16xf32>
    %c0_4 = arith.constant 0 : index
    %c0_5 = arith.constant 0 : index
    %4 = vector.load %arg2[%c0_4, %c0_5] : memref<512x9xf32, #tpu.memory_space<vmem>>, vector<512x1xf32>
    %5 = vector.broadcast %4 : vector<512x1xf32> to vector<512x16xf32>
    %6 = arith.mulf %3, %5 : vector<512x16xf32>
    %7 = arith.addf %0, %6 : vector<512x16xf32>
    %c1 = arith.constant 1 : index
    %c0_6 = arith.constant 0 : index
    %8 = vector.load %arg0[%c1, %c0_6] : memref<546x32xf32, #tpu.memory_space<vmem>>, vector<512x32xf32>
    %c32 = arith.constant 32 : index
    %c0_7 = arith.constant 0 : index
    %9 = vector.load %arg4[%c32, %c0_7] : memref<288x16xf32, #tpu.memory_space<vmem>>, vector<32x16xf32>
    %cst_8 = arith.constant dense<0.000000e+00> : vector<512x16xf32>
    %10 = tpu.matmul %8, %9, %cst_8 {dimension_numbers = #tpu.dot_dimension_numbers<[1], [0], [0], [1], [0, 0, 1, 1], [], []>} : vector<512x32xf32>, vector<32x16xf32>, vector<512x16xf32> -> vector<512x16xf32>
    %c0_9 = arith.constant 0 : index
    %c1_10 = arith.constant 1 : index
    %11 = vector.load %arg2[%c0_9, %c1_10] : memref<512x9xf32, #tpu.memory_space<vmem>>, vector<512x1xf32>
    %12 = vector.broadcast %11 : vector<512x1xf32> to vector<512x16xf32>
    %13 = arith.mulf %10, %12 : vector<512x16xf32>
    %14 = arith.addf %7, %13 : vector<512x16xf32>
    %c2 = arith.constant 2 : index
    %c0_11 = arith.constant 0 : index
    %15 = vector.load %arg0[%c2, %c0_11] : memref<546x32xf32, #tpu.memory_space<vmem>>, vector<512x32xf32>
    %c64 = arith.constant 64 : index
    %c0_12 = arith.constant 0 : index
    %16 = vector.load %arg4[%c64, %c0_12] : memref<288x16xf32, #tpu.memory_space<vmem>>, vector<32x16xf32>
    %cst_13 = arith.constant dense<0.000000e+00> : vector<512x16xf32>
    %17 = tpu.matmul %15, %16, %cst_13 {dimension_numbers = #tpu.dot_dimension_numbers<[1], [0], [0], [1], [0, 0, 1, 1], [], []>} : vector<512x32xf32>, vector<32x16xf32>, vector<512x16xf32> -> vector<512x16xf32>
    %c0_14 = arith.constant 0 : index
    %c2_15 = arith.constant 2 : index
    %18 = vector.load %arg2[%c0_14, %c2_15] : memref<512x9xf32, #tpu.memory_space<vmem>>, vector<512x1xf32>
    %19 = vector.broadcast %18 : vector<512x1xf32> to vector<512x16xf32>
    %20 = arith.mulf %17, %19 : vector<512x16xf32>
    %21 = arith.addf %14, %20 : vector<512x16xf32>
    %c16 = arith.constant 16 : index
    %c0_16 = arith.constant 0 : index
    %22 = vector.load %arg0[%c16, %c0_16] : memref<546x32xf32, #tpu.memory_space<vmem>>, vector<512x32xf32>
    %c96 = arith.constant 96 : index
    %c0_17 = arith.constant 0 : index
    %23 = vector.load %arg4[%c96, %c0_17] : memref<288x16xf32, #tpu.memory_space<vmem>>, vector<32x16xf32>
    %cst_18 = arith.constant dense<0.000000e+00> : vector<512x16xf32>
    %24 = tpu.matmul %22, %23, %cst_18 {dimension_numbers = #tpu.dot_dimension_numbers<[1], [0], [0], [1], [0, 0, 1, 1], [], []>} : vector<512x32xf32>, vector<32x16xf32>, vector<512x16xf32> -> vector<512x16xf32>
    %c0_19 = arith.constant 0 : index
    %c3 = arith.constant 3 : index
    %25 = vector.load %arg2[%c0_19, %c3] : memref<512x9xf32, #tpu.memory_space<vmem>>, vector<512x1xf32>
    %26 = vector.broadcast %25 : vector<512x1xf32> to vector<512x16xf32>
    %27 = arith.mulf %24, %26 : vector<512x16xf32>
    %28 = arith.addf %21, %27 : vector<512x16xf32>
    %c17 = arith.constant 17 : index
    %c0_20 = arith.constant 0 : index
    %29 = vector.load %arg0[%c17, %c0_20] : memref<546x32xf32, #tpu.memory_space<vmem>>, vector<512x32xf32>
    %c128 = arith.constant 128 : index
    %c0_21 = arith.constant 0 : index
    %30 = vector.load %arg4[%c128, %c0_21] : memref<288x16xf32, #tpu.memory_space<vmem>>, vector<32x16xf32>
    %cst_22 = arith.constant dense<0.000000e+00> : vector<512x16xf32>
    %31 = tpu.matmul %29, %30, %cst_22 {dimension_numbers = #tpu.dot_dimension_numbers<[1], [0], [0], [1], [0, 0, 1, 1], [], []>} : vector<512x32xf32>, vector<32x16xf32>, vector<512x16xf32> -> vector<512x16xf32>
    %32 = arith.addf %28, %31 : vector<512x16xf32>
    %c18 = arith.constant 18 : index
    %c0_23 = arith.constant 0 : index
    %33 = vector.load %arg0[%c18, %c0_23] : memref<546x32xf32, #tpu.memory_space<vmem>>, vector<512x32xf32>
    %c160 = arith.constant 160 : index
    %c0_24 = arith.constant 0 : index
    %34 = vector.load %arg4[%c160, %c0_24] : memref<288x16xf32, #tpu.memory_space<vmem>>, vector<32x16xf32>
    %cst_25 = arith.constant dense<0.000000e+00> : vector<512x16xf32>
    %35 = tpu.matmul %33, %34, %cst_25 {dimension_numbers = #tpu.dot_dimension_numbers<[1], [0], [0], [1], [0, 0, 1, 1], [], []>} : vector<512x32xf32>, vector<32x16xf32>, vector<512x16xf32> -> vector<512x16xf32>
    %c0_26 = arith.constant 0 : index
    %c5 = arith.constant 5 : index
    %36 = vector.load %arg2[%c0_26, %c5] : memref<512x9xf32, #tpu.memory_space<vmem>>, vector<512x1xf32>
    %37 = vector.broadcast %36 : vector<512x1xf32> to vector<512x16xf32>
    %38 = arith.mulf %35, %37 : vector<512x16xf32>
    %39 = arith.addf %32, %38 : vector<512x16xf32>
    %c32_27 = arith.constant 32 : index
    %c0_28 = arith.constant 0 : index
    %40 = vector.load %arg0[%c32_27, %c0_28] : memref<546x32xf32, #tpu.memory_space<vmem>>, vector<512x32xf32>
    %c192 = arith.constant 192 : index
    %c0_29 = arith.constant 0 : index
    %41 = vector.load %arg4[%c192, %c0_29] : memref<288x16xf32, #tpu.memory_space<vmem>>, vector<32x16xf32>
    %cst_30 = arith.constant dense<0.000000e+00> : vector<512x16xf32>
    %42 = tpu.matmul %40, %41, %cst_30 {dimension_numbers = #tpu.dot_dimension_numbers<[1], [0], [0], [1], [0, 0, 1, 1], [], []>} : vector<512x32xf32>, vector<32x16xf32>, vector<512x16xf32> -> vector<512x16xf32>
    %c0_31 = arith.constant 0 : index
    %c6 = arith.constant 6 : index
    %43 = vector.load %arg2[%c0_31, %c6] : memref<512x9xf32, #tpu.memory_space<vmem>>, vector<512x1xf32>
    %44 = vector.broadcast %43 : vector<512x1xf32> to vector<512x16xf32>
    %45 = arith.mulf %42, %44 : vector<512x16xf32>
    %46 = arith.addf %39, %45 : vector<512x16xf32>
    %c33 = arith.constant 33 : index
    %c0_32 = arith.constant 0 : index
    %47 = vector.load %arg0[%c33, %c0_32] : memref<546x32xf32, #tpu.memory_space<vmem>>, vector<512x32xf32>
    %c224 = arith.constant 224 : index
    %c0_33 = arith.constant 0 : index
    %48 = vector.load %arg4[%c224, %c0_33] : memref<288x16xf32, #tpu.memory_space<vmem>>, vector<32x16xf32>
    %cst_34 = arith.constant dense<0.000000e+00> : vector<512x16xf32>
    %49 = tpu.matmul %47, %48, %cst_34 {dimension_numbers = #tpu.dot_dimension_numbers<[1], [0], [0], [1], [0, 0, 1, 1], [], []>} : vector<512x32xf32>, vector<32x16xf32>, vector<512x16xf32> -> vector<512x16xf32>
    %c0_35 = arith.constant 0 : index
    %c7 = arith.constant 7 : index
    %50 = vector.load %arg2[%c0_35, %c7] : memref<512x9xf32, #tpu.memory_space<vmem>>, vector<512x1xf32>
    %51 = vector.broadcast %50 : vector<512x1xf32> to vector<512x16xf32>
    %52 = arith.mulf %49, %51 : vector<512x16xf32>
    %53 = arith.addf %46, %52 : vector<512x16xf32>
    %c34 = arith.constant 34 : index
    %c0_36 = arith.constant 0 : index
    %54 = vector.load %arg0[%c34, %c0_36] : memref<546x32xf32, #tpu.memory_space<vmem>>, vector<512x32xf32>
    %c256 = arith.constant 256 : index
    %c0_37 = arith.constant 0 : index
    %55 = vector.load %arg4[%c256, %c0_37] : memref<288x16xf32, #tpu.memory_space<vmem>>, vector<32x16xf32>
    %cst_38 = arith.constant dense<0.000000e+00> : vector<512x16xf32>
    %56 = tpu.matmul %54, %55, %cst_38 {dimension_numbers = #tpu.dot_dimension_numbers<[1], [0], [0], [1], [0, 0, 1, 1], [], []>} : vector<512x32xf32>, vector<32x16xf32>, vector<512x16xf32> -> vector<512x16xf32>
    %c0_39 = arith.constant 0 : index
    %c8 = arith.constant 8 : index
    %57 = vector.load %arg2[%c0_39, %c8] : memref<512x9xf32, #tpu.memory_space<vmem>>, vector<512x1xf32>
    %58 = vector.broadcast %57 : vector<512x1xf32> to vector<512x16xf32>
    %59 = arith.mulf %56, %58 : vector<512x16xf32>
    %60 = arith.addf %53, %59 : vector<512x16xf32>
    %c0_40 = arith.constant 0 : index
    %c0_41 = arith.constant 0 : index
    %61 = vector.load %arg5[%c0_40, %c0_41] : memref<1x16xf32, #tpu.memory_space<vmem>>, vector<1x16xf32>
    %62 = vector.broadcast %61 : vector<1x16xf32> to vector<512x16xf32>
    %63 = arith.addf %60, %62 : vector<512x16xf32>
    %c0_42 = arith.constant 0 : index
    %c0_43 = arith.constant 0 : index
    %64 = vector.load %arg6[%c0_42, %c0_43] : memref<1x16xf32, #tpu.memory_space<vmem>>, vector<1x16xf32>
    %c0_44 = arith.constant 0 : index
    %c0_45 = arith.constant 0 : index
    %65 = vector.load %arg7[%c0_44, %c0_45] : memref<1x16xf32, #tpu.memory_space<vmem>>, vector<1x16xf32>
    %cst_46 = arith.constant dense<0.000000e+00> : vector<16xf32>
    %66 = vector.multi_reduction <add>, %63, %cst_46 [0] : vector<512x16xf32> to vector<16xf32>
    %67 = vector.shape_cast %66 : vector<16xf32> to vector<1x16xf32>
    %cst_47 = arith.constant 5.120000e+02 : f32
    %68 = vector.broadcast %cst_47 : f32 to vector<1x16xf32>
    %69 = arith.divf %67, %68 : vector<1x16xf32>
    %70 = vector.broadcast %69 : vector<1x16xf32> to vector<512x16xf32>
    %71 = arith.subf %63, %70 : vector<512x16xf32>
    %72 = arith.mulf %71, %71 : vector<512x16xf32>
    %cst_48 = arith.constant dense<0.000000e+00> : vector<16xf32>
    %73 = vector.multi_reduction <add>, %72, %cst_48 [0] : vector<512x16xf32> to vector<16xf32>
    %74 = vector.shape_cast %73 : vector<16xf32> to vector<1x16xf32>
    %cst_49 = arith.constant 5.120000e+02 : f32
    %75 = vector.broadcast %cst_49 : f32 to vector<1x16xf32>
    %76 = arith.divf %74, %75 : vector<1x16xf32>
    %77 = vector.broadcast %69 : vector<1x16xf32> to vector<512x16xf32>
    %78 = arith.subf %63, %77 : vector<512x16xf32>
    %cst_50 = arith.constant 9.99999974E-6 : f32
    %79 = vector.broadcast %cst_50 : f32 to vector<1x16xf32>
    %80 = arith.addf %76, %79 : vector<1x16xf32>
    %81 = math.rsqrt %80 : vector<1x16xf32>
    %82 = vector.broadcast %81 : vector<1x16xf32> to vector<512x16xf32>
    %83 = arith.mulf %78, %82 : vector<512x16xf32>
    %84 = vector.broadcast %64 : vector<1x16xf32> to vector<512x16xf32>
    %85 = arith.mulf %83, %84 : vector<512x16xf32>
    %86 = vector.broadcast %65 : vector<1x16xf32> to vector<512x16xf32>
    %87 = arith.addf %85, %86 : vector<512x16xf32>
    %cst_51 = arith.constant 0.000000e+00 : f32
    %88 = vector.broadcast %cst_51 : f32 to vector<512x16xf32>
    %89 = arith.cmpf ogt, %87, %88 : vector<512x16xf32>
    %cst_52 = arith.constant 2.000000e-01 : f32
    %90 = vector.broadcast %cst_52 : f32 to vector<512x16xf32>
    %91 = arith.mulf %90, %87 : vector<512x16xf32>
    %92 = arith.select %89, %87, %91 : vector<512x16xi1>, vector<512x16xf32>
    %c0_53 = arith.constant 0 : index
    %c0_54 = arith.constant 0 : index
    %93 = vector.load %arg1[%c0_53, %c0_54] : memref<512x4xf32, #tpu.memory_space<vmem>>, vector<512x4xf32>
    %cst_55 = arith.constant dense<0.000000e+00> : vector<512xf32>
    %94 = vector.multi_reduction <add>, %93, %cst_55 [1] : vector<512x4xf32> to vector<512xf32>
    %95 = vector.shape_cast %94 : vector<512xf32> to vector<512x1xf32>
    %cst_56 = arith.constant 0.000000e+00 : f32
    %cst_57 = arith.constant 1.000000e+00 : f32
    %96 = vector.broadcast %cst_56 : f32 to vector<512x1xf32>
    %97 = arith.maximumf %96, %95 : vector<512x1xf32>
    %98 = vector.broadcast %cst_57 : f32 to vector<512x1xf32>
    %99 = arith.minimumf %98, %97 : vector<512x1xf32>
    %100 = vector.broadcast %99 : vector<512x1xf32> to vector<512x16xf32>
    %101 = arith.mulf %92, %100 : vector<512x16xf32>
    %c0_58 = arith.constant 0 : index
    %c0_59 = arith.constant 0 : index
    %102 = vector.load %arg8[%c0_58, %c0_59] : memref<20x16xf32, #tpu.memory_space<vmem>>, vector<16x16xf32>
    %cst_60 = arith.constant dense<0.000000e+00> : vector<512x16xf32>
    %103 = tpu.matmul %101, %102, %cst_60 {dimension_numbers = #tpu.dot_dimension_numbers<[1], [0], [0], [1], [0, 0, 1, 1], [], []>} : vector<512x16xf32>, vector<16x16xf32>, vector<512x16xf32> -> vector<512x16xf32>
    %c16_61 = arith.constant 16 : index
    %c0_62 = arith.constant 0 : index
    %104 = vector.load %arg8[%c16_61, %c0_62] : memref<20x16xf32, #tpu.memory_space<vmem>>, vector<4x16xf32>
    %cst_63 = arith.constant dense<0.000000e+00> : vector<512x16xf32>
    %105 = tpu.matmul %93, %104, %cst_63 {dimension_numbers = #tpu.dot_dimension_numbers<[1], [0], [0], [1], [0, 0, 1, 1], [], []>} : vector<512x4xf32>, vector<4x16xf32>, vector<512x16xf32> -> vector<512x16xf32>
    %106 = arith.addf %103, %105 : vector<512x16xf32>
    %c0_64 = arith.constant 0 : index
    %c0_65 = arith.constant 0 : index
    %107 = vector.load %arg9[%c0_64, %c0_65] : memref<1x16xf32, #tpu.memory_space<vmem>>, vector<1x16xf32>
    %108 = vector.broadcast %107 : vector<1x16xf32> to vector<512x16xf32>
    %109 = arith.addf %106, %108 : vector<512x16xf32>
    %c0_66 = arith.constant 0 : index
    %c0_67 = arith.constant 0 : index
    %110 = vector.load %arg10[%c0_66, %c0_67] : memref<1x16xf32, #tpu.memory_space<vmem>>, vector<1x16xf32>
    %c0_68 = arith.constant 0 : index
    %c0_69 = arith.constant 0 : index
    %111 = vector.load %arg11[%c0_68, %c0_69] : memref<1x16xf32, #tpu.memory_space<vmem>>, vector<1x16xf32>
    %cst_70 = arith.constant dense<0.000000e+00> : vector<16xf32>
    %112 = vector.multi_reduction <add>, %109, %cst_70 [0] : vector<512x16xf32> to vector<16xf32>
    %113 = vector.shape_cast %112 : vector<16xf32> to vector<1x16xf32>
    %cst_71 = arith.constant 5.120000e+02 : f32
    %114 = vector.broadcast %cst_71 : f32 to vector<1x16xf32>
    %115 = arith.divf %113, %114 : vector<1x16xf32>
    %116 = vector.broadcast %115 : vector<1x16xf32> to vector<512x16xf32>
    %117 = arith.subf %109, %116 : vector<512x16xf32>
    %118 = arith.mulf %117, %117 : vector<512x16xf32>
    %cst_72 = arith.constant dense<0.000000e+00> : vector<16xf32>
    %119 = vector.multi_reduction <add>, %118, %cst_72 [0] : vector<512x16xf32> to vector<16xf32>
    %120 = vector.shape_cast %119 : vector<16xf32> to vector<1x16xf32>
    %cst_73 = arith.constant 5.120000e+02 : f32
    %121 = vector.broadcast %cst_73 : f32 to vector<1x16xf32>
    %122 = arith.divf %120, %121 : vector<1x16xf32>
    %123 = vector.broadcast %115 : vector<1x16xf32> to vector<512x16xf32>
    %124 = arith.subf %109, %123 : vector<512x16xf32>
    %cst_74 = arith.constant 9.99999974E-6 : f32
    %125 = vector.broadcast %cst_74 : f32 to vector<1x16xf32>
    %126 = arith.addf %122, %125 : vector<1x16xf32>
    %127 = math.rsqrt %126 : vector<1x16xf32>
    %128 = vector.broadcast %127 : vector<1x16xf32> to vector<512x16xf32>
    %129 = arith.mulf %124, %128 : vector<512x16xf32>
    %130 = vector.broadcast %110 : vector<1x16xf32> to vector<512x16xf32>
    %131 = arith.mulf %129, %130 : vector<512x16xf32>
    %132 = vector.broadcast %111 : vector<1x16xf32> to vector<512x16xf32>
    %133 = arith.addf %131, %132 : vector<512x16xf32>
    %cst_75 = arith.constant 0.000000e+00 : f32
    %134 = vector.broadcast %cst_75 : f32 to vector<512x16xf32>
    %135 = arith.cmpf ogt, %133, %134 : vector<512x16xf32>
    %cst_76 = arith.constant 2.000000e-01 : f32
    %136 = vector.broadcast %cst_76 : f32 to vector<512x16xf32>
    %137 = arith.mulf %136, %133 : vector<512x16xf32>
    %138 = arith.select %135, %133, %137 : vector<512x16xi1>, vector<512x16xf32>
    %cst_77 = arith.constant 0.000000e+00 : f32
    %139 = vector.broadcast %cst_77 : f32 to vector<2x8xf32>
    %c0_78 = arith.constant 0 : index
    %c0_79 = arith.constant 0 : index
    %140 = vector.load %arg3[%c0_78, %c0_79] : memref<8x512xf32, #tpu.memory_space<vmem>>, vector<2x512xf32>
    %cst_80 = arith.constant dense<0.000000e+00> : vector<2x16xf32>
    %141 = tpu.matmul %140, %138, %cst_80 {dimension_numbers = #tpu.dot_dimension_numbers<[1], [0], [0], [1], [0, 0, 1, 1], [], []>} : vector<2x512xf32>, vector<512x16xf32>, vector<2x16xf32> -> vector<2x16xf32>
    %c0_81 = arith.constant 0 : index
    %c0_82 = arith.constant 0 : index
    %142 = vector.load %arg12[%c0_81, %c0_82] : memref<64x8xf32, #tpu.memory_space<vmem>>, vector<16x8xf32>
    %cst_83 = arith.constant dense<0.000000e+00> : vector<2x8xf32>
    %143 = tpu.matmul %141, %142, %cst_83 {dimension_numbers = #tpu.dot_dimension_numbers<[1], [0], [0], [1], [0, 0, 1, 1], [], []>} : vector<2x16xf32>, vector<16x8xf32>, vector<2x8xf32> -> vector<2x8xf32>
    %144 = arith.addf %139, %143 : vector<2x8xf32>
    %c2_84 = arith.constant 2 : index
    %c0_85 = arith.constant 0 : index
    %145 = vector.load %arg3[%c2_84, %c0_85] : memref<8x512xf32, #tpu.memory_space<vmem>>, vector<2x512xf32>
    %cst_86 = arith.constant dense<0.000000e+00> : vector<2x16xf32>
    %146 = tpu.matmul %145, %138, %cst_86 {dimension_numbers = #tpu.dot_dimension_numbers<[1], [0], [0], [1], [0, 0, 1, 1], [], []>} : vector<2x512xf32>, vector<512x16xf32>, vector<2x16xf32> -> vector<2x16xf32>
    %c16_87 = arith.constant 16 : index
    %c0_88 = arith.constant 0 : index
    %147 = vector.load %arg12[%c16_87, %c0_88] : memref<64x8xf32, #tpu.memory_space<vmem>>, vector<16x8xf32>
    %cst_89 = arith.constant dense<0.000000e+00> : vector<2x8xf32>
    %148 = tpu.matmul %146, %147, %cst_89 {dimension_numbers = #tpu.dot_dimension_numbers<[1], [0], [0], [1], [0, 0, 1, 1], [], []>} : vector<2x16xf32>, vector<16x8xf32>, vector<2x8xf32> -> vector<2x8xf32>
    %149 = arith.addf %144, %148 : vector<2x8xf32>
    %c4 = arith.constant 4 : index
    %c0_90 = arith.constant 0 : index
    %150 = vector.load %arg3[%c4, %c0_90] : memref<8x512xf32, #tpu.memory_space<vmem>>, vector<2x512xf32>
    %cst_91 = arith.constant dense<0.000000e+00> : vector<2x16xf32>
    %151 = tpu.matmul %150, %138, %cst_91 {dimension_numbers = #tpu.dot_dimension_numbers<[1], [0], [0], [1], [0, 0, 1, 1], [], []>} : vector<2x512xf32>, vector<512x16xf32>, vector<2x16xf32> -> vector<2x16xf32>
    %c32_92 = arith.constant 32 : index
    %c0_93 = arith.constant 0 : index
    %152 = vector.load %arg12[%c32_92, %c0_93] : memref<64x8xf32, #tpu.memory_space<vmem>>, vector<16x8xf32>
    %cst_94 = arith.constant dense<0.000000e+00> : vector<2x8xf32>
    %153 = tpu.matmul %151, %152, %cst_94 {dimension_numbers = #tpu.dot_dimension_numbers<[1], [0], [0], [1], [0, 0, 1, 1], [], []>} : vector<2x16xf32>, vector<16x8xf32>, vector<2x8xf32> -> vector<2x8xf32>
    %154 = arith.addf %149, %153 : vector<2x8xf32>
    %c6_95 = arith.constant 6 : index
    %c0_96 = arith.constant 0 : index
    %155 = vector.load %arg3[%c6_95, %c0_96] : memref<8x512xf32, #tpu.memory_space<vmem>>, vector<2x512xf32>
    %cst_97 = arith.constant dense<0.000000e+00> : vector<2x16xf32>
    %156 = tpu.matmul %155, %138, %cst_97 {dimension_numbers = #tpu.dot_dimension_numbers<[1], [0], [0], [1], [0, 0, 1, 1], [], []>} : vector<2x512xf32>, vector<512x16xf32>, vector<2x16xf32> -> vector<2x16xf32>
    %c48 = arith.constant 48 : index
    %c0_98 = arith.constant 0 : index
    %157 = vector.load %arg12[%c48, %c0_98] : memref<64x8xf32, #tpu.memory_space<vmem>>, vector<16x8xf32>
    %cst_99 = arith.constant dense<0.000000e+00> : vector<2x8xf32>
    %158 = tpu.matmul %156, %157, %cst_99 {dimension_numbers = #tpu.dot_dimension_numbers<[1], [0], [0], [1], [0, 0, 1, 1], [], []>} : vector<2x16xf32>, vector<16x8xf32>, vector<2x8xf32> -> vector<2x8xf32>
    %159 = arith.addf %154, %158 : vector<2x8xf32>
    %cst_100 = arith.constant 0.00444444455 : f32
    %160 = vector.broadcast %cst_100 : f32 to vector<2x8xf32>
    %161 = arith.mulf %159, %160 : vector<2x8xf32>
    %c0_101 = arith.constant 0 : index
    %c0_102 = arith.constant 0 : index
    %162 = vector.load %arg13[%c0_101, %c0_102] : memref<1x8xf32, #tpu.memory_space<vmem>>, vector<1x8xf32>
    %163 = vector.broadcast %162 : vector<1x8xf32> to vector<2x8xf32>
    %164 = arith.addf %161, %163 : vector<2x8xf32>
    %cst_103 = arith.constant 0.000000e+00 : f32
    %165 = vector.broadcast %cst_103 : f32 to vector<2x8xf32>
    %166 = arith.cmpf ogt, %164, %165 : vector<2x8xf32>
    %cst_104 = arith.constant 2.000000e-01 : f32
    %167 = vector.broadcast %cst_104 : f32 to vector<2x8xf32>
    %168 = arith.mulf %167, %164 : vector<2x8xf32>
    %169 = arith.select %166, %164, %168 : vector<2x8xi1>, vector<2x8xf32>
    %c0_105 = arith.constant 0 : index
    %c0_106 = arith.constant 0 : index
    %170 = vector.load %arg14[%c0_105, %c0_106] : memref<2x8xf32, #tpu.memory_space<vmem>>, vector<2x8xf32>
    tpu.vector_store %arg14[%c0_105, %c0_106], %169 {strides = array<i32>} : memref<2x8xf32, #tpu.memory_space<vmem>>, vector<2x8xf32>,
    return
  }
}

</mosaic_0001>

<llo_original>
// kernel: regiond_forward.1
$region0: #{regiond_forward.1}
  #allocation0 [shape = 'u32[]', space=smem, size = 0x4, offset = 0x4, fixed_abs, tag = 'smem constant byte address 0x4 - core index']
  #allocation1 [shape = 'u32[144,128]{1,0:T(1,128)}', space=vmem, size = 0x12000, scoped, tag = 'internal scratch']
  %s0 = inlined_call_operand.vmem [shape: f32[546,32], index: 0, kind: input, shape index: {}]
  %s1 = inlined_call_operand.vmem [shape: f32[512,4], index: 1, kind: input, shape index: {}]
  %s2 = inlined_call_operand.vmem [shape: f32[512,9], index: 2, kind: input, shape index: {}]
  %s3 = inlined_call_operand.vmem [shape: f32[8,512], index: 3, kind: input, shape index: {}]
  %s4 = inlined_call_operand.vmem [shape: f32[288,16], index: 4, kind: input, shape index: {}]
  %s5 = inlined_call_operand.vmem [shape: f32[1,16], index: 5, kind: input, shape index: {}]
  %s6 = inlined_call_operand.vmem [shape: f32[1,16], index: 6, kind: input, shape index: {}]
  %s7 = inlined_call_operand.vmem [shape: f32[1,16], index: 7, kind: input, shape index: {}]
  %s8 = inlined_call_operand.vmem [shape: f32[20,16], index: 8, kind: input, shape index: {}]
  %s9 = inlined_call_operand.vmem [shape: f32[1,16], index: 9, kind: input, shape index: {}]
  %s10 = inlined_call_operand.vmem [shape: f32[1,16], index: 10, kind: input, shape index: {}]
  %s11 = inlined_call_operand.vmem [shape: f32[1,16], index: 11, kind: input, shape index: {}]
  %s12 = inlined_call_operand.vmem [shape: f32[64,8], index: 12, kind: input, shape index: {}]
  %s13 = inlined_call_operand.vmem [shape: f32[1,8], index: 13, kind: input, shape index: {}]
  %s14 = inlined_call_operand.hbm [shape: f32[2,8], index: 14, kind: output, shape index: {}]
  %s15 = sld [smem:[#allocation0]]
  $region66: #{regiond_forward.1} parent=0
    _
  %s17 = ssub.s32 1, %s15
  %s18 = scalar_select 0, %s17, %s15
  $region1: #{regiond_forward.1} parent=0
    #allocation2 [shape = 'u8[1024]{0}', space=vmem, size = 0x400, scoped, tag = 'output window, operand 0, single buffered']
    #allocation3 [shape = 's32[1]{0}', space=sflag, size = 0x4, scoped, tag = 'scoped memory for regiond_forward.1']
    %19 = vsyncpa [#allocation3], 0
    // Predicated region
    $region2: #{regiond_forward.1} parent=1 // pred_check
      _
    $region3: #{regiond_forward.1} parent=1 // pred_check_branch
      %21 = sbr.rel (0) target = $region5
    $region4: #{regiond_forward.1} parent=1 // pred_region
      _
    $region5: #{regiond_forward.1} parent=1 // pred_fallthru
      _
    // Predicated region
    $region6: #{regiond_forward.1} parent=1 // pred_check
      _
    $region7: #{regiond_forward.1} parent=1 // pred_check_branch
      %23 = sbr.rel (0) target = $region9
    $region8: #{regiond_forward.1} parent=1 // pred_region
      _
    $region9: #{regiond_forward.1} parent=1 // pred_fallthru
      _
    // Predicated region
    $region10: #{regiond_forward.1} parent=1 // pred_check
      _
    $region11: #{regiond_forward.1} parent=1 // pred_check_branch
      %25 = sbr.rel (0) target = $region13
    $region12: #{regiond_forward.1} parent=1 // pred_region
      _
    $region13: #{regiond_forward.1} parent=1 // pred_fallthru
      _
    // Predicated region
    $region14: #{regiond_forward.1} parent=1 // pred_check
      _
    $region15: #{regiond_forward.1} parent=1 // pred_check_branch
      %27 = sbr.rel (0) target = $region17
    $region16: #{regiond_forward.1} parent=1 // pred_region
      _
    $region17: #{regiond_forward.1} parent=1 // pred_fallthru
      _
    // Predicated region
    $region18: #{regiond_forward.1} parent=1 // pred_check
      _
    $region19: #{regiond_forward.1} parent=1 // pred_check_branch
      %29 = sbr.rel (0) target = $region21
    $region20: #{regiond_forward.1} parent=1 // pred_region
      _
    $region21: #{regiond_forward.1} parent=1 // pred_fallthru
      _
    // Predicated region
    $region22: #{regiond_forward.1} parent=1 // pred_check
      _
    $region23: #{regiond_forward.1} parent=1 // pred_check_branch
      %31 = sbr.rel (0) target = $region25
    $region24: #{regiond_forward.1} parent=1 // pred_region
      _
    $region25: #{regiond_forward.1} parent=1 // pred_fallthru
      _
    // Predicated region
    $region26: #{regiond_forward.1} parent=1 // pred_check
      _
    $region27: #{regiond_forward.1} parent=1 // pred_check_branch
      %33 = sbr.rel (0) target = $region29
    $region28: #{regiond_forward.1} parent=1 // pred_region
      _
    $region29: #{regiond_forward.1} parent=1 // pred_fallthru
      _
    // Predicated region
    $region30: #{regiond_forward.1} parent=1 // pred_check
      _
    $region31: #{regiond_forward.1} parent=1 // pred_check_branch
      %35 = sbr.rel (0) target = $region33
    $region32: #{regiond_forward.1} parent=1 // pred_region
      _
    $region33: #{regiond_forward.1} parent=1 // pred_fallthru
      _
    // Predicated region
    $region34: #{regiond_forward.1} parent=1 // pred_check
      _
    $region35: #{regiond_forward.1} parent=1 // pred_check_branch
      %37 = sbr.rel (0) target = $region37
    $region36: #{regiond_forward.1} parent=1 // pred_region
      _
    $region37: #{regiond_forward.1} parent=1 // pred_fallthru
      _
    // Predicated region
    $region38: #{regiond_forward.1} parent=1 // pred_check
      _
    $region39: #{regiond_forward.1} parent=1 // pred_check_branch
      %39 = sbr.rel (0) target = $region41
    $region40: #{regiond_forward.1} parent=1 // pred_region
      _
    $region41: #{regiond_forward.1} parent=1 // pred_fallthru
      _
    // Predicated region
    $region42: #{regiond_forward.1} parent=1 // pred_check
      _
    $region43: #{regiond_forward.1} parent=1 // pred_check_branch
      %41 = sbr.rel (0) target = $region45
    $region44: #{regiond_forward.1} parent=1 // pred_region
      _
    $region45: #{regiond_forward.1} parent=1 // pred_fallthru
      _
    // Predicated region
    $region46: #{regiond_forward.1} parent=1 // pred_check
      _
    $region47: #{regiond_forward.1} parent=1 // pred_check_branch
      %43 = sbr.rel (0) target = $region49
    $region48: #{regiond_forward.1} parent=1 // pred_region
      _
    $region49: #{regiond_forward.1} parent=1 // pred_fallthru
      _
    // Predicated region
    $region50: #{regiond_forward.1} parent=1 // pred_check
      _
    $region51: #{regiond_forward.1} parent=1 // pred_check_branch
      %45 = sbr.rel (0) target = $region53
    $region52: #{regiond_forward.1} parent=1 // pred_region
      _
    $region53: #{regiond_forward.1} parent=1 // pred_fallthru
      _
    // Predicated region
    $region54: #{regiond_forward.1} parent=1 // pred_check
      _
    $region55: #{regiond_forward.1} parent=1 // pred_check_branch
      %47 = sbr.rel (0) target = $region57
    $region56: #{regiond_forward.1} parent=1 // pred_region
      _
    $region57: #{regiond_forward.1} parent=1 // pred_fallthru
      _
    %v48 = vld [vmem:[%s0] sm:$0xff]
    %v49 = vld [vmem:[%s0 + $0x8] sm:$0xff]
    %v50 = vld [vmem:[%s0 + $0x10] sm:$0xff]
    %v51 = vld [vmem:[%s0 + $0x18] sm:$0xff]
    %v52 = vld [vmem:[%s0 + $0x20] sm:$0xff]
    %v53 = vld [vmem:[%s0 + $0x28] sm:$0xff]
    %v54 = vld [vmem:[%s0 + $0x30] sm:$0xff]
    %v55 = vld [vmem:[%s0 + $0x38] sm:$0xff]
    %v56 = vld [vmem:[%s0 + $0x40] sm:$0xff]
    %v57 = vld [vmem:[%s0 + $0x48] sm:$0xff]
    %v58 = vld [vmem:[%s0 + $0x50] sm:$0xff]
    %v59 = vld [vmem:[%s0 + $0x58] sm:$0xff]
    %v60 = vld [vmem:[%s0 + $0x60] sm:$0xff]
    %v61 = vld [vmem:[%s0 + $0x68] sm:$0xff]
    %v62 = vld [vmem:[%s0 + $0x70] sm:$0xff]
    %v63 = vld [vmem:[%s0 + $0x78] sm:$0xff]
    %v64 = vld [vmem:[%s0 + $0x80] sm:$0xff]
    %v65 = vld [vmem:[%s0 + $0x88] sm:$0xff]
    %v66 = vld [vmem:[%s0 + $0x90] sm:$0xff]
    %v67 = vld [vmem:[%s0 + $0x98] sm:$0xff]
    %v68 = vld [vmem:[%s0 + $0xa0] sm:$0xff]
    %v69 = vld [vmem:[%s0 + $0xa8] sm:$0xff]
    %v70 = vld [vmem:[%s0 + $0xb0] sm:$0xff]
    %v71 = vld [vmem:[%s0 + $0xb8] sm:$0xff]
    %v72 = vld [vmem:[%s0 + $0xc0] sm:$0xff]
    %v73 = vld [vmem:[%s0 + $0xc8] sm:$0xff]
    %v74 = vld [vmem:[%s0 + $0xd0] sm:$0xff]
    %v75 = vld [vmem:[%s0 + $0xd8] sm:$0xff]
    %v76 = vld [vmem:[%s0 + $0xe0] sm:$0xff]
    %v77 = vld [vmem:[%s0 + $0xe8] sm:$0xff]
    %v78 = vld [vmem:[%s0 + $0xf0] sm:$0xff]
    %v79 = vld [vmem:[%s0 + $0xf8] sm:$0xff]
    %v80 = vld [vmem:[%s0 + $0x100] sm:$0xff]
    %v81 = vld [vmem:[%s0 + $0x108] sm:$0xff]
    %v82 = vld [vmem:[%s0 + $0x110] sm:$0xff]
    %v83 = vld [vmem:[%s0 + $0x118] sm:$0xff]
    %v84 = vld [vmem:[%s0 + $0x120] sm:$0xff]
    %v85 = vld [vmem:[%s0 + $0x128] sm:$0xff]
    %v86 = vld [vmem:[%s0 + $0x130] sm:$0xff]
    %v87 = vld [vmem:[%s0 + $0x138] sm:$0xff]
    %v88 = vld [vmem:[%s0 + $0x140] sm:$0xff]
    %v89 = vld [vmem:[%s0 + $0x148] sm:$0xff]
    %v90 = vld [vmem:[%s0 + $0x150] sm:$0xff]
    %v91 = vld [vmem:[%s0 + $0x158] sm:$0xff]
    %v92 = vld [vmem:[%s0 + $0x160] sm:$0xff]
    %v93 = vld [vmem:[%s0 + $0x168] sm:$0xff]
    %v94 = vld [vmem:[%s0 + $0x170] sm:$0xff]
    %v95 = vld [vmem:[%s0 + $0x178] sm:$0xff]
    %v96 = vld [vmem:[%s0 + $0x180] sm:$0xff]
    %v97 = vld [vmem:[%s0 + $0x188] sm:$0xff]
    %v98 = vld [vmem:[%s0 + $0x190] sm:$0xff]
    %v99 = vld [vmem:[%s0 + $0x198] sm:$0xff]
    %v100 = vld [vmem:[%s0 + $0x1a0] sm:$0xff]
    %v101 = vld [vmem:[%s0 + $0x1a8] sm:$0xff]
    %v102 = vld [vmem:[%s0 + $0x1b0] sm:$0xff]
    %v103 = vld [vmem:[%s0 + $0x1b8] sm:$0xff]
    %v104 = vld [vmem:[%s0 + $0x1c0] sm:$0xff]
    %v105 = vld [vmem:[%s0 + $0x1c8] sm:$0xff]
    %v106 = vld [vmem:[%s0 + $0x1d0] sm:$0xff]
    %v107 = vld [vmem:[%s0 + $0x1d8] sm:$0xff]
    %v108 = vld [vmem:[%s0 + $0x1e0] sm:$0xff]
    %v109 = vld [vmem:[%s0 + $0x1e8] sm:$0xff]
    %v110 = vld [vmem:[%s0 + $0x1f0] sm:$0xff]
    %v111 = vld [vmem:[%s0 + $0x1f8] sm:$0xff]
    %v112 = vld [vmem:[%s4] sm:$0xff]
    %v113 = vld [vmem:[%s4 + $0x8] sm:$0xff]
    %v114 = vld [vmem:[%s4 + $0x10] sm:$0xff]
    %v115 = vld [vmem:[%s4 + $0x18] sm:$0xff]
    %vm116 = vcmask 261120
    %v118 = vsel %vm116, %v48, 0
    %v121 = vsel %vm116, %v49, 0
    %v124 = vsel %vm116, %v50, 0
    %v127 = vsel %vm116, %v51, 0
    %v130 = vsel %vm116, %v52, 0
    %v133 = vsel %vm116, %v53, 0
    %v136 = vsel %vm116, %v54, 0
    %v139 = vsel %vm116, %v55, 0
    %v142 = vsel %vm116, %v56, 0
    %v145 = vsel %vm116, %v57, 0
    %v148 = vsel %vm116, %v58, 0
    %v151 = vsel %vm116, %v59, 0
    %v154 = vsel %vm116, %v60, 0
    %v157 = vsel %vm116, %v61, 0
    %v160 = vsel %vm116, %v62, 0
    %v163 = vsel %vm116, %v63, 0
    %v166 = vsel %vm116, %v64, 0
    %v169 = vsel %vm116, %v65, 0
    %v172 = vsel %vm116, %v66, 0
    %v175 = vsel %vm116, %v67, 0
    %v178 = vsel %vm116, %v68, 0
    %v181 = vsel %vm116, %v69, 0
    %v184 = vsel %vm116, %v70, 0
    %v187 = vsel %vm116, %v71, 0
    %v190 = vsel %vm116, %v72, 0
    %v193 = vsel %vm116, %v73, 0
    %v196 = vsel %vm116, %v74, 0
    %v199 = vsel %vm116, %v75, 0
    %v202 = vsel %vm116, %v76, 0
    %v205 = vsel %vm116, %v77, 0
    %v208 = vsel %vm116, %v78, 0
    %v211 = vsel %vm116, %v79, 0
    %v214 = vsel %vm116, %v80, 0
    %v217 = vsel %vm116, %v81, 0
    %v220 = vsel %vm116, %v82, 0
    %v223 = vsel %vm116, %v83, 0
    %v226 = vsel %vm116, %v84, 0
    %v229 = vsel %vm116, %v85, 0
    %v232 = vsel %vm116, %v86, 0
    %v235 = vsel %vm116, %v87, 0
    %v238 = vsel %vm116, %v88, 0
    %v241 = vsel %vm116, %v89, 0
    %v244 = vsel %vm116, %v90, 0
    %v247 = vsel %vm116, %v91, 0
    %v250 = vsel %vm116, %v92, 0
    %v253 = vsel %vm116, %v93, 0
    %v256 = vsel %vm116, %v94, 0
    %v259 = vsel %vm116, %v95, 0
    %v262 = vsel %vm116, %v96, 0
    %v265 = vsel %vm116, %v97, 0
    %v268 = vsel %vm116, %v98, 0
    %v271 = vsel %vm116, %v99, 0
    %v274 = vsel %vm116, %v100, 0
    %v277 = vsel %vm116, %v101, 0
    %v280 = vsel %vm116, %v102, 0
    %v283 = vsel %vm116, %v103, 0
    %v286 = vsel %vm116, %v104, 0
    %v289 = vsel %vm116, %v105, 0
    %v292 = vsel %vm116, %v106, 0
    %v295 = vsel %vm116, %v107, 0
    %v298 = vsel %vm116, %v108, 0
    %v301 = vsel %vm116, %v109, 0
    %v304 = vsel %vm116, %v110, 0
    %v307 = vsel %vm116, %v111, 0
    %309 = vmatprep.subr.mxu0 0.0
    %310 = vmatpush1.msra.mxu0 0.0
    %311 = vmatprep.subr.mxu0 0.0
    %312 = vmatpush1.msra.mxu0 0.0
    %313 = vmatprep.subr.mxu0 0.0
    %314 = vmatpush1.msra.mxu0 0.0
    %315 = vmatprep.subr.mxu0 0.0
    %316 = vmatpush1.msra.mxu0 0.0
    %317 = vmatprep.subr.mxu0 0.0
    %318 = vmatpush1.msra.mxu0 0.0
    %319 = vmatprep.subr.mxu0 0.0
    %320 = vmatpush1.msra.mxu0 0.0
    %321 = vmatprep.subr.mxu0 0.0
    %322 = vmatpush1.msra.mxu0 0.0
    %323 = vmatprep.subr.mxu0 0.0
    %324 = vmatpush1.msra.mxu0 0.0
    %325 = vmatprep.subr.mxu0 0.0
    %326 = vmatpush1.msra.mxu0 0.0
    %327 = vmatprep.subr.mxu0 0.0
    %328 = vmatpush1.msra.mxu0 0.0
    %329 = vmatprep.subr.mxu0 0.0
    %330 = vmatpush1.msra.mxu0 0.0
    %331 = vmatprep.subr.mxu0 0.0
    %332 = vmatpush1.msra.mxu0 0.0
    %333 = vmatprep.subr.mxu0 0.0
    %334 = vmatpush1.msra.mxu0 %v115
    %335 = vmatprep.subr.mxu0 0.0
    %336 = vmatpush1.msra.mxu0 %v114
    %337 = vmatprep.subr.mxu0 0.0
    %338 = vmatpush1.msra.mxu0 %v113
    %339 = vmatprep.subr.mxu0 0.0
    %340 = vmatpush1.msra.mxu0 %v112
    %341 = vmatprep.subr.mxu0 0.0
    %342 = vmatpush2.msra.mxu0 0.0
    %343 = vmatprep.subr.mxu0 0.0
    %344 = vmatpush2.msra.mxu0 0.0
    %345 = vmatprep.subr.mxu0 0.0
    %346 = vmatpush2.msra.mxu0 0.0
    %347 = vmatprep.subr.mxu0 0.0
    %348 = vmatpush2.msra.mxu0 0.0
    %349 = vmatprep.subr.mxu0 0.0
    %350 = vmatpush2.msra.mxu0 0.0
    %351 = vmatprep.subr.mxu0 0.0
    %352 = vmatpush2.msra.mxu0 0.0
    %353 = vmatprep.subr.mxu0 0.0
    %354 = vmatpush2.msra.mxu0 0.0
    %355 = vmatprep.subr.mxu0 0.0
    %356 = vmatpush2.msra.mxu0 0.0
    %357 = vmatprep.subr.mxu0 0.0
    %358 = vmatpush2.msra.mxu0 0.0
    %359 = vmatprep.subr.mxu0 0.0
    %360 = vmatpush2.msra.mxu0 0.0
    %361 = vmatprep.subr.mxu0 0.0
    %362 = vmatpush2.msra.mxu0 0.0
    %363 = vmatprep.subr.mxu0 0.0
    %364 = vmatpush2.msra.mxu0 0.0
    %365 = vmatprep.subr.mxu0 0.0
    %366 = vmatpush2.msra.mxu0 0.0
    %367 = vmatprep.subr.mxu0 0.0
    %368 = vmatpush2.msra.mxu0 0.0
    %369 = vmatprep.subr.mxu0 0.0
    %370 = vmatpush2.msra.mxu0 0.0
    %371 = vmatprep.subr.mxu0 0.0
    %372 = vmatpush2.msra.mxu0 0.0
    %373 = vmatprep.mubr.f32.mxu0 0.0
    %374 = vmatmul.mubr.f32.gmra.mxu0 %v118
    %v375 = vpop.f32.mrf.mxu0
    %v376 = vadd.f32 0.0, %v375
    %v377 = vpop.f32.mrf.mxu0
    %378 = vmatprep.mubr.f32.mxu0 0.0
    %379 = vmatmul.mubr.f32.gmra.mxu0 %v121
    %v380 = vpop.f32.mrf.mxu0
    %v381 = vadd.f32 0.0, %v380
    %v382 = vpop.f32.mrf.mxu0
    %383 = vmatprep.mubr.f32.mxu0 0.0
    %384 = vmatmul.mubr.f32.gmra.mxu0 %v124
    %v385 = vpop.f32.mrf.mxu0
    %v386 = vadd.f32 0.0, %v385
    %v387 = vpop.f32.mrf.mxu0
    %388 = vmatprep.mubr.f32.mxu0 0.0
    %389 = vmatmul.mubr.f32.gmra.mxu0 %v127
    %v390 = vpop.f32.mrf.mxu0
    %v391 = vadd.f32 0.0, %v390
    %v392 = vpop.f32.mrf.mxu0
    %393 = vmatprep.mubr.f32.mxu0 0.0
    %394 = vmatmul.mubr.f32.gmra.mxu0 %v130
    %v395 = vpop.f32.mrf.mxu0
    %v396 = vadd.f32 0.0, %v395
    %v397 = vpop.f32.mrf.mxu0
    %398 = vmatprep.mubr.f32.mxu0 0.0
    %399 = vmatmul.mubr.f32.gmra.mxu0 %v133
    %v400 = vpop.f32.mrf.mxu0
    %v401 = vadd.f32 0.0, %v400
    %v402 = vpop.f32.mrf.mxu0
    %403 = vmatprep.mubr.f32.mxu0 0.0
    %404 = vmatmul.mubr.f32.gmra.mxu0 %v136
    %v405 = vpop.f32.mrf.mxu0
    %v406 = vadd.f32 0.0, %v405
    %v407 = vpop.f32.mrf.mxu0
    %408 = vmatprep.mubr.f32.mxu0 0.0
    %409 = vmatmul.mubr.f32.gmra.mxu0 %v139
    %v410 = vpop.f32.mrf.mxu0
    %v411 = vadd.f32 0.0, %v410
    %v412 = vpop.f32.mrf.mxu0
    %413 = vmatprep.mubr.f32.mxu0 0.0
    %414 = vmatmul.mubr.f32.gmra.mxu0 %v142
    %v415 = vpop.f32.mrf.mxu0
    %v416 = vadd.f32 0.0, %v415
    %v417 = vpop.f32.mrf.mxu0
    %418 = vmatprep.mubr.f32.mxu0 0.0
    %419 = vmatmul.mubr.f32.gmra.mxu0 %v145
    %v420 = vpop.f32.mrf.mxu0
    %v421 = vadd.f32 0.0, %v420
    %v422 = vpop.f32.mrf.mxu0
    %423 = vmatprep.mubr.f32.mxu0 0.0
    %424 = vmatmul.mubr.f32.gmra.mxu0 %v148
    %v425 = vpop.f32.mrf.mxu0
    %v426 = vadd.f32 0.0, %v425
    %v427 = vpop.f32.mrf.mxu0
    %428 = vmatprep.mubr.f32.mxu0 0.0
    %429 = vmatmul.mubr.f32.gmra.mxu0 %v151
    %v430 = vpop.f32.mrf.mxu0
    %v431 = vadd.f32 0.0, %v430
    %v432 = vpop.f32.mrf.mxu0
    %433 = vmatprep.mubr.f32.mxu0 0.0
    %434 = vmatmul.mubr.f32.gmra.mxu0 %v154
    %v435 = vpop.f32.mrf.mxu0
    %v436 = vadd.f32 0.0, %v435
    %v437 = vpop.f32.mrf.mxu0
    %438 = vmatprep.mubr.f32.mxu0 0.0
    %439 = vmatmul.mubr.f32.gmra.mxu0 %v157
    %v440 = vpop.f32.mrf.mxu0
    %v441 = vadd.f32 0.0, %v440
    %v442 = vpop.f32.mrf.mxu0
    %443 = vmatprep.mubr.f32.mxu0 0.0
    %444 = vmatmul.mubr.f32.gmra.mxu0 %v160
    %v445 = vpop.f32.mrf.mxu0
    %v446 = vadd.f32 0.0, %v445
    %v447 = vpop.f32.mrf.mxu0
    %448 = vmatprep.mubr.f32.mxu0 0.0
    %449 = vmatmul.mubr.f32.gmra.mxu0 %v163
    %v450 = vpop.f32.mrf.mxu0
    %v451 = vadd.f32 0.0, %v450
    %v452 = vpop.f32.mrf.mxu0
    %453 = vmatprep.mubr.f32.mxu0 0.0
    %454 = vmatmul.mubr.f32.gmra.mxu0 %v166
    %v455 = vpop.f32.mrf.mxu0
    %v456 = vadd.f32 0.0, %v455
    %v457 = vpop.f32.mrf.mxu0
    %458 = vmatprep.mubr.f32.mxu0 0.0
    %459 = vmatmul.mubr.f32.gmra.mxu0 %v169
    %v460 = vpop.f32.mrf.mxu0
    %v461 = vadd.f32 0.0, %v460
    %v462 = vpop.f32.mrf.mxu0
    %463 = vmatprep.mubr.f32.mxu0 0.0
    %464 = vmatmul.mubr.f32.gmra.mxu0 %v172
    %v465 = vpop.f32.mrf.mxu0
    %v466 = vadd.f32 0.0, %v465
    %v467 = vpop.f32.mrf.mxu0
    %468 = vmatprep.mubr.f32.mxu0 0.0
    %469 = vmatmul.mubr.f32.gmra.mxu0 %v175
    %v470 = vpop.f32.mrf.mxu0
    %v471 = vadd.f32 0.0, %v470
    %v472 = vpop.f32.mrf.mxu0
    %473 = vmatprep.mubr.f32.mxu0 0.0
    %474 = vmatmul.mubr.f32.gmra.mxu0 %v178
    %v475 = vpop.f32.mrf.mxu0
    %v476 = vadd.f32 0.0, %v475
    %v477 = vpop.f32.mrf.mxu0
    %478 = vmatprep.mubr.f32.mxu0 0.0
    %479 = vmatmul.mubr.f32.gmra.mxu0 %v181
    %v480 = vpop.f32.mrf.mxu0
    %v481 = vadd.f32 0.0, %v480
    %v482 = vpop.f32.mrf.mxu0
    %483 = vmatprep.mubr.f32.mxu0 0.0
    %484 = vmatmul.mubr.f32.gmra.mxu0 %v184
    %v485 = vpop.f32.mrf.mxu0
    %v486 = vadd.f32 0.0, %v485
    %v487 = vpop.f32.mrf.mxu0
    %488 = vmatprep.mubr.f32.mxu0 0.0
    %489 = vmatmul.mubr.f32.gmra.mxu0 %v187
    %v490 = vpop.f32.mrf.mxu0
    %v491 = vadd.f32 0.0, %v490
    %v492 = vpop.f32.mrf.mxu0
    %493 = vmatprep.mubr.f32.mxu0 0.0
    %494 = vmatmul.mubr.f32.gmra.mxu0 %v190
    %v495 = vpop.f32.mrf.mxu0
    %v496 = vadd.f32 0.0, %v495
    %v497 = vpop.f32.mrf.mxu0
    %498 = vmatprep.mubr.f32.mxu0 0.0
    %499 = vmatmul.mubr.f32.gmra.mxu0 %v193
    %v500 = vpop.f32.mrf.mxu0
    %v501 = vadd.f32 0.0, %v500
    %v502 = vpop.f32.mrf.mxu0
    %503 = vmatprep.mubr.f32.mxu0 0.0
    %504 = vmatmul.mubr.f32.gmra.mxu0 %v196
    %v505 = vpop.f32.mrf.mxu0
    %v506 = vadd.f32 0.0, %v505
    %v507 = vpop.f32.mrf.mxu0
    %508 = vmatprep.mubr.f32.mxu0 0.0
    %509 = vmatmul.mubr.f32.gmra.mxu0 %v199
    %v510 = vpop.f32.mrf.mxu0
    %v511 = vadd.f32 0.0, %v510
    %v512 = vpop.f32.mrf.mxu0
    %513 = vmatprep.mubr.f32.mxu0 0.0
    %514 = vmatmul.mubr.f32.gmra.mxu0 %v202
    %v515 = vpop.f32.mrf.mxu0
    %v516 = vadd.f32 0.0, %v515
    %v517 = vpop.f32.mrf.mxu0
    %518 = vmatprep.mubr.f32.mxu0 0.0
    %519 = vmatmul.mubr.f32.gmra.mxu0 %v205
    %v520 = vpop.f32.mrf.mxu0
    %v521 = vadd.f32 0.0, %v520
    %v522 = vpop.f32.mrf.mxu0
    %523 = vmatprep.mubr.f32.mxu0 0.0
    %524 = vmatmul.mubr.f32.gmra.mxu0 %v208
    %v525 = vpop.f32.mrf.mxu0
    %v526 = vadd.f32 0.0, %v525
    %v527 = vpop.f32.mrf.mxu0
    %528 = vmatprep.mubr.f32.mxu0 0.0
    %529 = vmatmul.mubr.f32.gmra.mxu0 %v211
    %v530 = vpop.f32.mrf.mxu0
    %v531 = vadd.f32 0.0, %v530
    %v532 = vpop.f32.mrf.mxu0
    %533 = vmatprep.mubr.f32.mxu0 0.0
    %534 = vmatmul.mubr.f32.gmra.mxu0 %v214
    %v535 = vpop.f32.mrf.mxu0
    %v536 = vadd.f32 0.0, %v535
    %v537 = vpop.f32.mrf.mxu0
    %538 = vmatprep.mubr.f32.mxu0 0.0
    %539 = vmatmul.mubr.f32.gmra.mxu0 %v217
    %v540 = vpop.f32.mrf.mxu0
    %v541 = vadd.f32 0.0, %v540
    %v542 = vpop.f32.mrf.mxu0
    %543 = vmatprep.mubr.f32.mxu0 0.0
    %544 = vmatmul.mubr.f32.gmra.mxu0 %v220
    %v545 = vpop.f32.mrf.mxu0
    %v546 = vadd.f32 0.0, %v545
    %v547 = vpop.f32.mrf.mxu0
    %548 = vmatprep.mubr.f32.mxu0 0.0
    %549 = vmatmul.mubr.f32.gmra.mxu0 %v223
    %v550 = vpop.f32.mrf.mxu0
    %v551 = vadd.f32 0.0, %v550
    %v552 = vpop.f32.mrf.mxu0
    %553 = vmatprep.mubr.f32.mxu0 0.0
    %554 = vmatmul.mubr.f32.gmra.mxu0 %v226
    %v555 = vpop.f32.mrf.mxu0
    %v556 = vadd.f32 0.0, %v555
    %v557 = vpop.f32.mrf.mxu0
    %558 = vmatprep.mubr.f32.mxu0 0.0
    %559 = vmatmul.mubr.f32.gmra.mxu0 %v229
    %v560 = vpop.f32.mrf.mxu0
    %v561 = vadd.f32 0.0, %v560
    %v562 = vpop.f32.mrf.mxu0
    %563 = vmatprep.mubr.f32.mxu0 0.0
    %564 = vmatmul.mubr.f32.gmra.mxu0 %v232
    %v565 = vpop.f32.mrf.mxu0
    %v566 = vadd.f32 0.0, %v565
    %v567 = vpop.f32.mrf.mxu0
    %568 = vmatprep.mubr.f32.mxu0 0.0
    %569 = vmatmul.mubr.f32.gmra.mxu0 %v235
    %v570 = vpop.f32.mrf.mxu0
    %v571 = vadd.f32 0.0, %v570
    %v572 = vpop.f32.mrf.mxu0
    %573 = vmatprep.mubr.f32.mxu0 0.0
    %574 = vmatmul.mubr.f32.gmra.mxu0 %v238
    %v575 = vpop.f32.mrf.mxu0
    %v576 = vadd.f32 0.0, %v575
    %v577 = vpop.f32.mrf.mxu0
    %578 = vmatprep.mubr.f32.mxu0 0.0
    %579 = vmatmul.mubr.f32.gmra.mxu0 %v241
    %v580 = vpop.f32.mrf.mxu0
    %v581 = vadd.f32 0.0, %v580
    %v582 = vpop.f32.mrf.mxu0
    %583 = vmatprep.mubr.f32.mxu0 0.0
    %584 = vmatmul.mubr.f32.gmra.mxu0 %v244
    %v585 = vpop.f32.mrf.mxu0
    %v586 = vadd.f32 0.0, %v585
    %v587 = vpop.f32.mrf.mxu0
    %588 = vmatprep.mubr.f32.mxu0 0.0
    %589 = vmatmul.mubr.f32.gmra.mxu0 %v247
    %v590 = vpop.f32.mrf.mxu0
    %v591 = vadd.f32 0.0, %v590
    %v592 = vpop.f32.mrf.mxu0
    %593 = vmatprep.mubr.f32.mxu0 0.0
    %594 = vmatmul.mubr.f32.gmra.mxu0 %v250
    %v595 = vpop.f32.mrf.mxu0
    %v596 = vadd.f32 0.0, %v595
    %v597 = vpop.f32.mrf.mxu0
    %598 = vmatprep.mubr.f32.mxu0 0.0
    %599 = vmatmul.mubr.f32.gmra.mxu0 %v253
    %v600 = vpop.f32.mrf.mxu0
    %v601 = vadd.f32 0.0, %v600
    %v602 = vpop.f32.mrf.mxu0
    %603 = vmatprep.mubr.f32.mxu0 0.0
    %604 = vmatmul.mubr.f32.gmra.mxu0 %v256
    %v605 = vpop.f32.mrf.mxu0
    %v606 = vadd.f32 0.0, %v605
    %v607 = vpop.f32.mrf.mxu0
    %608 = vmatprep.mubr.f32.mxu0 0.0
    %609 = vmatmul.mubr.f32.gmra.mxu0 %v259
    %v610 = vpop.f32.mrf.mxu0
    %v611 = vadd.f32 0.0, %v610
    %v612 = vpop.f32.mrf.mxu0
    %613 = vmatprep.mubr.f32.mxu0 0.0
    %614 = vmatmul.mubr.f32.gmra.mxu0 %v262
    %v615 = vpop.f32.mrf.mxu0
    %v616 = vadd.f32 0.0, %v615
    %v617 = vpop.f32.mrf.mxu0
    %618 = vmatprep.mubr.f32.mxu0 0.0
    %619 = vmatmul.mubr.f32.gmra.mxu0 %v265
    %v620 = vpop.f32.mrf.mxu0
    %v621 = vadd.f32 0.0, %v620
    %v622 = vpop.f32.mrf.mxu0
    %623 = vmatprep.mubr.f32.mxu0 0.0
    %624 = vmatmul.mubr.f32.gmra.mxu0 %v268
    %v625 = vpop.f32.mrf.mxu0
    %v626 = vadd.f32 0.0, %v625
    %v627 = vpop.f32.mrf.mxu0
    %628 = vmatprep.mubr.f32.mxu0 0.0
    %629 = vmatmul.mubr.f32.gmra.mxu0 %v271
    %v630 = vpop.f32.mrf.mxu0
    %v631 = vadd.f32 0.0, %v630
    %v632 = vpop.f32.mrf.mxu0
    %633 = vmatprep.mubr.f32.mxu0 0.0
    %634 = vmatmul.mubr.f32.gmra.mxu0 %v274
    %v635 = vpop.f32.mrf.mxu0
    %v636 = vadd.f32 0.0, %v635
    %v637 = vpop.f32.mrf.mxu0
    %638 = vmatprep.mubr.f32.mxu0 0.0
    %639 = vmatmul.mubr.f32.gmra.mxu0 %v277
    %v640 = vpop.f32.mrf.mxu0
    %v641 = vadd.f32 0.0, %v640
    %v642 = vpop.f32.mrf.mxu0
    %643 = vmatprep.mubr.f32.mxu0 0.0
    %644 = vmatmul.mubr.f32.gmra.mxu0 %v280
    %v645 = vpop.f32.mrf.mxu0
    %v646 = vadd.f32 0.0, %v645
    %v647 = vpop.f32.mrf.mxu0
    %648 = vmatprep.mubr.f32.mxu0 0.0
    %649 = vmatmul.mubr.f32.gmra.mxu0 %v283
    %v650 = vpop.f32.mrf.mxu0
    %v651 = vadd.f32 0.0, %v650
    %v652 = vpop.f32.mrf.mxu0
    %653 = vmatprep.mubr.f32.mxu0 0.0
    %654 = vmatmul.mubr.f32.gmra.mxu0 %v286
    %v655 = vpop.f32.mrf.mxu0
    %v656 = vadd.f32 0.0, %v655
    %v657 = vpop.f32.mrf.mxu0
    %658 = vmatprep.mubr.f32.mxu0 0.0
    %659 = vmatmul.mubr.f32.gmra.mxu0 %v289
    %v660 = vpop.f32.mrf.mxu0
    %v661 = vadd.f32 0.0, %v660
    %v662 = vpop.f32.mrf.mxu0
    %663 = vmatprep.mubr.f32.mxu0 0.0
    %664 = vmatmul.mubr.f32.gmra.mxu0 %v292
    %v665 = vpop.f32.mrf.mxu0
    %v666 = vadd.f32 0.0, %v665
    %v667 = vpop.f32.mrf.mxu0
    %668 = vmatprep.mubr.f32.mxu0 0.0
    %669 = vmatmul.mubr.f32.gmra.mxu0 %v295
    %v670 = vpop.f32.mrf.mxu0
    %v671 = vadd.f32 0.0, %v670
    %v672 = vpop.f32.mrf.mxu0
    %673 = vmatprep.mubr.f32.mxu0 0.0
    %674 = vmatmul.mubr.f32.gmra.mxu0 %v298
    %v675 = vpop.f32.mrf.mxu0
    %v676 = vadd.f32 0.0, %v675
    %v677 = vpop.f32.mrf.mxu0
    %678 = vmatprep.mubr.f32.mxu0 0.0
    %679 = vmatmul.mubr.f32.gmra.mxu0 %v301
    %v680 = vpop.f32.mrf.mxu0
    %v681 = vadd.f32 0.0, %v680
    %v682 = vpop.f32.mrf.mxu0
    %683 = vmatprep.mubr.f32.mxu0 0.0
    %684 = vmatmul.mubr.f32.gmra.mxu0 %v304
    %v685 = vpop.f32.mrf.mxu0
    %v686 = vadd.f32 0.0, %v685
    %v687 = vpop.f32.mrf.mxu0
    %688 = vmatprep.mubr.f32.mxu0 0.0
    %689 = vmatmul.mubr.f32.gmra.mxu0 %v307
    %v690 = vpop.f32.mrf.mxu0
    %v691 = vadd.f32 0.0, %v690
    %v692 = vpop.f32.mrf.mxu0
    %693 = vdwg.mxu0
    %v694 = vld [vmem:[%s2] sm:$0xff]
    %v695 = vld [vmem:[%s2 + $0x8] sm:$0xff]
    %v696 = vld [vmem:[%s2 + $0x10] sm:$0xff]
    %v697 = vld [vmem:[%s2 + $0x18] sm:$0xff]
    %v698 = vld [vmem:[%s2 + $0x20] sm:$0xff]
    %v699 = vld [vmem:[%s2 + $0x28] sm:$0xff]
    %v700 = vld [vmem:[%s2 + $0x30] sm:$0xff]
    %v701 = vld [vmem:[%s2 + $0x38] sm:$0xff]
    %v702 = vld [vmem:[%s2 + $0x40] sm:$0xff]
    %v703 = vld [vmem:[%s2 + $0x48] sm:$0xff]
    %v704 = vld [vmem:[%s2 + $0x50] sm:$0xff]
    %v705 = vld [vmem:[%s2 + $0x58] sm:$0xff]
    %v706 = vld [vmem:[%s2 + $0x60] sm:$0xff]
    %v707 = vld [vmem:[%s2 + $0x68] sm:$0xff]
    %v708 = vld [vmem:[%s2 + $0x70] sm:$0xff]
    %v709 = vld [vmem:[%s2 + $0x78] sm:$0xff]
    %v710 = vld [vmem:[%s2 + $0x80] sm:$0xff]
    %v711 = vld [vmem:[%s2 + $0x88] sm:$0xff]
    %v712 = vld [vmem:[%s2 + $0x90] sm:$0xff]
    %v713 = vld [vmem:[%s2 + $0x98] sm:$0xff]
    %v714 = vld [vmem:[%s2 + $0xa0] sm:$0xff]
    %v715 = vld [vmem:[%s2 + $0xa8] sm:$0xff]
    %v716 = vld [vmem:[%s2 + $0xb0] sm:$0xff]
    %v717 = vld [vmem:[%s2 + $0xb8] sm:$0xff]
    %v718 = vld [vmem:[%s2 + $0xc0] sm:$0xff]
    %v719 = vld [vmem:[%s2 + $0xc8] sm:$0xff]
    %v720 = vld [vmem:[%s2 + $0xd0] sm:$0xff]
    %v721 = vld [vmem:[%s2 + $0xd8] sm:$0xff]
    %v722 = vld [vmem:[%s2 + $0xe0] sm:$0xff]
    %v723 = vld [vmem:[%s2 + $0xe8] sm:$0xff]
    %v724 = vld [vmem:[%s2 + $0xf0] sm:$0xff]
    %v725 = vld [vmem:[%s2 + $0xf8] sm:$0xff]
    %v726 = vld [vmem:[%s2 + $0x100] sm:$0xff]
    %v727 = vld [vmem:[%s2 + $0x108] sm:$0xff]
    %v728 = vld [vmem:[%s2 + $0x110] sm:$0xff]
    %v729 = vld [vmem:[%s2 + $0x118] sm:$0xff]
    %v730 = vld [vmem:[%s2 + $0x120] sm:$0xff]
    %v731 = vld [vmem:[%s2 + $0x128] sm:$0xff]
    %v732 = vld [vmem:[%s2 + $0x130] sm:$0xff]
    %v733 = vld [vmem:[%s2 + $0x138] sm:$0xff]
    %v734 = vld [vmem:[%s2 + $0x140] sm:$0xff]
    %v735 = vld [vmem:[%s2 + $0x148] sm:$0xff]
    %v736 = vld [vmem:[%s2 + $0x150] sm:$0xff]
    %v737 = vld [vmem:[%s2 + $0x158] sm:$0xff]
    %v738 = vld [vmem:[%s2 + $0x160] sm:$0xff]
    %v739 = vld [vmem:[%s2 + $0x168] sm:$0xff]
    %v740 = vld [vmem:[%s2 + $0x170] sm:$0xff]
    %v741 = vld [vmem:[%s2 + $0x178] sm:$0xff]
    %v742 = vld [vmem:[%s2 + $0x180] sm:$0xff]
    %v743 = vld [vmem:[%s2 + $0x188] sm:$0xff]
    %v744 = vld [vmem:[%s2 + $0x190] sm:$0xff]
    %v745 = vld [vmem:[%s2 + $0x198] sm:$0xff]
    %v746 = vld [vmem:[%s2 + $0x1a0] sm:$0xff]
    %v747 = vld [vmem:[%s2 + $0x1a8] sm:$0xff]
    %v748 = vld [vmem:[%s2 + $0x1b0] sm:$0xff]
    %v749 = vld [vmem:[%s2 + $0x1b8] sm:$0xff]
    %v750 = vld [vmem:[%s2 + $0x1c0] sm:$0xff]
    %v751 = vld [vmem:[%s2 + $0x1c8] sm:$0xff]
    %v752 = vld [vmem:[%s2 + $0x1d0] sm:$0xff]
    %v753 = vld [vmem:[%s2 + $0x1d8] sm:$0xff]
    %v754 = vld [vmem:[%s2 + $0x1e0] sm:$0xff]
    %v755 = vld [vmem:[%s2 + $0x1e8] sm:$0xff]
    %v756 = vld [vmem:[%s2 + $0x1f0] sm:$0xff]
    %v757 = vld [vmem:[%s2 + $0x1f8] sm:$0xff]
    %759 = vset.pattern.permute.xlu0 0
    %760 = vperm.xlu0 %759, %v694
    %v761 = vpop.permute.xlu0 %760
    %764 = vset.pattern.permute.xlu0 0
    %765 = vperm.xlu0 %764, %v695
    %v766 = vpop.permute.xlu0 %765
    %769 = vset.pattern.permute.xlu0 0
    %770 = vperm.xlu0 %769, %v696
    %v771 = vpop.permute.xlu0 %770
    %774 = vset.pattern.permute.xlu0 0
    %775 = vperm.xlu0 %774, %v697
    %v776 = vpop.permute.xlu0 %775
    %779 = vset.pattern.permute.xlu0 0
    %780 = vperm.xlu0 %779, %v698
    %v781 = vpop.permute.xlu0 %780
    %784 = vset.pattern.permute.xlu0 0
    %785 = vperm.xlu0 %784, %v699
    %v786 = vpop.permute.xlu0 %785
    %789 = vset.pattern.permute.xlu0 0
    %790 = vperm.xlu0 %789, %v700
    %v791 = vpop.permute.xlu0 %790
    %794 = vset.pattern.permute.xlu0 0
    %795 = vperm.xlu0 %794, %v701
    %v796 = vpop.permute.xlu0 %795
    %799 = vset.pattern.permute.xlu0 0
    %800 = vperm.xlu0 %799, %v702
    %v801 = vpop.permute.xlu0 %800
    %804 = vset.pattern.permute.xlu0 0
    %805 = vperm.xlu0 %804, %v703
    %v806 = vpop.permute.xlu0 %805
    %809 = vset.pattern.permute.xlu0 0
    %810 = vperm.xlu0 %809, %v704
    %v811 = vpop.permute.xlu0 %810
    %814 = vset.pattern.permute.xlu0 0
    %815 = vperm.xlu0 %814, %v705
    %v816 = vpop.permute.xlu0 %815
    %819 = vset.pattern.permute.xlu0 0
    %820 = vperm.xlu0 %819, %v706
    %v821 = vpop.permute.xlu0 %820
    %824 = vset.pattern.permute.xlu0 0
    %825 = vperm.xlu0 %824, %v707
    %v826 = vpop.permute.xlu0 %825
    %829 = vset.pattern.permute.xlu0 0
    %830 = vperm.xlu0 %829, %v708
    %v831 = vpop.permute.xlu0 %830
    %834 = vset.pattern.permute.xlu0 0
    %835 = vperm.xlu0 %834, %v709
    %v836 = vpop.permute.xlu0 %835
    %839 = vset.pattern.permute.xlu0 0
    %840 = vperm.xlu0 %839, %v710
    %v841 = vpop.permute.xlu0 %840
    %844 = vset.pattern.permute.xlu0 0
    %845 = vperm.xlu0 %844, %v711
    %v846 = vpop.permute.xlu0 %845
    %849 = vset.pattern.permute.xlu0 0
    %850 = vperm.xlu0 %849, %v712
    %v851 = vpop.permute.xlu0 %850
    %854 = vset.pattern.permute.xlu0 0
    %855 = vperm.xlu0 %854, %v713
    %v856 = vpop.permute.xlu0 %855
    %859 = vset.pattern.permute.xlu0 0
    %860 = vperm.xlu0 %859, %v714
    %v861 = vpop.permute.xlu0 %860
    %864 = vset.pattern.permute.xlu0 0
    %865 = vperm.xlu0 %864, %v715
    %v866 = vpop.permute.xlu0 %865
    %869 = vset.pattern.permute.xlu0 0
    %870 = vperm.xlu0 %869, %v716
    %v871 = vpop.permute.xlu0 %870
    %874 = vset.pattern.permute.xlu0 0
    %875 = vperm.xlu0 %874, %v717
    %v876 = vpop.permute.xlu0 %875
    %879 = vset.pattern.permute.xlu0 0
    %880 = vperm.xlu0 %879, %v718
    %v881 = vpop.permute.xlu0 %880
    %884 = vset.pattern.permute.xlu0 0
    %885 = vperm.xlu0 %884, %v719
    %v886 = vpop.permute.xlu0 %885
    %889 = vset.pattern.permute.xlu0 0
    %890 = vperm.xlu0 %889, %v720
    %v891 = vpop.permute.xlu0 %890
    %894 = vset.pattern.permute.xlu0 0
    %895 = vperm.xlu0 %894, %v721
    %v896 = vpop.permute.xlu0 %895
    %899 = vset.pattern.permute.xlu0 0
    %900 = vperm.xlu0 %899, %v722
    %v901 = vpop.permute.xlu0 %900
    %904 = vset.pattern.permute.xlu0 0
    %905 = vperm.xlu0 %904, %v723
    %v906 = vpop.permute.xlu0 %905
    %909 = vset.pattern.permute.xlu0 0
    %910 = vperm.xlu0 %909, %v724
    %v911 = vpop.permute.xlu0 %910
    %914 = vset.pattern.permute.xlu0 0
    %915 = vperm.xlu0 %914, %v725
    %v916 = vpop.permute.xlu0 %915
    %919 = vset.pattern.permute.xlu0 0
    %920 = vperm.xlu0 %919, %v726
    %v921 = vpop.permute.xlu0 %920
    %924 = vset.pattern.permute.xlu0 0
    %925 = vperm.xlu0 %924, %v727
    %v926 = vpop.permute.xlu0 %925
    %929 = vset.pattern.permute.xlu0 0
    %930 = vperm.xlu0 %929, %v728
    %v931 = vpop.permute.xlu0 %930
    %934 = vset.pattern.permute.xlu0 0
    %935 = vperm.xlu0 %934, %v729
    %v936 = vpop.permute.xlu0 %935
    %939 = vset.pattern.permute.xlu0 0
    %940 = vperm.xlu0 %939, %v730
    %v941 = vpop.permute.xlu0 %940
    %944 = vset.pattern.permute.xlu0 0
    %945 = vperm.xlu0 %944, %v731
    %v946 = vpop.permute.xlu0 %945
    %949 = vset.pattern.permute.xlu0 0
    %950 = vperm.xlu0 %949, %v732
    %v951 = vpop.permute.xlu0 %950
    %954 = vset.pattern.permute.xlu0 0
    %955 = vperm.xlu0 %954, %v733
    %v956 = vpop.permute.xlu0 %955
    %959 = vset.pattern.permute.xlu0 0
    %960 = vperm.xlu0 %959, %v734
    %v961 = vpop.permute.xlu0 %960
    %964 = vset.pattern.permute.xlu0 0
    %965 = vperm.xlu0 %964, %v735
    %v966 = vpop.permute.xlu0 %965
    %969 = vset.pattern.permute.xlu0 0
    %970 = vperm.xlu0 %969, %v736
    %v971 = vpop.permute.xlu0 %970
    %974 = vset.pattern.permute.xlu0 0
    %975 = vperm.xlu0 %974, %v737
    %v976 = vpop.permute.xlu0 %975
    %979 = vset.pattern.permute.xlu0 0
    %980 = vperm.xlu0 %979, %v738
    %v981 = vpop.permute.xlu0 %980
    %984 = vset.pattern.permute.xlu0 0
    %985 = vperm.xlu0 %984, %v739
    %v986 = vpop.permute.xlu0 %985
    %989 = vset.pattern.permute.xlu0 0
    %990 = vperm.xlu0 %989, %v740
    %v991 = vpop.permute.xlu0 %990
    %994 = vset.pattern.permute.xlu0 0
    %995 = vperm.xlu0 %994, %v741
    %v996 = vpop.permute.xlu0 %995
    %999 = vset.pattern.permute.xlu0 0
    %1000 = vperm.xlu0 %999, %v742
    %v1001 = vpop.permute.xlu0 %1000
    %1004 = vset.pattern.permute.xlu0 0
    %1005 = vperm.xlu0 %1004, %v743
    %v1006 = vpop.permute.xlu0 %1005
    %1009 = vset.pattern.permute.xlu0 0
    %1010 = vperm.xlu0 %1009, %v744
    %v1011 = vpop.permute.xlu0 %1010
    %1014 = vset.pattern.permute.xlu0 0
    %1015 = vperm.xlu0 %1014, %v745
    %v1016 = vpop.permute.xlu0 %1015
    %1019 = vset.pattern.permute.xlu0 0
    %1020 = vperm.xlu0 %1019, %v746
    %v1021 = vpop.permute.xlu0 %1020
    %1024 = vset.pattern.permute.xlu0 0
    %1025 = vperm.xlu0 %1024, %v747
    %v1026 = vpop.permute.xlu0 %1025
    %1029 = vset.pattern.permute.xlu0 0
    %1030 = vperm.xlu0 %1029, %v748
    %v1031 = vpop.permute.xlu0 %1030
    %1034 = vset.pattern.permute.xlu0 0
    %1035 = vperm.xlu0 %1034, %v749
    %v1036 = vpop.permute.xlu0 %1035
    %1039 = vset.pattern.permute.xlu0 0
    %1040 = vperm.xlu0 %1039, %v750
    %v1041 = vpop.permute.xlu0 %1040
    %1044 = vset.pattern.permute.xlu0 0
    %1045 = vperm.xlu0 %1044, %v751
    %v1046 = vpop.permute.xlu0 %1045
    %1049 = vset.pattern.permute.xlu0 0
    %1050 = vperm.xlu0 %1049, %v752
    %v1051 = vpop.permute.xlu0 %1050
    %1054 = vset.pattern.permute.xlu0 0
    %1055 = vperm.xlu0 %1054, %v753
    %v1056 = vpop.permute.xlu0 %1055
    %1059 = vset.pattern.permute.xlu0 0
    %1060 = vperm.xlu0 %1059, %v754
    %v1061 = vpop.permute.xlu0 %1060
    %1064 = vset.pattern.permute.xlu0 0
    %1065 = vperm.xlu0 %1064, %v755
    %v1066 = vpop.permute.xlu0 %1065
    %1069 = vset.pattern.permute.xlu0 0
    %1070 = vperm.xlu0 %1069, %v756
    %v1071 = vpop.permute.xlu0 %1070
    %1074 = vset.pattern.permute.xlu0 0
    %1075 = vperm.xlu0 %1074, %v757
    %v1076 = vpop.permute.xlu0 %1075
    %v1078 = vmul.f32 %v376, %v761
    %v1079 = vmul.f32 %v381, %v766
    %v1080 = vmul.f32 %v386, %v771
    %v1081 = vmul.f32 %v391, %v776
    %v1082 = vmul.f32 %v396, %v781
    %v1083 = vmul.f32 %v401, %v786
    %v1084 = vmul.f32 %v406, %v791
    %v1085 = vmul.f32 %v411, %v796
    %v1086 = vmul.f32 %v416, %v801
    %v1087 = vmul.f32 %v421, %v806
    %v1088 = vmul.f32 %v426, %v811
    %v1089 = vmul.f32 %v431, %v816
    %v1090 = vmul.f32 %v436, %v821
    %v1091 = vmul.f32 %v441, %v826
    %v1092 = vmul.f32 %v446, %v831
    %v1093 = vmul.f32 %v451, %v836
    %v1094 = vmul.f32 %v456, %v841
    %v1095 = vmul.f32 %v461, %v846
    %v1096 = vmul.f32 %v466, %v851
    %v1097 = vmul.f32 %v471, %v856
    %v1098 = vmul.f32 %v476, %v861
    %v1099 = vmul.f32 %v481, %v866
    %v1100 = vmul.f32 %v486, %v871
    %v1101 = vmul.f32 %v491, %v876
    %v1102 = vmul.f32 %v496, %v881
    %v1103 = vmul.f32 %v501, %v886
    %v1104 = vmul.f32 %v506, %v891
    %v1105 = vmul.f32 %v511, %v896
    %v1106 = vmul.f32 %v516, %v901
    %v1107 = vmul.f32 %v521, %v906
    %v1108 = vmul.f32 %v526, %v911
    %v1109 = vmul.f32 %v531, %v916
    %v1110 = vmul.f32 %v536, %v921
    %v1111 = vmul.f32 %v541, %v926
    %v1112 = vmul.f32 %v546, %v931
    %v1113 = vmul.f32 %v551, %v936
    %v1114 = vmul.f32 %v556, %v941
    %v1115 = vmul.f32 %v561, %v946
    %v1116 = vmul.f32 %v566, %v951
    %v1117 = vmul.f32 %v571, %v956
    %v1118 = vmul.f32 %v576, %v961
    %v1119 = vmul.f32 %v581, %v966
    %v1120 = vmul.f32 %v586, %v971
    %v1121 = vmul.f32 %v591, %v976
    %v1122 = vmul.f32 %v596, %v981
    %v1123 = vmul.f32 %v601, %v986
    %v1124 = vmul.f32 %v606, %v991
    %v1125 = vmul.f32 %v611, %v996
    %v1126 = vmul.f32 %v616, %v1001
    %v1127 = vmul.f32 %v621, %v1006
    %v1128 = vmul.f32 %v626, %v1011
    %v1129 = vmul.f32 %v631, %v1016
    %v1130 = vmul.f32 %v636, %v1021
    %v1131 = vmul.f32 %v641, %v1026
    %v1132 = vmul.f32 %v646, %v1031
    %v1133 = vmul.f32 %v651, %v1036
    %v1134 = vmul.f32 %v656, %v1041
    %v1135 = vmul.f32 %v661, %v1046
    %v1136 = vmul.f32 %v666, %v1051
    %v1137 = vmul.f32 %v671, %v1056
    %v1138 = vmul.f32 %v676, %v1061
    %v1139 = vmul.f32 %v681, %v1066
    %v1140 = vmul.f32 %v686, %v1071
    %v1141 = vmul.f32 %v691, %v1076
    %v1142 = vadd.f32 %v1078, 0.0
    %v1143 = vadd.f32 %v1079, 0.0
    %v1144 = vadd.f32 %v1080, 0.0
    %v1145 = vadd.f32 %v1081, 0.0
    %v1146 = vadd.f32 %v1082, 0.0
    %v1147 = vadd.f32 %v1083, 0.0
    %v1148 = vadd.f32 %v1084, 0.0
    %v1149 = vadd.f32 %v1085, 0.0
    %v1150 = vadd.f32 %v1086, 0.0
    %v1151 = vadd.f32 %v1087, 0.0
    %v1152 = vadd.f32 %v1088, 0.0
    %v1153 = vadd.f32 %v1089, 0.0
    %v1154 = vadd.f32 %v1090, 0.0
    %v1155 = vadd.f32 %v1091, 0.0
    %v1156 = vadd.f32 %v1092, 0.0
    %v1157 = vadd.f32 %v1093, 0.0
    %v1158 = vadd.f32 %v1094, 0.0
    %v1159 = vadd.f32 %v1095, 0.0
    %v1160 = vadd.f32 %v1096, 0.0
    %v1161 = vadd.f32 %v1097, 0.0
    %v1162 = vadd.f32 %v1098, 0.0
    %v1163 = vadd.f32 %v1099, 0.0
    %v1164 = vadd.f32 %v1100, 0.0
    %v1165 = vadd.f32 %v1101, 0.0
    %v1166 = vadd.f32 %v1102, 0.0
    %v1167 = vadd.f32 %v1103, 0.0
    %v1168 = vadd.f32 %v1104, 0.0
    %v1169 = vadd.f32 %v1105, 0.0
    %v1170 = vadd.f32 %v1106, 0.0
    %v1171 = vadd.f32 %v1107, 0.0
    %v1172 = vadd.f32 %v1108, 0.0
    %v1173 = vadd.f32 %v1109, 0.0
    %v1174 = vadd.f32 %v1110, 0.0
    %v1175 = vadd.f32 %v1111, 0.0
    %v1176 = vadd.f32 %v1112, 0.0
    %v1177 = vadd.f32 %v1113, 0.0
    %v1178 = vadd.f32 %v1114, 0.0
    %v1179 = vadd.f32 %v1115, 0.0
    %v1180 = vadd.f32 %v1116, 0.0
    %v1181 = vadd.f32 %v1117, 0.0
    %v1182 = vadd.f32 %v1118, 0.0
    %v1183 = vadd.f32 %v1119, 0.0
    %v1184 = vadd.f32 %v1120, 0.0
    %v1185 = vadd.f32 %v1121, 0.0
    %v1186 = vadd.f32 %v1122, 0.0
    %v1187 = vadd.f32 %v1123, 0.0
    %v1188 = vadd.f32 %v1124, 0.0
    %v1189 = vadd.f32 %v1125, 0.0
    %v1190 = vadd.f32 %v1126, 0.0
    %v1191 = vadd.f32 %v1127, 0.0
    %v1192 = vadd.f32 %v1128, 0.0
    %v1193 = vadd.f32 %v1129, 0.0
    %v1194 = vadd.f32 %v1130, 0.0
    %v1195 = vadd.f32 %v1131, 0.0
    %v1196 = vadd.f32 %v1132, 0.0
    %v1197 = vadd.f32 %v1133, 0.0
    %v1198 = vadd.f32 %v1134, 0.0
    %v1199 = vadd.f32 %v1135, 0.0
    %v1200 = vadd.f32 %v1136, 0.0
    %v1201 = vadd.f32 %v1137, 0.0
    %v1202 = vadd.f32 %v1138, 0.0
    %v1203 = vadd.f32 %v1139, 0.0
    %v1204 = vadd.f32 %v1140, 0.0
    %v1205 = vadd.f32 %v1141, 0.0
    %v1206 = vld [vmem:[%s0 + $0x1] sm:$0xff]
    %v1207 = vld [vmem:[%s0 + $0x9] sm:$0xff]
    %v1208 = vld [vmem:[%s0 + $0x11] sm:$0xff]
    %v1209 = vld [vmem:[%s0 + $0x19] sm:$0xff]
    %v1210 = vld [vmem:[%s0 + $0x21] sm:$0xff]
    %v1211 = vld [vmem:[%s0 + $0x29] sm:$0xff]
    %v1212 = vld [vmem:[%s0 + $0x31] sm:$0xff]
    %v1213 = vld [vmem:[%s0 + $0x39] sm:$0xff]
    %v1214 = vld [vmem:[%s0 + $0x41] sm:$0xff]
    %v1215 = vld [vmem:[%s0 + $0x49] sm:$0xff]
    %v1216 = vld [vmem:[%s0 + $0x51] sm:$0xff]
    %v1217 = vld [vmem:[%s0 + $0x59] sm:$0xff]
    %v1218 = vld [vmem:[%s0 + $0x61] sm:$0xff]
    %v1219 = vld [vmem:[%s0 + $0x69] sm:$0xff]
    %v1220 = vld [vmem:[%s0 + $0x71] sm:$0xff]
    %v1221 = vld [vmem:[%s0 + $0x79] sm:$0xff]
    %v1222 = vld [vmem:[%s0 + $0x81] sm:$0xff]
    %v1223 = vld [vmem:[%s0 + $0x89] sm:$0xff]
    %v1224 = vld [vmem:[%s0 + $0x91] sm:$0xff]
    %v1225 = vld [vmem:[%s0 + $0x99] sm:$0xff]
    %v1226 = vld [vmem:[%s0 + $0xa1] sm:$0xff]
    %v1227 = vld [vmem:[%s0 + $0xa9] sm:$0xff]
    %v1228 = vld [vmem:[%s0 + $0xb1] sm:$0xff]
    %v1229 = vld [vmem:[%s0 + $0xb9] sm:$0xff]
    %v1230 = vld [vmem:[%s0 + $0xc1] sm:$0xff]
    %v1231 = vld [vmem:[%s0 + $0xc9] sm:$0xff]
    %v1232 = vld [vmem:[%s0 + $0xd1] sm:$0xff]
    %v1233 = vld [vmem:[%s0 + $0xd9] sm:$0xff]
    %v1234 = vld [vmem:[%s0 + $0xe1] sm:$0xff]
    %v1235 = vld [vmem:[%s0 + $0xe9] sm:$0xff]
    %v1236 = vld [vmem:[%s0 + $0xf1] sm:$0xff]
    %v1237 = vld [vmem:[%s0 + $0xf9] sm:$0xff]
    %v1238 = vld [vmem:[%s0 + $0x101] sm:$0xff]
    %v1239 = vld [vmem:[%s0 + $0x109] sm:$0xff]
    %v1240 = vld [vmem:[%s0 + $0x111] sm:$0xff]
    %v1241 = vld [vmem:[%s0 + $0x119] sm:$0xff]
    %v1242 = vld [vmem:[%s0 + $0x121] sm:$0xff]
    %v1243 = vld [vmem:[%s0 + $0x129] sm:$0xff]
    %v1244 = vld [vmem:[%s0 + $0x131] sm:$0xff]
    %v1245 = vld [vmem:[%s0 + $0x139] sm:$0xff]
    %v1246 = vld [vmem:[%s0 + $0x141] sm:$0xff]
    %v1247 = vld [vmem:[%s0 + $0x149] sm:$0xff]
    %v1248 = vld [vmem:[%s0 + $0x151] sm:$0xff]
    %v1249 = vld [vmem:[%s0 + $0x159] sm:$0xff]
    %v1250 = vld [vmem:[%s0 + $0x161] sm:$0xff]
    %v1251 = vld [vmem:[%s0 + $0x169] sm:$0xff]
    %v1252 = vld [vmem:[%s0 + $0x171] sm:$0xff]
    %v1253 = vld [vmem:[%s0 + $0x179] sm:$0xff]
    %v1254 = vld [vmem:[%s0 + $0x181] sm:$0xff]
    %v1255 = vld [vmem:[%s0 + $0x189] sm:$0xff]
    %v1256 = vld [vmem:[%s0 + $0x191] sm:$0xff]
    %v1257 = vld [vmem:[%s0 + $0x199] sm:$0xff]
    %v1258 = vld [vmem:[%s0 + $0x1a1] sm:$0xff]
    %v1259 = vld [vmem:[%s0 + $0x1a9] sm:$0xff]
    %v1260 = vld [vmem:[%s0 + $0x1b1] sm:$0xff]
    %v1261 = vld [vmem:[%s0 + $0x1b9] sm:$0xff]
    %v1262 = vld [vmem:[%s0 + $0x1c1] sm:$0xff]
    %v1263 = vld [vmem:[%s0 + $0x1c9] sm:$0xff]
    %v1264 = vld [vmem:[%s0 + $0x1d1] sm:$0xff]
    %v1265 = vld [vmem:[%s0 + $0x1d9] sm:$0xff]
    %v1266 = vld [vmem:[%s0 + $0x1e1] sm:$0xff]
    %v1267 = vld [vmem:[%s0 + $0x1e9] sm:$0xff]
    %v1268 = vld [vmem:[%s0 + $0x1f1] sm:$0xff]
    %v1269 = vld [vmem:[%s0 + $0x1f9] sm:$0xff]
    %v1270 = vld [vmem:[%s4 + $0x20] sm:$0xff]
    %v1271 = vld [vmem:[%s4 + $0x28] sm:$0xff]
    %v1272 = vld [vmem:[%s4 + $0x30] sm:$0xff]
    %v1273 = vld [vmem:[%s4 + $0x38] sm:$0xff]
    %v1275 = vsel %vm116, %v1206, 0
    %v1278 = vsel %vm116, %v1207, 0
    %v1281 = vsel %vm116, %v1208, 0
    %v1284 = vsel %vm116, %v1209, 0
    %v1287 = vsel %vm116, %v1210, 0
    %v1290 = vsel %vm116, %v1211, 0
    %v1293 = vsel %vm116, %v1212, 0
    %v1296 = vsel %vm116, %v1213, 0
    %v1299 = vsel %vm116, %v1214, 0
    %v1302 = vsel %vm116, %v1215, 0
    %v1305 = vsel %vm116, %v1216, 0
    %v1308 = vsel %vm116, %v1217, 0
    %v1311 = vsel %vm116, %v1218, 0
    %v1314 = vsel %vm116, %v1219, 0
    %v1317 = vsel %vm116, %v1220, 0
    %v1320 = vsel %vm116, %v1221, 0
    %v1323 = vsel %vm116, %v1222, 0
    %v1326 = vsel %vm116, %v1223, 0
    %v1329 = vsel %vm116, %v1224, 0
    %v1332 = vsel %vm116, %v1225, 0
    %v1335 = vsel %vm116, %v1226, 0
    %v1338 = vsel %vm116, %v1227, 0
    %v1341 = vsel %vm116, %v1228, 0
    %v1344 = vsel %vm116, %v1229, 0
    %v1347 = vsel %vm116, %v1230, 0
    %v1350 = vsel %vm116, %v1231, 0
    %v1353 = vsel %vm116, %v1232, 0
    %v1356 = vsel %vm116, %v1233, 0
    %v1359 = vsel %vm116, %v1234, 0
    %v1362 = vsel %vm116, %v1235, 0
    %v1365 = vsel %vm116, %v1236, 0
    %v1368 = vsel %vm116, %v1237, 0
    %v1371 = vsel %vm116, %v1238, 0
    %v1374 = vsel %vm116, %v1239, 0
    %v1377 = vsel %vm116, %v1240, 0
    %v1380 = vsel %vm116, %v1241, 0
    %v1383 = vsel %vm116, %v1242, 0
    %v1386 = vsel %vm116, %v1243, 0
    %v1389 = vsel %vm116, %v1244, 0
    %v1392 = vsel %vm116, %v1245, 0
    %v1395 = vsel %vm116, %v1246, 0
    %v1398 = vsel %vm116, %v1247, 0
    %v1401 = vsel %vm116, %v1248, 0
    %v1404 = vsel %vm116, %v1249, 0
    %v1407 = vsel %vm116, %v1250, 0
    %v1410 = vsel %vm116, %v1251, 0
    %v1413 = vsel %vm116, %v1252, 0
    %v1416 = vsel %vm116, %v1253, 0
    %v1419 = vsel %vm116, %v1254, 0
    %v1422 = vsel %vm116, %v1255, 0
    %v1425 = vsel %vm116, %v1256, 0
    %v1428 = vsel %vm116, %v1257, 0
    %v1431 = vsel %vm116, %v1258, 0
    %v1434 = vsel %vm116, %v1259, 0
    %v1437 = vsel %vm116, %v1260, 0
    %v1440 = vsel %vm116, %v1261, 0
    %v1443 = vsel %vm116, %v1262, 0
    %v1446 = vsel %vm116, %v1263, 0
    %v1449 = vsel %vm116, %v1264, 0
    %v1452 = vsel %vm116, %v1265, 0
    %v1455 = vsel %vm116, %v1266, 0
    %v1458 = vsel %vm116, %v1267, 0
    %v1461 = vsel %vm116, %v1268, 0
    %v1464 = vsel %vm116, %v1269, 0
    %1466 = vmatprep.subr.mxu0 0.0
    %1467 = vmatpush1.msra.mxu0 0.0
    %1468 = vmatprep.subr.mxu0 0.0
    %1469 = vmatpush1.msra.mxu0 0.0
    %1470 = vmatprep.subr.mxu0 0.0
    %1471 = vmatpush1.msra.mxu0 0.0
    %1472 = vmatprep.subr.mxu0 0.0
    %1473 = vmatpush1.msra.mxu0 0.0
    %1474 = vmatprep.subr.mxu0 0.0
    %1475 = vmatpush1.msra.mxu0 0.0
    %1476 = vmatprep.subr.mxu0 0.0
    %1477 = vmatpush1.msra.mxu0 0.0
    %1478 = vmatprep.subr.mxu0 0.0
    %1479 = vmatpush1.msra.mxu0 0.0
    %1480 = vmatprep.subr.mxu0 0.0
    %1481 = vmatpush1.msra.mxu0 0.0
    %1482 = vmatprep.subr.mxu0 0.0
    %1483 = vmatpush1.msra.mxu0 0.0
    %1484 = vmatprep.subr.mxu0 0.0
    %1485 = vmatpush1.msra.mxu0 0.0
    %1486 = vmatprep.subr.mxu0 0.0
    %1487 = vmatpush1.msra.mxu0 0.0
    %1488 = vmatprep.subr.mxu0 0.0
    %1489 = vmatpush1.msra.mxu0 0.0
    %1490 = vmatprep.subr.mxu0 0.0
    %1491 = vmatpush1.msra.mxu0 %v1273
    %1492 = vmatprep.subr.mxu0 0.0
    %1493 = vmatpush1.msra.mxu0 %v1272
    %1494 = vmatprep.subr.mxu0 0.0
    %1495 = vmatpush1.msra.mxu0 %v1271
    %1496 = vmatprep.subr.mxu0 0.0
    %1497 = vmatpush1.msra.mxu0 %v1270
    %1498 = vmatprep.subr.mxu0 0.0
    %1499 = vmatpush2.msra.mxu0 0.0
    %1500 = vmatprep.subr.mxu0 0.0
    %1501 = vmatpush2.msra.mxu0 0.0
    %1502 = vmatprep.subr.mxu0 0.0
    %1503 = vmatpush2.msra.mxu0 0.0
    %1504 = vmatprep.subr.mxu0 0.0
    %1505 = vmatpush2.msra.mxu0 0.0
    %1506 = vmatprep.subr.mxu0 0.0
    %1507 = vmatpush2.msra.mxu0 0.0
    %1508 = vmatprep.subr.mxu0 0.0
    %1509 = vmatpush2.msra.mxu0 0.0
    %1510 = vmatprep.subr.mxu0 0.0
    %1511 = vmatpush2.msra.mxu0 0.0
    %1512 = vmatprep.subr.mxu0 0.0
    %1513 = vmatpush2.msra.mxu0 0.0
    %1514 = vmatprep.subr.mxu0 0.0
    %1515 = vmatpush2.msra.mxu0 0.0
    %1516 = vmatprep.subr.mxu0 0.0
    %1517 = vmatpush2.msra.mxu0 0.0
    %1518 = vmatprep.subr.mxu0 0.0
    %1519 = vmatpush2.msra.mxu0 0.0
    %1520 = vmatprep.subr.mxu0 0.0
    %1521 = vmatpush2.msra.mxu0 0.0
    %1522 = vmatprep.subr.mxu0 0.0
    %1523 = vmatpush2.msra.mxu0 0.0
    %1524 = vmatprep.subr.mxu0 0.0
    %1525 = vmatpush2.msra.mxu0 0.0
    %1526 = vmatprep.subr.mxu0 0.0
    %1527 = vmatpush2.msra.mxu0 0.0
    %1528 = vmatprep.subr.mxu0 0.0
    %1529 = vmatpush2.msra.mxu0 0.0
    %1530 = vmatprep.mubr.f32.mxu0 0.0
    %1531 = vmatmul.mubr.f32.gmra.mxu0 %v1275
    %v1532 = vpop.f32.mrf.mxu0
    %v1533 = vadd.f32 0.0, %v1532
    %v1534 = vpop.f32.mrf.mxu0
    %1535 = vmatprep.mubr.f32.mxu0 0.0
    %1536 = vmatmul.mubr.f32.gmra.mxu0 %v1278
    %v1537 = vpop.f32.mrf.mxu0
    %v1538 = vadd.f32 0.0, %v1537
    %v1539 = vpop.f32.mrf.mxu0
    %1540 = vmatprep.mubr.f32.mxu0 0.0
    %1541 = vmatmul.mubr.f32.gmra.mxu0 %v1281
    %v1542 = vpop.f32.mrf.mxu0
    %v1543 = vadd.f32 0.0, %v1542
    %v1544 = vpop.f32.mrf.mxu0
    %1545 = vmatprep.mubr.f32.mxu0 0.0
    %1546 = vmatmul.mubr.f32.gmra.mxu0 %v1284
    %v1547 = vpop.f32.mrf.mxu0
    %v1548 = vadd.f32 0.0, %v1547
    %v1549 = vpop.f32.mrf.mxu0
    %1550 = vmatprep.mubr.f32.mxu0 0.0
    %1551 = vmatmul.mubr.f32.gmra.mxu0 %v1287
    %v1552 = vpop.f32.mrf.mxu0
    %v1553 = vadd.f32 0.0, %v1552
    %v1554 = vpop.f32.mrf.mxu0
    %1555 = vmatprep.mubr.f32.mxu0 0.0
    %1556 = vmatmul.mubr.f32.gmra.mxu0 %v1290
    %v1557 = vpop.f32.mrf.mxu0
    %v1558 = vadd.f32 0.0, %v1557
    %v1559 = vpop.f32.mrf.mxu0
    %1560 = vmatprep.mubr.f32.mxu0 0.0
    %1561 = vmatmul.mubr.f32.gmra.mxu0 %v1293
    %v1562 = vpop.f32.mrf.mxu0
    %v1563 = vadd.f32 0.0, %v1562
    %v1564 = vpop.f32.mrf.mxu0
    %1565 = vmatprep.mubr.f32.mxu0 0.0
    %1566 = vmatmul.mubr.f32.gmra.mxu0 %v1296
    %v1567 = vpop.f32.mrf.mxu0
    %v1568 = vadd.f32 0.0, %v1567
    %v1569 = vpop.f32.mrf.mxu0
    %1570 = vmatprep.mubr.f32.mxu0 0.0
    %1571 = vmatmul.mubr.f32.gmra.mxu0 %v1299
    %v1572 = vpop.f32.mrf.mxu0
    %v1573 = vadd.f32 0.0, %v1572
    %v1574 = vpop.f32.mrf.mxu0
    %1575 = vmatprep.mubr.f32.mxu0 0.0
    %1576 = vmatmul.mubr.f32.gmra.mxu0 %v1302
    %v1577 = vpop.f32.mrf.mxu0
    %v1578 = vadd.f32 0.0, %v1577
    %v1579 = vpop.f32.mrf.mxu0
    %1580 = vmatprep.mubr.f32.mxu0 0.0
    %1581 = vmatmul.mubr.f32.gmra.mxu0 %v1305
    %v1582 = vpop.f32.mrf.mxu0
    %v1583 = vadd.f32 0.0, %v1582
    %v1584 = vpop.f32.mrf.mxu0
    %1585 = vmatprep.mubr.f32.mxu0 0.0
    %1586 = vmatmul.mubr.f32.gmra.mxu0 %v1308
    %v1587 = vpop.f32.mrf.mxu0
    %v1588 = vadd.f32 0.0, %v1587
    %v1589 = vpop.f32.mrf.mxu0
    %1590 = vmatprep.mubr.f32.mxu0 0.0
    %1591 = vmatmul.mubr.f32.gmra.mxu0 %v1311
    %v1592 = vpop.f32.mrf.mxu0
    %v1593 = vadd.f32 0.0, %v1592
    %v1594 = vpop.f32.mrf.mxu0
    %1595 = vmatprep.mubr.f32.mxu0 0.0
    %1596 = vmatmul.mubr.f32.gmra.mxu0 %v1314
    %v1597 = vpop.f32.mrf.mxu0
    %v1598 = vadd.f32 0.0, %v1597
    %v1599 = vpop.f32.mrf.mxu0
    %1600 = vmatprep.mubr.f32.mxu0 0.0
    %1601 = vmatmul.mubr.f32.gmra.mxu0 %v1317
    %v1602 = vpop.f32.mrf.mxu0
    %v1603 = vadd.f32 0.0, %v1602
    %v1604 = vpop.f32.mrf.mxu0
    %1605 = vmatprep.mubr.f32.mxu0 0.0
    %1606 = vmatmul.mubr.f32.gmra.mxu0 %v1320
    %v1607 = vpop.f32.mrf.mxu0
    %v1608 = vadd.f32 0.0, %v1607
    %v1609 = vpop.f32.mrf.mxu0
    %1610 = vmatprep.mubr.f32.mxu0 0.0
    %1611 = vmatmul.mubr.f32.gmra.mxu0 %v1323
    %v1612 = vpop.f32.mrf.mxu0
    %v1613 = vadd.f32 0.0, %v1612
    %v1614 = vpop.f32.mrf.mxu0
    %1615 = vmatprep.mubr.f32.mxu0 0.0
    %1616 = vmatmul.mubr.f32.gmra.mxu0 %v1326
    %v1617 = vpop.f32.mrf.mxu0
    %v1618 = vadd.f32 0.0, %v1617
    %v1619 = vpop.f32.mrf.mxu0
    %1620 = vmatprep.mubr.f32.mxu0 0.0
    %1621 = vmatmul.mubr.f32.gmra.mxu0 %v1329
    %v1622 = vpop.f32.mrf.mxu0
    %v1623 = vadd.f32 0.0, %v1622
    %v1624 = vpop.f32.mrf.mxu0
    %1625 = vmatprep.mubr.f32.mxu0 0.0
    %1626 = vmatmul.mubr.f32.gmra.mxu0 %v1332
    %v1627 = vpop.f32.mrf.mxu0
    %v1628 = vadd.f32 0.0, %v1627
    %v1629 = vpop.f32.mrf.mxu0
    %1630 = vmatprep.mubr.f32.mxu0 0.0
    %1631 = vmatmul.mubr.f32.gmra.mxu0 %v1335
    %v1632 = vpop.f32.mrf.mxu0
    %v1633 = vadd.f32 0.0, %v1632
    %v1634 = vpop.f32.mrf.mxu0
    %1635 = vmatprep.mubr.f32.mxu0 0.0
    %1636 = vmatmul.mubr.f32.gmra.mxu0 %v1338
    %v1637 = vpop.f32.mrf.mxu0
    %v1638 = vadd.f32 0.0, %v1637
    %v1639 = vpop.f32.mrf.mxu0
    %1640 = vmatprep.mubr.f32.mxu0 0.0
    %1641 = vmatmul.mubr.f32.gmra.mxu0 %v1341
    %v1642 = vpop.f32.mrf.mxu0
    %v1643 = vadd.f32 0.0, %v1642
    %v1644 = vpop.f32.mrf.mxu0
    %1645 = vmatprep.mubr.f32.mxu0 0.0
    %1646 = vmatmul.mubr.f32.gmra.mxu0 %v1344
    %v1647 = vpop.f32.mrf.mxu0
    %v1648 = vadd.f32 0.0, %v1647
    %v1649 = vpop.f32.mrf.mxu0
    %1650 = vmatprep.mubr.f32.mxu0 0.0
    %1651 = vmatmul.mubr.f32.gmra.mxu0 %v1347
    %v1652 = vpop.f32.mrf.mxu0
    %v1653 = vadd.f32 0.0, %v1652
    %v1654 = vpop.f32.mrf.mxu0
    %1655 = vmatprep.mubr.f32.mxu0 0.0
    %1656 = vmatmul.mubr.f32.gmra.mxu0 %v1350
    %v1657 = vpop.f32.mrf.mxu0
    %v1658 = vadd.f32 0.0, %v1657
    %v1659 = vpop.f32.mrf.mxu0
    %1660 = vmatprep.mubr.f32.mxu0 0.0
    %1661 = vmatmul.mubr.f32.gmra.mxu0 %v1353
    %v1662 = vpop.f32.mrf.mxu0
    %v1663 = vadd.f32 0.0, %v1662
    %v1664 = vpop.f32.mrf.mxu0
    %1665 = vmatprep.mubr.f32.mxu0 0.0
    %1666 = vmatmul.mubr.f32.gmra.mxu0 %v1356
    %v1667 = vpop.f32.mrf.mxu0
    %v1668 = vadd.f32 0.0, %v1667
    %v1669 = vpop.f32.mrf.mxu0
    %1670 = vmatprep.mubr.f32.mxu0 0.0
    %1671 = vmatmul.mubr.f32.gmra.mxu0 %v1359
    %v1672 = vpop.f32.mrf.mxu0
    %v1673 = vadd.f32 0.0, %v1672
    %v1674 = vpop.f32.mrf.mxu0
    %1675 = vmatprep.mubr.f32.mxu0 0.0
    %1676 = vmatmul.mubr.f32.gmra.mxu0 %v1362
    %v1677 = vpop.f32.mrf.mxu0
    %v1678 = vadd.f32 0.0, %v1677
    %v1679 = vpop.f32.mrf.mxu0
    %1680 = vmatprep.mubr.f32.mxu0 0.0
    %1681 = vmatmul.mubr.f32.gmra.mxu0 %v1365
    %v1682 = vpop.f32.mrf.mxu0
    %v1683 = vadd.f32 0.0, %v1682
    %v1684 = vpop.f32.mrf.mxu0
    %1685 = vmatprep.mubr.f32.mxu0 0.0
    %1686 = vmatmul.mubr.f32.gmra.mxu0 %v1368
    %v1687 = vpop.f32.mrf.mxu0
    %v1688 = vadd.f32 0.0, %v1687
    %v1689 = vpop.f32.mrf.mxu0
    %1690 = vmatprep.mubr.f32.mxu0 0.0
    %1691 = vmatmul.mubr.f32.gmra.mxu0 %v1371
    %v1692 = vpop.f32.mrf.mxu0
    %v1693 = vadd.f32 0.0, %v1692
    %v1694 = vpop.f32.mrf.mxu0
    %1695 = vmatprep.mubr.f32.mxu0 0.0
    %1696 = vmatmul.mubr.f32.gmra.mxu0 %v1374
    %v1697 = vpop.f32.mrf.mxu0
    %v1698 = vadd.f32 0.0, %v1697
    %v1699 = vpop.f32.mrf.mxu0
    %1700 = vmatprep.mubr.f32.mxu0 0.0
    %1701 = vmatmul.mubr.f32.gmra.mxu0 %v1377
    %v1702 = vpop.f32.mrf.mxu0
    %v1703 = vadd.f32 0.0, %v1702
    %v1704 = vpop.f32.mrf.mxu0
    %1705 = vmatprep.mubr.f32.mxu0 0.0
    %1706 = vmatmul.mubr.f32.gmra.mxu0 %v1380
    %v1707 = vpop.f32.mrf.mxu0
    %v1708 = vadd.f32 0.0, %v1707
    %v1709 = vpop.f32.mrf.mxu0
    %1710 = vmatprep.mubr.f32.mxu0 0.0
    %1711 = vmatmul.mubr.f32.gmra.mxu0 %v1383
    %v1712 = vpop.f32.mrf.mxu0
    %v1713 = vadd.f32 0.0, %v1712
    %v1714 = vpop.f32.mrf.mxu0
    %1715 = vmatprep.mubr.f32.mxu0 0.0
    %1716 = vmatmul.mubr.f32.gmra.mxu0 %v1386
    %v1717 = vpop.f32.mrf.mxu0
    %v1718 = vadd.f32 0.0, %v1717
    %v1719 = vpop.f32.mrf.mxu0
    %1720 = vmatprep.mubr.f32.mxu0 0.0
    %1721 = vmatmul.mubr.f32.gmra.mxu0 %v1389
    %v1722 = vpop.f32.mrf.mxu0
    %v1723 = vadd.f32 0.0, %v1722
    %v1724 = vpop.f32.mrf.mxu0
    %1725 = vmatprep.mubr.f32.mxu0 0.0
    %1726 = vmatmul.mubr.f32.gmra.mxu0 %v1392
    %v1727 = vpop.f32.mrf.mxu0
    %v1728 = vadd.f32 0.0, %v1727
    %v1729 = vpop.f32.mrf.mxu0
    %1730 = vmatprep.mubr.f32.mxu0 0.0
    %1731 = vmatmul.mubr.f32.gmra.mxu0 %v1395
    %v1732 = vpop.f32.mrf.mxu0
    %v1733 = vadd.f32 0.0, %v1732
    %v1734 = vpop.f32.mrf.mxu0
    %1735 = vmatprep.mubr.f32.mxu0 0.0
    %1736 = vmatmul.mubr.f32.gmra.mxu0 %v1398
    %v1737 = vpop.f32.mrf.mxu0
    %v1738 = vadd.f32 0.0, %v1737
    %v1739 = vpop.f32.mrf.mxu0
    %1740 = vmatprep.mubr.f32.mxu0 0.0
    %1741 = vmatmul.mubr.f32.gmra.mxu0 %v1401
    %v1742 = vpop.f32.mrf.mxu0
    %v1743 = vadd.f32 0.0, %v1742
    %v1744 = vpop.f32.mrf.mxu0
    %1745 = vmatprep.mubr.f32.mxu0 0.0
    %1746 = vmatmul.mubr.f32.gmra.mxu0 %v1404
    %v1747 = vpop.f32.mrf.mxu0
    %v1748 = vadd.f32 0.0, %v1747
    %v1749 = vpop.f32.mrf.mxu0
    %1750 = vmatprep.mubr.f32.mxu0 0.0
    %1751 = vmatmul.mubr.f32.gmra.mxu0 %v1407
    %v1752 = vpop.f32.mrf.mxu0
    %v1753 = vadd.f32 0.0, %v1752
    %v1754 = vpop.f32.mrf.mxu0
    %1755 = vmatprep.mubr.f32.mxu0 0.0
    %1756 = vmatmul.mubr.f32.gmra.mxu0 %v1410
    %v1757 = vpop.f32.mrf.mxu0
    %v1758 = vadd.f32 0.0, %v1757
    %v1759 = vpop.f32.mrf.mxu0
    %1760 = vmatprep.mubr.f32.mxu0 0.0
    %1761 = vmatmul.mubr.f32.gmra.mxu0 %v1413
    %v1762 = vpop.f32.mrf.mxu0
    %v1763 = vadd.f32 0.0, %v1762
    %v1764 = vpop.f32.mrf.mxu0
    %1765 = vmatprep.mubr.f32.mxu0 0.0
    %1766 = vmatmul.mubr.f32.gmra.mxu0 %v1416
    %v1767 = vpop.f32.mrf.mxu0
    %v1768 = vadd.f32 0.0, %v1767
    %v1769 = vpop.f32.mrf.mxu0
    %1770 = vmatprep.mubr.f32.mxu0 0.0
    %1771 = vmatmul.mubr.f32.gmra.mxu0 %v1419
    %v1772 = vpop.f32.mrf.mxu0
    %v1773 = vadd.f32 0.0, %v1772
    %v1774 = vpop.f32.mrf.mxu0
    %1775 = vmatprep.mubr.f32.mxu0 0.0
    %1776 = vmatmul.mubr.f32.gmra.mxu0 %v1422
    %v1777 = vpop.f32.mrf.mxu0
    %v1778 = vadd.f32 0.0, %v1777
    %v1779 = vpop.f32.mrf.mxu0
    %1780 = vmatprep.mubr.f32.mxu0 0.0
    %1781 = vmatmul.mubr.f32.gmra.mxu0 %v1425
    %v1782 = vpop.f32.mrf.mxu0
    %v1783 = vadd.f32 0.0, %v1782
    %v1784 = vpop.f32.mrf.mxu0
    %1785 = vmatprep.mubr.f32.mxu0 0.0
    %1786 = vmatmul.mubr.f32.gmra.mxu0 %v1428
    %v1787 = vpop.f32.mrf.mxu0
    %v1788 = vadd.f32 0.0, %v1787
    %v1789 = vpop.f32.mrf.mxu0
    %1790 = vmatprep.mubr.f32.mxu0 0.0
    %1791 = vmatmul.mubr.f32.gmra.mxu0 %v1431
    %v1792 = vpop.f32.mrf.mxu0
    %v1793 = vadd.f32 0.0, %v1792
    %v1794 = vpop.f32.mrf.mxu0
    %1795 = vmatprep.mubr.f32.mxu0 0.0
    %1796 = vmatmul.mubr.f32.gmra.mxu0 %v1434
    %v1797 = vpop.f32.mrf.mxu0
    %v1798 = vadd.f32 0.0, %v1797
    %v1799 = vpop.f32.mrf.mxu0
    %1800 = vmatprep.mubr.f32.mxu0 0.0
    %1801 = vmatmul.mubr.f32.gmra.mxu0 %v1437
    %v1802 = vpop.f32.mrf.mxu0
    %v1803 = vadd.f32 0.0, %v1802
    %v1804 = vpop.f32.mrf.mxu0
    %1805 = vmatprep.mubr.f32.mxu0 0.0
    %1806 = vmatmul.mubr.f32.gmra.mxu0 %v1440
    %v1807 = vpop.f32.mrf.mxu0
    %v1808 = vadd.f32 0.0, %v1807
    %v1809 = vpop.f32.mrf.mxu0
    %1810 = vmatprep.mubr.f32.mxu0 0.0
    %1811 = vmatmul.mubr.f32.gmra.mxu0 %v1443
    %v1812 = vpop.f32.mrf.mxu0
    %v1813 = vadd.f32 0.0, %v1812
    %v1814 = vpop.f32.mrf.mxu0
    %1815 = vmatprep.mubr.f32.mxu0 0.0
    %1816 = vmatmul.mubr.f32.gmra.mxu0 %v1446
    %v1817 = vpop.f32.mrf.mxu0
    %v1818 = vadd.f32 0.0, %v1817
    %v1819 = vpop.f32.mrf.mxu0
    %1820 = vmatprep.mubr.f32.mxu0 0.0
    %1821 = vmatmul.mubr.f32.gmra.mxu0 %v1449
    %v1822 = vpop.f32.mrf.mxu0
    %v1823 = vadd.f32 0.0, %v1822
    %v1824 = vpop.f32.mrf.mxu0
    %1825 = vmatprep.mubr.f32.mxu0 0.0
    %1826 = vmatmul.mubr.f32.gmra.mxu0 %v1452
    %v1827 = vpop.f32.mrf.mxu0
    %v1828 = vadd.f32 0.0, %v1827
    %v1829 = vpop.f32.mrf.mxu0
    %1830 = vmatprep.mubr.f32.mxu0 0.0
    %1831 = vmatmul.mubr.f32.gmra.mxu0 %v1455
    %v1832 = vpop.f32.mrf.mxu0
    %v1833 = vadd.f32 0.0, %v1832
    %v1834 = vpop.f32.mrf.mxu0
    %1835 = vmatprep.mubr.f32.mxu0 0.0
    %1836 = vmatmul.mubr.f32.gmra.mxu0 %v1458
    %v1837 = vpop.f32.mrf.mxu0
    %v1838 = vadd.f32 0.0, %v1837
    %v1839 = vpop.f32.mrf.mxu0
    %1840 = vmatprep.mubr.f32.mxu0 0.0
    %1841 = vmatmul.mubr.f32.gmra.mxu0 %v1461
    %v1842 = vpop.f32.mrf.mxu0
    %v1843 = vadd.f32 0.0, %v1842
    %v1844 = vpop.f32.mrf.mxu0
    %1845 = vmatprep.mubr.f32.mxu0 0.0
    %1846 = vmatmul.mubr.f32.gmra.mxu0 %v1464
    %v1847 = vpop.f32.mrf.mxu0
    %v1848 = vadd.f32 0.0, %v1847
    %v1849 = vpop.f32.mrf.mxu0
    %1850 = vdwg.mxu0
    %1851 = vset.pattern.permute.xlu0 1
    %1852 = vperm.xlu0 %1851, %v694
    %v1853 = vpop.permute.xlu0 %1852
    %1855 = vset.pattern.permute.xlu0 1
    %1856 = vperm.xlu0 %1855, %v695
    %v1857 = vpop.permute.xlu0 %1856
    %1859 = vset.pattern.permute.xlu0 1
    %1860 = vperm.xlu0 %1859, %v696
    %v1861 = vpop.permute.xlu0 %1860
    %1863 = vset.pattern.permute.xlu0 1
    %1864 = vperm.xlu0 %1863, %v697
    %v1865 = vpop.permute.xlu0 %1864
    %1867 = vset.pattern.permute.xlu0 1
    %1868 = vperm.xlu0 %1867, %v698
    %v1869 = vpop.permute.xlu0 %1868
    %1871 = vset.pattern.permute.xlu0 1
    %1872 = vperm.xlu0 %1871, %v699
    %v1873 = vpop.permute.xlu0 %1872
    %1875 = vset.pattern.permute.xlu0 1
    %1876 = vperm.xlu0 %1875, %v700
    %v1877 = vpop.permute.xlu0 %1876
    %1879 = vset.pattern.permute.xlu0 1
    %1880 = vperm.xlu0 %1879, %v701
    %v1881 = vpop.permute.xlu0 %1880
    %1883 = vset.pattern.permute.xlu0 1
    %1884 = vperm.xlu0 %1883, %v702
    %v1885 = vpop.permute.xlu0 %1884
    %1887 = vset.pattern.permute.xlu0 1
    %1888 = vperm.xlu0 %1887, %v703
    %v1889 = vpop.permute.xlu0 %1888
    %1891 = vset.pattern.permute.xlu0 1
    %1892 = vperm.xlu0 %1891, %v704
    %v1893 = vpop.permute.xlu0 %1892
    %1895 = vset.pattern.permute.xlu0 1
    %1896 = vperm.xlu0 %1895, %v705
    %v1897 = vpop.permute.xlu0 %1896
    %1899 = vset.pattern.permute.xlu0 1
    %1900 = vperm.xlu0 %1899, %v706
    %v1901 = vpop.permute.xlu0 %1900
    %1903 = vset.pattern.permute.xlu0 1
    %1904 = vperm.xlu0 %1903, %v707
    %v1905 = vpop.permute.xlu0 %1904
    %1907 = vset.pattern.permute.xlu0 1
    %1908 = vperm.xlu0 %1907, %v708
    %v1909 = vpop.permute.xlu0 %1908
    %1911 = vset.pattern.permute.xlu0 1
    %1912 = vperm.xlu0 %1911, %v709
    %v1913 = vpop.permute.xlu0 %1912
    %1915 = vset.pattern.permute.xlu0 1
    %1916 = vperm.xlu0 %1915, %v710
    %v1917 = vpop.permute.xlu0 %1916
    %1919 = vset.pattern.permute.xlu0 1
    %1920 = vperm.xlu0 %1919, %v711
    %v1921 = vpop.permute.xlu0 %1920
    %1923 = vset.pattern.permute.xlu0 1
    %1924 = vperm.xlu0 %1923, %v712
    %v1925 = vpop.permute.xlu0 %1924
    %1927 = vset.pattern.permute.xlu0 1
    %1928 = vperm.xlu0 %1927, %v713
    %v1929 = vpop.permute.xlu0 %1928
    %1931 = vset.pattern.permute.xlu0 1
    %1932 = vperm.xlu0 %1931, %v714
    %v1933 = vpop.permute.xlu0 %1932
    %1935 = vset.pattern.permute.xlu0 1
    %1936 = vperm.xlu0 %1935, %v715
    %v1937 = vpop.permute.xlu0 %1936
    %1939 = vset.pattern.permute.xlu0 1
    %1940 = vperm.xlu0 %1939, %v716
    %v1941 = vpop.permute.xlu0 %1940
    %1943 = vset.pattern.permute.xlu0 1
    %1944 = vperm.xlu0 %1943, %v717
    %v1945 = vpop.permute.xlu0 %1944
    %1947 = vset.pattern.permute.xlu0 1
    %1948 = vperm.xlu0 %1947, %v718
    %v1949 = vpop.permute.xlu0 %1948
    %1951 = vset.pattern.permute.xlu0 1
    %1952 = vperm.xlu0 %1951, %v719
    %v1953 = vpop.permute.xlu0 %1952
    %1955 = vset.pattern.permute.xlu0 1
    %1956 = vperm.xlu0 %1955, %v720
    %v1957 = vpop.permute.xlu0 %1956
    %1959 = vset.pattern.permute.xlu0 1
    %1960 = vperm.xlu0 %1959, %v721
    %v1961 = vpop.permute.xlu0 %1960
    %1963 = vset.pattern.permute.xlu0 1
    %1964 = vperm.xlu0 %1963, %v722
    %v1965 = vpop.permute.xlu0 %1964
    %1967 = vset.pattern.permute.xlu0 1
    %1968 = vperm.xlu0 %1967, %v723
    %v1969 = vpop.permute.xlu0 %1968
    %1971 = vset.pattern.permute.xlu0 1
    %1972 = vperm.xlu0 %1971, %v724
    %v1973 = vpop.permute.xlu0 %1972
    %1975 = vset.pattern.permute.xlu0 1
    %1976 = vperm.xlu0 %1975, %v725
    %v1977 = vpop.permute.xlu0 %1976
    %1979 = vset.pattern.permute.xlu0 1
    %1980 = vperm.xlu0 %1979, %v726
    %v1981 = vpop.permute.xlu0 %1980
    %1983 = vset.pattern.permute.xlu0 1
    %1984 = vperm.xlu0 %1983, %v727
    %v1985 = vpop.permute.xlu0 %1984
    %1987 = vset.pattern.permute.xlu0 1
    %1988 = vperm.xlu0 %1987, %v728
    %v1989 = vpop.permute.xlu0 %1988
    %1991 = vset.pattern.permute.xlu0 1
    %1992 = vperm.xlu0 %1991, %v729
    %v1993 = vpop.permute.xlu0 %1992
    %1995 = vset.pattern.permute.xlu0 1
    %1996 = vperm.xlu0 %1995, %v730
    %v1997 = vpop.permute.xlu0 %1996
    %1999 = vset.pattern.permute.xlu0 1
    %2000 = vperm.xlu0 %1999, %v731
    %v2001 = vpop.permute.xlu0 %2000
    %2003 = vset.pattern.permute.xlu0 1
    %2004 = vperm.xlu0 %2003, %v732
    %v2005 = vpop.permute.xlu0 %2004
    %2007 = vset.pattern.permute.xlu0 1
    %2008 = vperm.xlu0 %2007, %v733
    %v2009 = vpop.permute.xlu0 %2008
    %2011 = vset.pattern.permute.xlu0 1
    %2012 = vperm.xlu0 %2011, %v734
    %v2013 = vpop.permute.xlu0 %2012
    %2015 = vset.pattern.permute.xlu0 1
    %2016 = vperm.xlu0 %2015, %v735
    %v2017 = vpop.permute.xlu0 %2016
    %2019 = vset.pattern.permute.xlu0 1
    %2020 = vperm.xlu0 %2019, %v736
    %v2021 = vpop.permute.xlu0 %2020
    %2023 = vset.pattern.permute.xlu0 1
    %2024 = vperm.xlu0 %2023, %v737
    %v2025 = vpop.permute.xlu0 %2024
    %2027 = vset.pattern.permute.xlu0 1
    %2028 = vperm.xlu0 %2027, %v738
    %v2029 = vpop.permute.xlu0 %2028
    %2031 = vset.pattern.permute.xlu0 1
    %2032 = vperm.xlu0 %2031, %v739
    %v2033 = vpop.permute.xlu0 %2032
    %2035 = vset.pattern.permute.xlu0 1
    %2036 = vperm.xlu0 %2035, %v740
    %v2037 = vpop.permute.xlu0 %2036
    %2039 = vset.pattern.permute.xlu0 1
    %2040 = vperm.xlu0 %2039, %v741
    %v2041 = vpop.permute.xlu0 %2040
    %2043 = vset.pattern.permute.xlu0 1
    %2044 = vperm.xlu0 %2043, %v742
    %v2045 = vpop.permute.xlu0 %2044
    %2047 = vset.pattern.permute.xlu0 1
    %2048 = vperm.xlu0 %2047, %v743
    %v2049 = vpop.permute.xlu0 %2048
    %2051 = vset.pattern.permute.xlu0 1
    %2052 = vperm.xlu0 %2051, %v744
    %v2053 = vpop.permute.xlu0 %2052
    %2055 = vset.pattern.permute.xlu0 1
    %2056 = vperm.xlu0 %2055, %v745
    %v2057 = vpop.permute.xlu0 %2056
    %2059 = vset.pattern.permute.xlu0 1
    %2060 = vperm.xlu0 %2059, %v746
    %v2061 = vpop.permute.xlu0 %2060
    %2063 = vset.pattern.permute.xlu0 1
    %2064 = vperm.xlu0 %2063, %v747
    %v2065 = vpop.permute.xlu0 %2064
    %2067 = vset.pattern.permute.xlu0 1
    %2068 = vperm.xlu0 %2067, %v748
    %v2069 = vpop.permute.xlu0 %2068
    %2071 = vset.pattern.permute.xlu0 1
    %2072 = vperm.xlu0 %2071, %v749
    %v2073 = vpop.permute.xlu0 %2072
    %2075 = vset.pattern.permute.xlu0 1
    %2076 = vperm.xlu0 %2075, %v750
    %v2077 = vpop.permute.xlu0 %2076
    %2079 = vset.pattern.permute.xlu0 1
    %2080 = vperm.xlu0 %2079, %v751
    %v2081 = vpop.permute.xlu0 %2080
    %2083 = vset.pattern.permute.xlu0 1
    %2084 = vperm.xlu0 %2083, %v752
    %v2085 = vpop.permute.xlu0 %2084
    %2087 = vset.pattern.permute.xlu0 1
    %2088 = vperm.xlu0 %2087, %v753
    %v2089 = vpop.permute.xlu0 %2088
    %2091 = vset.pattern.permute.xlu0 1
    %2092 = vperm.xlu0 %2091, %v754
    %v2093 = vpop.permute.xlu0 %2092
    %2095 = vset.pattern.permute.xlu0 1
    %2096 = vperm.xlu0 %2095, %v755
    %v2097 = vpop.permute.xlu0 %2096
    %2099 = vset.pattern.permute.xlu0 1
    %2100 = vperm.xlu0 %2099, %v756
    %v2101 = vpop.permute.xlu0 %2100
    %2103 = vset.pattern.permute.xlu0 1
    %2104 = vperm.xlu0 %2103, %v757
    %v2105 = vpop.permute.xlu0 %2104
    %v2107 = vmul.f32 %v1533, %v1853
    %v2108 = vmul.f32 %v1538, %v1857
    %v2109 = vmul.f32 %v1543, %v1861
    %v2110 = vmul.f32 %v1548, %v1865
    %v2111 = vmul.f32 %v1553, %v1869
    %v2112 = vmul.f32 %v1558, %v1873
    %v2113 = vmul.f32 %v1563, %v1877
    %v2114 = vmul.f32 %v1568, %v1881
    %v2115 = vmul.f32 %v1573, %v1885
    %v2116 = vmul.f32 %v1578, %v1889
    %v2117 = vmul.f32 %v1583, %v1893
    %v2118 = vmul.f32 %v1588, %v1897
    %v2119 = vmul.f32 %v1593, %v1901
    %v2120 = vmul.f32 %v1598, %v1905
    %v2121 = vmul.f32 %v1603, %v1909
    %v2122 = vmul.f32 %v1608, %v1913
    %v2123 = vmul.f32 %v1613, %v1917
    %v2124 = vmul.f32 %v1618, %v1921
    %v2125 = vmul.f32 %v1623, %v1925
    %v2126 = vmul.f32 %v1628, %v1929
    %v2127 = vmul.f32 %v1633, %v1933
    %v2128 = vmul.f32 %v1638, %v1937
    %v2129 = vmul.f32 %v1643, %v1941
    %v2130 = vmul.f32 %v1648, %v1945
    %v2131 = vmul.f32 %v1653, %v1949
    %v2132 = vmul.f32 %v1658, %v1953
    %v2133 = vmul.f32 %v1663, %v1957
    %v2134 = vmul.f32 %v1668, %v1961
    %v2135 = vmul.f32 %v1673, %v1965
    %v2136 = vmul.f32 %v1678, %v1969
    %v2137 = vmul.f32 %v1683, %v1973
    %v2138 = vmul.f32 %v1688, %v1977
    %v2139 = vmul.f32 %v1693, %v1981
    %v2140 = vmul.f32 %v1698, %v1985
    %v2141 = vmul.f32 %v1703, %v1989
    %v2142 = vmul.f32 %v1708, %v1993
    %v2143 = vmul.f32 %v1713, %v1997
    %v2144 = vmul.f32 %v1718, %v2001
    %v2145 = vmul.f32 %v1723, %v2005
    %v2146 = vmul.f32 %v1728, %v2009
    %v2147 = vmul.f32 %v1733, %v2013
    %v2148 = vmul.f32 %v1738, %v2017
    %v2149 = vmul.f32 %v1743, %v2021
    %v2150 = vmul.f32 %v1748, %v2025
    %v2151 = vmul.f32 %v1753, %v2029
    %v2152 = vmul.f32 %v1758, %v2033
    %v2153 = vmul.f32 %v1763, %v2037
    %v2154 = vmul.f32 %v1768, %v2041
    %v2155 = vmul.f32 %v1773, %v2045
    %v2156 = vmul.f32 %v1778, %v2049
    %v2157 = vmul.f32 %v1783, %v2053
    %v2158 = vmul.f32 %v1788, %v2057
    %v2159 = vmul.f32 %v1793, %v2061
    %v2160 = vmul.f32 %v1798, %v2065
    %v2161 = vmul.f32 %v1803, %v2069
    %v2162 = vmul.f32 %v1808, %v2073
    %v2163 = vmul.f32 %v1813, %v2077
    %v2164 = vmul.f32 %v1818, %v2081
    %v2165 = vmul.f32 %v1823, %v2085
    %v2166 = vmul.f32 %v1828, %v2089
    %v2167 = vmul.f32 %v1833, %v2093
    %v2168 = vmul.f32 %v1838, %v2097
    %v2169 = vmul.f32 %v1843, %v2101
    %v2170 = vmul.f32 %v1848, %v2105
    %v2171 = vadd.f32 %v1142, %v2107
    %v2172 = vadd.f32 %v1143, %v2108
    %v2173 = vadd.f32 %v1144, %v2109
    %v2174 = vadd.f32 %v1145, %v2110
    %v2175 = vadd.f32 %v1146, %v2111
    %v2176 = vadd.f32 %v1147, %v2112
    %v2177 = vadd.f32 %v1148, %v2113
    %v2178 = vadd.f32 %v1149, %v2114
    %v2179 = vadd.f32 %v1150, %v2115
    %v2180 = vadd.f32 %v1151, %v2116
    %v2181 = vadd.f32 %v1152, %v2117
    %v2182 = vadd.f32 %v1153, %v2118
    %v2183 = vadd.f32 %v1154, %v2119
    %v2184 = vadd.f32 %v1155, %v2120
    %v2185 = vadd.f32 %v1156, %v2121
    %v2186 = vadd.f32 %v1157, %v2122
    %v2187 = vadd.f32 %v1158, %v2123
    %v2188 = vadd.f32 %v1159, %v2124
    %v2189 = vadd.f32 %v1160, %v2125
    %v2190 = vadd.f32 %v1161, %v2126
    %v2191 = vadd.f32 %v1162, %v2127
    %v2192 = vadd.f32 %v1163, %v2128
    %v2193 = vadd.f32 %v1164, %v2129
    %v2194 = vadd.f32 %v1165, %v2130
    %v2195 = vadd.f32 %v1166, %v2131
    %v2196 = vadd.f32 %v1167, %v2132
    %v2197 = vadd.f32 %v1168, %v2133
    %v2198 = vadd.f32 %v1169, %v2134
    %v2199 = vadd.f32 %v1170, %v2135
    %v2200 = vadd.f32 %v1171, %v2136
    %v2201 = vadd.f32 %v1172, %v2137
    %v2202 = vadd.f32 %v1173, %v2138
    %v2203 = vadd.f32 %v1174, %v2139
    %v2204 = vadd.f32 %v1175, %v2140
    %v2205 = vadd.f32 %v1176, %v2141
    %v2206 = vadd.f32 %v1177, %v2142
    %v2207 = vadd.f32 %v1178, %v2143
    %v2208 = vadd.f32 %v1179, %v2144
    %v2209 = vadd.f32 %v1180, %v2145
    %v2210 = vadd.f32 %v1181, %v2146
    %v2211 = vadd.f32 %v1182, %v2147
    %v2212 = vadd.f32 %v1183, %v2148
    %v2213 = vadd.f32 %v1184, %v2149
    %v2214 = vadd.f32 %v1185, %v2150
    %v2215 = vadd.f32 %v1186, %v2151
    %v2216 = vadd.f32 %v1187, %v2152
    %v2217 = vadd.f32 %v1188, %v2153
    %v2218 = vadd.f32 %v1189, %v2154
    %v2219 = vadd.f32 %v1190, %v2155
    %v2220 = vadd.f32 %v1191, %v2156
    %v2221 = vadd.f32 %v1192, %v2157
    %v2222 = vadd.f32 %v1193, %v2158
    %v2223 = vadd.f32 %v1194, %v2159
    %v2224 = vadd.f32 %v1195, %v2160
    %v2225 = vadd.f32 %v1196, %v2161
    %v2226 = vadd.f32 %v1197, %v2162
    %v2227 = vadd.f32 %v1198, %v2163
    %v2228 = vadd.f32 %v1199, %v2164
    %v2229 = vadd.f32 %v1200, %v2165
    %v2230 = vadd.f32 %v1201, %v2166
    %v2231 = vadd.f32 %v1202, %v2167
    %v2232 = vadd.f32 %v1203, %v2168
    %v2233 = vadd.f32 %v1204, %v2169
    %v2234 = vadd.f32 %v1205, %v2170
    %v2235 = vld [vmem:[%s0 + $0x2] sm:$0xff]
    %v2236 = vld [vmem:[%s0 + $0xa] sm:$0xff]
    %v2237 = vld [vmem:[%s0 + $0x12] sm:$0xff]
    %v2238 = vld [vmem:[%s0 + $0x1a] sm:$0xff]
    %v2239 = vld [vmem:[%s0 + $0x22] sm:$0xff]
    %v2240 = vld [vmem:[%s0 + $0x2a] sm:$0xff]
    %v2241 = vld [vmem:[%s0 + $0x32] sm:$0xff]
    %v2242 = vld [vmem:[%s0 + $0x3a] sm:$0xff]
    %v2243 = vld [vmem:[%s0 + $0x42] sm:$0xff]
    %v2244 = vld [vmem:[%s0 + $0x4a] sm:$0xff]
    %v2245 = vld [vmem:[%s0 + $0x52] sm:$0xff]
    %v2246 = vld [vmem:[%s0 + $0x5a] sm:$0xff]
    %v2247 = vld [vmem:[%s0 + $0x62] sm:$0xff]
    %v2248 = vld [vmem:[%s0 + $0x6a] sm:$0xff]
    %v2249 = vld [vmem:[%s0 + $0x72] sm:$0xff]
    %v2250 = vld [vmem:[%s0 + $0x7a] sm:$0xff]
    %v2251 = vld [vmem:[%s0 + $0x82] sm:$0xff]
    %v2252 = vld [vmem:[%s0 + $0x8a] sm:$0xff]
    %v2253 = vld [vmem:[%s0 + $0x92] sm:$0xff]
    %v2254 = vld [vmem:[%s0 + $0x9a] sm:$0xff]
    %v2255 = vld [vmem:[%s0 + $0xa2] sm:$0xff]
    %v2256 = vld [vmem:[%s0 + $0xaa] sm:$0xff]
    %v2257 = vld [vmem:[%s0 + $0xb2] sm:$0xff]
    %v2258 = vld [vmem:[%s0 + $0xba] sm:$0xff]
    %v2259 = vld [vmem:[%s0 + $0xc2] sm:$0xff]
    %v2260 = vld [vmem:[%s0 + $0xca] sm:$0xff]
    %v2261 = vld [vmem:[%s0 + $0xd2] sm:$0xff]
    %v2262 = vld [vmem:[%s0 + $0xda] sm:$0xff]
    %v2263 = vld [vmem:[%s0 + $0xe2] sm:$0xff]
    %v2264 = vld [vmem:[%s0 + $0xea] sm:$0xff]
    %v2265 = vld [vmem:[%s0 + $0xf2] sm:$0xff]
    %v2266 = vld [vmem:[%s0 + $0xfa] sm:$0xff]
    %v2267 = vld [vmem:[%s0 + $0x102] sm:$0xff]
    %v2268 = vld [vmem:[%s0 + $0x10a] sm:$0xff]
    %v2269 = vld [vmem:[%s0 + $0x112] sm:$0xff]
    %v2270 = vld [vmem:[%s0 + $0x11a] sm:$0xff]
    %v2271 = vld [vmem:[%s0 + $0x122] sm:$0xff]
    %v2272 = vld [vmem:[%s0 + $0x12a] sm:$0xff]
    %v2273 = vld [vmem:[%s0 + $0x132] sm:$0xff]
    %v2274 = vld [vmem:[%s0 + $0x13a] sm:$0xff]
    %v2275 = vld [vmem:[%s0 + $0x142] sm:$0xff]
    %v2276 = vld [vmem:[%s0 + $0x14a] sm:$0xff]
    %v2277 = vld [vmem:[%s0 + $0x152] sm:$0xff]
    %v2278 = vld [vmem:[%s0 + $0x15a] sm:$0xff]
    %v2279 = vld [vmem:[%s0 + $0x162] sm:$0xff]
    %v2280 = vld [vmem:[%s0 + $0x16a] sm:$0xff]
    %v2281 = vld [vmem:[%s0 + $0x172] sm:$0xff]
    %v2282 = vld [vmem:[%s0 + $0x17a] sm:$0xff]
    %v2283 = vld [vmem:[%s0 + $0x182] sm:$0xff]
    %v2284 = vld [vmem:[%s0 + $0x18a] sm:$0xff]
    %v2285 = vld [vmem:[%s0 + $0x192] sm:$0xff]
    %v2286 = vld [vmem:[%s0 + $0x19a] sm:$0xff]
    %v2287 = vld [vmem:[%s0 + $0x1a2] sm:$0xff]
    %v2288 = vld [vmem:[%s0 + $0x1aa] sm:$0xff]
    %v2289 = vld [vmem:[%s0 + $0x1b2] sm:$0xff]
    %v2290 = vld [vmem:[%s0 + $0x1ba] sm:$0xff]
    %v2291 = vld [vmem:[%s0 + $0x1c2] sm:$0xff]
    %v2292 = vld [vmem:[%s0 + $0x1ca] sm:$0xff]
    %v2293 = vld [vmem:[%s0 + $0x1d2] sm:$0xff]
    %v2294 = vld [vmem:[%s0 + $0x1da] sm:$0xff]
    %v2295 = vld [vmem:[%s0 + $0x1e2] sm:$0xff]
    %v2296 = vld [vmem:[%s0 + $0x1ea] sm:$0xff]
    %v2297 = vld [vmem:[%s0 + $0x1f2] sm:$0xff]
    %v2298 = vld [vmem:[%s0 + $0x1fa] sm:$0xff]
    %v2299 = vld [vmem:[%s4 + $0x40] sm:$0xff]
    %v2300 = vld [vmem:[%s4 + $0x48] sm:$0xff]
    %v2301 = vld [vmem:[%s4 + $0x50] sm:$0xff]
    %v2302 = vld [vmem:[%s4 + $0x58] sm:$0xff]
    %v2304 = vsel %vm116, %v2235, 0
    %v2307 = vsel %vm116, %v2236, 0
    %v2310 = vsel %vm116, %v2237, 0
    %v2313 = vsel %vm116, %v2238, 0
    %v2316 = vsel %vm116, %v2239, 0
    %v2319 = vsel %vm116, %v2240, 0
    %v2322 = vsel %vm116, %v2241, 0
    %v2325 = vsel %vm116, %v2242, 0
    %v2328 = vsel %vm116, %v2243, 0
    %v2331 = vsel %vm116, %v2244, 0
    %v2334 = vsel %vm116, %v2245, 0
    %v2337 = vsel %vm116, %v2246, 0
    %v2340 = vsel %vm116, %v2247, 0
    %v2343 = vsel %vm116, %v2248, 0
    %v2346 = vsel %vm116, %v2249, 0
    %v2349 = vsel %vm116, %v2250, 0
    %v2352 = vsel %vm116, %v2251, 0
    %v2355 = vsel %vm116, %v2252, 0
    %v2358 = vsel %vm116, %v2253, 0
    %v2361 = vsel %vm116, %v2254, 0
    %v2364 = vsel %vm116, %v2255, 0
    %v2367 = vsel %vm116, %v2256, 0
    %v2370 = vsel %vm116, %v2257, 0
    %v2373 = vsel %vm116, %v2258, 0
    %v2376 = vsel %vm116, %v2259, 0
    %v2379 = vsel %vm116, %v2260, 0
    %v2382 = vsel %vm116, %v2261, 0
    %v2385 = vsel %vm116, %v2262, 0
    %v2388 = vsel %vm116, %v2263, 0
    %v2391 = vsel %vm116, %v2264, 0
    %v2394 = vsel %vm116, %v2265, 0
    %v2397 = vsel %vm116, %v2266, 0
    %v2400 = vsel %vm116, %v2267, 0
    %v2403 = vsel %vm116, %v2268, 0
    %v2406 = vsel %vm116, %v2269, 0
    %v2409 = vsel %vm116, %v2270, 0
    %v2412 = vsel %vm116, %v2271, 0
    %v2415 = vsel %vm116, %v2272, 0
    %v2418 = vsel %vm116, %v2273, 0
    %v2421 = vsel %vm116, %v2274, 0
    %v2424 = vsel %vm116, %v2275, 0
    %v2427 = vsel %vm116, %v2276, 0
    %v2430 = vsel %vm116, %v2277, 0
    %v2433 = vsel %vm116, %v2278, 0
    %v2436 = vsel %vm116, %v2279, 0
    %v2439 = vsel %vm116, %v2280, 0
    %v2442 = vsel %vm116, %v2281, 0
    %v2445 = vsel %vm116, %v2282, 0
    %v2448 = vsel %vm116, %v2283, 0
    %v2451 = vsel %vm116, %v2284, 0
    %v2454 = vsel %vm116, %v2285, 0
    %v2457 = vsel %vm116, %v2286, 0
    %v2460 = vsel %vm116, %v2287, 0
    %v2463 = vsel %vm116, %v2288, 0
    %v2466 = vsel %vm116, %v2289, 0
    %v2469 = vsel %vm116, %v2290, 0
    %v2472 = vsel %vm116, %v2291, 0
    %v2475 = vsel %vm116, %v2292, 0
    %v2478 = vsel %vm116, %v2293, 0
    %v2481 = vsel %vm116, %v2294, 0
    %v2484 = vsel %vm116, %v2295, 0
    %v2487 = vsel %vm116, %v2296, 0
    %v2490 = vsel %vm116, %v2297, 0
    %v2493 = vsel %vm116, %v2298, 0
    %2495 = vmatprep.subr.mxu0 0.0
    %2496 = vmatpush1.msra.mxu0 0.0
    %2497 = vmatprep.subr.mxu0 0.0
    %2498 = vmatpush1.msra.mxu0 0.0
    %2499 = vmatprep.subr.mxu0 0.0
    %2500 = vmatpush1.msra.mxu0 0.0
    %2501 = vmatprep.subr.mxu0 0.0
    %2502 = vmatpush1.msra.mxu0 0.0
    %2503 = vmatprep.subr.mxu0 0.0
    %2504 = vmatpush1.msra.mxu0 0.0
    %2505 = vmatprep.subr.mxu0 0.0
    %2506 = vmatpush1.msra.mxu0 0.0
    %2507 = vmatprep.subr.mxu0 0.0
    %2508 = vmatpush1.msra.mxu0 0.0
    %2509 = vmatprep.subr.mxu0 0.0
    %2510 = vmatpush1.msra.mxu0 0.0
    %2511 = vmatprep.subr.mxu0 0.0
    %2512 = vmatpush1.msra.mxu0 0.0
    %2513 = vmatprep.subr.mxu0 0.0
    %2514 = vmatpush1.msra.mxu0 0.0
    %2515 = vmatprep.subr.mxu0 0.0
    %2516 = vmatpush1.msra.mxu0 0.0
    %2517 = vmatprep.subr.mxu0 0.0
    %2518 = vmatpush1.msra.mxu0 0.0
    %2519 = vmatprep.subr.mxu0 0.0
    %2520 = vmatpush1.msra.mxu0 %v2302
    %2521 = vmatprep.subr.mxu0 0.0
    %2522 = vmatpush1.msra.mxu0 %v2301
    %2523 = vmatprep.subr.mxu0 0.0
    %2524 = vmatpush1.msra.mxu0 %v2300
    %2525 = vmatprep.subr.mxu0 0.0
    %2526 = vmatpush1.msra.mxu0 %v2299
    %2527 = vmatprep.subr.mxu0 0.0
    %2528 = vmatpush2.msra.mxu0 0.0
    %2529 = vmatprep.subr.mxu0 0.0
    %2530 = vmatpush2.msra.mxu0 0.0
    %2531 = vmatprep.subr.mxu0 0.0
    %2532 = vmatpush2.msra.mxu0 0.0
    %2533 = vmatprep.subr.mxu0 0.0
    %2534 = vmatpush2.msra.mxu0 0.0
    %2535 = vmatprep.subr.mxu0 0.0
    %2536 = vmatpush2.msra.mxu0 0.0
    %2537 = vmatprep.subr.mxu0 0.0
    %2538 = vmatpush2.msra.mxu0 0.0
    %2539 = vmatprep.subr.mxu0 0.0
    %2540 = vmatpush2.msra.mxu0 0.0
    %2541 = vmatprep.subr.mxu0 0.0
    %2542 = vmatpush2.msra.mxu0 0.0
    %2543 = vmatprep.subr.mxu0 0.0
    %2544 = vmatpush2.msra.mxu0 0.0
    %2545 = vmatprep.subr.mxu0 0.0
    %2546 = vmatpush2.msra.mxu0 0.0
    %2547 = vmatprep.subr.mxu0 0.0
    %2548 = vmatpush2.msra.mxu0 0.0
    %2549 = vmatprep.subr.mxu0 0.0
    %2550 = vmatpush2.msra.mxu0 0.0
    %2551 = vmatprep.subr.mxu0 0.0
    %2552 = vmatpush2.msra.mxu0 0.0
    %2553 = vmatprep.subr.mxu0 0.0
    %2554 = vmatpush2.msra.mxu0 0.0
    %2555 = vmatprep.subr.mxu0 0.0
    %2556 = vmatpush2.msra.mxu0 0.0
    %2557 = vmatprep.subr.mxu0 0.0
    %2558 = vmatpush2.msra.mxu0 0.0
    %2559 = vmatprep.mubr.f32.mxu0 0.0
    %2560 = vmatmul.mubr.f32.gmra.mxu0 %v2304
    %v2561 = vpop.f32.mrf.mxu0
    %v2562 = vadd.f32 0.0, %v2561
    %v2563 = vpop.f32.mrf.mxu0
    %2564 = vmatprep.mubr.f32.mxu0 0.0
    %2565 = vmatmul.mubr.f32.gmra.mxu0 %v2307
    %v2566 = vpop.f32.mrf.mxu0
    %v2567 = vadd.f32 0.0, %v2566
    %v2568 = vpop.f32.mrf.mxu0
    %2569 = vmatprep.mubr.f32.mxu0 0.0
    %2570 = vmatmul.mubr.f32.gmra.mxu0 %v2310
    %v2571 = vpop.f32.mrf.mxu0
    %v2572 = vadd.f32 0.0, %v2571
    %v2573 = vpop.f32.mrf.mxu0
    %2574 = vmatprep.mubr.f32.mxu0 0.0
    %2575 = vmatmul.mubr.f32.gmra.mxu0 %v2313
    %v2576 = vpop.f32.mrf.mxu0
    %v2577 = vadd.f32 0.0, %v2576
    %v2578 = vpop.f32.mrf.mxu0
    %2579 = vmatprep.mubr.f32.mxu0 0.0
    %2580 = vmatmul.mubr.f32.gmra.mxu0 %v2316
    %v2581 = vpop.f32.mrf.mxu0
    %v2582 = vadd.f32 0.0, %v2581
    %v2583 = vpop.f32.mrf.mxu0
    %2584 = vmatprep.mubr.f32.mxu0 0.0
    %2585 = vmatmul.mubr.f32.gmra.mxu0 %v2319
    %v2586 = vpop.f32.mrf.mxu0
    %v2587 = vadd.f32 0.0, %v2586
    %v2588 = vpop.f32.mrf.mxu0
    %2589 = vmatprep.mubr.f32.mxu0 0.0
    %2590 = vmatmul.mubr.f32.gmra.mxu0 %v2322
    %v2591 = vpop.f32.mrf.mxu0
    %v2592 = vadd.f32 0.0, %v2591
    %v2593 = vpop.f32.mrf.mxu0
    %2594 = vmatprep.mubr.f32.mxu0 0.0
    %2595 = vmatmul.mubr.f32.gmra.mxu0 %v2325
    %v2596 = vpop.f32.mrf.mxu0
    %v2597 = vadd.f32 0.0, %v2596
    %v2598 = vpop.f32.mrf.mxu0
    %2599 = vmatprep.mubr.f32.mxu0 0.0
    %2600 = vmatmul.mubr.f32.gmra.mxu0 %v2328
    %v2601 = vpop.f32.mrf.mxu0
    %v2602 = vadd.f32 0.0, %v2601
    %v2603 = vpop.f32.mrf.mxu0
    %2604 = vmatprep.mubr.f32.mxu0 0.0
    %2605 = vmatmul.mubr.f32.gmra.mxu0 %v2331
    %v2606 = vpop.f32.mrf.mxu0
    %v2607 = vadd.f32 0.0, %v2606
    %v2608 = vpop.f32.mrf.mxu0
    %2609 = vmatprep.mubr.f32.mxu0 0.0
    %2610 = vmatmul.mubr.f32.gmra.mxu0 %v2334
    %v2611 = vpop.f32.mrf.mxu0
    %v2612 = vadd.f32 0.0, %v2611
    %v2613 = vpop.f32.mrf.mxu0
    %2614 = vmatprep.mubr.f32.mxu0 0.0
    %2615 = vmatmul.mubr.f32.gmra.mxu0 %v2337
    %v2616 = vpop.f32.mrf.mxu0
    %v2617 = vadd.f32 0.0, %v2616
    %v2618 = vpop.f32.mrf.mxu0
    %2619 = vmatprep.mubr.f32.mxu0 0.0
    %2620 = vmatmul.mubr.f32.gmra.mxu0 %v2340
    %v2621 = vpop.f32.mrf.mxu0
    %v2622 = vadd.f32 0.0, %v2621
    %v2623 = vpop.f32.mrf.mxu0
    %2624 = vmatprep.mubr.f32.mxu0 0.0
    %2625 = vmatmul.mubr.f32.gmra.mxu0 %v2343
    %v2626 = vpop.f32.mrf.mxu0
    %v2627 = vadd.f32 0.0, %v2626
    %v2628 = vpop.f32.mrf.mxu0
    %2629 = vmatprep.mubr.f32.mxu0 0.0
    %2630 = vmatmul.mubr.f32.gmra.mxu0 %v2346
    %v2631 = vpop.f32.mrf.mxu0
    %v2632 = vadd.f32 0.0, %v2631
    %v2633 = vpop.f32.mrf.mxu0
    %2634 = vmatprep.mubr.f32.mxu0 0.0
    %2635 = vmatmul.mubr.f32.gmra.mxu0 %v2349
    %v2636 = vpop.f32.mrf.mxu0
    %v2637 = vadd.f32 0.0, %v2636
    %v2638 = vpop.f32.mrf.mxu0
    %2639 = vmatprep.mubr.f32.mxu0 0.0
    %2640 = vmatmul.mubr.f32.gmra.mxu0 %v2352
    %v2641 = vpop.f32.mrf.mxu0
    %v2642 = vadd.f32 0.0, %v2641
    %v2643 = vpop.f32.mrf.mxu0
    %2644 = vmatprep.mubr.f32.mxu0 0.0
    %2645 = vmatmul.mubr.f32.gmra.mxu0 %v2355
    %v2646 = vpop.f32.mrf.mxu0
    %v2647 = vadd.f32 0.0, %v2646
    %v2648 = vpop.f32.mrf.mxu0
    %2649 = vmatprep.mubr.f32.mxu0 0.0
    %2650 = vmatmul.mubr.f32.gmra.mxu0 %v2358
    %v2651 = vpop.f32.mrf.mxu0
    %v2652 = vadd.f32 0.0, %v2651
    %v2653 = vpop.f32.mrf.mxu0
    %2654 = vmatprep.mubr.f32.mxu0 0.0
    %2655 = vmatmul.mubr.f32.gmra.mxu0 %v2361
    %v2656 = vpop.f32.mrf.mxu0
    %v2657 = vadd.f32 0.0, %v2656
    %v2658 = vpop.f32.mrf.mxu0
    %2659 = vmatprep.mubr.f32.mxu0 0.0
    %2660 = vmatmul.mubr.f32.gmra.mxu0 %v2364
    %v2661 = vpop.f32.mrf.mxu0
    %v2662 = vadd.f32 0.0, %v2661
    %v2663 = vpop.f32.mrf.mxu0
    %2664 = vmatprep.mubr.f32.mxu0 0.0
    %2665 = vmatmul.mubr.f32.gmra.mxu0 %v2367
    %v2666 = vpop.f32.mrf.mxu0
    %v2667 = vadd.f32 0.0, %v2666
    %v2668 = vpop.f32.mrf.mxu0
    %2669 = vmatprep.mubr.f32.mxu0 0.0
    %2670 = vmatmul.mubr.f32.gmra.mxu0 %v2370
    %v2671 = vpop.f32.mrf.mxu0
    %v2672 = vadd.f32 0.0, %v2671
    %v2673 = vpop.f32.mrf.mxu0
    %2674 = vmatprep.mubr.f32.mxu0 0.0
    %2675 = vmatmul.mubr.f32.gmra.mxu0 %v2373
    %v2676 = vpop.f32.mrf.mxu0
    %v2677 = vadd.f32 0.0, %v2676
    %v2678 = vpop.f32.mrf.mxu0
    %2679 = vmatprep.mubr.f32.mxu0 0.0
    %2680 = vmatmul.mubr.f32.gmra.mxu0 %v2376
    %v2681 = vpop.f32.mrf.mxu0
    %v2682 = vadd.f32 0.0, %v2681
    %v2683 = vpop.f32.mrf.mxu0
    %2684 = vmatprep.mubr.f32.mxu0 0.0
    %2685 = vmatmul.mubr.f32.gmra.mxu0 %v2379
    %v2686 = vpop.f32.mrf.mxu0
    %v2687 = vadd.f32 0.0, %v2686
    %v2688 = vpop.f32.mrf.mxu0
    %2689 = vmatprep.mubr.f32.mxu0 0.0
    %2690 = vmatmul.mubr.f32.gmra.mxu0 %v2382
    %v2691 = vpop.f32.mrf.mxu0
    %v2692 = vadd.f32 0.0, %v2691
    %v2693 = vpop.f32.mrf.mxu0
    %2694 = vmatprep.mubr.f32.mxu0 0.0
    %2695 = vmatmul.mubr.f32.gmra.mxu0 %v2385
    %v2696 = vpop.f32.mrf.mxu0
    %v2697 = vadd.f32 0.0, %v2696
    %v2698 = vpop.f32.mrf.mxu0
    %2699 = vmatprep.mubr.f32.mxu0 0.0
    %2700 = vmatmul.mubr.f32.gmra.mxu0 %v2388
    %v2701 = vpop.f32.mrf.mxu0
    %v2702 = vadd.f32 0.0, %v2701
    %v2703 = vpop.f32.mrf.mxu0
    %2704 = vmatprep.mubr.f32.mxu0 0.0
    %2705 = vmatmul.mubr.f32.gmra.mxu0 %v2391
    %v2706 = vpop.f32.mrf.mxu0
    %v2707 = vadd.f32 0.0, %v2706
    %v2708 = vpop.f32.mrf.mxu0
    %2709 = vmatprep.mubr.f32.mxu0 0.0
    %2710 = vmatmul.mubr.f32.gmra.mxu0 %v2394
    %v2711 = vpop.f32.mrf.mxu0
    %v2712 = vadd.f32 0.0, %v2711
    %v2713 = vpop.f32.mrf.mxu0
    %2714 = vmatprep.mubr.f32.mxu0 0.0
    %2715 = vmatmul.mubr.f32.gmra.mxu0 %v2397
    %v2716 = vpop.f32.mrf.mxu0
    %v2717 = vadd.f32 0.0, %v2716
    %v2718 = vpop.f32.mrf.mxu0
    %2719 = vmatprep.mubr.f32.mxu0 0.0
    %2720 = vmatmul.mubr.f32.gmra.mxu0 %v2400
    %v2721 = vpop.f32.mrf.mxu0
    %v2722 = vadd.f32 0.0, %v2721
    %v2723 = vpop.f32.mrf.mxu0
    %2724 = vmatprep.mubr.f32.mxu0 0.0
    %2725 = vmatmul.mubr.f32.gmra.mxu0 %v2403
    %v2726 = vpop.f32.mrf.mxu0
    %v2727 = vadd.f32 0.0, %v2726
    %v2728 = vpop.f32.mrf.mxu0
    %2729 = vmatprep.mubr.f32.mxu0 0.0
    %2730 = vmatmul.mubr.f32.gmra.mxu0 %v2406
    %v2731 = vpop.f32.mrf.mxu0
    %v2732 = vadd.f32 0.0, %v2731
    %v2733 = vpop.f32.mrf.mxu0
    %2734 = vmatprep.mubr.f32.mxu0 0.0
    %2735 = vmatmul.mubr.f32.gmra.mxu0 %v2409
    %v2736 = vpop.f32.mrf.mxu0
    %v2737 = vadd.f32 0.0, %v2736
    %v2738 = vpop.f32.mrf.mxu0
    %2739 = vmatprep.mubr.f32.mxu0 0.0
    %2740 = vmatmul.mubr.f32.gmra.mxu0 %v2412
    %v2741 = vpop.f32.mrf.mxu0
    %v2742 = vadd.f32 0.0, %v2741
    %v2743 = vpop.f32.mrf.mxu0
    %2744 = vmatprep.mubr.f32.mxu0 0.0
    %2745 = vmatmul.mubr.f32.gmra.mxu0 %v2415
    %v2746 = vpop.f32.mrf.mxu0
    %v2747 = vadd.f32 0.0, %v2746
    %v2748 = vpop.f32.mrf.mxu0
    %2749 = vmatprep.mubr.f32.mxu0 0.0
    %2750 = vmatmul.mubr.f32.gmra.mxu0 %v2418
    %v2751 = vpop.f32.mrf.mxu0
    %v2752 = vadd.f32 0.0, %v2751
    %v2753 = vpop.f32.mrf.mxu0
    %2754 = vmatprep.mubr.f32.mxu0 0.0
    %2755 = vmatmul.mubr.f32.gmra.mxu0 %v2421
    %v2756 = vpop.f32.mrf.mxu0
    %v2757 = vadd.f32 0.0, %v2756
    %v2758 = vpop.f32.mrf.mxu0
    %2759 = vmatprep.mubr.f32.mxu0 0.0
    %2760 = vmatmul.mubr.f32.gmra.mxu0 %v2424
    %v2761 = vpop.f32.mrf.mxu0
    %v2762 = vadd.f32 0.0, %v2761
    %v2763 = vpop.f32.mrf.mxu0
    %2764 = vmatprep.mubr.f32.mxu0 0.0
    %2765 = vmatmul.mubr.f32.gmra.mxu0 %v2427
    %v2766 = vpop.f32.mrf.mxu0
    %v2767 = vadd.f32 0.0, %v2766
    %v2768 = vpop.f32.mrf.mxu0
    %2769 = vmatprep.mubr.f32.mxu0 0.0
    %2770 = vmatmul.mubr.f32.gmra.mxu0 %v2430
    %v2771 = vpop.f32.mrf.mxu0
    %v2772 = vadd.f32 0.0, %v2771
    %v2773 = vpop.f32.mrf.mxu0
    %2774 = vmatprep.mubr.f32.mxu0 0.0
    %2775 = vmatmul.mubr.f32.gmra.mxu0 %v2433
    %v2776 = vpop.f32.mrf.mxu0
    %v2777 = vadd.f32 0.0, %v2776
    %v2778 = vpop.f32.mrf.mxu0
    %2779 = vmatprep.mubr.f32.mxu0 0.0
    %2780 = vmatmul.mubr.f32.gmra.mxu0 %v2436
    %v2781 = vpop.f32.mrf.mxu0
    %v2782 = vadd.f32 0.0, %v2781
    %v2783 = vpop.f32.mrf.mxu0
    %2784 = vmatprep.mubr.f32.mxu0 0.0
    %2785 = vmatmul.mubr.f32.gmra.mxu0 %v2439
    %v2786 = vpop.f32.mrf.mxu0
    %v2787 = vadd.f32 0.0, %v2786
    %v2788 = vpop.f32.mrf.mxu0
    %2789 = vmatprep.mubr.f32.mxu0 0.0
    %2790 = vmatmul.mubr.f32.gmra.mxu0 %v2442
    %v2791 = vpop.f32.mrf.mxu0
    %v2792 = vadd.f32 0.0, %v2791
    %v2793 = vpop.f32.mrf.mxu0
    %2794 = vmatprep.mubr.f32.mxu0 0.0
    %2795 = vmatmul.mubr.f32.gmra.mxu0 %v2445
    %v2796 = vpop.f32.mrf.mxu0
    %v2797 = vadd.f32 0.0, %v2796
    %v2798 = vpop.f32.mrf.mxu0
    %2799 = vmatprep.mubr.f32.mxu0 0.0
    %2800 = vmatmul.mubr.f32.gmra.mxu0 %v2448
    %v2801 = vpop.f32.mrf.mxu0
    %v2802 = vadd.f32 0.0, %v2801
    %v2803 = vpop.f32.mrf.mxu0
    %2804 = vmatprep.mubr.f32.mxu0 0.0
    %2805 = vmatmul.mubr.f32.gmra.mxu0 %v2451
    %v2806 = vpop.f32.mrf.mxu0
    %v2807 = vadd.f32 0.0, %v2806
    %v2808 = vpop.f32.mrf.mxu0
    %2809 = vmatprep.mubr.f32.mxu0 0.0
    %2810 = vmatmul.mubr.f32.gmra.mxu0 %v2454
    %v2811 = vpop.f32.mrf.mxu0
    %v2812 = vadd.f32 0.0, %v2811
    %v2813 = vpop.f32.mrf.mxu0
    %2814 = vmatprep.mubr.f32.mxu0 0.0
    %2815 = vmatmul.mubr.f32.gmra.mxu0 %v2457
    %v2816 = vpop.f32.mrf.mxu0
    %v2817 = vadd.f32 0.0, %v2816
    %v2818 = vpop.f32.mrf.mxu0
    %2819 = vmatprep.mubr.f32.mxu0 0.0
    %2820 = vmatmul.mubr.f32.gmra.mxu0 %v2460
    %v2821 = vpop.f32.mrf.mxu0
    %v2822 = vadd.f32 0.0, %v2821
    %v2823 = vpop.f32.mrf.mxu0
    %2824 = vmatprep.mubr.f32.mxu0 0.0
    %2825 = vmatmul.mubr.f32.gmra.mxu0 %v2463
    %v2826 = vpop.f32.mrf.mxu0
    %v2827 = vadd.f32 0.0, %v2826
    %v2828 = vpop.f32.mrf.mxu0
    %2829 = vmatprep.mubr.f32.mxu0 0.0
    %2830 = vmatmul.mubr.f32.gmra.mxu0 %v2466
    %v2831 = vpop.f32.mrf.mxu0
    %v2832 = vadd.f32 0.0, %v2831
    %v2833 = vpop.f32.mrf.mxu0
    %2834 = vmatprep.mubr.f32.mxu0 0.0
    %2835 = vmatmul.mubr.f32.gmra.mxu0 %v2469
    %v2836 = vpop.f32.mrf.mxu0
    %v2837 = vadd.f32 0.0, %v2836
    %v2838 = vpop.f32.mrf.mxu0
    %2839 = vmatprep.mubr.f32.mxu0 0.0
    %2840 = vmatmul.mubr.f32.gmra.mxu0 %v2472
    %v2841 = vpop.f32.mrf.mxu0
    %v2842 = vadd.f32 0.0, %v2841
    %v2843 = vpop.f32.mrf.mxu0
    %2844 = vmatprep.mubr.f32.mxu0 0.0
    %2845 = vmatmul.mubr.f32.gmra.mxu0 %v2475
    %v2846 = vpop.f32.mrf.mxu0
    %v2847 = vadd.f32 0.0, %v2846
    %v2848 = vpop.f32.mrf.mxu0
    %2849 = vmatprep.mubr.f32.mxu0 0.0
    %2850 = vmatmul.mubr.f32.gmra.mxu0 %v2478
    %v2851 = vpop.f32.mrf.mxu0
    %v2852 = vadd.f32 0.0, %v2851
    %v2853 = vpop.f32.mrf.mxu0
    %2854 = vmatprep.mubr.f32.mxu0 0.0
    %2855 = vmatmul.mubr.f32.gmra.mxu0 %v2481
    %v2856 = vpop.f32.mrf.mxu0
    %v2857 = vadd.f32 0.0, %v2856
    %v2858 = vpop.f32.mrf.mxu0
    %2859 = vmatprep.mubr.f32.mxu0 0.0
    %2860 = vmatmul.mubr.f32.gmra.mxu0 %v2484
    %v2861 = vpop.f32.mrf.mxu0
    %v2862 = vadd.f32 0.0, %v2861
    %v2863 = vpop.f32.mrf.mxu0
    %2864 = vmatprep.mubr.f32.mxu0 0.0
    %2865 = vmatmul.mubr.f32.gmra.mxu0 %v2487
    %v2866 = vpop.f32.mrf.mxu0
    %v2867 = vadd.f32 0.0, %v2866
    %v2868 = vpop.f32.mrf.mxu0
    %2869 = vmatprep.mubr.f32.mxu0 0.0
    %2870 = vmatmul.mubr.f32.gmra.mxu0 %v2490
    %v2871 = vpop.f32.mrf.mxu0
    %v2872 = vadd.f32 0.0, %v2871
    %v2873 = vpop.f32.mrf.mxu0
    %2874 = vmatprep.mubr.f32.mxu0 0.0
    %2875 = vmatmul.mubr.f32.gmra.mxu0 %v2493
    %v2876 = vpop.f32.mrf.mxu0
    %v2877 = vadd.f32 0.0, %v2876
    %v2878 = vpop.f32.mrf.mxu0
    %2879 = vdwg.mxu0
    %2880 = vset.pattern.permute.xlu0 2
    %2881 = vperm.xlu0 %2880, %v694
    %v2882 = vpop.permute.xlu0 %2881
    %2884 = vset.pattern.permute.xlu0 2
    %2885 = vperm.xlu0 %2884, %v695
    %v2886 = vpop.permute.xlu0 %2885
    %2888 = vset.pattern.permute.xlu0 2
    %2889 = vperm.xlu0 %2888, %v696
    %v2890 = vpop.permute.xlu0 %2889
    %2892 = vset.pattern.permute.xlu0 2
    %2893 = vperm.xlu0 %2892, %v697
    %v2894 = vpop.permute.xlu0 %2893
    %2896 = vset.pattern.permute.xlu0 2
    %2897 = vperm.xlu0 %2896, %v698
    %v2898 = vpop.permute.xlu0 %2897
    %2900 = vset.pattern.permute.xlu0 2
    %2901 = vperm.xlu0 %2900, %v699
    %v2902 = vpop.permute.xlu0 %2901
    %2904 = vset.pattern.permute.xlu0 2
    %2905 = vperm.xlu0 %2904, %v700
    %v2906 = vpop.permute.xlu0 %2905
    %2908 = vset.pattern.permute.xlu0 2
    %2909 = vperm.xlu0 %2908, %v701
    %v2910 = vpop.permute.xlu0 %2909
    %2912 = vset.pattern.permute.xlu0 2
    %2913 = vperm.xlu0 %2912, %v702
    %v2914 = vpop.permute.xlu0 %2913
    %2916 = vset.pattern.permute.xlu0 2
    %2917 = vperm.xlu0 %2916, %v703
    %v2918 = vpop.permute.xlu0 %2917
    %2920 = vset.pattern.permute.xlu0 2
    %2921 = vperm.xlu0 %2920, %v704
    %v2922 = vpop.permute.xlu0 %2921
    %2924 = vset.pattern.permute.xlu0 2
    %2925 = vperm.xlu0 %2924, %v705
    %v2926 = vpop.permute.xlu0 %2925
    %2928 = vset.pattern.permute.xlu0 2
    %2929 = vperm.xlu0 %2928, %v706
    %v2930 = vpop.permute.xlu0 %2929
    %2932 = vset.pattern.permute.xlu0 2
    %2933 = vperm.xlu0 %2932, %v707
    %v2934 = vpop.permute.xlu0 %2933
    %2936 = vset.pattern.permute.xlu0 2
    %2937 = vperm.xlu0 %2936, %v708
    %v2938 = vpop.permute.xlu0 %2937
    %2940 = vset.pattern.permute.xlu0 2
    %2941 = vperm.xlu0 %2940, %v709
    %v2942 = vpop.permute.xlu0 %2941
    %2944 = vset.pattern.permute.xlu0 2
    %2945 = vperm.xlu0 %2944, %v710
    %v2946 = vpop.permute.xlu0 %2945
    %2948 = vset.pattern.permute.xlu0 2
    %2949 = vperm.xlu0 %2948, %v711
    %v2950 = vpop.permute.xlu0 %2949
    %2952 = vset.pattern.permute.xlu0 2
    %2953 = vperm.xlu0 %2952, %v712
    %v2954 = vpop.permute.xlu0 %2953
    %2956 = vset.pattern.permute.xlu0 2
    %2957 = vperm.xlu0 %2956, %v713
    %v2958 = vpop.permute.xlu0 %2957
    %2960 = vset.pattern.permute.xlu0 2
    %2961 = vperm.xlu0 %2960, %v714
    %v2962 = vpop.permute.xlu0 %2961
    %2964 = vset.pattern.permute.xlu0 2
    %2965 = vperm.xlu0 %2964, %v715
    %v2966 = vpop.permute.xlu0 %2965
    %2968 = vset.pattern.permute.xlu0 2
    %2969 = vperm.xlu0 %2968, %v716
    %v2970 = vpop.permute.xlu0 %2969
    %2972 = vset.pattern.permute.xlu0 2
    %2973 = vperm.xlu0 %2972, %v717
    %v2974 = vpop.permute.xlu0 %2973
    %2976 = vset.pattern.permute.xlu0 2
    %2977 = vperm.xlu0 %2976, %v718
    %v2978 = vpop.permute.xlu0 %2977
    %2980 = vset.pattern.permute.xlu0 2
    %2981 = vperm.xlu0 %2980, %v719
    %v2982 = vpop.permute.xlu0 %2981
    %2984 = vset.pattern.permute.xlu0 2
    %2985 = vperm.xlu0 %2984, %v720
    %v2986 = vpop.permute.xlu0 %2985
    %2988 = vset.pattern.permute.xlu0 2
    %2989 = vperm.xlu0 %2988, %v721
    %v2990 = vpop.permute.xlu0 %2989
    %2992 = vset.pattern.permute.xlu0 2
    %2993 = vperm.xlu0 %2992, %v722
    %v2994 = vpop.permute.xlu0 %2993
    %2996 = vset.pattern.permute.xlu0 2
    %2997 = vperm.xlu0 %2996, %v723
    %v2998 = vpop.permute.xlu0 %2997
    %3000 = vset.pattern.permute.xlu0 2
    %3001 = vperm.xlu0 %3000, %v724
    %v3002 = vpop.permute.xlu0 %3001
    %3004 = vset.pattern.permute.xlu0 2
    %3005 = vperm.xlu0 %3004, %v725
    %v3006 = vpop.permute.xlu0 %3005
    %3008 = vset.pattern.permute.xlu0 2
    %3009 = vperm.xlu0 %3008, %v726
    %v3010 = vpop.permute.xlu0 %3009
    %3012 = vset.pattern.permute.xlu0 2
    %3013 = vperm.xlu0 %3012, %v727
    %v3014 = vpop.permute.xlu0 %3013
    %3016 = vset.pattern.permute.xlu0 2
    %3017 = vperm.xlu0 %3016, %v728
    %v3018 = vpop.permute.xlu0 %3017
    %3020 = vset.pattern.permute.xlu0 2
    %3021 = vperm.xlu0 %3020, %v729
    %v3022 = vpop.permute.xlu0 %3021
    %3024 = vset.pattern.permute.xlu0 2
    %3025 = vperm.xlu0 %3024, %v730
    %v3026 = vpop.permute.xlu0 %3025
    %3028 = vset.pattern.permute.xlu0 2
    %3029 = vperm.xlu0 %3028, %v731
    %v3030 = vpop.permute.xlu0 %3029
    %3032 = vset.pattern.permute.xlu0 2
    %3033 = vperm.xlu0 %3032, %v732
    %v3034 = vpop.permute.xlu0 %3033
    %3036 = vset.pattern.permute.xlu0 2
    %3037 = vperm.xlu0 %3036, %v733
    %v3038 = vpop.permute.xlu0 %3037
    %3040 = vset.pattern.permute.xlu0 2
    %3041 = vperm.xlu0 %3040, %v734
    %v3042 = vpop.permute.xlu0 %3041
    %3044 = vset.pattern.permute.xlu0 2
    %3045 = vperm.xlu0 %3044, %v735
    %v3046 = vpop.permute.xlu0 %3045
    %3048 = vset.pattern.permute.xlu0 2
    %3049 = vperm.xlu0 %3048, %v736
    %v3050 = vpop.permute.xlu0 %3049
    %3052 = vset.pattern.permute.xlu0 2
    %3053 = vperm.xlu0 %3052, %v737
    %v3054 = vpop.permute.xlu0 %3053
    %3056 = vset.pattern.permute.xlu0 2
    %3057 = vperm.xlu0 %3056, %v738
    %v3058 = vpop.permute.xlu0 %3057
    %3060 = vset.pattern.permute.xlu0 2
    %3061 = vperm.xlu0 %3060, %v739
    %v3062 = vpop.permute.xlu0 %3061
    %3064 = vset.pattern.permute.xlu0 2
    %3065 = vperm.xlu0 %3064, %v740
    %v3066 = vpop.permute.xlu0 %3065
    %3068 = vset.pattern.permute.xlu0 2
    %3069 = vperm.xlu0 %3068, %v741
    %v3070 = vpop.permute.xlu0 %3069
    %3072 = vset.pattern.permute.xlu0 2
    %3073 = vperm.xlu0 %3072, %v742
    %v3074 = vpop.permute.xlu0 %3073
    %3076 = vset.pattern.permute.xlu0 2
    %3077 = vperm.xlu0 %3076, %v743
    %v3078 = vpop.permute.xlu0 %3077
    %3080 = vset.pattern.permute.xlu0 2
    %3081 = vperm.xlu0 %3080, %v744
    %v3082 = vpop.permute.xlu0 %3081
    %3084 = vset.pattern.permute.xlu0 2
    %3085 = vperm.xlu0 %3084, %v745
    %v3086 = vpop.permute.xlu0 %3085
    %3088 = vset.pattern.permute.xlu0 2
    %3089 = vperm.xlu0 %3088, %v746
    %v3090 = vpop.permute.xlu0 %3089
    %3092 = vset.pattern.permute.xlu0 2
    %3093 = vperm.xlu0 %3092, %v747
    %v3094 = vpop.permute.xlu0 %3093
    %3096 = vset.pattern.permute.xlu0 2
    %3097 = vperm.xlu0 %3096, %v748
    %v3098 = vpop.permute.xlu0 %3097
    %3100 = vset.pattern.permute.xlu0 2
    %3101 = vperm.xlu0 %3100, %v749
    %v3102 = vpop.permute.xlu0 %3101
    %3104 = vset.pattern.permute.xlu0 2
    %3105 = vperm.xlu0 %3104, %v750
    %v3106 = vpop.permute.xlu0 %3105
    %3108 = vset.pattern.permute.xlu0 2
    %3109 = vperm.xlu0 %3108, %v751
    %v3110 = vpop.permute.xlu0 %3109
    %3112 = vset.pattern.permute.xlu0 2
    %3113 = vperm.xlu0 %3112, %v752
    %v3114 = vpop.permute.xlu0 %3113
    %3116 = vset.pattern.permute.xlu0 2
    %3117 = vperm.xlu0 %3116, %v753
    %v3118 = vpop.permute.xlu0 %3117
    %3120 = vset.pattern.permute.xlu0 2
    %3121 = vperm.xlu0 %3120, %v754
    %v3122 = vpop.permute.xlu0 %3121
    %3124 = vset.pattern.permute.xlu0 2
    %3125 = vperm.xlu0 %3124, %v755
    %v3126 = vpop.permute.xlu0 %3125
    %3128 = vset.pattern.permute.xlu0 2
    %3129 = vperm.xlu0 %3128, %v756
    %v3130 = vpop.permute.xlu0 %3129
    %3132 = vset.pattern.permute.xlu0 2
    %3133 = vperm.xlu0 %3132, %v757
    %v3134 = vpop.permute.xlu0 %3133
    %v3136 = vmul.f32 %v2562, %v2882
    %v3137 = vmul.f32 %v2567, %v2886
    %v3138 = vmul.f32 %v2572, %v2890
    %v3139 = vmul.f32 %v2577, %v2894
    %v3140 = vmul.f32 %v2582, %v2898
    %v3141 = vmul.f32 %v2587, %v2902
    %v3142 = vmul.f32 %v2592, %v2906
    %v3143 = vmul.f32 %v2597, %v2910
    %v3144 = vmul.f32 %v2602, %v2914
    %v3145 = vmul.f32 %v2607, %v2918
    %v3146 = vmul.f32 %v2612, %v2922
    %v3147 = vmul.f32 %v2617, %v2926
    %v3148 = vmul.f32 %v2622, %v2930
    %v3149 = vmul.f32 %v2627, %v2934
    %v3150 = vmul.f32 %v2632, %v2938
    %v3151 = vmul.f32 %v2637, %v2942
    %v3152 = vmul.f32 %v2642, %v2946
    %v3153 = vmul.f32 %v2647, %v2950
    %v3154 = vmul.f32 %v2652, %v2954
    %v3155 = vmul.f32 %v2657, %v2958
    %v3156 = vmul.f32 %v2662, %v2962
    %v3157 = vmul.f32 %v2667, %v2966
    %v3158 = vmul.f32 %v2672, %v2970
    %v3159 = vmul.f32 %v2677, %v2974
    %v3160 = vmul.f32 %v2682, %v2978
    %v3161 = vmul.f32 %v2687, %v2982
    %v3162 = vmul.f32 %v2692, %v2986
    %v3163 = vmul.f32 %v2697, %v2990
    %v3164 = vmul.f32 %v2702, %v2994
    %v3165 = vmul.f32 %v2707, %v2998
    %v3166 = vmul.f32 %v2712, %v3002
    %v3167 = vmul.f32 %v2717, %v3006
    %v3168 = vmul.f32 %v2722, %v3010
    %v3169 = vmul.f32 %v2727, %v3014
    %v3170 = vmul.f32 %v2732, %v3018
    %v3171 = vmul.f32 %v2737, %v3022
    %v3172 = vmul.f32 %v2742, %v3026
    %v3173 = vmul.f32 %v2747, %v3030
    %v3174 = vmul.f32 %v2752, %v3034
    %v3175 = vmul.f32 %v2757, %v3038
    %v3176 = vmul.f32 %v2762, %v3042
    %v3177 = vmul.f32 %v2767, %v3046
    %v3178 = vmul.f32 %v2772, %v3050
    %v3179 = vmul.f32 %v2777, %v3054
    %v3180 = vmul.f32 %v2782, %v3058
    %v3181 = vmul.f32 %v2787, %v3062
    %v3182 = vmul.f32 %v2792, %v3066
    %v3183 = vmul.f32 %v2797, %v3070
    %v3184 = vmul.f32 %v2802, %v3074
    %v3185 = vmul.f32 %v2807, %v3078
    %v3186 = vmul.f32 %v2812, %v3082
    %v3187 = vmul.f32 %v2817, %v3086
    %v3188 = vmul.f32 %v2822, %v3090
    %v3189 = vmul.f32 %v2827, %v3094
    %v3190 = vmul.f32 %v2832, %v3098
    %v3191 = vmul.f32 %v2837, %v3102
    %v3192 = vmul.f32 %v2842, %v3106
    %v3193 = vmul.f32 %v2847, %v3110
    %v3194 = vmul.f32 %v2852, %v3114
    %v3195 = vmul.f32 %v2857, %v3118
    %v3196 = vmul.f32 %v2862, %v3122
    %v3197 = vmul.f32 %v2867, %v3126
    %v3198 = vmul.f32 %v2872, %v3130
    %v3199 = vmul.f32 %v2877, %v3134
    %v3200 = vadd.f32 %v2171, %v3136
    %v3201 = vadd.f32 %v2172, %v3137
    %v3202 = vadd.f32 %v2173, %v3138
    %v3203 = vadd.f32 %v2174, %v3139
    %v3204 = vadd.f32 %v2175, %v3140
    %v3205 = vadd.f32 %v2176, %v3141
    %v3206 = vadd.f32 %v2177, %v3142
    %v3207 = vadd.f32 %v2178, %v3143
    %v3208 = vadd.f32 %v2179, %v3144
    %v3209 = vadd.f32 %v2180, %v3145
    %v3210 = vadd.f32 %v2181, %v3146
    %v3211 = vadd.f32 %v2182, %v3147
    %v3212 = vadd.f32 %v2183, %v3148
    %v3213 = vadd.f32 %v2184, %v3149
    %v3214 = vadd.f32 %v2185, %v3150
    %v3215 = vadd.f32 %v2186, %v3151
    %v3216 = vadd.f32 %v2187, %v3152
    %v3217 = vadd.f32 %v2188, %v3153
    %v3218 = vadd.f32 %v2189, %v3154
    %v3219 = vadd.f32 %v2190, %v3155
    %v3220 = vadd.f32 %v2191, %v3156
    %v3221 = vadd.f32 %v2192, %v3157
    %v3222 = vadd.f32 %v2193, %v3158
    %v3223 = vadd.f32 %v2194, %v3159
    %v3224 = vadd.f32 %v2195, %v3160
    %v3225 = vadd.f32 %v2196, %v3161
    %v3226 = vadd.f32 %v2197, %v3162
    %v3227 = vadd.f32 %v2198, %v3163
    %v3228 = vadd.f32 %v2199, %v3164
    %v3229 = vadd.f32 %v2200, %v3165
    %v3230 = vadd.f32 %v2201, %v3166
    %v3231 = vadd.f32 %v2202, %v3167
    %v3232 = vadd.f32 %v2203, %v3168
    %v3233 = vadd.f32 %v2204, %v3169
    %v3234 = vadd.f32 %v2205, %v3170
    %v3235 = vadd.f32 %v2206, %v3171
    %v3236 = vadd.f32 %v2207, %v3172
    %v3237 = vadd.f32 %v2208, %v3173
    %v3238 = vadd.f32 %v2209, %v3174
    %v3239 = vadd.f32 %v2210, %v3175
    %v3240 = vadd.f32 %v2211, %v3176
    %v3241 = vadd.f32 %v2212, %v3177
    %v3242 = vadd.f32 %v2213, %v3178
    %v3243 = vadd.f32 %v2214, %v3179
    %v3244 = vadd.f32 %v2215, %v3180
    %v3245 = vadd.f32 %v2216, %v3181
    %v3246 = vadd.f32 %v2217, %v3182
    %v3247 = vadd.f32 %v2218, %v3183
    %v3248 = vadd.f32 %v2219, %v3184
    %v3249 = vadd.f32 %v2220, %v3185
    %v3250 = vadd.f32 %v2221, %v3186
    %v3251 = vadd.f32 %v2222, %v3187
    %v3252 = vadd.f32 %v2223, %v3188
    %v3253 = vadd.f32 %v2224, %v3189
    %v3254 = vadd.f32 %v2225, %v3190
    %v3255 = vadd.f32 %v2226, %v3191
    %v3256 = vadd.f32 %v2227, %v3192
    %v3257 = vadd.f32 %v2228, %v3193
    %v3258 = vadd.f32 %v2229, %v3194
    %v3259 = vadd.f32 %v2230, %v3195
    %v3260 = vadd.f32 %v2231, %v3196
    %v3261 = vadd.f32 %v2232, %v3197
    %v3262 = vadd.f32 %v2233, %v3198
    %v3263 = vadd.f32 %v2234, %v3199
    %v3264 = vld [vmem:[%s0 + $0x10] sm:$0xff]
    %v3265 = vld [vmem:[%s0 + $0x18] sm:$0xff]
    %v3266 = vld [vmem:[%s0 + $0x20] sm:$0xff]
    %v3267 = vld [vmem:[%s0 + $0x28] sm:$0xff]
    %v3268 = vld [vmem:[%s0 + $0x30] sm:$0xff]
    %v3269 = vld [vmem:[%s0 + $0x38] sm:$0xff]
    %v3270 = vld [vmem:[%s0 + $0x40] sm:$0xff]
    %v3271 = vld [vmem:[%s0 + $0x48] sm:$0xff]
    %v3272 = vld [vmem:[%s0 + $0x50] sm:$0xff]
    %v3273 = vld [vmem:[%s0 + $0x58] sm:$0xff]
    %v3274 = vld [vmem:[%s0 + $0x60] sm:$0xff]
    %v3275 = vld [vmem:[%s0 + $0x68] sm:$0xff]
    %v3276 = vld [vmem:[%s0 + $0x70] sm:$0xff]
    %v3277 = vld [vmem:[%s0 + $0x78] sm:$0xff]
    %v3278 = vld [vmem:[%s0 + $0x80] sm:$0xff]
    %v3279 = vld [vmem:[%s0 + $0x88] sm:$0xff]
    %v3280 = vld [vmem:[%s0 + $0x90] sm:$0xff]
    %v3281 = vld [vmem:[%s0 + $0x98] sm:$0xff]
    %v3282 = vld [vmem:[%s0 + $0xa0] sm:$0xff]
    %v3283 = vld [vmem:[%s0 + $0xa8] sm:$0xff]
    %v3284 = vld [vmem:[%s0 + $0xb0] sm:$0xff]
    %v3285 = vld [vmem:[%s0 + $0xb8] sm:$0xff]
    %v3286 = vld [vmem:[%s0 + $0xc0] sm:$0xff]
    %v3287 = vld [vmem:[%s0 + $0xc8] sm:$0xff]
    %v3288 = vld [vmem:[%s0 + $0xd0] sm:$0xff]
    %v3289 = vld [vmem:[%s0 + $0xd8] sm:$0xff]
    %v3290 = vld [vmem:[%s0 + $0xe0] sm:$0xff]
    %v3291 = vld [vmem:[%s0 + $0xe8] sm:$0xff]
    %v3292 = vld [vmem:[%s0 + $0xf0] sm:$0xff]
    %v3293 = vld [vmem:[%s0 + $0xf8] sm:$0xff]
    %v3294 = vld [vmem:[%s0 + $0x100] sm:$0xff]
    %v3295 = vld [vmem:[%s0 + $0x108] sm:$0xff]
    %v3296 = vld [vmem:[%s0 + $0x110] sm:$0xff]
    %v3297 = vld [vmem:[%s0 + $0x118] sm:$0xff]
    %v3298 = vld [vmem:[%s0 + $0x120] sm:$0xff]
    %v3299 = vld [vmem:[%s0 + $0x128] sm:$0xff]
    %v3300 = vld [vmem:[%s0 + $0x130] sm:$0xff]
    %v3301 = vld [vmem:[%s0 + $0x138] sm:$0xff]
    %v3302 = vld [vmem:[%s0 + $0x140] sm:$0xff]
    %v3303 = vld [vmem:[%s0 + $0x148] sm:$0xff]
    %v3304 = vld [vmem:[%s0 + $0x150] sm:$0xff]
    %v3305 = vld [vmem:[%s0 + $0x158] sm:$0xff]
    %v3306 = vld [vmem:[%s0 + $0x160] sm:$0xff]
    %v3307 = vld [vmem:[%s0 + $0x168] sm:$0xff]
    %v3308 = vld [vmem:[%s0 + $0x170] sm:$0xff]
    %v3309 = vld [vmem:[%s0 + $0x178] sm:$0xff]
    %v3310 = vld [vmem:[%s0 + $0x180] sm:$0xff]
    %v3311 = vld [vmem:[%s0 + $0x188] sm:$0xff]
    %v3312 = vld [vmem:[%s0 + $0x190] sm:$0xff]
    %v3313 = vld [vmem:[%s0 + $0x198] sm:$0xff]
    %v3314 = vld [vmem:[%s0 + $0x1a0] sm:$0xff]
    %v3315 = vld [vmem:[%s0 + $0x1a8] sm:$0xff]
    %v3316 = vld [vmem:[%s0 + $0x1b0] sm:$0xff]
    %v3317 = vld [vmem:[%s0 + $0x1b8] sm:$0xff]
    %v3318 = vld [vmem:[%s0 + $0x1c0] sm:$0xff]
    %v3319 = vld [vmem:[%s0 + $0x1c8] sm:$0xff]
    %v3320 = vld [vmem:[%s0 + $0x1d0] sm:$0xff]
    %v3321 = vld [vmem:[%s0 + $0x1d8] sm:$0xff]
    %v3322 = vld [vmem:[%s0 + $0x1e0] sm:$0xff]
    %v3323 = vld [vmem:[%s0 + $0x1e8] sm:$0xff]
    %v3324 = vld [vmem:[%s0 + $0x1f0] sm:$0xff]
    %v3325 = vld [vmem:[%s0 + $0x1f8] sm:$0xff]
    %v3326 = vld [vmem:[%s0 + $0x200] sm:$0xff]
    %v3327 = vld [vmem:[%s0 + $0x208] sm:$0xff]
    %v3328 = vld [vmem:[%s4 + $0x60] sm:$0xff]
    %v3329 = vld [vmem:[%s4 + $0x68] sm:$0xff]
    %v3330 = vld [vmem:[%s4 + $0x70] sm:$0xff]
    %v3331 = vld [vmem:[%s4 + $0x78] sm:$0xff]
    %v3333 = vsel %vm116, %v3264, 0
    %v3336 = vsel %vm116, %v3265, 0
    %v3339 = vsel %vm116, %v3266, 0
    %v3342 = vsel %vm116, %v3267, 0
    %v3345 = vsel %vm116, %v3268, 0
    %v3348 = vsel %vm116, %v3269, 0
    %v3351 = vsel %vm116, %v3270, 0
    %v3354 = vsel %vm116, %v3271, 0
    %v3357 = vsel %vm116, %v3272, 0
    %v3360 = vsel %vm116, %v3273, 0
    %v3363 = vsel %vm116, %v3274, 0
    %v3366 = vsel %vm116, %v3275, 0
    %v3369 = vsel %vm116, %v3276, 0
    %v3372 = vsel %vm116, %v3277, 0
    %v3375 = vsel %vm116, %v3278, 0
    %v3378 = vsel %vm116, %v3279, 0
    %v3381 = vsel %vm116, %v3280, 0
    %v3384 = vsel %vm116, %v3281, 0
    %v3387 = vsel %vm116, %v3282, 0
    %v3390 = vsel %vm116, %v3283, 0
    %v3393 = vsel %vm116, %v3284, 0
    %v3396 = vsel %vm116, %v3285, 0
    %v3399 = vsel %vm116, %v3286, 0
    %v3402 = vsel %vm116, %v3287, 0
    %v3405 = vsel %vm116, %v3288, 0
    %v3408 = vsel %vm116, %v3289, 0
    %v3411 = vsel %vm116, %v3290, 0
    %v3414 = vsel %vm116, %v3291, 0
    %v3417 = vsel %vm116, %v3292, 0
    %v3420 = vsel %vm116, %v3293, 0
    %v3423 = vsel %vm116, %v3294, 0
    %v3426 = vsel %vm116, %v3295, 0
    %v3429 = vsel %vm116, %v3296, 0
    %v3432 = vsel %vm116, %v3297, 0
    %v3435 = vsel %vm116, %v3298, 0
    %v3438 = vsel %vm116, %v3299, 0
    %v3441 = vsel %vm116, %v3300, 0
    %v3444 = vsel %vm116, %v3301, 0
    %v3447 = vsel %vm116, %v3302, 0
    %v3450 = vsel %vm116, %v3303, 0
    %v3453 = vsel %vm116, %v3304, 0
    %v3456 = vsel %vm116, %v3305, 0
    %v3459 = vsel %vm116, %v3306, 0
    %v3462 = vsel %vm116, %v3307, 0
    %v3465 = vsel %vm116, %v3308, 0
    %v3468 = vsel %vm116, %v3309, 0
    %v3471 = vsel %vm116, %v3310, 0
    %v3474 = vsel %vm116, %v3311, 0
    %v3477 = vsel %vm116, %v3312, 0
    %v3480 = vsel %vm116, %v3313, 0
    %v3483 = vsel %vm116, %v3314, 0
    %v3486 = vsel %vm116, %v3315, 0
    %v3489 = vsel %vm116, %v3316, 0
    %v3492 = vsel %vm116, %v3317, 0
    %v3495 = vsel %vm116, %v3318, 0
    %v3498 = vsel %vm116, %v3319, 0
    %v3501 = vsel %vm116, %v3320, 0
    %v3504 = vsel %vm116, %v3321, 0
    %v3507 = vsel %vm116, %v3322, 0
    %v3510 = vsel %vm116, %v3323, 0
    %v3513 = vsel %vm116, %v3324, 0
    %v3516 = vsel %vm116, %v3325, 0
    %v3519 = vsel %vm116, %v3326, 0
    %v3522 = vsel %vm116, %v3327, 0
    %3524 = vmatprep.subr.mxu0 0.0
    %3525 = vmatpush1.msra.mxu0 0.0
    %3526 = vmatprep.subr.mxu0 0.0
    %3527 = vmatpush1.msra.mxu0 0.0
    %3528 = vmatprep.subr.mxu0 0.0
    %3529 = vmatpush1.msra.mxu0 0.0
    %3530 = vmatprep.subr.mxu0 0.0
    %3531 = vmatpush1.msra.mxu0 0.0
    %3532 = vmatprep.subr.mxu0 0.0
    %3533 = vmatpush1.msra.mxu0 0.0
    %3534 = vmatprep.subr.mxu0 0.0
    %3535 = vmatpush1.msra.mxu0 0.0
    %3536 = vmatprep.subr.mxu0 0.0
    %3537 = vmatpush1.msra.mxu0 0.0
    %3538 = vmatprep.subr.mxu0 0.0
    %3539 = vmatpush1.msra.mxu0 0.0
    %3540 = vmatprep.subr.mxu0 0.0
    %3541 = vmatpush1.msra.mxu0 0.0
    %3542 = vmatprep.subr.mxu0 0.0
    %3543 = vmatpush1.msra.mxu0 0.0
    %3544 = vmatprep.subr.mxu0 0.0
    %3545 = vmatpush1.msra.mxu0 0.0
    %3546 = vmatprep.subr.mxu0 0.0
    %3547 = vmatpush1.msra.mxu0 0.0
    %3548 = vmatprep.subr.mxu0 0.0
    %3549 = vmatpush1.msra.mxu0 %v3331
    %3550 = vmatprep.subr.mxu0 0.0
    %3551 = vmatpush1.msra.mxu0 %v3330
    %3552 = vmatprep.subr.mxu0 0.0
    %3553 = vmatpush1.msra.mxu0 %v3329
    %3554 = vmatprep.subr.mxu0 0.0
    %3555 = vmatpush1.msra.mxu0 %v3328
    %3556 = vmatprep.subr.mxu0 0.0
    %3557 = vmatpush2.msra.mxu0 0.0
    %3558 = vmatprep.subr.mxu0 0.0
    %3559 = vmatpush2.msra.mxu0 0.0
    %3560 = vmatprep.subr.mxu0 0.0
    %3561 = vmatpush2.msra.mxu0 0.0
    %3562 = vmatprep.subr.mxu0 0.0
    %3563 = vmatpush2.msra.mxu0 0.0
    %3564 = vmatprep.subr.mxu0 0.0
    %3565 = vmatpush2.msra.mxu0 0.0
    %3566 = vmatprep.subr.mxu0 0.0
    %3567 = vmatpush2.msra.mxu0 0.0
    %3568 = vmatprep.subr.mxu0 0.0
    %3569 = vmatpush2.msra.mxu0 0.0
    %3570 = vmatprep.subr.mxu0 0.0
    %3571 = vmatpush2.msra.mxu0 0.0
    %3572 = vmatprep.subr.mxu0 0.0
    %3573 = vmatpush2.msra.mxu0 0.0
    %3574 = vmatprep.subr.mxu0 0.0
    %3575 = vmatpush2.msra.mxu0 0.0
    %3576 = vmatprep.subr.mxu0 0.0
    %3577 = vmatpush2.msra.mxu0 0.0
    %3578 = vmatprep.subr.mxu0 0.0
    %3579 = vmatpush2.msra.mxu0 0.0
    %3580 = vmatprep.subr.mxu0 0.0
    %3581 = vmatpush2.msra.mxu0 0.0
    %3582 = vmatprep.subr.mxu0 0.0
    %3583 = vmatpush2.msra.mxu0 0.0
    %3584 = vmatprep.subr.mxu0 0.0
    %3585 = vmatpush2.msra.mxu0 0.0
    %3586 = vmatprep.subr.mxu0 0.0
    %3587 = vmatpush2.msra.mxu0 0.0
    %3588 = vmatprep.mubr.f32.mxu0 0.0
    %3589 = vmatmul.mubr.f32.gmra.mxu0 %v3333
    %v3590 = vpop.f32.mrf.mxu0
    %v3591 = vadd.f32 0.0, %v3590
    %v3592 = vpop.f32.mrf.mxu0
    %3593 = vmatprep.mubr.f32.mxu0 0.0
    %3594 = vmatmul.mubr.f32.gmra.mxu0 %v3336
    %v3595 = vpop.f32.mrf.mxu0
    %v3596 = vadd.f32 0.0, %v3595
    %v3597 = vpop.f32.mrf.mxu0
    %3598 = vmatprep.mubr.f32.mxu0 0.0
    %3599 = vmatmul.mubr.f32.gmra.mxu0 %v3339
    %v3600 = vpop.f32.mrf.mxu0
    %v3601 = vadd.f32 0.0, %v3600
    %v3602 = vpop.f32.mrf.mxu0
    %3603 = vmatprep.mubr.f32.mxu0 0.0
    %3604 = vmatmul.mubr.f32.gmra.mxu0 %v3342
    %v3605 = vpop.f32.mrf.mxu0
    %v3606 = vadd.f32 0.0, %v3605
    %v3607 = vpop.f32.mrf.mxu0
    %3608 = vmatprep.mubr.f32.mxu0 0.0
    %3609 = vmatmul.mubr.f32.gmra.mxu0 %v3345
    %v3610 = vpop.f32.mrf.mxu0
    %v3611 = vadd.f32 0.0, %v3610
    %v3612 = vpop.f32.mrf.mxu0
    %3613 = vmatprep.mubr.f32.mxu0 0.0
    %3614 = vmatmul.mubr.f32.gmra.mxu0 %v3348
    %v3615 = vpop.f32.mrf.mxu0
    %v3616 = vadd.f32 0.0, %v3615
    %v3617 = vpop.f32.mrf.mxu0
    %3618 = vmatprep.mubr.f32.mxu0 0.0
    %3619 = vmatmul.mubr.f32.gmra.mxu0 %v3351
    %v3620 = vpop.f32.mrf.mxu0
    %v3621 = vadd.f32 0.0, %v3620
    %v3622 = vpop.f32.mrf.mxu0
    %3623 = vmatprep.mubr.f32.mxu0 0.0
    %3624 = vmatmul.mubr.f32.gmra.mxu0 %v3354
    %v3625 = vpop.f32.mrf.mxu0
    %v3626 = vadd.f32 0.0, %v3625
    %v3627 = vpop.f32.mrf.mxu0
    %3628 = vmatprep.mubr.f32.mxu0 0.0
    %3629 = vmatmul.mubr.f32.gmra.mxu0 %v3357
    %v3630 = vpop.f32.mrf.mxu0
    %v3631 = vadd.f32 0.0, %v3630
    %v3632 = vpop.f32.mrf.mxu0
    %3633 = vmatprep.mubr.f32.mxu0 0.0
    %3634 = vmatmul.mubr.f32.gmra.mxu0 %v3360
    %v3635 = vpop.f32.mrf.mxu0
    %v3636 = vadd.f32 0.0, %v3635
    %v3637 = vpop.f32.mrf.mxu0
    %3638 = vmatprep.mubr.f32.mxu0 0.0
    %3639 = vmatmul.mubr.f32.gmra.mxu0 %v3363
    %v3640 = vpop.f32.mrf.mxu0
    %v3641 = vadd.f32 0.0, %v3640
    %v3642 = vpop.f32.mrf.mxu0
    %3643 = vmatprep.mubr.f32.mxu0 0.0
    %3644 = vmatmul.mubr.f32.gmra.mxu0 %v3366
    %v3645 = vpop.f32.mrf.mxu0
    %v3646 = vadd.f32 0.0, %v3645
    %v3647 = vpop.f32.mrf.mxu0
    %3648 = vmatprep.mubr.f32.mxu0 0.0
    %3649 = vmatmul.mubr.f32.gmra.mxu0 %v3369
    %v3650 = vpop.f32.mrf.mxu0
    %v3651 = vadd.f32 0.0, %v3650
    %v3652 = vpop.f32.mrf.mxu0
    %3653 = vmatprep.mubr.f32.mxu0 0.0
    %3654 = vmatmul.mubr.f32.gmra.mxu0 %v3372
    %v3655 = vpop.f32.mrf.mxu0
    %v3656 = vadd.f32 0.0, %v3655
    %v3657 = vpop.f32.mrf.mxu0
    %3658 = vmatprep.mubr.f32.mxu0 0.0
    %3659 = vmatmul.mubr.f32.gmra.mxu0 %v3375
    %v3660 = vpop.f32.mrf.mxu0
    %v3661 = vadd.f32 0.0, %v3660
    %v3662 = vpop.f32.mrf.mxu0
    %3663 = vmatprep.mubr.f32.mxu0 0.0
    %3664 = vmatmul.mubr.f32.gmra.mxu0 %v3378
    %v3665 = vpop.f32.mrf.mxu0
    %v3666 = vadd.f32 0.0, %v3665
    %v3667 = vpop.f32.mrf.mxu0
    %3668 = vmatprep.mubr.f32.mxu0 0.0
    %3669 = vmatmul.mubr.f32.gmra.mxu0 %v3381
    %v3670 = vpop.f32.mrf.mxu0
    %v3671 = vadd.f32 0.0, %v3670
    %v3672 = vpop.f32.mrf.mxu0
    %3673 = vmatprep.mubr.f32.mxu0 0.0
    %3674 = vmatmul.mubr.f32.gmra.mxu0 %v3384
    %v3675 = vpop.f32.mrf.mxu0
    %v3676 = vadd.f32 0.0, %v3675
    %v3677 = vpop.f32.mrf.mxu0
    %3678 = vmatprep.mubr.f32.mxu0 0.0
    %3679 = vmatmul.mubr.f32.gmra.mxu0 %v3387
    %v3680 = vpop.f32.mrf.mxu0
    %v3681 = vadd.f32 0.0, %v3680
    %v3682 = vpop.f32.mrf.mxu0
    %3683 = vmatprep.mubr.f32.mxu0 0.0
    %3684 = vmatmul.mubr.f32.gmra.mxu0 %v3390
    %v3685 = vpop.f32.mrf.mxu0
    %v3686 = vadd.f32 0.0, %v3685
    %v3687 = vpop.f32.mrf.mxu0
    %3688 = vmatprep.mubr.f32.mxu0 0.0
    %3689 = vmatmul.mubr.f32.gmra.mxu0 %v3393
    %v3690 = vpop.f32.mrf.mxu0
    %v3691 = vadd.f32 0.0, %v3690
    %v3692 = vpop.f32.mrf.mxu0
    %3693 = vmatprep.mubr.f32.mxu0 0.0
    %3694 = vmatmul.mubr.f32.gmra.mxu0 %v3396
    %v3695 = vpop.f32.mrf.mxu0
    %v3696 = vadd.f32 0.0, %v3695
    %v3697 = vpop.f32.mrf.mxu0
    %3698 = vmatprep.mubr.f32.mxu0 0.0
    %3699 = vmatmul.mubr.f32.gmra.mxu0 %v3399
    %v3700 = vpop.f32.mrf.mxu0
    %v3701 = vadd.f32 0.0, %v3700
    %v3702 = vpop.f32.mrf.mxu0
    %3703 = vmatprep.mubr.f32.mxu0 0.0
    %3704 = vmatmul.mubr.f32.gmra.mxu0 %v3402
    %v3705 = vpop.f32.mrf.mxu0
    %v3706 = vadd.f32 0.0, %v3705
    %v3707 = vpop.f32.mrf.mxu0
    %3708 = vmatprep.mubr.f32.mxu0 0.0
    %3709 = vmatmul.mubr.f32.gmra.mxu0 %v3405
    %v3710 = vpop.f32.mrf.mxu0
    %v3711 = vadd.f32 0.0, %v3710
    %v3712 = vpop.f32.mrf.mxu0
    %3713 = vmatprep.mubr.f32.mxu0 0.0
    %3714 = vmatmul.mubr.f32.gmra.mxu0 %v3408
    %v3715 = vpop.f32.mrf.mxu0
    %v3716 = vadd.f32 0.0, %v3715
    %v3717 = vpop.f32.mrf.mxu0
    %3718 = vmatprep.mubr.f32.mxu0 0.0
    %3719 = vmatmul.mubr.f32.gmra.mxu0 %v3411
    %v3720 = vpop.f32.mrf.mxu0
    %v3721 = vadd.f32 0.0, %v3720
    %v3722 = vpop.f32.mrf.mxu0
    %3723 = vmatprep.mubr.f32.mxu0 0.0
    %3724 = vmatmul.mubr.f32.gmra.mxu0 %v3414
    %v3725 = vpop.f32.mrf.mxu0
    %v3726 = vadd.f32 0.0, %v3725
    %v3727 = vpop.f32.mrf.mxu0
    %3728 = vmatprep.mubr.f32.mxu0 0.0
    %3729 = vmatmul.mubr.f32.gmra.mxu0 %v3417
    %v3730 = vpop.f32.mrf.mxu0
    %v3731 = vadd.f32 0.0, %v3730
    %v3732 = vpop.f32.mrf.mxu0
    %3733 = vmatprep.mubr.f32.mxu0 0.0
    %3734 = vmatmul.mubr.f32.gmra.mxu0 %v3420
    %v3735 = vpop.f32.mrf.mxu0
    %v3736 = vadd.f32 0.0, %v3735
    %v3737 = vpop.f32.mrf.mxu0
    %3738 = vmatprep.mubr.f32.mxu0 0.0
    %3739 = vmatmul.mubr.f32.gmra.mxu0 %v3423
    %v3740 = vpop.f32.mrf.mxu0
    %v3741 = vadd.f32 0.0, %v3740
    %v3742 = vpop.f32.mrf.mxu0
    %3743 = vmatprep.mubr.f32.mxu0 0.0
    %3744 = vmatmul.mubr.f32.gmra.mxu0 %v3426
    %v3745 = vpop.f32.mrf.mxu0
    %v3746 = vadd.f32 0.0, %v3745
    %v3747 = vpop.f32.mrf.mxu0
    %3748 = vmatprep.mubr.f32.mxu0 0.0
    %3749 = vmatmul.mubr.f32.gmra.mxu0 %v3429
    %v3750 = vpop.f32.mrf.mxu0
    %v3751 = vadd.f32 0.0, %v3750
    %v3752 = vpop.f32.mrf.mxu0
    %3753 = vmatprep.mubr.f32.mxu0 0.0
    %3754 = vmatmul.mubr.f32.gmra.mxu0 %v3432
    %v3755 = vpop.f32.mrf.mxu0
    %v3756 = vadd.f32 0.0, %v3755
    %v3757 = vpop.f32.mrf.mxu0
    %3758 = vmatprep.mubr.f32.mxu0 0.0
    %3759 = vmatmul.mubr.f32.gmra.mxu0 %v3435
    %v3760 = vpop.f32.mrf.mxu0
    %v3761 = vadd.f32 0.0, %v3760
    %v3762 = vpop.f32.mrf.mxu0
    %3763 = vmatprep.mubr.f32.mxu0 0.0
    %3764 = vmatmul.mubr.f32.gmra.mxu0 %v3438
    %v3765 = vpop.f32.mrf.mxu0
    %v3766 = vadd.f32 0.0, %v3765
    %v3767 = vpop.f32.mrf.mxu0
    %3768 = vmatprep.mubr.f32.mxu0 0.0
    %3769 = vmatmul.mubr.f32.gmra.mxu0 %v3441
    %v3770 = vpop.f32.mrf.mxu0
    %v3771 = vadd.f32 0.0, %v3770
    %v3772 = vpop.f32.mrf.mxu0
    %3773 = vmatprep.mubr.f32.mxu0 0.0
    %3774 = vmatmul.mubr.f32.gmra.mxu0 %v3444
    %v3775 = vpop.f32.mrf.mxu0
    %v3776 = vadd.f32 0.0, %v3775
    %v3777 = vpop.f32.mrf.mxu0
    %3778 = vmatprep.mubr.f32.mxu0 0.0
    %3779 = vmatmul.mubr.f32.gmra.mxu0 %v3447
    %v3780 = vpop.f32.mrf.mxu0
    %v3781 = vadd.f32 0.0, %v3780
    %v3782 = vpop.f32.mrf.mxu0
    %3783 = vmatprep.mubr.f32.mxu0 0.0
    %3784 = vmatmul.mubr.f32.gmra.mxu0 %v3450
    %v3785 = vpop.f32.mrf.mxu0
    %v3786 = vadd.f32 0.0, %v3785
    %v3787 = vpop.f32.mrf.mxu0
    %3788 = vmatprep.mubr.f32.mxu0 0.0
    %3789 = vmatmul.mubr.f32.gmra.mxu0 %v3453
    %v3790 = vpop.f32.mrf.mxu0
    %v3791 = vadd.f32 0.0, %v3790
    %v3792 = vpop.f32.mrf.mxu0
    %3793 = vmatprep.mubr.f32.mxu0 0.0
    %3794 = vmatmul.mubr.f32.gmra.mxu0 %v3456
    %v3795 = vpop.f32.mrf.mxu0
    %v3796 = vadd.f32 0.0, %v3795
    %v3797 = vpop.f32.mrf.mxu0
    %3798 = vmatprep.mubr.f32.mxu0 0.0
    %3799 = vmatmul.mubr.f32.gmra.mxu0 %v3459
    %v3800 = vpop.f32.mrf.mxu0
    %v3801 = vadd.f32 0.0, %v3800
    %v3802 = vpop.f32.mrf.mxu0
    %3803 = vmatprep.mubr.f32.mxu0 0.0
    %3804 = vmatmul.mubr.f32.gmra.mxu0 %v3462
    %v3805 = vpop.f32.mrf.mxu0
    %v3806 = vadd.f32 0.0, %v3805
    %v3807 = vpop.f32.mrf.mxu0
    %3808 = vmatprep.mubr.f32.mxu0 0.0
    %3809 = vmatmul.mubr.f32.gmra.mxu0 %v3465
    %v3810 = vpop.f32.mrf.mxu0
    %v3811 = vadd.f32 0.0, %v3810
    %v3812 = vpop.f32.mrf.mxu0
    %3813 = vmatprep.mubr.f32.mxu0 0.0
    %3814 = vmatmul.mubr.f32.gmra.mxu0 %v3468
    %v3815 = vpop.f32.mrf.mxu0
    %v3816 = vadd.f32 0.0, %v3815
    %v3817 = vpop.f32.mrf.mxu0
    %3818 = vmatprep.mubr.f32.mxu0 0.0
    %3819 = vmatmul.mubr.f32.gmra.mxu0 %v3471
    %v3820 = vpop.f32.mrf.mxu0
    %v3821 = vadd.f32 0.0, %v3820
    %v3822 = vpop.f32.mrf.mxu0
    %3823 = vmatprep.mubr.f32.mxu0 0.0
    %3824 = vmatmul.mubr.f32.gmra.mxu0 %v3474
    %v3825 = vpop.f32.mrf.mxu0
    %v3826 = vadd.f32 0.0, %v3825
    %v3827 = vpop.f32.mrf.mxu0
    %3828 = vmatprep.mubr.f32.mxu0 0.0
    %3829 = vmatmul.mubr.f32.gmra.mxu0 %v3477
    %v3830 = vpop.f32.mrf.mxu0
    %v3831 = vadd.f32 0.0, %v3830
    %v3832 = vpop.f32.mrf.mxu0
    %3833 = vmatprep.mubr.f32.mxu0 0.0
    %3834 = vmatmul.mubr.f32.gmra.mxu0 %v3480
    %v3835 = vpop.f32.mrf.mxu0
    %v3836 = vadd.f32 0.0, %v3835
    %v3837 = vpop.f32.mrf.mxu0
    %3838 = vmatprep.mubr.f32.mxu0 0.0
    %3839 = vmatmul.mubr.f32.gmra.mxu0 %v3483
    %v3840 = vpop.f32.mrf.mxu0
    %v3841 = vadd.f32 0.0, %v3840
    %v3842 = vpop.f32.mrf.mxu0
    %3843 = vmatprep.mubr.f32.mxu0 0.0
    %3844 = vmatmul.mubr.f32.gmra.mxu0 %v3486
    %v3845 = vpop.f32.mrf.mxu0
    %v3846 = vadd.f32 0.0, %v3845
    %v3847 = vpop.f32.mrf.mxu0
    %3848 = vmatprep.mubr.f32.mxu0 0.0
    %3849 = vmatmul.mubr.f32.gmra.mxu0 %v3489
    %v3850 = vpop.f32.mrf.mxu0
    %v3851 = vadd.f32 0.0, %v3850
    %v3852 = vpop.f32.mrf.mxu0
    %3853 = vmatprep.mubr.f32.mxu0 0.0
    %3854 = vmatmul.mubr.f32.gmra.mxu0 %v3492
    %v3855 = vpop.f32.mrf.mxu0
    %v3856 = vadd.f32 0.0, %v3855
    %v3857 = vpop.f32.mrf.mxu0
    %3858 = vmatprep.mubr.f32.mxu0 0.0
    %3859 = vmatmul.mubr.f32.gmra.mxu0 %v3495
    %v3860 = vpop.f32.mrf.mxu0
    %v3861 = vadd.f32 0.0, %v3860
    %v3862 = vpop.f32.mrf.mxu0
    %3863 = vmatprep.mubr.f32.mxu0 0.0
    %3864 = vmatmul.mubr.f32.gmra.mxu0 %v3498
    %v3865 = vpop.f32.mrf.mxu0
    %v3866 = vadd.f32 0.0, %v3865
    %v3867 = vpop.f32.mrf.mxu0
    %3868 = vmatprep.mubr.f32.mxu0 0.0
    %3869 = vmatmul.mubr.f32.gmra.mxu0 %v3501
    %v3870 = vpop.f32.mrf.mxu0
    %v3871 = vadd.f32 0.0, %v3870
    %v3872 = vpop.f32.mrf.mxu0
    %3873 = vmatprep.mubr.f32.mxu0 0.0
    %3874 = vmatmul.mubr.f32.gmra.mxu0 %v3504
    %v3875 = vpop.f32.mrf.mxu0
    %v3876 = vadd.f32 0.0, %v3875
    %v3877 = vpop.f32.mrf.mxu0
    %3878 = vmatprep.mubr.f32.mxu0 0.0
    %3879 = vmatmul.mubr.f32.gmra.mxu0 %v3507
    %v3880 = vpop.f32.mrf.mxu0
    %v3881 = vadd.f32 0.0, %v3880
    %v3882 = vpop.f32.mrf.mxu0
    %3883 = vmatprep.mubr.f32.mxu0 0.0
    %3884 = vmatmul.mubr.f32.gmra.mxu0 %v3510
    %v3885 = vpop.f32.mrf.mxu0
    %v3886 = vadd.f32 0.0, %v3885
    %v3887 = vpop.f32.mrf.mxu0
    %3888 = vmatprep.mubr.f32.mxu0 0.0
    %3889 = vmatmul.mubr.f32.gmra.mxu0 %v3513
    %v3890 = vpop.f32.mrf.mxu0
    %v3891 = vadd.f32 0.0, %v3890
    %v3892 = vpop.f32.mrf.mxu0
    %3893 = vmatprep.mubr.f32.mxu0 0.0
    %3894 = vmatmul.mubr.f32.gmra.mxu0 %v3516
    %v3895 = vpop.f32.mrf.mxu0
    %v3896 = vadd.f32 0.0, %v3895
    %v3897 = vpop.f32.mrf.mxu0
    %3898 = vmatprep.mubr.f32.mxu0 0.0
    %3899 = vmatmul.mubr.f32.gmra.mxu0 %v3519
    %v3900 = vpop.f32.mrf.mxu0
    %v3901 = vadd.f32 0.0, %v3900
    %v3902 = vpop.f32.mrf.mxu0
    %3903 = vmatprep.mubr.f32.mxu0 0.0
    %3904 = vmatmul.mubr.f32.gmra.mxu0 %v3522
    %v3905 = vpop.f32.mrf.mxu0
    %v3906 = vadd.f32 0.0, %v3905
    %v3907 = vpop.f32.mrf.mxu0
    %3908 = vdwg.mxu0
    %3909 = vset.pattern.permute.xlu0 3
    %3910 = vperm.xlu0 %3909, %v694
    %v3911 = vpop.permute.xlu0 %3910
    %3913 = vset.pattern.permute.xlu0 3
    %3914 = vperm.xlu0 %3913, %v695
    %v3915 = vpop.permute.xlu0 %3914
    %3917 = vset.pattern.permute.xlu0 3
    %3918 = vperm.xlu0 %3917, %v696
    %v3919 = vpop.permute.xlu0 %3918
    %3921 = vset.pattern.permute.xlu0 3
    %3922 = vperm.xlu0 %3921, %v697
    %v3923 = vpop.permute.xlu0 %3922
    %3925 = vset.pattern.permute.xlu0 3
    %3926 = vperm.xlu0 %3925, %v698
    %v3927 = vpop.permute.xlu0 %3926
    %3929 = vset.pattern.permute.xlu0 3
    %3930 = vperm.xlu0 %3929, %v699
    %v3931 = vpop.permute.xlu0 %3930
    %3933 = vset.pattern.permute.xlu0 3
    %3934 = vperm.xlu0 %3933, %v700
    %v3935 = vpop.permute.xlu0 %3934
    %3937 = vset.pattern.permute.xlu0 3
    %3938 = vperm.xlu0 %3937, %v701
    %v3939 = vpop.permute.xlu0 %3938
    %3941 = vset.pattern.permute.xlu0 3
    %3942 = vperm.xlu0 %3941, %v702
    %v3943 = vpop.permute.xlu0 %3942
    %3945 = vset.pattern.permute.xlu0 3
    %3946 = vperm.xlu0 %3945, %v703
    %v3947 = vpop.permute.xlu0 %3946
    %3949 = vset.pattern.permute.xlu0 3
    %3950 = vperm.xlu0 %3949, %v704
    %v3951 = vpop.permute.xlu0 %3950
    %3953 = vset.pattern.permute.xlu0 3
    %3954 = vperm.xlu0 %3953, %v705
    %v3955 = vpop.permute.xlu0 %3954
    %3957 = vset.pattern.permute.xlu0 3
    %3958 = vperm.xlu0 %3957, %v706
    %v3959 = vpop.permute.xlu0 %3958
    %3961 = vset.pattern.permute.xlu0 3
    %3962 = vperm.xlu0 %3961, %v707
    %v3963 = vpop.permute.xlu0 %3962
    %3965 = vset.pattern.permute.xlu0 3
    %3966 = vperm.xlu0 %3965, %v708
    %v3967 = vpop.permute.xlu0 %3966
    %3969 = vset.pattern.permute.xlu0 3
    %3970 = vperm.xlu0 %3969, %v709
    %v3971 = vpop.permute.xlu0 %3970
    %3973 = vset.pattern.permute.xlu0 3
    %3974 = vperm.xlu0 %3973, %v710
    %v3975 = vpop.permute.xlu0 %3974
    %3977 = vset.pattern.permute.xlu0 3
    %3978 = vperm.xlu0 %3977, %v711
    %v3979 = vpop.permute.xlu0 %3978
    %3981 = vset.pattern.permute.xlu0 3
    %3982 = vperm.xlu0 %3981, %v712
    %v3983 = vpop.permute.xlu0 %3982
    %3985 = vset.pattern.permute.xlu0 3
    %3986 = vperm.xlu0 %3985, %v713
    %v3987 = vpop.permute.xlu0 %3986
    %3989 = vset.pattern.permute.xlu0 3
    %3990 = vperm.xlu0 %3989, %v714
    %v3991 = vpop.permute.xlu0 %3990
    %3993 = vset.pattern.permute.xlu0 3
    %3994 = vperm.xlu0 %3993, %v715
    %v3995 = vpop.permute.xlu0 %3994
    %3997 = vset.pattern.permute.xlu0 3
    %3998 = vperm.xlu0 %3997, %v716
    %v3999 = vpop.permute.xlu0 %3998
    %4001 = vset.pattern.permute.xlu0 3
    %4002 = vperm.xlu0 %4001, %v717
    %v4003 = vpop.permute.xlu0 %4002
    %4005 = vset.pattern.permute.xlu0 3
    %4006 = vperm.xlu0 %4005, %v718
    %v4007 = vpop.permute.xlu0 %4006
    %4009 = vset.pattern.permute.xlu0 3
    %4010 = vperm.xlu0 %4009, %v719
    %v4011 = vpop.permute.xlu0 %4010
    %4013 = vset.pattern.permute.xlu0 3
    %4014 = vperm.xlu0 %4013, %v720
    %v4015 = vpop.permute.xlu0 %4014
    %4017 = vset.pattern.permute.xlu0 3
    %4018 = vperm.xlu0 %4017, %v721
    %v4019 = vpop.permute.xlu0 %4018
    %4021 = vset.pattern.permute.xlu0 3
    %4022 = vperm.xlu0 %4021, %v722
    %v4023 = vpop.permute.xlu0 %4022
    %4025 = vset.pattern.permute.xlu0 3
    %4026 = vperm.xlu0 %4025, %v723
    %v4027 = vpop.permute.xlu0 %4026
    %4029 = vset.pattern.permute.xlu0 3
    %4030 = vperm.xlu0 %4029, %v724
    %v4031 = vpop.permute.xlu0 %4030
    %4033 = vset.pattern.permute.xlu0 3
    %4034 = vperm.xlu0 %4033, %v725
    %v4035 = vpop.permute.xlu0 %4034
    %4037 = vset.pattern.permute.xlu0 3
    %4038 = vperm.xlu0 %4037, %v726
    %v4039 = vpop.permute.xlu0 %4038
    %4041 = vset.pattern.permute.xlu0 3
    %4042 = vperm.xlu0 %4041, %v727
    %v4043 = vpop.permute.xlu0 %4042
    %4045 = vset.pattern.permute.xlu0 3
    %4046 = vperm.xlu0 %4045, %v728
    %v4047 = vpop.permute.xlu0 %4046
    %4049 = vset.pattern.permute.xlu0 3
    %4050 = vperm.xlu0 %4049, %v729
    %v4051 = vpop.permute.xlu0 %4050
    %4053 = vset.pattern.permute.xlu0 3
    %4054 = vperm.xlu0 %4053, %v730
    %v4055 = vpop.permute.xlu0 %4054
    %4057 = vset.pattern.permute.xlu0 3
    %4058 = vperm.xlu0 %4057, %v731
    %v4059 = vpop.permute.xlu0 %4058
    %4061 = vset.pattern.permute.xlu0 3
    %4062 = vperm.xlu0 %4061, %v732
    %v4063 = vpop.permute.xlu0 %4062
    %4065 = vset.pattern.permute.xlu0 3
    %4066 = vperm.xlu0 %4065, %v733
    %v4067 = vpop.permute.xlu0 %4066
    %4069 = vset.pattern.permute.xlu0 3
    %4070 = vperm.xlu0 %4069, %v734
    %v4071 = vpop.permute.xlu0 %4070
    %4073 = vset.pattern.permute.xlu0 3
    %4074 = vperm.xlu0 %4073, %v735
    %v4075 = vpop.permute.xlu0 %4074
    %4077 = vset.pattern.permute.xlu0 3
    %4078 = vperm.xlu0 %4077, %v736
    %v4079 = vpop.permute.xlu0 %4078
    %4081 = vset.pattern.permute.xlu0 3
    %4082 = vperm.xlu0 %4081, %v737
    %v4083 = vpop.permute.xlu0 %4082
    %4085 = vset.pattern.permute.xlu0 3
    %4086 = vperm.xlu0 %4085, %v738
    %v4087 = vpop.permute.xlu0 %4086
    %4089 = vset.pattern.permute.xlu0 3
    %4090 = vperm.xlu0 %4089, %v739
    %v4091 = vpop.permute.xlu0 %4090
    %4093 = vset.pattern.permute.xlu0 3
    %4094 = vperm.xlu0 %4093, %v740
    %v4095 = vpop.permute.xlu0 %4094
    %4097 = vset.pattern.permute.xlu0 3
    %4098 = vperm.xlu0 %4097, %v741
    %v4099 = vpop.permute.xlu0 %4098
    %4101 = vset.pattern.permute.xlu0 3
    %4102 = vperm.xlu0 %4101, %v742
    %v4103 = vpop.permute.xlu0 %4102
    %4105 = vset.pattern.permute.xlu0 3
    %4106 = vperm.xlu0 %4105, %v743
    %v4107 = vpop.permute.xlu0 %4106
    %4109 = vset.pattern.permute.xlu0 3
    %4110 = vperm.xlu0 %4109, %v744
    %v4111 = vpop.permute.xlu0 %4110
    %4113 = vset.pattern.permute.xlu0 3
    %4114 = vperm.xlu0 %4113, %v745
    %v4115 = vpop.permute.xlu0 %4114
    %4117 = vset.pattern.permute.xlu0 3
    %4118 = vperm.xlu0 %4117, %v746
    %v4119 = vpop.permute.xlu0 %4118
    %4121 = vset.pattern.permute.xlu0 3
    %4122 = vperm.xlu0 %4121, %v747
    %v4123 = vpop.permute.xlu0 %4122
    %4125 = vset.pattern.permute.xlu0 3
    %4126 = vperm.xlu0 %4125, %v748
    %v4127 = vpop.permute.xlu0 %4126
    %4129 = vset.pattern.permute.xlu0 3
    %4130 = vperm.xlu0 %4129, %v749
    %v4131 = vpop.permute.xlu0 %4130
    %4133 = vset.pattern.permute.xlu0 3
    %4134 = vperm.xlu0 %4133, %v750
    %v4135 = vpop.permute.xlu0 %4134
    %4137 = vset.pattern.permute.xlu0 3
    %4138 = vperm.xlu0 %4137, %v751
    %v4139 = vpop.permute.xlu0 %4138
    %4141 = vset.pattern.permute.xlu0 3
    %4142 = vperm.xlu0 %4141, %v752
    %v4143 = vpop.permute.xlu0 %4142
    %4145 = vset.pattern.permute.xlu0 3
    %4146 = vperm.xlu0 %4145, %v753
    %v4147 = vpop.permute.xlu0 %4146
    %4149 = vset.pattern.permute.xlu0 3
    %4150 = vperm.xlu0 %4149, %v754
    %v4151 = vpop.permute.xlu0 %4150
    %4153 = vset.pattern.permute.xlu0 3
    %4154 = vperm.xlu0 %4153, %v755
    %v4155 = vpop.permute.xlu0 %4154
    %4157 = vset.pattern.permute.xlu0 3
    %4158 = vperm.xlu0 %4157, %v756
    %v4159 = vpop.permute.xlu0 %4158
    %4161 = vset.pattern.permute.xlu0 3
    %4162 = vperm.xlu0 %4161, %v757
    %v4163 = vpop.permute.xlu0 %4162
    %v4165 = vmul.f32 %v3591, %v3911
    %v4166 = vmul.f32 %v3596, %v3915
    %v4167 = vmul.f32 %v3601, %v3919
    %v4168 = vmul.f32 %v3606, %v3923
    %v4169 = vmul.f32 %v3611, %v3927
    %v4170 = vmul.f32 %v3616, %v3931
    %v4171 = vmul.f32 %v3621, %v3935
    %v4172 = vmul.f32 %v3626, %v3939
    %v4173 = vmul.f32 %v3631, %v3943
    %v4174 = vmul.f32 %v3636, %v3947
    %v4175 = vmul.f32 %v3641, %v3951
    %v4176 = vmul.f32 %v3646, %v3955
    %v4177 = vmul.f32 %v3651, %v3959
    %v4178 = vmul.f32 %v3656, %v3963
    %v4179 = vmul.f32 %v3661, %v3967
    %v4180 = vmul.f32 %v3666, %v3971
    %v4181 = vmul.f32 %v3671, %v3975
    %v4182 = vmul.f32 %v3676, %v3979
    %v4183 = vmul.f32 %v3681, %v3983
    %v4184 = vmul.f32 %v3686, %v3987
    %v4185 = vmul.f32 %v3691, %v3991
    %v4186 = vmul.f32 %v3696, %v3995
    %v4187 = vmul.f32 %v3701, %v3999
    %v4188 = vmul.f32 %v3706, %v4003
    %v4189 = vmul.f32 %v3711, %v4007
    %v4190 = vmul.f32 %v3716, %v4011
    %v4191 = vmul.f32 %v3721, %v4015
    %v4192 = vmul.f32 %v3726, %v4019
    %v4193 = vmul.f32 %v3731, %v4023
    %v4194 = vmul.f32 %v3736, %v4027
    %v4195 = vmul.f32 %v3741, %v4031
    %v4196 = vmul.f32 %v3746, %v4035
    %v4197 = vmul.f32 %v3751, %v4039
    %v4198 = vmul.f32 %v3756, %v4043
    %v4199 = vmul.f32 %v3761, %v4047
    %v4200 = vmul.f32 %v3766, %v4051
    %v4201 = vmul.f32 %v3771, %v4055
    %v4202 = vmul.f32 %v3776, %v4059
    %v4203 = vmul.f32 %v3781, %v4063
    %v4204 = vmul.f32 %v3786, %v4067
    %v4205 = vmul.f32 %v3791, %v4071
    %v4206 = vmul.f32 %v3796, %v4075
    %v4207 = vmul.f32 %v3801, %v4079
    %v4208 = vmul.f32 %v3806, %v4083
    %v4209 = vmul.f32 %v3811, %v4087
    %v4210 = vmul.f32 %v3816, %v4091
    %v4211 = vmul.f32 %v3821, %v4095
    %v4212 = vmul.f32 %v3826, %v4099
    %v4213 = vmul.f32 %v3831, %v4103
    %v4214 = vmul.f32 %v3836, %v4107
    %v4215 = vmul.f32 %v3841, %v4111
    %v4216 = vmul.f32 %v3846, %v4115
    %v4217 = vmul.f32 %v3851, %v4119
    %v4218 = vmul.f32 %v3856, %v4123
    %v4219 = vmul.f32 %v3861, %v4127
    %v4220 = vmul.f32 %v3866, %v4131
    %v4221 = vmul.f32 %v3871, %v4135
    %v4222 = vmul.f32 %v3876, %v4139
    %v4223 = vmul.f32 %v3881, %v4143
    %v4224 = vmul.f32 %v3886, %v4147
    %v4225 = vmul.f32 %v3891, %v4151
    %v4226 = vmul.f32 %v3896, %v4155
    %v4227 = vmul.f32 %v3901, %v4159
    %v4228 = vmul.f32 %v3906, %v4163
    %v4229 = vadd.f32 %v3200, %v4165
    %v4230 = vadd.f32 %v3201, %v4166
    %v4231 = vadd.f32 %v3202, %v4167
    %v4232 = vadd.f32 %v3203, %v4168
    %v4233 = vadd.f32 %v3204, %v4169
    %v4234 = vadd.f32 %v3205, %v4170
    %v4235 = vadd.f32 %v3206, %v4171
    %v4236 = vadd.f32 %v3207, %v4172
    %v4237 = vadd.f32 %v3208, %v4173
    %v4238 = vadd.f32 %v3209, %v4174
    %v4239 = vadd.f32 %v3210, %v4175
    %v4240 = vadd.f32 %v3211, %v4176
    %v4241 = vadd.f32 %v3212, %v4177
    %v4242 = vadd.f32 %v3213, %v4178
    %v4243 = vadd.f32 %v3214, %v4179
    %v4244 = vadd.f32 %v3215, %v4180
    %v4245 = vadd.f32 %v3216, %v4181
    %v4246 = vadd.f32 %v3217, %v4182
    %v4247 = vadd.f32 %v3218, %v4183
    %v4248 = vadd.f32 %v3219, %v4184
    %v4249 = vadd.f32 %v3220, %v4185
    %v4250 = vadd.f32 %v3221, %v4186
    %v4251 = vadd.f32 %v3222, %v4187
    %v4252 = vadd.f32 %v3223, %v4188
    %v4253 = vadd.f32 %v3224, %v4189
    %v4254 = vadd.f32 %v3225, %v4190
    %v4255 = vadd.f32 %v3226, %v4191
    %v4256 = vadd.f32 %v3227, %v4192
    %v4257 = vadd.f32 %v3228, %v4193
    %v4258 = vadd.f32 %v3229, %v4194
    %v4259 = vadd.f32 %v3230, %v4195
    %v4260 = vadd.f32 %v3231, %v4196
    %v4261 = vadd.f32 %v3232, %v4197
    %v4262 = vadd.f32 %v3233, %v4198
    %v4263 = vadd.f32 %v3234, %v4199
    %v4264 = vadd.f32 %v3235, %v4200
    %v4265 = vadd.f32 %v3236, %v4201
    %v4266 = vadd.f32 %v3237, %v4202
    %v4267 = vadd.f32 %v3238, %v4203
    %v4268 = vadd.f32 %v3239, %v4204
    %v4269 = vadd.f32 %v3240, %v4205
    %v4270 = vadd.f32 %v3241, %v4206
    %v4271 = vadd.f32 %v3242, %v4207
    %v4272 = vadd.f32 %v3243, %v4208
    %v4273 = vadd.f32 %v3244, %v4209
    %v4274 = vadd.f32 %v3245, %v4210
    %v4275 = vadd.f32 %v3246, %v4211
    %v4276 = vadd.f32 %v3247, %v4212
    %v4277 = vadd.f32 %v3248, %v4213
    %v4278 = vadd.f32 %v3249, %v4214
    %v4279 = vadd.f32 %v3250, %v4215
    %v4280 = vadd.f32 %v3251, %v4216
    %v4281 = vadd.f32 %v3252, %v4217
    %v4282 = vadd.f32 %v3253, %v4218
    %v4283 = vadd.f32 %v3254, %v4219
    %v4284 = vadd.f32 %v3255, %v4220
    %v4285 = vadd.f32 %v3256, %v4221
    %v4286 = vadd.f32 %v3257, %v4222
    %v4287 = vadd.f32 %v3258, %v4223
    %v4288 = vadd.f32 %v3259, %v4224
    %v4289 = vadd.f32 %v3260, %v4225
    %v4290 = vadd.f32 %v3261, %v4226
    %v4291 = vadd.f32 %v3262, %v4227
    %v4292 = vadd.f32 %v3263, %v4228
    %v4293 = vld [vmem:[%s0 + $0x11] sm:$0xff]
    %v4294 = vld [vmem:[%s0 + $0x19] sm:$0xff]
    %v4295 = vld [vmem:[%s0 + $0x21] sm:$0xff]
    %v4296 = vld [vmem:[%s0 + $0x29] sm:$0xff]
    %v4297 = vld [vmem:[%s0 + $0x31] sm:$0xff]
    %v4298 = vld [vmem:[%s0 + $0x39] sm:$0xff]
    %v4299 = vld [vmem:[%s0 + $0x41] sm:$0xff]
    %v4300 = vld [vmem:[%s0 + $0x49] sm:$0xff]
    %v4301 = vld [vmem:[%s0 + $0x51] sm:$0xff]
    %v4302 = vld [vmem:[%s0 + $0x59] sm:$0xff]
    %v4303 = vld [vmem:[%s0 + $0x61] sm:$0xff]
    %v4304 = vld [vmem:[%s0 + $0x69] sm:$0xff]
    %v4305 = vld [vmem:[%s0 + $0x71] sm:$0xff]
    %v4306 = vld [vmem:[%s0 + $0x79] sm:$0xff]
    %v4307 = vld [vmem:[%s0 + $0x81] sm:$0xff]
    %v4308 = vld [vmem:[%s0 + $0x89] sm:$0xff]
    %v4309 = vld [vmem:[%s0 + $0x91] sm:$0xff]
    %v4310 = vld [vmem:[%s0 + $0x99] sm:$0xff]
    %v4311 = vld [vmem:[%s0 + $0xa1] sm:$0xff]
    %v4312 = vld [vmem:[%s0 + $0xa9] sm:$0xff]
    %v4313 = vld [vmem:[%s0 + $0xb1] sm:$0xff]
    %v4314 = vld [vmem:[%s0 + $0xb9] sm:$0xff]
    %v4315 = vld [vmem:[%s0 + $0xc1] sm:$0xff]
    %v4316 = vld [vmem:[%s0 + $0xc9] sm:$0xff]
    %v4317 = vld [vmem:[%s0 + $0xd1] sm:$0xff]
    %v4318 = vld [vmem:[%s0 + $0xd9] sm:$0xff]
    %v4319 = vld [vmem:[%s0 + $0xe1] sm:$0xff]
    %v4320 = vld [vmem:[%s0 + $0xe9] sm:$0xff]
    %v4321 = vld [vmem:[%s0 + $0xf1] sm:$0xff]
    %v4322 = vld [vmem:[%s0 + $0xf9] sm:$0xff]
    %v4323 = vld [vmem:[%s0 + $0x101] sm:$0xff]
    %v4324 = vld [vmem:[%s0 + $0x109] sm:$0xff]
    %v4325 = vld [vmem:[%s0 + $0x111] sm:$0xff]
    %v4326 = vld [vmem:[%s0 + $0x119] sm:$0xff]
    %v4327 = vld [vmem:[%s0 + $0x121] sm:$0xff]
    %v4328 = vld [vmem:[%s0 + $0x129] sm:$0xff]
    %v4329 = vld [vmem:[%s0 + $0x131] sm:$0xff]
    %v4330 = vld [vmem:[%s0 + $0x139] sm:$0xff]
    %v4331 = vld [vmem:[%s0 + $0x141] sm:$0xff]
    %v4332 = vld [vmem:[%s0 + $0x149] sm:$0xff]
    %v4333 = vld [vmem:[%s0 + $0x151] sm:$0xff]
    %v4334 = vld [vmem:[%s0 + $0x159] sm:$0xff]
    %v4335 = vld [vmem:[%s0 + $0x161] sm:$0xff]
    %v4336 = vld [vmem:[%s0 + $0x169] sm:$0xff]
    %v4337 = vld [vmem:[%s0 + $0x171] sm:$0xff]
    %v4338 = vld [vmem:[%s0 + $0x179] sm:$0xff]
    %v4339 = vld [vmem:[%s0 + $0x181] sm:$0xff]
    %v4340 = vld [vmem:[%s0 + $0x189] sm:$0xff]
    %v4341 = vld [vmem:[%s0 + $0x191] sm:$0xff]
    %v4342 = vld [vmem:[%s0 + $0x199] sm:$0xff]
    %v4343 = vld [vmem:[%s0 + $0x1a1] sm:$0xff]
    %v4344 = vld [vmem:[%s0 + $0x1a9] sm:$0xff]
    %v4345 = vld [vmem:[%s0 + $0x1b1] sm:$0xff]
    %v4346 = vld [vmem:[%s0 + $0x1b9] sm:$0xff]
    %v4347 = vld [vmem:[%s0 + $0x1c1] sm:$0xff]
    %v4348 = vld [vmem:[%s0 + $0x1c9] sm:$0xff]
    %v4349 = vld [vmem:[%s0 + $0x1d1] sm:$0xff]
    %v4350 = vld [vmem:[%s0 + $0x1d9] sm:$0xff]
    %v4351 = vld [vmem:[%s0 + $0x1e1] sm:$0xff]
    %v4352 = vld [vmem:[%s0 + $0x1e9] sm:$0xff]
    %v4353 = vld [vmem:[%s0 + $0x1f1] sm:$0xff]
    %v4354 = vld [vmem:[%s0 + $0x1f9] sm:$0xff]
    %v4355 = vld [vmem:[%s0 + $0x201] sm:$0xff]
    %v4356 = vld [vmem:[%s0 + $0x209] sm:$0xff]
    %v4357 = vld [vmem:[%s4 + $0x80] sm:$0xff]
    %v4358 = vld [vmem:[%s4 + $0x88] sm:$0xff]
    %v4359 = vld [vmem:[%s4 + $0x90] sm:$0xff]
    %v4360 = vld [vmem:[%s4 + $0x98] sm:$0xff]
    %v4362 = vsel %vm116, %v4293, 0
    %v4365 = vsel %vm116, %v4294, 0
    %v4368 = vsel %vm116, %v4295, 0
    %v4371 = vsel %vm116, %v4296, 0
    %v4374 = vsel %vm116, %v4297, 0
    %v4377 = vsel %vm116, %v4298, 0
    %v4380 = vsel %vm116, %v4299, 0
    %v4383 = vsel %vm116, %v4300, 0
    %v4386 = vsel %vm116, %v4301, 0
    %v4389 = vsel %vm116, %v4302, 0
    %v4392 = vsel %vm116, %v4303, 0
    %v4395 = vsel %vm116, %v4304, 0
    %v4398 = vsel %vm116, %v4305, 0
    %v4401 = vsel %vm116, %v4306, 0
    %v4404 = vsel %vm116, %v4307, 0
    %v4407 = vsel %vm116, %v4308, 0
    %v4410 = vsel %vm116, %v4309, 0
    %v4413 = vsel %vm116, %v4310, 0
    %v4416 = vsel %vm116, %v4311, 0
    %v4419 = vsel %vm116, %v4312, 0
    %v4422 = vsel %vm116, %v4313, 0
    %v4425 = vsel %vm116, %v4314, 0
    %v4428 = vsel %vm116, %v4315, 0
    %v4431 = vsel %vm116, %v4316, 0
    %v4434 = vsel %vm116, %v4317, 0
    %v4437 = vsel %vm116, %v4318, 0
    %v4440 = vsel %vm116, %v4319, 0
    %v4443 = vsel %vm116, %v4320, 0
    %v4446 = vsel %vm116, %v4321, 0
    %v4449 = vsel %vm116, %v4322, 0
    %v4452 = vsel %vm116, %v4323, 0
    %v4455 = vsel %vm116, %v4324, 0
    %v4458 = vsel %vm116, %v4325, 0
    %v4461 = vsel %vm116, %v4326, 0
    %v4464 = vsel %vm116, %v4327, 0
    %v4467 = vsel %vm116, %v4328, 0
    %v4470 = vsel %vm116, %v4329, 0
    %v4473 = vsel %vm116, %v4330, 0
    %v4476 = vsel %vm116, %v4331, 0
    %v4479 = vsel %vm116, %v4332, 0
    %v4482 = vsel %vm116, %v4333, 0
    %v4485 = vsel %vm116, %v4334, 0
    %v4488 = vsel %vm116, %v4335, 0
    %v4491 = vsel %vm116, %v4336, 0
    %v4494 = vsel %vm116, %v4337, 0
    %v4497 = vsel %vm116, %v4338, 0
    %v4500 = vsel %vm116, %v4339, 0
    %v4503 = vsel %vm116, %v4340, 0
    %v4506 = vsel %vm116, %v4341, 0
    %v4509 = vsel %vm116, %v4342, 0
    %v4512 = vsel %vm116, %v4343, 0
    %v4515 = vsel %vm116, %v4344, 0
    %v4518 = vsel %vm116, %v4345, 0
    %v4521 = vsel %vm116, %v4346, 0
    %v4524 = vsel %vm116, %v4347, 0
    %v4527 = vsel %vm116, %v4348, 0
    %v4530 = vsel %vm116, %v4349, 0
    %v4533 = vsel %vm116, %v4350, 0
    %v4536 = vsel %vm116, %v4351, 0
    %v4539 = vsel %vm116, %v4352, 0
    %v4542 = vsel %vm116, %v4353, 0
    %v4545 = vsel %vm116, %v4354, 0
    %v4548 = vsel %vm116, %v4355, 0
    %v4551 = vsel %vm116, %v4356, 0
    %4553 = vmatprep.subr.mxu0 0.0
    %4554 = vmatpush1.msra.mxu0 0.0
    %4555 = vmatprep.subr.mxu0 0.0
    %4556 = vmatpush1.msra.mxu0 0.0
    %4557 = vmatprep.subr.mxu0 0.0
    %4558 = vmatpush1.msra.mxu0 0.0
    %4559 = vmatprep.subr.mxu0 0.0
    %4560 = vmatpush1.msra.mxu0 0.0
    %4561 = vmatprep.subr.mxu0 0.0
    %4562 = vmatpush1.msra.mxu0 0.0
    %4563 = vmatprep.subr.mxu0 0.0
    %4564 = vmatpush1.msra.mxu0 0.0
    %4565 = vmatprep.subr.mxu0 0.0
    %4566 = vmatpush1.msra.mxu0 0.0
    %4567 = vmatprep.subr.mxu0 0.0
    %4568 = vmatpush1.msra.mxu0 0.0
    %4569 = vmatprep.subr.mxu0 0.0
    %4570 = vmatpush1.msra.mxu0 0.0
    %4571 = vmatprep.subr.mxu0 0.0
    %4572 = vmatpush1.msra.mxu0 0.0
    %4573 = vmatprep.subr.mxu0 0.0
    %4574 = vmatpush1.msra.mxu0 0.0
    %4575 = vmatprep.subr.mxu0 0.0
    %4576 = vmatpush1.msra.mxu0 0.0
    %4577 = vmatprep.subr.mxu0 0.0
    %4578 = vmatpush1.msra.mxu0 %v4360
    %4579 = vmatprep.subr.mxu0 0.0
    %4580 = vmatpush1.msra.mxu0 %v4359
    %4581 = vmatprep.subr.mxu0 0.0
    %4582 = vmatpush1.msra.mxu0 %v4358
    %4583 = vmatprep.subr.mxu0 0.0
    %4584 = vmatpush1.msra.mxu0 %v4357
    %4585 = vmatprep.subr.mxu0 0.0
    %4586 = vmatpush2.msra.mxu0 0.0
    %4587 = vmatprep.subr.mxu0 0.0
    %4588 = vmatpush2.msra.mxu0 0.0
    %4589 = vmatprep.subr.mxu0 0.0
    %4590 = vmatpush2.msra.mxu0 0.0
    %4591 = vmatprep.subr.mxu0 0.0
    %4592 = vmatpush2.msra.mxu0 0.0
    %4593 = vmatprep.subr.mxu0 0.0
    %4594 = vmatpush2.msra.mxu0 0.0
    %4595 = vmatprep.subr.mxu0 0.0
    %4596 = vmatpush2.msra.mxu0 0.0
    %4597 = vmatprep.subr.mxu0 0.0
    %4598 = vmatpush2.msra.mxu0 0.0
    %4599 = vmatprep.subr.mxu0 0.0
    %4600 = vmatpush2.msra.mxu0 0.0
    %4601 = vmatprep.subr.mxu0 0.0
    %4602 = vmatpush2.msra.mxu0 0.0
    %4603 = vmatprep.subr.mxu0 0.0
    %4604 = vmatpush2.msra.mxu0 0.0
    %4605 = vmatprep.subr.mxu0 0.0
    %4606 = vmatpush2.msra.mxu0 0.0
    %4607 = vmatprep.subr.mxu0 0.0
    %4608 = vmatpush2.msra.mxu0 0.0
    %4609 = vmatprep.subr.mxu0 0.0
    %4610 = vmatpush2.msra.mxu0 0.0
    %4611 = vmatprep.subr.mxu0 0.0
    %4612 = vmatpush2.msra.mxu0 0.0
    %4613 = vmatprep.subr.mxu0 0.0
    %4614 = vmatpush2.msra.mxu0 0.0
    %4615 = vmatprep.subr.mxu0 0.0
    %4616 = vmatpush2.msra.mxu0 0.0
    %4617 = vmatprep.mubr.f32.mxu0 0.0
    %4618 = vmatmul.mubr.f32.gmra.mxu0 %v4362
    %v4619 = vpop.f32.mrf.mxu0
    %v4620 = vadd.f32 0.0, %v4619
    %v4621 = vpop.f32.mrf.mxu0
    %4622 = vmatprep.mubr.f32.mxu0 0.0
    %4623 = vmatmul.mubr.f32.gmra.mxu0 %v4365
    %v4624 = vpop.f32.mrf.mxu0
    %v4625 = vadd.f32 0.0, %v4624
    %v4626 = vpop.f32.mrf.mxu0
    %4627 = vmatprep.mubr.f32.mxu0 0.0
    %4628 = vmatmul.mubr.f32.gmra.mxu0 %v4368
    %v4629 = vpop.f32.mrf.mxu0
    %v4630 = vadd.f32 0.0, %v4629
    %v4631 = vpop.f32.mrf.mxu0
    %4632 = vmatprep.mubr.f32.mxu0 0.0
    %4633 = vmatmul.mubr.f32.gmra.mxu0 %v4371
    %v4634 = vpop.f32.mrf.mxu0
    %v4635 = vadd.f32 0.0, %v4634
    %v4636 = vpop.f32.mrf.mxu0
    %4637 = vmatprep.mubr.f32.mxu0 0.0
    %4638 = vmatmul.mubr.f32.gmra.mxu0 %v4374
    %v4639 = vpop.f32.mrf.mxu0
    %v4640 = vadd.f32 0.0, %v4639
    %v4641 = vpop.f32.mrf.mxu0
    %4642 = vmatprep.mubr.f32.mxu0 0.0
    %4643 = vmatmul.mubr.f32.gmra.mxu0 %v4377
    %v4644 = vpop.f32.mrf.mxu0
    %v4645 = vadd.f32 0.0, %v4644
    %v4646 = vpop.f32.mrf.mxu0
    %4647 = vmatprep.mubr.f32.mxu0 0.0
    %4648 = vmatmul.mubr.f32.gmra.mxu0 %v4380
    %v4649 = vpop.f32.mrf.mxu0
    %v4650 = vadd.f32 0.0, %v4649
    %v4651 = vpop.f32.mrf.mxu0
    %4652 = vmatprep.mubr.f32.mxu0 0.0
    %4653 = vmatmul.mubr.f32.gmra.mxu0 %v4383
    %v4654 = vpop.f32.mrf.mxu0
    %v4655 = vadd.f32 0.0, %v4654
    %v4656 = vpop.f32.mrf.mxu0
    %4657 = vmatprep.mubr.f32.mxu0 0.0
    %4658 = vmatmul.mubr.f32.gmra.mxu0 %v4386
    %v4659 = vpop.f32.mrf.mxu0
    %v4660 = vadd.f32 0.0, %v4659
    %v4661 = vpop.f32.mrf.mxu0
    %4662 = vmatprep.mubr.f32.mxu0 0.0
    %4663 = vmatmul.mubr.f32.gmra.mxu0 %v4389
    %v4664 = vpop.f32.mrf.mxu0
    %v4665 = vadd.f32 0.0, %v4664
    %v4666 = vpop.f32.mrf.mxu0
    %4667 = vmatprep.mubr.f32.mxu0 0.0
    %4668 = vmatmul.mubr.f32.gmra.mxu0 %v4392
    %v4669 = vpop.f32.mrf.mxu0
    %v4670 = vadd.f32 0.0, %v4669
    %v4671 = vpop.f32.mrf.mxu0
    %4672 = vmatprep.mubr.f32.mxu0 0.0
    %4673 = vmatmul.mubr.f32.gmra.mxu0 %v4395
    %v4674 = vpop.f32.mrf.mxu0
    %v4675 = vadd.f32 0.0, %v4674
    %v4676 = vpop.f32.mrf.mxu0
    %4677 = vmatprep.mubr.f32.mxu0 0.0
    %4678 = vmatmul.mubr.f32.gmra.mxu0 %v4398
    %v4679 = vpop.f32.mrf.mxu0
    %v4680 = vadd.f32 0.0, %v4679
    %v4681 = vpop.f32.mrf.mxu0
    %4682 = vmatprep.mubr.f32.mxu0 0.0
    %4683 = vmatmul.mubr.f32.gmra.mxu0 %v4401
    %v4684 = vpop.f32.mrf.mxu0
    %v4685 = vadd.f32 0.0, %v4684
    %v4686 = vpop.f32.mrf.mxu0
    %4687 = vmatprep.mubr.f32.mxu0 0.0
    %4688 = vmatmul.mubr.f32.gmra.mxu0 %v4404
    %v4689 = vpop.f32.mrf.mxu0
    %v4690 = vadd.f32 0.0, %v4689
    %v4691 = vpop.f32.mrf.mxu0
    %4692 = vmatprep.mubr.f32.mxu0 0.0
    %4693 = vmatmul.mubr.f32.gmra.mxu0 %v4407
    %v4694 = vpop.f32.mrf.mxu0
    %v4695 = vadd.f32 0.0, %v4694
    %v4696 = vpop.f32.mrf.mxu0
    %4697 = vmatprep.mubr.f32.mxu0 0.0
    %4698 = vmatmul.mubr.f32.gmra.mxu0 %v4410
    %v4699 = vpop.f32.mrf.mxu0
    %v4700 = vadd.f32 0.0, %v4699
    %v4701 = vpop.f32.mrf.mxu0
    %4702 = vmatprep.mubr.f32.mxu0 0.0
    %4703 = vmatmul.mubr.f32.gmra.mxu0 %v4413
    %v4704 = vpop.f32.mrf.mxu0
    %v4705 = vadd.f32 0.0, %v4704
    %v4706 = vpop.f32.mrf.mxu0
    %4707 = vmatprep.mubr.f32.mxu0 0.0
    %4708 = vmatmul.mubr.f32.gmra.mxu0 %v4416
    %v4709 = vpop.f32.mrf.mxu0
    %v4710 = vadd.f32 0.0, %v4709
    %v4711 = vpop.f32.mrf.mxu0
    %4712 = vmatprep.mubr.f32.mxu0 0.0
    %4713 = vmatmul.mubr.f32.gmra.mxu0 %v4419
    %v4714 = vpop.f32.mrf.mxu0
    %v4715 = vadd.f32 0.0, %v4714
    %v4716 = vpop.f32.mrf.mxu0
    %4717 = vmatprep.mubr.f32.mxu0 0.0
    %4718 = vmatmul.mubr.f32.gmra.mxu0 %v4422
    %v4719 = vpop.f32.mrf.mxu0
    %v4720 = vadd.f32 0.0, %v4719
    %v4721 = vpop.f32.mrf.mxu0
    %4722 = vmatprep.mubr.f32.mxu0 0.0
    %4723 = vmatmul.mubr.f32.gmra.mxu0 %v4425
    %v4724 = vpop.f32.mrf.mxu0
    %v4725 = vadd.f32 0.0, %v4724
    %v4726 = vpop.f32.mrf.mxu0
    %4727 = vmatprep.mubr.f32.mxu0 0.0
    %4728 = vmatmul.mubr.f32.gmra.mxu0 %v4428
    %v4729 = vpop.f32.mrf.mxu0
    %v4730 = vadd.f32 0.0, %v4729
    %v4731 = vpop.f32.mrf.mxu0
    %4732 = vmatprep.mubr.f32.mxu0 0.0
    %4733 = vmatmul.mubr.f32.gmra.mxu0 %v4431
    %v4734 = vpop.f32.mrf.mxu0
    %v4735 = vadd.f32 0.0, %v4734
    %v4736 = vpop.f32.mrf.mxu0
    %4737 = vmatprep.mubr.f32.mxu0 0.0
    %4738 = vmatmul.mubr.f32.gmra.mxu0 %v4434
    %v4739 = vpop.f32.mrf.mxu0
    %v4740 = vadd.f32 0.0, %v4739
    %v4741 = vpop.f32.mrf.mxu0
    %4742 = vmatprep.mubr.f32.mxu0 0.0
    %4743 = vmatmul.mubr.f32.gmra.mxu0 %v4437
    %v4744 = vpop.f32.mrf.mxu0
    %v4745 = vadd.f32 0.0, %v4744
    %v4746 = vpop.f32.mrf.mxu0
    %4747 = vmatprep.mubr.f32.mxu0 0.0
    %4748 = vmatmul.mubr.f32.gmra.mxu0 %v4440
    %v4749 = vpop.f32.mrf.mxu0
    %v4750 = vadd.f32 0.0, %v4749
    %v4751 = vpop.f32.mrf.mxu0
    %4752 = vmatprep.mubr.f32.mxu0 0.0
    %4753 = vmatmul.mubr.f32.gmra.mxu0 %v4443
    %v4754 = vpop.f32.mrf.mxu0
    %v4755 = vadd.f32 0.0, %v4754
    %v4756 = vpop.f32.mrf.mxu0
    %4757 = vmatprep.mubr.f32.mxu0 0.0
    %4758 = vmatmul.mubr.f32.gmra.mxu0 %v4446
    %v4759 = vpop.f32.mrf.mxu0
    %v4760 = vadd.f32 0.0, %v4759
    %v4761 = vpop.f32.mrf.mxu0
    %4762 = vmatprep.mubr.f32.mxu0 0.0
    %4763 = vmatmul.mubr.f32.gmra.mxu0 %v4449
    %v4764 = vpop.f32.mrf.mxu0
    %v4765 = vadd.f32 0.0, %v4764
    %v4766 = vpop.f32.mrf.mxu0
    %4767 = vmatprep.mubr.f32.mxu0 0.0
    %4768 = vmatmul.mubr.f32.gmra.mxu0 %v4452
    %v4769 = vpop.f32.mrf.mxu0
    %v4770 = vadd.f32 0.0, %v4769
    %v4771 = vpop.f32.mrf.mxu0
    %4772 = vmatprep.mubr.f32.mxu0 0.0
    %4773 = vmatmul.mubr.f32.gmra.mxu0 %v4455
    %v4774 = vpop.f32.mrf.mxu0
    %v4775 = vadd.f32 0.0, %v4774
    %v4776 = vpop.f32.mrf.mxu0
    %4777 = vmatprep.mubr.f32.mxu0 0.0
    %4778 = vmatmul.mubr.f32.gmra.mxu0 %v4458
    %v4779 = vpop.f32.mrf.mxu0
    %v4780 = vadd.f32 0.0, %v4779
    %v4781 = vpop.f32.mrf.mxu0
    %4782 = vmatprep.mubr.f32.mxu0 0.0
    %4783 = vmatmul.mubr.f32.gmra.mxu0 %v4461
    %v4784 = vpop.f32.mrf.mxu0
    %v4785 = vadd.f32 0.0, %v4784
    %v4786 = vpop.f32.mrf.mxu0
    %4787 = vmatprep.mubr.f32.mxu0 0.0
    %4788 = vmatmul.mubr.f32.gmra.mxu0 %v4464
    %v4789 = vpop.f32.mrf.mxu0
    %v4790 = vadd.f32 0.0, %v4789
    %v4791 = vpop.f32.mrf.mxu0
    %4792 = vmatprep.mubr.f32.mxu0 0.0
    %4793 = vmatmul.mubr.f32.gmra.mxu0 %v4467
    %v4794 = vpop.f32.mrf.mxu0
    %v4795 = vadd.f32 0.0, %v4794
    %v4796 = vpop.f32.mrf.mxu0
    %4797 = vmatprep.mubr.f32.mxu0 0.0
    %4798 = vmatmul.mubr.f32.gmra.mxu0 %v4470
    %v4799 = vpop.f32.mrf.mxu0
    %v4800 = vadd.f32 0.0, %v4799
    %v4801 = vpop.f32.mrf.mxu0
    %4802 = vmatprep.mubr.f32.mxu0 0.0
    %4803 = vmatmul.mubr.f32.gmra.mxu0 %v4473
    %v4804 = vpop.f32.mrf.mxu0
    %v4805 = vadd.f32 0.0, %v4804
    %v4806 = vpop.f32.mrf.mxu0
    %4807 = vmatprep.mubr.f32.mxu0 0.0
    %4808 = vmatmul.mubr.f32.gmra.mxu0 %v4476
    %v4809 = vpop.f32.mrf.mxu0
    %v4810 = vadd.f32 0.0, %v4809
    %v4811 = vpop.f32.mrf.mxu0
    %4812 = vmatprep.mubr.f32.mxu0 0.0
    %4813 = vmatmul.mubr.f32.gmra.mxu0 %v4479
    %v4814 = vpop.f32.mrf.mxu0
    %v4815 = vadd.f32 0.0, %v4814
    %v4816 = vpop.f32.mrf.mxu0
    %4817 = vmatprep.mubr.f32.mxu0 0.0
    %4818 = vmatmul.mubr.f32.gmra.mxu0 %v4482
    %v4819 = vpop.f32.mrf.mxu0
    %v4820 = vadd.f32 0.0, %v4819
    %v4821 = vpop.f32.mrf.mxu0
    %4822 = vmatprep.mubr.f32.mxu0 0.0
    %4823 = vmatmul.mubr.f32.gmra.mxu0 %v4485
    %v4824 = vpop.f32.mrf.mxu0
    %v4825 = vadd.f32 0.0, %v4824
    %v4826 = vpop.f32.mrf.mxu0
    %4827 = vmatprep.mubr.f32.mxu0 0.0
    %4828 = vmatmul.mubr.f32.gmra.mxu0 %v4488
    %v4829 = vpop.f32.mrf.mxu0
    %v4830 = vadd.f32 0.0, %v4829
    %v4831 = vpop.f32.mrf.mxu0
    %4832 = vmatprep.mubr.f32.mxu0 0.0
    %4833 = vmatmul.mubr.f32.gmra.mxu0 %v4491
    %v4834 = vpop.f32.mrf.mxu0
    %v4835 = vadd.f32 0.0, %v4834
    %v4836 = vpop.f32.mrf.mxu0
    %4837 = vmatprep.mubr.f32.mxu0 0.0
    %4838 = vmatmul.mubr.f32.gmra.mxu0 %v4494
    %v4839 = vpop.f32.mrf.mxu0
    %v4840 = vadd.f32 0.0, %v4839
    %v4841 = vpop.f32.mrf.mxu0
    %4842 = vmatprep.mubr.f32.mxu0 0.0
    %4843 = vmatmul.mubr.f32.gmra.mxu0 %v4497
    %v4844 = vpop.f32.mrf.mxu0
    %v4845 = vadd.f32 0.0, %v4844
    %v4846 = vpop.f32.mrf.mxu0
    %4847 = vmatprep.mubr.f32.mxu0 0.0
    %4848 = vmatmul.mubr.f32.gmra.mxu0 %v4500
    %v4849 = vpop.f32.mrf.mxu0
    %v4850 = vadd.f32 0.0, %v4849
    %v4851 = vpop.f32.mrf.mxu0
    %4852 = vmatprep.mubr.f32.mxu0 0.0
    %4853 = vmatmul.mubr.f32.gmra.mxu0 %v4503
    %v4854 = vpop.f32.mrf.mxu0
    %v4855 = vadd.f32 0.0, %v4854
    %v4856 = vpop.f32.mrf.mxu0
    %4857 = vmatprep.mubr.f32.mxu0 0.0
    %4858 = vmatmul.mubr.f32.gmra.mxu0 %v4506
    %v4859 = vpop.f32.mrf.mxu0
    %v4860 = vadd.f32 0.0, %v4859
    %v4861 = vpop.f32.mrf.mxu0
    %4862 = vmatprep.mubr.f32.mxu0 0.0
    %4863 = vmatmul.mubr.f32.gmra.mxu0 %v4509
    %v4864 = vpop.f32.mrf.mxu0
    %v4865 = vadd.f32 0.0, %v4864
    %v4866 = vpop.f32.mrf.mxu0
    %4867 = vmatprep.mubr.f32.mxu0 0.0
    %4868 = vmatmul.mubr.f32.gmra.mxu0 %v4512
    %v4869 = vpop.f32.mrf.mxu0
    %v4870 = vadd.f32 0.0, %v4869
    %v4871 = vpop.f32.mrf.mxu0
    %4872 = vmatprep.mubr.f32.mxu0 0.0
    %4873 = vmatmul.mubr.f32.gmra.mxu0 %v4515
    %v4874 = vpop.f32.mrf.mxu0
    %v4875 = vadd.f32 0.0, %v4874
    %v4876 = vpop.f32.mrf.mxu0
    %4877 = vmatprep.mubr.f32.mxu0 0.0
    %4878 = vmatmul.mubr.f32.gmra.mxu0 %v4518
    %v4879 = vpop.f32.mrf.mxu0
    %v4880 = vadd.f32 0.0, %v4879
    %v4881 = vpop.f32.mrf.mxu0
    %4882 = vmatprep.mubr.f32.mxu0 0.0
    %4883 = vmatmul.mubr.f32.gmra.mxu0 %v4521
    %v4884 = vpop.f32.mrf.mxu0
    %v4885 = vadd.f32 0.0, %v4884
    %v4886 = vpop.f32.mrf.mxu0
    %4887 = vmatprep.mubr.f32.mxu0 0.0
    %4888 = vmatmul.mubr.f32.gmra.mxu0 %v4524
    %v4889 = vpop.f32.mrf.mxu0
    %v4890 = vadd.f32 0.0, %v4889
    %v4891 = vpop.f32.mrf.mxu0
    %4892 = vmatprep.mubr.f32.mxu0 0.0
    %4893 = vmatmul.mubr.f32.gmra.mxu0 %v4527
    %v4894 = vpop.f32.mrf.mxu0
    %v4895 = vadd.f32 0.0, %v4894
    %v4896 = vpop.f32.mrf.mxu0
    %4897 = vmatprep.mubr.f32.mxu0 0.0
    %4898 = vmatmul.mubr.f32.gmra.mxu0 %v4530
    %v4899 = vpop.f32.mrf.mxu0
    %v4900 = vadd.f32 0.0, %v4899
    %v4901 = vpop.f32.mrf.mxu0
    %4902 = vmatprep.mubr.f32.mxu0 0.0
    %4903 = vmatmul.mubr.f32.gmra.mxu0 %v4533
    %v4904 = vpop.f32.mrf.mxu0
    %v4905 = vadd.f32 0.0, %v4904
    %v4906 = vpop.f32.mrf.mxu0
    %4907 = vmatprep.mubr.f32.mxu0 0.0
    %4908 = vmatmul.mubr.f32.gmra.mxu0 %v4536
    %v4909 = vpop.f32.mrf.mxu0
    %v4910 = vadd.f32 0.0, %v4909
    %v4911 = vpop.f32.mrf.mxu0
    %4912 = vmatprep.mubr.f32.mxu0 0.0
    %4913 = vmatmul.mubr.f32.gmra.mxu0 %v4539
    %v4914 = vpop.f32.mrf.mxu0
    %v4915 = vadd.f32 0.0, %v4914
    %v4916 = vpop.f32.mrf.mxu0
    %4917 = vmatprep.mubr.f32.mxu0 0.0
    %4918 = vmatmul.mubr.f32.gmra.mxu0 %v4542
    %v4919 = vpop.f32.mrf.mxu0
    %v4920 = vadd.f32 0.0, %v4919
    %v4921 = vpop.f32.mrf.mxu0
    %4922 = vmatprep.mubr.f32.mxu0 0.0
    %4923 = vmatmul.mubr.f32.gmra.mxu0 %v4545
    %v4924 = vpop.f32.mrf.mxu0
    %v4925 = vadd.f32 0.0, %v4924
    %v4926 = vpop.f32.mrf.mxu0
    %4927 = vmatprep.mubr.f32.mxu0 0.0
    %4928 = vmatmul.mubr.f32.gmra.mxu0 %v4548
    %v4929 = vpop.f32.mrf.mxu0
    %v4930 = vadd.f32 0.0, %v4929
    %v4931 = vpop.f32.mrf.mxu0
    %4932 = vmatprep.mubr.f32.mxu0 0.0
    %4933 = vmatmul.mubr.f32.gmra.mxu0 %v4551
    %v4934 = vpop.f32.mrf.mxu0
    %v4935 = vadd.f32 0.0, %v4934
    %v4936 = vpop.f32.mrf.mxu0
    %4937 = vdwg.mxu0
    %v4938 = vadd.f32 %v4229, %v4620
    %v4939 = vadd.f32 %v4230, %v4625
    %v4940 = vadd.f32 %v4231, %v4630
    %v4941 = vadd.f32 %v4232, %v4635
    %v4942 = vadd.f32 %v4233, %v4640
    %v4943 = vadd.f32 %v4234, %v4645
    %v4944 = vadd.f32 %v4235, %v4650
    %v4945 = vadd.f32 %v4236, %v4655
    %v4946 = vadd.f32 %v4237, %v4660
    %v4947 = vadd.f32 %v4238, %v4665
    %v4948 = vadd.f32 %v4239, %v4670
    %v4949 = vadd.f32 %v4240, %v4675
    %v4950 = vadd.f32 %v4241, %v4680
    %v4951 = vadd.f32 %v4242, %v4685
    %v4952 = vadd.f32 %v4243, %v4690
    %v4953 = vadd.f32 %v4244, %v4695
    %v4954 = vadd.f32 %v4245, %v4700
    %v4955 = vadd.f32 %v4246, %v4705
    %v4956 = vadd.f32 %v4247, %v4710
    %v4957 = vadd.f32 %v4248, %v4715
    %v4958 = vadd.f32 %v4249, %v4720
    %v4959 = vadd.f32 %v4250, %v4725
    %v4960 = vadd.f32 %v4251, %v4730
    %v4961 = vadd.f32 %v4252, %v4735
    %v4962 = vadd.f32 %v4253, %v4740
    %v4963 = vadd.f32 %v4254, %v4745
    %v4964 = vadd.f32 %v4255, %v4750
    %v4965 = vadd.f32 %v4256, %v4755
    %v4966 = vadd.f32 %v4257, %v4760
    %v4967 = vadd.f32 %v4258, %v4765
    %v4968 = vadd.f32 %v4259, %v4770
    %v4969 = vadd.f32 %v4260, %v4775
    %v4970 = vadd.f32 %v4261, %v4780
    %v4971 = vadd.f32 %v4262, %v4785
    %v4972 = vadd.f32 %v4263, %v4790
    %v4973 = vadd.f32 %v4264, %v4795
    %v4974 = vadd.f32 %v4265, %v4800
    %v4975 = vadd.f32 %v4266, %v4805
    %v4976 = vadd.f32 %v4267, %v4810
    %v4977 = vadd.f32 %v4268, %v4815
    %v4978 = vadd.f32 %v4269, %v4820
    %v4979 = vadd.f32 %v4270, %v4825
    %v4980 = vadd.f32 %v4271, %v4830
    %v4981 = vadd.f32 %v4272, %v4835
    %v4982 = vadd.f32 %v4273, %v4840
    %v4983 = vadd.f32 %v4274, %v4845
    %v4984 = vadd.f32 %v4275, %v4850
    %v4985 = vadd.f32 %v4276, %v4855
    %v4986 = vadd.f32 %v4277, %v4860
    %v4987 = vadd.f32 %v4278, %v4865
    %v4988 = vadd.f32 %v4279, %v4870
    %v4989 = vadd.f32 %v4280, %v4875
    %v4990 = vadd.f32 %v4281, %v4880
    %v4991 = vadd.f32 %v4282, %v4885
    %v4992 = vadd.f32 %v4283, %v4890
    %v4993 = vadd.f32 %v4284, %v4895
    %v4994 = vadd.f32 %v4285, %v4900
    %v4995 = vadd.f32 %v4286, %v4905
    %v4996 = vadd.f32 %v4287, %v4910
    %v4997 = vadd.f32 %v4288, %v4915
    %v4998 = vadd.f32 %v4289, %v4920
    %v4999 = vadd.f32 %v4290, %v4925
    %v5000 = vadd.f32 %v4291, %v4930
    %v5001 = vadd.f32 %v4292, %v4935
    %v5002 = vld [vmem:[%s0 + $0x12] sm:$0xff]
    %v5003 = vld [vmem:[%s0 + $0x1a] sm:$0xff]
    %v5004 = vld [vmem:[%s0 + $0x22] sm:$0xff]
    %v5005 = vld [vmem:[%s0 + $0x2a] sm:$0xff]
    %v5006 = vld [vmem:[%s0 + $0x32] sm:$0xff]
    %v5007 = vld [vmem:[%s0 + $0x3a] sm:$0xff]
    %v5008 = vld [vmem:[%s0 + $0x42] sm:$0xff]
    %v5009 = vld [vmem:[%s0 + $0x4a] sm:$0xff]
    %v5010 = vld [vmem:[%s0 + $0x52] sm:$0xff]
    %v5011 = vld [vmem:[%s0 + $0x5a] sm:$0xff]
    %v5012 = vld [vmem:[%s0 + $0x62] sm:$0xff]
    %v5013 = vld [vmem:[%s0 + $0x6a] sm:$0xff]
    %v5014 = vld [vmem:[%s0 + $0x72] sm:$0xff]
    %v5015 = vld [vmem:[%s0 + $0x7a] sm:$0xff]
    %v5016 = vld [vmem:[%s0 + $0x82] sm:$0xff]
    %v5017 = vld [vmem:[%s0 + $0x8a] sm:$0xff]
    %v5018 = vld [vmem:[%s0 + $0x92] sm:$0xff]
    %v5019 = vld [vmem:[%s0 + $0x9a] sm:$0xff]
    %v5020 = vld [vmem:[%s0 + $0xa2] sm:$0xff]
    %v5021 = vld [vmem:[%s0 + $0xaa] sm:$0xff]
    %v5022 = vld [vmem:[%s0 + $0xb2] sm:$0xff]
    %v5023 = vld [vmem:[%s0 + $0xba] sm:$0xff]
    %v5024 = vld [vmem:[%s0 + $0xc2] sm:$0xff]
    %v5025 = vld [vmem:[%s0 + $0xca] sm:$0xff]
    %v5026 = vld [vmem:[%s0 + $0xd2] sm:$0xff]
    %v5027 = vld [vmem:[%s0 + $0xda] sm:$0xff]
    %v5028 = vld [vmem:[%s0 + $0xe2] sm:$0xff]
    %v5029 = vld [vmem:[%s0 + $0xea] sm:$0xff]
    %v5030 = vld [vmem:[%s0 + $0xf2] sm:$0xff]
    %v5031 = vld [vmem:[%s0 + $0xfa] sm:$0xff]
    %v5032 = vld [vmem:[%s0 + $0x102] sm:$0xff]
    %v5033 = vld [vmem:[%s0 + $0x10a] sm:$0xff]
    %v5034 = vld [vmem:[%s0 + $0x112] sm:$0xff]
    %v5035 = vld [vmem:[%s0 + $0x11a] sm:$0xff]
    %v5036 = vld [vmem:[%s0 + $0x122] sm:$0xff]
    %v5037 = vld [vmem:[%s0 + $0x12a] sm:$0xff]
    %v5038 = vld [vmem:[%s0 + $0x132] sm:$0xff]
    %v5039 = vld [vmem:[%s0 + $0x13a] sm:$0xff]
    %v5040 = vld [vmem:[%s0 + $0x142] sm:$0xff]
    %v5041 = vld [vmem:[%s0 + $0x14a] sm:$0xff]
    %v5042 = vld [vmem:[%s0 + $0x152] sm:$0xff]
    %v5043 = vld [vmem:[%s0 + $0x15a] sm:$0xff]
    %v5044 = vld [vmem:[%s0 + $0x162] sm:$0xff]
    %v5045 = vld [vmem:[%s0 + $0x16a] sm:$0xff]
    %v5046 = vld [vmem:[%s0 + $0x172] sm:$0xff]
    %v5047 = vld [vmem:[%s0 + $0x17a] sm:$0xff]
    %v5048 = vld [vmem:[%s0 + $0x182] sm:$0xff]
    %v5049 = vld [vmem:[%s0 + $0x18a] sm:$0xff]
    %v5050 = vld [vmem:[%s0 + $0x192] sm:$0xff]
    %v5051 = vld [vmem:[%s0 + $0x19a] sm:$0xff]
    %v5052 = vld [vmem:[%s0 + $0x1a2] sm:$0xff]
    %v5053 = vld [vmem:[%s0 + $0x1aa] sm:$0xff]
    %v5054 = vld [vmem:[%s0 + $0x1b2] sm:$0xff]
    %v5055 = vld [vmem:[%s0 + $0x1ba] sm:$0xff]
    %v5056 = vld [vmem:[%s0 + $0x1c2] sm:$0xff]
    %v5057 = vld [vmem:[%s0 + $0x1ca] sm:$0xff]
    %v5058 = vld [vmem:[%s0 + $0x1d2] sm:$0xff]
    %v5059 = vld [vmem:[%s0 + $0x1da] sm:$0xff]
    %v5060 = vld [vmem:[%s0 + $0x1e2] sm:$0xff]
    %v5061 = vld [vmem:[%s0 + $0x1ea] sm:$0xff]
    %v5062 = vld [vmem:[%s0 + $0x1f2] sm:$0xff]
    %v5063 = vld [vmem:[%s0 + $0x1fa] sm:$0xff]
    %v5064 = vld [vmem:[%s0 + $0x202] sm:$0xff]
    %v5065 = vld [vmem:[%s0 + $0x20a] sm:$0xff]
    %v5066 = vld [vmem:[%s4 + $0xa0] sm:$0xff]
    %v5067 = vld [vmem:[%s4 + $0xa8] sm:$0xff]
    %v5068 = vld [vmem:[%s4 + $0xb0] sm:$0xff]
    %v5069 = vld [vmem:[%s4 + $0xb8] sm:$0xff]
    %v5071 = vsel %vm116, %v5002, 0
    %v5074 = vsel %vm116, %v5003, 0
    %v5077 = vsel %vm116, %v5004, 0
    %v5080 = vsel %vm116, %v5005, 0
    %v5083 = vsel %vm116, %v5006, 0
    %v5086 = vsel %vm116, %v5007, 0
    %v5089 = vsel %vm116, %v5008, 0
    %v5092 = vsel %vm116, %v5009, 0
    %v5095 = vsel %vm116, %v5010, 0
    %v5098 = vsel %vm116, %v5011, 0
    %v5101 = vsel %vm116, %v5012, 0
    %v5104 = vsel %vm116, %v5013, 0
    %v5107 = vsel %vm116, %v5014, 0
    %v5110 = vsel %vm116, %v5015, 0
    %v5113 = vsel %vm116, %v5016, 0
    %v5116 = vsel %vm116, %v5017, 0
    %v5119 = vsel %vm116, %v5018, 0
    %v5122 = vsel %vm116, %v5019, 0
    %v5125 = vsel %vm116, %v5020, 0
    %v5128 = vsel %vm116, %v5021, 0
    %v5131 = vsel %vm116, %v5022, 0
    %v5134 = vsel %vm116, %v5023, 0
    %v5137 = vsel %vm116, %v5024, 0
    %v5140 = vsel %vm116, %v5025, 0
    %v5143 = vsel %vm116, %v5026, 0
    %v5146 = vsel %vm116, %v5027, 0
    %v5149 = vsel %vm116, %v5028, 0
    %v5152 = vsel %vm116, %v5029, 0
    %v5155 = vsel %vm116, %v5030, 0
    %v5158 = vsel %vm116, %v5031, 0
    %v5161 = vsel %vm116, %v5032, 0
    %v5164 = vsel %vm116, %v5033, 0
    %v5167 = vsel %vm116, %v5034, 0
    %v5170 = vsel %vm116, %v5035, 0
    %v5173 = vsel %vm116, %v5036, 0
    %v5176 = vsel %vm116, %v5037, 0
    %v5179 = vsel %vm116, %v5038, 0
    %v5182 = vsel %vm116, %v5039, 0
    %v5185 = vsel %vm116, %v5040, 0
    %v5188 = vsel %vm116, %v5041, 0
    %v5191 = vsel %vm116, %v5042, 0
    %v5194 = vsel %vm116, %v5043, 0
    %v5197 = vsel %vm116, %v5044, 0
    %v5200 = vsel %vm116, %v5045, 0
    %v5203 = vsel %vm116, %v5046, 0
    %v5206 = vsel %vm116, %v5047, 0
    %v5209 = vsel %vm116, %v5048, 0
    %v5212 = vsel %vm116, %v5049, 0
    %v5215 = vsel %vm116, %v5050, 0
    %v5218 = vsel %vm116, %v5051, 0
    %v5221 = vsel %vm116, %v5052, 0
    %v5224 = vsel %vm116, %v5053, 0
    %v5227 = vsel %vm116, %v5054, 0
    %v5230 = vsel %vm116, %v5055, 0
    %v5233 = vsel %vm116, %v5056, 0
    %v5236 = vsel %vm116, %v5057, 0
    %v5239 = vsel %vm116, %v5058, 0
    %v5242 = vsel %vm116, %v5059, 0
    %v5245 = vsel %vm116, %v5060, 0
    %v5248 = vsel %vm116, %v5061, 0
    %v5251 = vsel %vm116, %v5062, 0
    %v5254 = vsel %vm116, %v5063, 0
    %v5257 = vsel %vm116, %v5064, 0
    %v5260 = vsel %vm116, %v5065, 0
    %5262 = vmatprep.subr.mxu0 0.0
    %5263 = vmatpush1.msra.mxu0 0.0
    %5264 = vmatprep.subr.mxu0 0.0
    %5265 = vmatpush1.msra.mxu0 0.0
    %5266 = vmatprep.subr.mxu0 0.0
    %5267 = vmatpush1.msra.mxu0 0.0
    %5268 = vmatprep.subr.mxu0 0.0
    %5269 = vmatpush1.msra.mxu0 0.0
    %5270 = vmatprep.subr.mxu0 0.0
    %5271 = vmatpush1.msra.mxu0 0.0
    %5272 = vmatprep.subr.mxu0 0.0
    %5273 = vmatpush1.msra.mxu0 0.0
    %5274 = vmatprep.subr.mxu0 0.0
    %5275 = vmatpush1.msra.mxu0 0.0
    %5276 = vmatprep.subr.mxu0 0.0
    %5277 = vmatpush1.msra.mxu0 0.0
    %5278 = vmatprep.subr.mxu0 0.0
    %5279 = vmatpush1.msra.mxu0 0.0
    %5280 = vmatprep.subr.mxu0 0.0
    %5281 = vmatpush1.msra.mxu0 0.0
    %5282 = vmatprep.subr.mxu0 0.0
    %5283 = vmatpush1.msra.mxu0 0.0
    %5284 = vmatprep.subr.mxu0 0.0
    %5285 = vmatpush1.msra.mxu0 0.0
    %5286 = vmatprep.subr.mxu0 0.0
    %5287 = vmatpush1.msra.mxu0 %v5069
    %5288 = vmatprep.subr.mxu0 0.0
    %5289 = vmatpush1.msra.mxu0 %v5068
    %5290 = vmatprep.subr.mxu0 0.0
    %5291 = vmatpush1.msra.mxu0 %v5067
    %5292 = vmatprep.subr.mxu0 0.0
    %5293 = vmatpush1.msra.mxu0 %v5066
    %5294 = vmatprep.subr.mxu0 0.0
    %5295 = vmatpush2.msra.mxu0 0.0
    %5296 = vmatprep.subr.mxu0 0.0
    %5297 = vmatpush2.msra.mxu0 0.0
    %5298 = vmatprep.subr.mxu0 0.0
    %5299 = vmatpush2.msra.mxu0 0.0
    %5300 = vmatprep.subr.mxu0 0.0
    %5301 = vmatpush2.msra.mxu0 0.0
    %5302 = vmatprep.subr.mxu0 0.0
    %5303 = vmatpush2.msra.mxu0 0.0
    %5304 = vmatprep.subr.mxu0 0.0
    %5305 = vmatpush2.msra.mxu0 0.0
    %5306 = vmatprep.subr.mxu0 0.0
    %5307 = vmatpush2.msra.mxu0 0.0
    %5308 = vmatprep.subr.mxu0 0.0
    %5309 = vmatpush2.msra.mxu0 0.0
    %5310 = vmatprep.subr.mxu0 0.0
    %5311 = vmatpush2.msra.mxu0 0.0
    %5312 = vmatprep.subr.mxu0 0.0
    %5313 = vmatpush2.msra.mxu0 0.0
    %5314 = vmatprep.subr.mxu0 0.0
    %5315 = vmatpush2.msra.mxu0 0.0
    %5316 = vmatprep.subr.mxu0 0.0
    %5317 = vmatpush2.msra.mxu0 0.0
    %5318 = vmatprep.subr.mxu0 0.0
    %5319 = vmatpush2.msra.mxu0 0.0
    %5320 = vmatprep.subr.mxu0 0.0
    %5321 = vmatpush2.msra.mxu0 0.0
    %5322 = vmatprep.subr.mxu0 0.0
    %5323 = vmatpush2.msra.mxu0 0.0
    %5324 = vmatprep.subr.mxu0 0.0
    %5325 = vmatpush2.msra.mxu0 0.0
    %5326 = vmatprep.mubr.f32.mxu0 0.0
    %5327 = vmatmul.mubr.f32.gmra.mxu0 %v5071
    %v5328 = vpop.f32.mrf.mxu0
    %v5329 = vadd.f32 0.0, %v5328
    %v5330 = vpop.f32.mrf.mxu0
    %5331 = vmatprep.mubr.f32.mxu0 0.0
    %5332 = vmatmul.mubr.f32.gmra.mxu0 %v5074
    %v5333 = vpop.f32.mrf.mxu0
    %v5334 = vadd.f32 0.0, %v5333
    %v5335 = vpop.f32.mrf.mxu0
    %5336 = vmatprep.mubr.f32.mxu0 0.0
    %5337 = vmatmul.mubr.f32.gmra.mxu0 %v5077
    %v5338 = vpop.f32.mrf.mxu0
    %v5339 = vadd.f32 0.0, %v5338
    %v5340 = vpop.f32.mrf.mxu0
    %5341 = vmatprep.mubr.f32.mxu0 0.0
    %5342 = vmatmul.mubr.f32.gmra.mxu0 %v5080
    %v5343 = vpop.f32.mrf.mxu0
    %v5344 = vadd.f32 0.0, %v5343
    %v5345 = vpop.f32.mrf.mxu0
    %5346 = vmatprep.mubr.f32.mxu0 0.0
    %5347 = vmatmul.mubr.f32.gmra.mxu0 %v5083
    %v5348 = vpop.f32.mrf.mxu0
    %v5349 = vadd.f32 0.0, %v5348
    %v5350 = vpop.f32.mrf.mxu0
    %5351 = vmatprep.mubr.f32.mxu0 0.0
    %5352 = vmatmul.mubr.f32.gmra.mxu0 %v5086
    %v5353 = vpop.f32.mrf.mxu0
    %v5354 = vadd.f32 0.0, %v5353
    %v5355 = vpop.f32.mrf.mxu0
    %5356 = vmatprep.mubr.f32.mxu0 0.0
    %5357 = vmatmul.mubr.f32.gmra.mxu0 %v5089
    %v5358 = vpop.f32.mrf.mxu0
    %v5359 = vadd.f32 0.0, %v5358
    %v5360 = vpop.f32.mrf.mxu0
    %5361 = vmatprep.mubr.f32.mxu0 0.0
    %5362 = vmatmul.mubr.f32.gmra.mxu0 %v5092
    %v5363 = vpop.f32.mrf.mxu0
    %v5364 = vadd.f32 0.0, %v5363
    %v5365 = vpop.f32.mrf.mxu0
    %5366 = vmatprep.mubr.f32.mxu0 0.0
    %5367 = vmatmul.mubr.f32.gmra.mxu0 %v5095
    %v5368 = vpop.f32.mrf.mxu0
    %v5369 = vadd.f32 0.0, %v5368
    %v5370 = vpop.f32.mrf.mxu0
    %5371 = vmatprep.mubr.f32.mxu0 0.0
    %5372 = vmatmul.mubr.f32.gmra.mxu0 %v5098
    %v5373 = vpop.f32.mrf.mxu0
    %v5374 = vadd.f32 0.0, %v5373
    %v5375 = vpop.f32.mrf.mxu0
    %5376 = vmatprep.mubr.f32.mxu0 0.0
    %5377 = vmatmul.mubr.f32.gmra.mxu0 %v5101
    %v5378 = vpop.f32.mrf.mxu0
    %v5379 = vadd.f32 0.0, %v5378
    %v5380 = vpop.f32.mrf.mxu0
    %5381 = vmatprep.mubr.f32.mxu0 0.0
    %5382 = vmatmul.mubr.f32.gmra.mxu0 %v5104
    %v5383 = vpop.f32.mrf.mxu0
    %v5384 = vadd.f32 0.0, %v5383
    %v5385 = vpop.f32.mrf.mxu0
    %5386 = vmatprep.mubr.f32.mxu0 0.0
    %5387 = vmatmul.mubr.f32.gmra.mxu0 %v5107
    %v5388 = vpop.f32.mrf.mxu0
    %v5389 = vadd.f32 0.0, %v5388
    %v5390 = vpop.f32.mrf.mxu0
    %5391 = vmatprep.mubr.f32.mxu0 0.0
    %5392 = vmatmul.mubr.f32.gmra.mxu0 %v5110
    %v5393 = vpop.f32.mrf.mxu0
    %v5394 = vadd.f32 0.0, %v5393
    %v5395 = vpop.f32.mrf.mxu0
    %5396 = vmatprep.mubr.f32.mxu0 0.0
    %5397 = vmatmul.mubr.f32.gmra.mxu0 %v5113
    %v5398 = vpop.f32.mrf.mxu0
    %v5399 = vadd.f32 0.0, %v5398
    %v5400 = vpop.f32.mrf.mxu0
    %5401 = vmatprep.mubr.f32.mxu0 0.0
    %5402 = vmatmul.mubr.f32.gmra.mxu0 %v5116
    %v5403 = vpop.f32.mrf.mxu0
    %v5404 = vadd.f32 0.0, %v5403
    %v5405 = vpop.f32.mrf.mxu0
    %5406 = vmatprep.mubr.f32.mxu0 0.0
    %5407 = vmatmul.mubr.f32.gmra.mxu0 %v5119
    %v5408 = vpop.f32.mrf.mxu0
    %v5409 = vadd.f32 0.0, %v5408
    %v5410 = vpop.f32.mrf.mxu0
    %5411 = vmatprep.mubr.f32.mxu0 0.0
    %5412 = vmatmul.mubr.f32.gmra.mxu0 %v5122
    %v5413 = vpop.f32.mrf.mxu0
    %v5414 = vadd.f32 0.0, %v5413
    %v5415 = vpop.f32.mrf.mxu0
    %5416 = vmatprep.mubr.f32.mxu0 0.0
    %5417 = vmatmul.mubr.f32.gmra.mxu0 %v5125
    %v5418 = vpop.f32.mrf.mxu0
    %v5419 = vadd.f32 0.0, %v5418
    %v5420 = vpop.f32.mrf.mxu0
    %5421 = vmatprep.mubr.f32.mxu0 0.0
    %5422 = vmatmul.mubr.f32.gmra.mxu0 %v5128
    %v5423 = vpop.f32.mrf.mxu0
    %v5424 = vadd.f32 0.0, %v5423
    %v5425 = vpop.f32.mrf.mxu0
    %5426 = vmatprep.mubr.f32.mxu0 0.0
    %5427 = vmatmul.mubr.f32.gmra.mxu0 %v5131
    %v5428 = vpop.f32.mrf.mxu0
    %v5429 = vadd.f32 0.0, %v5428
    %v5430 = vpop.f32.mrf.mxu0
    %5431 = vmatprep.mubr.f32.mxu0 0.0
    %5432 = vmatmul.mubr.f32.gmra.mxu0 %v5134
    %v5433 = vpop.f32.mrf.mxu0
    %v5434 = vadd.f32 0.0, %v5433
    %v5435 = vpop.f32.mrf.mxu0
    %5436 = vmatprep.mubr.f32.mxu0 0.0
    %5437 = vmatmul.mubr.f32.gmra.mxu0 %v5137
    %v5438 = vpop.f32.mrf.mxu0
    %v5439 = vadd.f32 0.0, %v5438
    %v5440 = vpop.f32.mrf.mxu0
    %5441 = vmatprep.mubr.f32.mxu0 0.0
    %5442 = vmatmul.mubr.f32.gmra.mxu0 %v5140
    %v5443 = vpop.f32.mrf.mxu0
    %v5444 = vadd.f32 0.0, %v5443
    %v5445 = vpop.f32.mrf.mxu0
    %5446 = vmatprep.mubr.f32.mxu0 0.0
    %5447 = vmatmul.mubr.f32.gmra.mxu0 %v5143
    %v5448 = vpop.f32.mrf.mxu0
    %v5449 = vadd.f32 0.0, %v5448
    %v5450 = vpop.f32.mrf.mxu0
    %5451 = vmatprep.mubr.f32.mxu0 0.0
    %5452 = vmatmul.mubr.f32.gmra.mxu0 %v5146
    %v5453 = vpop.f32.mrf.mxu0
    %v5454 = vadd.f32 0.0, %v5453
    %v5455 = vpop.f32.mrf.mxu0
    %5456 = vmatprep.mubr.f32.mxu0 0.0
    %5457 = vmatmul.mubr.f32.gmra.mxu0 %v5149
    %v5458 = vpop.f32.mrf.mxu0
    %v5459 = vadd.f32 0.0, %v5458
    %v5460 = vpop.f32.mrf.mxu0
    %5461 = vmatprep.mubr.f32.mxu0 0.0
    %5462 = vmatmul.mubr.f32.gmra.mxu0 %v5152
    %v5463 = vpop.f32.mrf.mxu0
    %v5464 = vadd.f32 0.0, %v5463
    %v5465 = vpop.f32.mrf.mxu0
    %5466 = vmatprep.mubr.f32.mxu0 0.0
    %5467 = vmatmul.mubr.f32.gmra.mxu0 %v5155
    %v5468 = vpop.f32.mrf.mxu0
    %v5469 = vadd.f32 0.0, %v5468
    %v5470 = vpop.f32.mrf.mxu0
    %5471 = vmatprep.mubr.f32.mxu0 0.0
    %5472 = vmatmul.mubr.f32.gmra.mxu0 %v5158
    %v5473 = vpop.f32.mrf.mxu0
    %v5474 = vadd.f32 0.0, %v5473
    %v5475 = vpop.f32.mrf.mxu0
    %5476 = vmatprep.mubr.f32.mxu0 0.0
    %5477 = vmatmul.mubr.f32.gmra.mxu0 %v5161
    %v5478 = vpop.f32.mrf.mxu0
    %v5479 = vadd.f32 0.0, %v5478
    %v5480 = vpop.f32.mrf.mxu0
    %5481 = vmatprep.mubr.f32.mxu0 0.0
    %5482 = vmatmul.mubr.f32.gmra.mxu0 %v5164
    %v5483 = vpop.f32.mrf.mxu0
    %v5484 = vadd.f32 0.0, %v5483
    %v5485 = vpop.f32.mrf.mxu0
    %5486 = vmatprep.mubr.f32.mxu0 0.0
    %5487 = vmatmul.mubr.f32.gmra.mxu0 %v5167
    %v5488 = vpop.f32.mrf.mxu0
    %v5489 = vadd.f32 0.0, %v5488
    %v5490 = vpop.f32.mrf.mxu0
    %5491 = vmatprep.mubr.f32.mxu0 0.0
    %5492 = vmatmul.mubr.f32.gmra.mxu0 %v5170
    %v5493 = vpop.f32.mrf.mxu0
    %v5494 = vadd.f32 0.0, %v5493
    %v5495 = vpop.f32.mrf.mxu0
    %5496 = vmatprep.mubr.f32.mxu0 0.0
    %5497 = vmatmul.mubr.f32.gmra.mxu0 %v5173
    %v5498 = vpop.f32.mrf.mxu0
    %v5499 = vadd.f32 0.0, %v5498
    %v5500 = vpop.f32.mrf.mxu0
    %5501 = vmatprep.mubr.f32.mxu0 0.0
    %5502 = vmatmul.mubr.f32.gmra.mxu0 %v5176
    %v5503 = vpop.f32.mrf.mxu0
    %v5504 = vadd.f32 0.0, %v5503
    %v5505 = vpop.f32.mrf.mxu0
    %5506 = vmatprep.mubr.f32.mxu0 0.0
    %5507 = vmatmul.mubr.f32.gmra.mxu0 %v5179
    %v5508 = vpop.f32.mrf.mxu0
    %v5509 = vadd.f32 0.0, %v5508
    %v5510 = vpop.f32.mrf.mxu0
    %5511 = vmatprep.mubr.f32.mxu0 0.0
    %5512 = vmatmul.mubr.f32.gmra.mxu0 %v5182
    %v5513 = vpop.f32.mrf.mxu0
    %v5514 = vadd.f32 0.0, %v5513
    %v5515 = vpop.f32.mrf.mxu0
    %5516 = vmatprep.mubr.f32.mxu0 0.0
    %5517 = vmatmul.mubr.f32.gmra.mxu0 %v5185
    %v5518 = vpop.f32.mrf.mxu0
    %v5519 = vadd.f32 0.0, %v5518
    %v5520 = vpop.f32.mrf.mxu0
    %5521 = vmatprep.mubr.f32.mxu0 0.0
    %5522 = vmatmul.mubr.f32.gmra.mxu0 %v5188
    %v5523 = vpop.f32.mrf.mxu0
    %v5524 = vadd.f32 0.0, %v5523
    %v5525 = vpop.f32.mrf.mxu0
    %5526 = vmatprep.mubr.f32.mxu0 0.0
    %5527 = vmatmul.mubr.f32.gmra.mxu0 %v5191
    %v5528 = vpop.f32.mrf.mxu0
    %v5529 = vadd.f32 0.0, %v5528
    %v5530 = vpop.f32.mrf.mxu0
    %5531 = vmatprep.mubr.f32.mxu0 0.0
    %5532 = vmatmul.mubr.f32.gmra.mxu0 %v5194
    %v5533 = vpop.f32.mrf.mxu0
    %v5534 = vadd.f32 0.0, %v5533
    %v5535 = vpop.f32.mrf.mxu0
    %5536 = vmatprep.mubr.f32.mxu0 0.0
    %5537 = vmatmul.mubr.f32.gmra.mxu0 %v5197
    %v5538 = vpop.f32.mrf.mxu0
    %v5539 = vadd.f32 0.0, %v5538
    %v5540 = vpop.f32.mrf.mxu0
    %5541 = vmatprep.mubr.f32.mxu0 0.0
    %5542 = vmatmul.mubr.f32.gmra.mxu0 %v5200
    %v5543 = vpop.f32.mrf.mxu0
    %v5544 = vadd.f32 0.0, %v5543
    %v5545 = vpop.f32.mrf.mxu0
    %5546 = vmatprep.mubr.f32.mxu0 0.0
    %5547 = vmatmul.mubr.f32.gmra.mxu0 %v5203
    %v5548 = vpop.f32.mrf.mxu0
    %v5549 = vadd.f32 0.0, %v5548
    %v5550 = vpop.f32.mrf.mxu0
    %5551 = vmatprep.mubr.f32.mxu0 0.0
    %5552 = vmatmul.mubr.f32.gmra.mxu0 %v5206
    %v5553 = vpop.f32.mrf.mxu0
    %v5554 = vadd.f32 0.0, %v5553
    %v5555 = vpop.f32.mrf.mxu0
    %5556 = vmatprep.mubr.f32.mxu0 0.0
    %5557 = vmatmul.mubr.f32.gmra.mxu0 %v5209
    %v5558 = vpop.f32.mrf.mxu0
    %v5559 = vadd.f32 0.0, %v5558
    %v5560 = vpop.f32.mrf.mxu0
    %5561 = vmatprep.mubr.f32.mxu0 0.0
    %5562 = vmatmul.mubr.f32.gmra.mxu0 %v5212
    %v5563 = vpop.f32.mrf.mxu0
    %v5564 = vadd.f32 0.0, %v5563
    %v5565 = vpop.f32.mrf.mxu0
    %5566 = vmatprep.mubr.f32.mxu0 0.0
    %5567 = vmatmul.mubr.f32.gmra.mxu0 %v5215
    %v5568 = vpop.f32.mrf.mxu0
    %v5569 = vadd.f32 0.0, %v5568
    %v5570 = vpop.f32.mrf.mxu0
    %5571 = vmatprep.mubr.f32.mxu0 0.0
    %5572 = vmatmul.mubr.f32.gmra.mxu0 %v5218
    %v5573 = vpop.f32.mrf.mxu0
    %v5574 = vadd.f32 0.0, %v5573
    %v5575 = vpop.f32.mrf.mxu0
    %5576 = vmatprep.mubr.f32.mxu0 0.0
    %5577 = vmatmul.mubr.f32.gmra.mxu0 %v5221
    %v5578 = vpop.f32.mrf.mxu0
    %v5579 = vadd.f32 0.0, %v5578
    %v5580 = vpop.f32.mrf.mxu0
    %5581 = vmatprep.mubr.f32.mxu0 0.0
    %5582 = vmatmul.mubr.f32.gmra.mxu0 %v5224
    %v5583 = vpop.f32.mrf.mxu0
    %v5584 = vadd.f32 0.0, %v5583
    %v5585 = vpop.f32.mrf.mxu0
    %5586 = vmatprep.mubr.f32.mxu0 0.0
    %5587 = vmatmul.mubr.f32.gmra.mxu0 %v5227
    %v5588 = vpop.f32.mrf.mxu0
    %v5589 = vadd.f32 0.0, %v5588
    %v5590 = vpop.f32.mrf.mxu0
    %5591 = vmatprep.mubr.f32.mxu0 0.0
    %5592 = vmatmul.mubr.f32.gmra.mxu0 %v5230
    %v5593 = vpop.f32.mrf.mxu0
    %v5594 = vadd.f32 0.0, %v5593
    %v5595 = vpop.f32.mrf.mxu0
    %5596 = vmatprep.mubr.f32.mxu0 0.0
    %5597 = vmatmul.mubr.f32.gmra.mxu0 %v5233
    %v5598 = vpop.f32.mrf.mxu0
    %v5599 = vadd.f32 0.0, %v5598
    %v5600 = vpop.f32.mrf.mxu0
    %5601 = vmatprep.mubr.f32.mxu0 0.0
    %5602 = vmatmul.mubr.f32.gmra.mxu0 %v5236
    %v5603 = vpop.f32.mrf.mxu0
    %v5604 = vadd.f32 0.0, %v5603
    %v5605 = vpop.f32.mrf.mxu0
    %5606 = vmatprep.mubr.f32.mxu0 0.0
    %5607 = vmatmul.mubr.f32.gmra.mxu0 %v5239
    %v5608 = vpop.f32.mrf.mxu0
    %v5609 = vadd.f32 0.0, %v5608
    %v5610 = vpop.f32.mrf.mxu0
    %5611 = vmatprep.mubr.f32.mxu0 0.0
    %5612 = vmatmul.mubr.f32.gmra.mxu0 %v5242
    %v5613 = vpop.f32.mrf.mxu0
    %v5614 = vadd.f32 0.0, %v5613
    %v5615 = vpop.f32.mrf.mxu0
    %5616 = vmatprep.mubr.f32.mxu0 0.0
    %5617 = vmatmul.mubr.f32.gmra.mxu0 %v5245
    %v5618 = vpop.f32.mrf.mxu0
    %v5619 = vadd.f32 0.0, %v5618
    %v5620 = vpop.f32.mrf.mxu0
    %5621 = vmatprep.mubr.f32.mxu0 0.0
    %5622 = vmatmul.mubr.f32.gmra.mxu0 %v5248
    %v5623 = vpop.f32.mrf.mxu0
    %v5624 = vadd.f32 0.0, %v5623
    %v5625 = vpop.f32.mrf.mxu0
    %5626 = vmatprep.mubr.f32.mxu0 0.0
    %5627 = vmatmul.mubr.f32.gmra.mxu0 %v5251
    %v5628 = vpop.f32.mrf.mxu0
    %v5629 = vadd.f32 0.0, %v5628
    %v5630 = vpop.f32.mrf.mxu0
    %5631 = vmatprep.mubr.f32.mxu0 0.0
    %5632 = vmatmul.mubr.f32.gmra.mxu0 %v5254
    %v5633 = vpop.f32.mrf.mxu0
    %v5634 = vadd.f32 0.0, %v5633
    %v5635 = vpop.f32.mrf.mxu0
    %5636 = vmatprep.mubr.f32.mxu0 0.0
    %5637 = vmatmul.mubr.f32.gmra.mxu0 %v5257
    %v5638 = vpop.f32.mrf.mxu0
    %v5639 = vadd.f32 0.0, %v5638
    %v5640 = vpop.f32.mrf.mxu0
    %5641 = vmatprep.mubr.f32.mxu0 0.0
    %5642 = vmatmul.mubr.f32.gmra.mxu0 %v5260
    %v5643 = vpop.f32.mrf.mxu0
    %v5644 = vadd.f32 0.0, %v5643
    %v5645 = vpop.f32.mrf.mxu0
    %5646 = vdwg.mxu0
    %5647 = vset.pattern.permute.xlu0 5
    %5648 = vperm.xlu0 %5647, %v694
    %v5649 = vpop.permute.xlu0 %5648
    %5651 = vset.pattern.permute.xlu0 5
    %5652 = vperm.xlu0 %5651, %v695
    %v5653 = vpop.permute.xlu0 %5652
    %5655 = vset.pattern.permute.xlu0 5
    %5656 = vperm.xlu0 %5655, %v696
    %v5657 = vpop.permute.xlu0 %5656
    %5659 = vset.pattern.permute.xlu0 5
    %5660 = vperm.xlu0 %5659, %v697
    %v5661 = vpop.permute.xlu0 %5660
    %5663 = vset.pattern.permute.xlu0 5
    %5664 = vperm.xlu0 %5663, %v698
    %v5665 = vpop.permute.xlu0 %5664
    %5667 = vset.pattern.permute.xlu0 5
    %5668 = vperm.xlu0 %5667, %v699
    %v5669 = vpop.permute.xlu0 %5668
    %5671 = vset.pattern.permute.xlu0 5
    %5672 = vperm.xlu0 %5671, %v700
    %v5673 = vpop.permute.xlu0 %5672
    %5675 = vset.pattern.permute.xlu0 5
    %5676 = vperm.xlu0 %5675, %v701
    %v5677 = vpop.permute.xlu0 %5676
    %5679 = vset.pattern.permute.xlu0 5
    %5680 = vperm.xlu0 %5679, %v702
    %v5681 = vpop.permute.xlu0 %5680
    %5683 = vset.pattern.permute.xlu0 5
    %5684 = vperm.xlu0 %5683, %v703
    %v5685 = vpop.permute.xlu0 %5684
    %5687 = vset.pattern.permute.xlu0 5
    %5688 = vperm.xlu0 %5687, %v704
    %v5689 = vpop.permute.xlu0 %5688
    %5691 = vset.pattern.permute.xlu0 5
    %5692 = vperm.xlu0 %5691, %v705
    %v5693 = vpop.permute.xlu0 %5692
    %5695 = vset.pattern.permute.xlu0 5
    %5696 = vperm.xlu0 %5695, %v706
    %v5697 = vpop.permute.xlu0 %5696
    %5699 = vset.pattern.permute.xlu0 5
    %5700 = vperm.xlu0 %5699, %v707
    %v5701 = vpop.permute.xlu0 %5700
    %5703 = vset.pattern.permute.xlu0 5
    %5704 = vperm.xlu0 %5703, %v708
    %v5705 = vpop.permute.xlu0 %5704
    %5707 = vset.pattern.permute.xlu0 5
    %5708 = vperm.xlu0 %5707, %v709
    %v5709 = vpop.permute.xlu0 %5708
    %5711 = vset.pattern.permute.xlu0 5
    %5712 = vperm.xlu0 %5711, %v710
    %v5713 = vpop.permute.xlu0 %5712
    %5715 = vset.pattern.permute.xlu0 5
    %5716 = vperm.xlu0 %5715, %v711
    %v5717 = vpop.permute.xlu0 %5716
    %5719 = vset.pattern.permute.xlu0 5
    %5720 = vperm.xlu0 %5719, %v712
    %v5721 = vpop.permute.xlu0 %5720
    %5723 = vset.pattern.permute.xlu0 5
    %5724 = vperm.xlu0 %5723, %v713
    %v5725 = vpop.permute.xlu0 %5724
    %5727 = vset.pattern.permute.xlu0 5
    %5728 = vperm.xlu0 %5727, %v714
    %v5729 = vpop.permute.xlu0 %5728
    %5731 = vset.pattern.permute.xlu0 5
    %5732 = vperm.xlu0 %5731, %v715
    %v5733 = vpop.permute.xlu0 %5732
    %5735 = vset.pattern.permute.xlu0 5
    %5736 = vperm.xlu0 %5735, %v716
    %v5737 = vpop.permute.xlu0 %5736
    %5739 = vset.pattern.permute.xlu0 5
    %5740 = vperm.xlu0 %5739, %v717
    %v5741 = vpop.permute.xlu0 %5740
    %5743 = vset.pattern.permute.xlu0 5
    %5744 = vperm.xlu0 %5743, %v718
    %v5745 = vpop.permute.xlu0 %5744
    %5747 = vset.pattern.permute.xlu0 5
    %5748 = vperm.xlu0 %5747, %v719
    %v5749 = vpop.permute.xlu0 %5748
    %5751 = vset.pattern.permute.xlu0 5
    %5752 = vperm.xlu0 %5751, %v720
    %v5753 = vpop.permute.xlu0 %5752
    %5755 = vset.pattern.permute.xlu0 5
    %5756 = vperm.xlu0 %5755, %v721
    %v5757 = vpop.permute.xlu0 %5756
    %5759 = vset.pattern.permute.xlu0 5
    %5760 = vperm.xlu0 %5759, %v722
    %v5761 = vpop.permute.xlu0 %5760
    %5763 = vset.pattern.permute.xlu0 5
    %5764 = vperm.xlu0 %5763, %v723
    %v5765 = vpop.permute.xlu0 %5764
    %5767 = vset.pattern.permute.xlu0 5
    %5768 = vperm.xlu0 %5767, %v724
    %v5769 = vpop.permute.xlu0 %5768
    %5771 = vset.pattern.permute.xlu0 5
    %5772 = vperm.xlu0 %5771, %v725
    %v5773 = vpop.permute.xlu0 %5772
    %5775 = vset.pattern.permute.xlu0 5
    %5776 = vperm.xlu0 %5775, %v726
    %v5777 = vpop.permute.xlu0 %5776
    %5779 = vset.pattern.permute.xlu0 5
    %5780 = vperm.xlu0 %5779, %v727
    %v5781 = vpop.permute.xlu0 %5780
    %5783 = vset.pattern.permute.xlu0 5
    %5784 = vperm.xlu0 %5783, %v728
    %v5785 = vpop.permute.xlu0 %5784
    %5787 = vset.pattern.permute.xlu0 5
    %5788 = vperm.xlu0 %5787, %v729
    %v5789 = vpop.permute.xlu0 %5788
    %5791 = vset.pattern.permute.xlu0 5
    %5792 = vperm.xlu0 %5791, %v730
    %v5793 = vpop.permute.xlu0 %5792
    %5795 = vset.pattern.permute.xlu0 5
    %5796 = vperm.xlu0 %5795, %v731
    %v5797 = vpop.permute.xlu0 %5796
    %5799 = vset.pattern.permute.xlu0 5
    %5800 = vperm.xlu0 %5799, %v732
    %v5801 = vpop.permute.xlu0 %5800
    %5803 = vset.pattern.permute.xlu0 5
    %5804 = vperm.xlu0 %5803, %v733
    %v5805 = vpop.permute.xlu0 %5804
    %5807 = vset.pattern.permute.xlu0 5
    %5808 = vperm.xlu0 %5807, %v734
    %v5809 = vpop.permute.xlu0 %5808
    %5811 = vset.pattern.permute.xlu0 5
    %5812 = vperm.xlu0 %5811, %v735
    %v5813 = vpop.permute.xlu0 %5812
    %5815 = vset.pattern.permute.xlu0 5
    %5816 = vperm.xlu0 %5815, %v736
    %v5817 = vpop.permute.xlu0 %5816
    %5819 = vset.pattern.permute.xlu0 5
    %5820 = vperm.xlu0 %5819, %v737
    %v5821 = vpop.permute.xlu0 %5820
    %5823 = vset.pattern.permute.xlu0 5
    %5824 = vperm.xlu0 %5823, %v738
    %v5825 = vpop.permute.xlu0 %5824
    %5827 = vset.pattern.permute.xlu0 5
    %5828 = vperm.xlu0 %5827, %v739
    %v5829 = vpop.permute.xlu0 %5828
    %5831 = vset.pattern.permute.xlu0 5
    %5832 = vperm.xlu0 %5831, %v740
    %v5833 = vpop.permute.xlu0 %5832
    %5835 = vset.pattern.permute.xlu0 5
    %5836 = vperm.xlu0 %5835, %v741
    %v5837 = vpop.permute.xlu0 %5836
    %5839 = vset.pattern.permute.xlu0 5
    %5840 = vperm.xlu0 %5839, %v742
    %v5841 = vpop.permute.xlu0 %5840
    %5843 = vset.pattern.permute.xlu0 5
    %5844 = vperm.xlu0 %5843, %v743
    %v5845 = vpop.permute.xlu0 %5844
    %5847 = vset.pattern.permute.xlu0 5
    %5848 = vperm.xlu0 %5847, %v744
    %v5849 = vpop.permute.xlu0 %5848
    %5851 = vset.pattern.permute.xlu0 5
    %5852 = vperm.xlu0 %5851, %v745
    %v5853 = vpop.permute.xlu0 %5852
    %5855 = vset.pattern.permute.xlu0 5
    %5856 = vperm.xlu0 %5855, %v746
    %v5857 = vpop.permute.xlu0 %5856
    %5859 = vset.pattern.permute.xlu0 5
    %5860 = vperm.xlu0 %5859, %v747
    %v5861 = vpop.permute.xlu0 %5860
    %5863 = vset.pattern.permute.xlu0 5
    %5864 = vperm.xlu0 %5863, %v748
    %v5865 = vpop.permute.xlu0 %5864
    %5867 = vset.pattern.permute.xlu0 5
    %5868 = vperm.xlu0 %5867, %v749
    %v5869 = vpop.permute.xlu0 %5868
    %5871 = vset.pattern.permute.xlu0 5
    %5872 = vperm.xlu0 %5871, %v750
    %v5873 = vpop.permute.xlu0 %5872
    %5875 = vset.pattern.permute.xlu0 5
    %5876 = vperm.xlu0 %5875, %v751
    %v5877 = vpop.permute.xlu0 %5876
    %5879 = vset.pattern.permute.xlu0 5
    %5880 = vperm.xlu0 %5879, %v752
    %v5881 = vpop.permute.xlu0 %5880
    %5883 = vset.pattern.permute.xlu0 5
    %5884 = vperm.xlu0 %5883, %v753
    %v5885 = vpop.permute.xlu0 %5884
    %5887 = vset.pattern.permute.xlu0 5
    %5888 = vperm.xlu0 %5887, %v754
    %v5889 = vpop.permute.xlu0 %5888
    %5891 = vset.pattern.permute.xlu0 5
    %5892 = vperm.xlu0 %5891, %v755
    %v5893 = vpop.permute.xlu0 %5892
    %5895 = vset.pattern.permute.xlu0 5
    %5896 = vperm.xlu0 %5895, %v756
    %v5897 = vpop.permute.xlu0 %5896
    %5899 = vset.pattern.permute.xlu0 5
    %5900 = vperm.xlu0 %5899, %v757
    %v5901 = vpop.permute.xlu0 %5900
    %v5903 = vmul.f32 %v5329, %v5649
    %v5904 = vmul.f32 %v5334, %v5653
    %v5905 = vmul.f32 %v5339, %v5657
    %v5906 = vmul.f32 %v5344, %v5661
    %v5907 = vmul.f32 %v5349, %v5665
    %v5908 = vmul.f32 %v5354, %v5669
    %v5909 = vmul.f32 %v5359, %v5673
    %v5910 = vmul.f32 %v5364, %v5677
    %v5911 = vmul.f32 %v5369, %v5681
    %v5912 = vmul.f32 %v5374, %v5685
    %v5913 = vmul.f32 %v5379, %v5689
    %v5914 = vmul.f32 %v5384, %v5693
    %v5915 = vmul.f32 %v5389, %v5697
    %v5916 = vmul.f32 %v5394, %v5701
    %v5917 = vmul.f32 %v5399, %v5705
    %v5918 = vmul.f32 %v5404, %v5709
    %v5919 = vmul.f32 %v5409, %v5713
    %v5920 = vmul.f32 %v5414, %v5717
    %v5921 = vmul.f32 %v5419, %v5721
    %v5922 = vmul.f32 %v5424, %v5725
    %v5923 = vmul.f32 %v5429, %v5729
    %v5924 = vmul.f32 %v5434, %v5733
    %v5925 = vmul.f32 %v5439, %v5737
    %v5926 = vmul.f32 %v5444, %v5741
    %v5927 = vmul.f32 %v5449, %v5745
    %v5928 = vmul.f32 %v5454, %v5749
    %v5929 = vmul.f32 %v5459, %v5753
    %v5930 = vmul.f32 %v5464, %v5757
    %v5931 = vmul.f32 %v5469, %v5761
    %v5932 = vmul.f32 %v5474, %v5765
    %v5933 = vmul.f32 %v5479, %v5769
    %v5934 = vmul.f32 %v5484, %v5773
    %v5935 = vmul.f32 %v5489, %v5777
    %v5936 = vmul.f32 %v5494, %v5781
    %v5937 = vmul.f32 %v5499, %v5785
    %v5938 = vmul.f32 %v5504, %v5789
    %v5939 = vmul.f32 %v5509, %v5793
    %v5940 = vmul.f32 %v5514, %v5797
    %v5941 = vmul.f32 %v5519, %v5801
    %v5942 = vmul.f32 %v5524, %v5805
    %v5943 = vmul.f32 %v5529, %v5809
    %v5944 = vmul.f32 %v5534, %v5813
    %v5945 = vmul.f32 %v5539, %v5817
    %v5946 = vmul.f32 %v5544, %v5821
    %v5947 = vmul.f32 %v5549, %v5825
    %v5948 = vmul.f32 %v5554, %v5829
    %v5949 = vmul.f32 %v5559, %v5833
    %v5950 = vmul.f32 %v5564, %v5837
    %v5951 = vmul.f32 %v5569, %v5841
    %v5952 = vmul.f32 %v5574, %v5845
    %v5953 = vmul.f32 %v5579, %v5849
    %v5954 = vmul.f32 %v5584, %v5853
    %v5955 = vmul.f32 %v5589, %v5857
    %v5956 = vmul.f32 %v5594, %v5861
    %v5957 = vmul.f32 %v5599, %v5865
    %v5958 = vmul.f32 %v5604, %v5869
    %v5959 = vmul.f32 %v5609, %v5873
    %v5960 = vmul.f32 %v5614, %v5877
    %v5961 = vmul.f32 %v5619, %v5881
    %v5962 = vmul.f32 %v5624, %v5885
    %v5963 = vmul.f32 %v5629, %v5889
    %v5964 = vmul.f32 %v5634, %v5893
    %v5965 = vmul.f32 %v5639, %v5897
    %v5966 = vmul.f32 %v5644, %v5901
    %v5967 = vadd.f32 %v4938, %v5903
    %v5968 = vadd.f32 %v4939, %v5904
    %v5969 = vadd.f32 %v4940, %v5905
    %v5970 = vadd.f32 %v4941, %v5906
    %v5971 = vadd.f32 %v4942, %v5907
    %v5972 = vadd.f32 %v4943, %v5908
    %v5973 = vadd.f32 %v4944, %v5909
    %v5974 = vadd.f32 %v4945, %v5910
    %v5975 = vadd.f32 %v4946, %v5911
    %v5976 = vadd.f32 %v4947, %v5912
    %v5977 = vadd.f32 %v4948, %v5913
    %v5978 = vadd.f32 %v4949, %v5914
    %v5979 = vadd.f32 %v4950, %v5915
    %v5980 = vadd.f32 %v4951, %v5916
    %v5981 = vadd.f32 %v4952, %v5917
    %v5982 = vadd.f32 %v4953, %v5918
    %v5983 = vadd.f32 %v4954, %v5919
    %v5984 = vadd.f32 %v4955, %v5920
    %v5985 = vadd.f32 %v4956, %v5921
    %v5986 = vadd.f32 %v4957, %v5922
    %v5987 = vadd.f32 %v4958, %v5923
    %v5988 = vadd.f32 %v4959, %v5924
    %v5989 = vadd.f32 %v4960, %v5925
    %v5990 = vadd.f32 %v4961, %v5926
    %v5991 = vadd.f32 %v4962, %v5927
    %v5992 = vadd.f32 %v4963, %v5928
    %v5993 = vadd.f32 %v4964, %v5929
    %v5994 = vadd.f32 %v4965, %v5930
    %v5995 = vadd.f32 %v4966, %v5931
    %v5996 = vadd.f32 %v4967, %v5932
    %v5997 = vadd.f32 %v4968, %v5933
    %v5998 = vadd.f32 %v4969, %v5934
    %v5999 = vadd.f32 %v4970, %v5935
    %v6000 = vadd.f32 %v4971, %v5936
    %v6001 = vadd.f32 %v4972, %v5937
    %v6002 = vadd.f32 %v4973, %v5938
    %v6003 = vadd.f32 %v4974, %v5939
    %v6004 = vadd.f32 %v4975, %v5940
    %v6005 = vadd.f32 %v4976, %v5941
    %v6006 = vadd.f32 %v4977, %v5942
    %v6007 = vadd.f32 %v4978, %v5943
    %v6008 = vadd.f32 %v4979, %v5944
    %v6009 = vadd.f32 %v4980, %v5945
    %v6010 = vadd.f32 %v4981, %v5946
    %v6011 = vadd.f32 %v4982, %v5947
    %v6012 = vadd.f32 %v4983, %v5948
    %v6013 = vadd.f32 %v4984, %v5949
    %v6014 = vadd.f32 %v4985, %v5950
    %v6015 = vadd.f32 %v4986, %v5951
    %v6016 = vadd.f32 %v4987, %v5952
    %v6017 = vadd.f32 %v4988, %v5953
    %v6018 = vadd.f32 %v4989, %v5954
    %v6019 = vadd.f32 %v4990, %v5955
    %v6020 = vadd.f32 %v4991, %v5956
    %v6021 = vadd.f32 %v4992, %v5957
    %v6022 = vadd.f32 %v4993, %v5958
    %v6023 = vadd.f32 %v4994, %v5959
    %v6024 = vadd.f32 %v4995, %v5960
    %v6025 = vadd.f32 %v4996, %v5961
    %v6026 = vadd.f32 %v4997, %v5962
    %v6027 = vadd.f32 %v4998, %v5963
    %v6028 = vadd.f32 %v4999, %v5964
    %v6029 = vadd.f32 %v5000, %v5965
    %v6030 = vadd.f32 %v5001, %v5966
    %v6031 = vld [vmem:[%s0 + $0x20] sm:$0xff]
    %v6032 = vld [vmem:[%s0 + $0x28] sm:$0xff]
    %v6033 = vld [vmem:[%s0 + $0x30] sm:$0xff]
    %v6034 = vld [vmem:[%s0 + $0x38] sm:$0xff]
    %v6035 = vld [vmem:[%s0 + $0x40] sm:$0xff]
    %v6036 = vld [vmem:[%s0 + $0x48] sm:$0xff]
    %v6037 = vld [vmem:[%s0 + $0x50] sm:$0xff]
    %v6038 = vld [vmem:[%s0 + $0x58] sm:$0xff]
    %v6039 = vld [vmem:[%s0 + $0x60] sm:$0xff]
    %v6040 = vld [vmem:[%s0 + $0x68] sm:$0xff]
    %v6041 = vld [vmem:[%s0 + $0x70] sm:$0xff]
    %v6042 = vld [vmem:[%s0 + $0x78] sm:$0xff]
    %v6043 = vld [vmem:[%s0 + $0x80] sm:$0xff]
    %v6044 = vld [vmem:[%s0 + $0x88] sm:$0xff]
    %v6045 = vld [vmem:[%s0 + $0x90] sm:$0xff]
    %v6046 = vld [vmem:[%s0 + $0x98] sm:$0xff]
    %v6047 = vld [vmem:[%s0 + $0xa0] sm:$0xff]
    %v6048 = vld [vmem:[%s0 + $0xa8] sm:$0xff]
    %v6049 = vld [vmem:[%s0 + $0xb0] sm:$0xff]
    %v6050 = vld [vmem:[%s0 + $0xb8] sm:$0xff]
    %v6051 = vld [vmem:[%s0 + $0xc0] sm:$0xff]
    %v6052 = vld [vmem:[%s0 + $0xc8] sm:$0xff]
    %v6053 = vld [vmem:[%s0 + $0xd0] sm:$0xff]
    %v6054 = vld [vmem:[%s0 + $0xd8] sm:$0xff]
    %v6055 = vld [vmem:[%s0 + $0xe0] sm:$0xff]
    %v6056 = vld [vmem:[%s0 + $0xe8] sm:$0xff]
    %v6057 = vld [vmem:[%s0 + $0xf0] sm:$0xff]
    %v6058 = vld [vmem:[%s0 + $0xf8] sm:$0xff]
    %v6059 = vld [vmem:[%s0 + $0x100] sm:$0xff]
    %v6060 = vld [vmem:[%s0 + $0x108] sm:$0xff]
    %v6061 = vld [vmem:[%s0 + $0x110] sm:$0xff]
    %v6062 = vld [vmem:[%s0 + $0x118] sm:$0xff]
    %v6063 = vld [vmem:[%s0 + $0x120] sm:$0xff]
    %v6064 = vld [vmem:[%s0 + $0x128] sm:$0xff]
    %v6065 = vld [vmem:[%s0 + $0x130] sm:$0xff]
    %v6066 = vld [vmem:[%s0 + $0x138] sm:$0xff]
    %v6067 = vld [vmem:[%s0 + $0x140] sm:$0xff]
    %v6068 = vld [vmem:[%s0 + $0x148] sm:$0xff]
    %v6069 = vld [vmem:[%s0 + $0x150] sm:$0xff]
    %v6070 = vld [vmem:[%s0 + $0x158] sm:$0xff]
    %v6071 = vld [vmem:[%s0 + $0x160] sm:$0xff]
    %v6072 = vld [vmem:[%s0 + $0x168] sm:$0xff]
    %v6073 = vld [vmem:[%s0 + $0x170] sm:$0xff]
    %v6074 = vld [vmem:[%s0 + $0x178] sm:$0xff]
    %v6075 = vld [vmem:[%s0 + $0x180] sm:$0xff]
    %v6076 = vld [vmem:[%s0 + $0x188] sm:$0xff]
    %v6077 = vld [vmem:[%s0 + $0x190] sm:$0xff]
    %v6078 = vld [vmem:[%s0 + $0x198] sm:$0xff]
    %v6079 = vld [vmem:[%s0 + $0x1a0] sm:$0xff]
    %v6080 = vld [vmem:[%s0 + $0x1a8] sm:$0xff]
    %v6081 = vld [vmem:[%s0 + $0x1b0] sm:$0xff]
    %v6082 = vld [vmem:[%s0 + $0x1b8] sm:$0xff]
    %v6083 = vld [vmem:[%s0 + $0x1c0] sm:$0xff]
    %v6084 = vld [vmem:[%s0 + $0x1c8] sm:$0xff]
    %v6085 = vld [vmem:[%s0 + $0x1d0] sm:$0xff]
    %v6086 = vld [vmem:[%s0 + $0x1d8] sm:$0xff]
    %v6087 = vld [vmem:[%s0 + $0x1e0] sm:$0xff]
    %v6088 = vld [vmem:[%s0 + $0x1e8] sm:$0xff]
    %v6089 = vld [vmem:[%s0 + $0x1f0] sm:$0xff]
    %v6090 = vld [vmem:[%s0 + $0x1f8] sm:$0xff]
    %v6091 = vld [vmem:[%s0 + $0x200] sm:$0xff]
    %v6092 = vld [vmem:[%s0 + $0x208] sm:$0xff]
    %v6093 = vld [vmem:[%s0 + $0x210] sm:$0xff]
    %v6094 = vld [vmem:[%s0 + $0x218] sm:$0xff]
    %v6095 = vld [vmem:[%s4 + $0xc0] sm:$0xff]
    %v6096 = vld [vmem:[%s4 + $0xc8] sm:$0xff]
    %v6097 = vld [vmem:[%s4 + $0xd0] sm:$0xff]
    %v6098 = vld [vmem:[%s4 + $0xd8] sm:$0xff]
    %v6100 = vsel %vm116, %v6031, 0
    %v6103 = vsel %vm116, %v6032, 0
    %v6106 = vsel %vm116, %v6033, 0
    %v6109 = vsel %vm116, %v6034, 0
    %v6112 = vsel %vm116, %v6035, 0
    %v6115 = vsel %vm116, %v6036, 0
    %v6118 = vsel %vm116, %v6037, 0
    %v6121 = vsel %vm116, %v6038, 0
    %v6124 = vsel %vm116, %v6039, 0
    %v6127 = vsel %vm116, %v6040, 0
    %v6130 = vsel %vm116, %v6041, 0
    %v6133 = vsel %vm116, %v6042, 0
    %v6136 = vsel %vm116, %v6043, 0
    %v6139 = vsel %vm116, %v6044, 0
    %v6142 = vsel %vm116, %v6045, 0
    %v6145 = vsel %vm116, %v6046, 0
    %v6148 = vsel %vm116, %v6047, 0
    %v6151 = vsel %vm116, %v6048, 0
    %v6154 = vsel %vm116, %v6049, 0
    %v6157 = vsel %vm116, %v6050, 0
    %v6160 = vsel %vm116, %v6051, 0
    %v6163 = vsel %vm116, %v6052, 0
    %v6166 = vsel %vm116, %v6053, 0
    %v6169 = vsel %vm116, %v6054, 0
    %v6172 = vsel %vm116, %v6055, 0
    %v6175 = vsel %vm116, %v6056, 0
    %v6178 = vsel %vm116, %v6057, 0
    %v6181 = vsel %vm116, %v6058, 0
    %v6184 = vsel %vm116, %v6059, 0
    %v6187 = vsel %vm116, %v6060, 0
    %v6190 = vsel %vm116, %v6061, 0
    %v6193 = vsel %vm116, %v6062, 0
    %v6196 = vsel %vm116, %v6063, 0
    %v6199 = vsel %vm116, %v6064, 0
    %v6202 = vsel %vm116, %v6065, 0
    %v6205 = vsel %vm116, %v6066, 0
    %v6208 = vsel %vm116, %v6067, 0
    %v6211 = vsel %vm116, %v6068, 0
    %v6214 = vsel %vm116, %v6069, 0
    %v6217 = vsel %vm116, %v6070, 0
    %v6220 = vsel %vm116, %v6071, 0
    %v6223 = vsel %vm116, %v6072, 0
    %v6226 = vsel %vm116, %v6073, 0
    %v6229 = vsel %vm116, %v6074, 0
    %v6232 = vsel %vm116, %v6075, 0
    %v6235 = vsel %vm116, %v6076, 0
    %v6238 = vsel %vm116, %v6077, 0
    %v6241 = vsel %vm116, %v6078, 0
    %v6244 = vsel %vm116, %v6079, 0
    %v6247 = vsel %vm116, %v6080, 0
    %v6250 = vsel %vm116, %v6081, 0
    %v6253 = vsel %vm116, %v6082, 0
    %v6256 = vsel %vm116, %v6083, 0
    %v6259 = vsel %vm116, %v6084, 0
    %v6262 = vsel %vm116, %v6085, 0
    %v6265 = vsel %vm116, %v6086, 0
    %v6268 = vsel %vm116, %v6087, 0
    %v6271 = vsel %vm116, %v6088, 0
    %v6274 = vsel %vm116, %v6089, 0
    %v6277 = vsel %vm116, %v6090, 0
    %v6280 = vsel %vm116, %v6091, 0
    %v6283 = vsel %vm116, %v6092, 0
    %v6286 = vsel %vm116, %v6093, 0
    %v6289 = vsel %vm116, %v6094, 0
    %6291 = vmatprep.subr.mxu0 0.0
    %6292 = vmatpush1.msra.mxu0 0.0
    %6293 = vmatprep.subr.mxu0 0.0
    %6294 = vmatpush1.msra.mxu0 0.0
    %6295 = vmatprep.subr.mxu0 0.0
    %6296 = vmatpush1.msra.mxu0 0.0
    %6297 = vmatprep.subr.mxu0 0.0
    %6298 = vmatpush1.msra.mxu0 0.0
    %6299 = vmatprep.subr.mxu0 0.0
    %6300 = vmatpush1.msra.mxu0 0.0
    %6301 = vmatprep.subr.mxu0 0.0
    %6302 = vmatpush1.msra.mxu0 0.0
    %6303 = vmatprep.subr.mxu0 0.0
    %6304 = vmatpush1.msra.mxu0 0.0
    %6305 = vmatprep.subr.mxu0 0.0
    %6306 = vmatpush1.msra.mxu0 0.0
    %6307 = vmatprep.subr.mxu0 0.0
    %6308 = vmatpush1.msra.mxu0 0.0
    %6309 = vmatprep.subr.mxu0 0.0
    %6310 = vmatpush1.msra.mxu0 0.0
    %6311 = vmatprep.subr.mxu0 0.0
    %6312 = vmatpush1.msra.mxu0 0.0
    %6313 = vmatprep.subr.mxu0 0.0
    %6314 = vmatpush1.msra.mxu0 0.0
    %6315 = vmatprep.subr.mxu0 0.0
    %6316 = vmatpush1.msra.mxu0 %v6098
    %6317 = vmatprep.subr.mxu0 0.0
    %6318 = vmatpush1.msra.mxu0 %v6097
    %6319 = vmatprep.subr.mxu0 0.0
    %6320 = vmatpush1.msra.mxu0 %v6096
    %6321 = vmatprep.subr.mxu0 0.0
    %6322 = vmatpush1.msra.mxu0 %v6095
    %6323 = vmatprep.subr.mxu0 0.0
    %6324 = vmatpush2.msra.mxu0 0.0
    %6325 = vmatprep.subr.mxu0 0.0
    %6326 = vmatpush2.msra.mxu0 0.0
    %6327 = vmatprep.subr.mxu0 0.0
    %6328 = vmatpush2.msra.mxu0 0.0
    %6329 = vmatprep.subr.mxu0 0.0
    %6330 = vmatpush2.msra.mxu0 0.0
    %6331 = vmatprep.subr.mxu0 0.0
    %6332 = vmatpush2.msra.mxu0 0.0
    %6333 = vmatprep.subr.mxu0 0.0
    %6334 = vmatpush2.msra.mxu0 0.0
    %6335 = vmatprep.subr.mxu0 0.0
    %6336 = vmatpush2.msra.mxu0 0.0
    %6337 = vmatprep.subr.mxu0 0.0
    %6338 = vmatpush2.msra.mxu0 0.0
    %6339 = vmatprep.subr.mxu0 0.0
    %6340 = vmatpush2.msra.mxu0 0.0
    %6341 = vmatprep.subr.mxu0 0.0
    %6342 = vmatpush2.msra.mxu0 0.0
    %6343 = vmatprep.subr.mxu0 0.0
    %6344 = vmatpush2.msra.mxu0 0.0
    %6345 = vmatprep.subr.mxu0 0.0
    %6346 = vmatpush2.msra.mxu0 0.0
    %6347 = vmatprep.subr.mxu0 0.0
    %6348 = vmatpush2.msra.mxu0 0.0
    %6349 = vmatprep.subr.mxu0 0.0
    %6350 = vmatpush2.msra.mxu0 0.0
    %6351 = vmatprep.subr.mxu0 0.0
    %6352 = vmatpush2.msra.mxu0 0.0
    %6353 = vmatprep.subr.mxu0 0.0
    %6354 = vmatpush2.msra.mxu0 0.0
    %6355 = vmatprep.mubr.f32.mxu0 0.0
    %6356 = vmatmul.mubr.f32.gmra.mxu0 %v6100
    %v6357 = vpop.f32.mrf.mxu0
    %v6358 = vadd.f32 0.0, %v6357
    %v6359 = vpop.f32.mrf.mxu0
    %6360 = vmatprep.mubr.f32.mxu0 0.0
    %6361 = vmatmul.mubr.f32.gmra.mxu0 %v6103
    %v6362 = vpop.f32.mrf.mxu0
    %v6363 = vadd.f32 0.0, %v6362
    %v6364 = vpop.f32.mrf.mxu0
    %6365 = vmatprep.mubr.f32.mxu0 0.0
    %6366 = vmatmul.mubr.f32.gmra.mxu0 %v6106
    %v6367 = vpop.f32.mrf.mxu0
    %v6368 = vadd.f32 0.0, %v6367
    %v6369 = vpop.f32.mrf.mxu0
    %6370 = vmatprep.mubr.f32.mxu0 0.0
    %6371 = vmatmul.mubr.f32.gmra.mxu0 %v6109
    %v6372 = vpop.f32.mrf.mxu0
    %v6373 = vadd.f32 0.0, %v6372
    %v6374 = vpop.f32.mrf.mxu0
    %6375 = vmatprep.mubr.f32.mxu0 0.0
    %6376 = vmatmul.mubr.f32.gmra.mxu0 %v6112
    %v6377 = vpop.f32.mrf.mxu0
    %v6378 = vadd.f32 0.0, %v6377
    %v6379 = vpop.f32.mrf.mxu0
    %6380 = vmatprep.mubr.f32.mxu0 0.0
    %6381 = vmatmul.mubr.f32.gmra.mxu0 %v6115
    %v6382 = vpop.f32.mrf.mxu0
    %v6383 = vadd.f32 0.0, %v6382
    %v6384 = vpop.f32.mrf.mxu0
    %6385 = vmatprep.mubr.f32.mxu0 0.0
    %6386 = vmatmul.mubr.f32.gmra.mxu0 %v6118
    %v6387 = vpop.f32.mrf.mxu0
    %v6388 = vadd.f32 0.0, %v6387
    %v6389 = vpop.f32.mrf.mxu0
    %6390 = vmatprep.mubr.f32.mxu0 0.0
    %6391 = vmatmul.mubr.f32.gmra.mxu0 %v6121
    %v6392 = vpop.f32.mrf.mxu0
    %v6393 = vadd.f32 0.0, %v6392
    %v6394 = vpop.f32.mrf.mxu0
    %6395 = vmatprep.mubr.f32.mxu0 0.0
    %6396 = vmatmul.mubr.f32.gmra.mxu0 %v6124
    %v6397 = vpop.f32.mrf.mxu0
    %v6398 = vadd.f32 0.0, %v6397
    %v6399 = vpop.f32.mrf.mxu0
    %6400 = vmatprep.mubr.f32.mxu0 0.0
    %6401 = vmatmul.mubr.f32.gmra.mxu0 %v6127
    %v6402 = vpop.f32.mrf.mxu0
    %v6403 = vadd.f32 0.0, %v6402
    %v6404 = vpop.f32.mrf.mxu0
    %6405 = vmatprep.mubr.f32.mxu0 0.0
    %6406 = vmatmul.mubr.f32.gmra.mxu0 %v6130
    %v6407 = vpop.f32.mrf.mxu0
    %v6408 = vadd.f32 0.0, %v6407
    %v6409 = vpop.f32.mrf.mxu0
    %6410 = vmatprep.mubr.f32.mxu0 0.0
    %6411 = vmatmul.mubr.f32.gmra.mxu0 %v6133
    %v6412 = vpop.f32.mrf.mxu0
    %v6413 = vadd.f32 0.0, %v6412
    %v6414 = vpop.f32.mrf.mxu0
    %6415 = vmatprep.mubr.f32.mxu0 0.0
    %6416 = vmatmul.mubr.f32.gmra.mxu0 %v6136
    %v6417 = vpop.f32.mrf.mxu0
    %v6418 = vadd.f32 0.0, %v6417
    %v6419 = vpop.f32.mrf.mxu0
    %6420 = vmatprep.mubr.f32.mxu0 0.0
    %6421 = vmatmul.mubr.f32.gmra.mxu0 %v6139
    %v6422 = vpop.f32.mrf.mxu0
    %v6423 = vadd.f32 0.0, %v6422
    %v6424 = vpop.f32.mrf.mxu0
    %6425 = vmatprep.mubr.f32.mxu0 0.0
    %6426 = vmatmul.mubr.f32.gmra.mxu0 %v6142
    %v6427 = vpop.f32.mrf.mxu0
    %v6428 = vadd.f32 0.0, %v6427
    %v6429 = vpop.f32.mrf.mxu0
    %6430 = vmatprep.mubr.f32.mxu0 0.0
    %6431 = vmatmul.mubr.f32.gmra.mxu0 %v6145
    %v6432 = vpop.f32.mrf.mxu0
    %v6433 = vadd.f32 0.0, %v6432
    %v6434 = vpop.f32.mrf.mxu0
    %6435 = vmatprep.mubr.f32.mxu0 0.0
    %6436 = vmatmul.mubr.f32.gmra.mxu0 %v6148
    %v6437 = vpop.f32.mrf.mxu0
    %v6438 = vadd.f32 0.0, %v6437
    %v6439 = vpop.f32.mrf.mxu0
    %6440 = vmatprep.mubr.f32.mxu0 0.0
    %6441 = vmatmul.mubr.f32.gmra.mxu0 %v6151
    %v6442 = vpop.f32.mrf.mxu0
    %v6443 = vadd.f32 0.0, %v6442
    %v6444 = vpop.f32.mrf.mxu0
    %6445 = vmatprep.mubr.f32.mxu0 0.0
    %6446 = vmatmul.mubr.f32.gmra.mxu0 %v6154
    %v6447 = vpop.f32.mrf.mxu0
    %v6448 = vadd.f32 0.0, %v6447
    %v6449 = vpop.f32.mrf.mxu0
    %6450 = vmatprep.mubr.f32.mxu0 0.0
    %6451 = vmatmul.mubr.f32.gmra.mxu0 %v6157
    %v6452 = vpop.f32.mrf.mxu0
    %v6453 = vadd.f32 0.0, %v6452
    %v6454 = vpop.f32.mrf.mxu0
    %6455 = vmatprep.mubr.f32.mxu0 0.0
    %6456 = vmatmul.mubr.f32.gmra.mxu0 %v6160
    %v6457 = vpop.f32.mrf.mxu0
    %v6458 = vadd.f32 0.0, %v6457
    %v6459 = vpop.f32.mrf.mxu0
    %6460 = vmatprep.mubr.f32.mxu0 0.0
    %6461 = vmatmul.mubr.f32.gmra.mxu0 %v6163
    %v6462 = vpop.f32.mrf.mxu0
    %v6463 = vadd.f32 0.0, %v6462
    %v6464 = vpop.f32.mrf.mxu0
    %6465 = vmatprep.mubr.f32.mxu0 0.0
    %6466 = vmatmul.mubr.f32.gmra.mxu0 %v6166
    %v6467 = vpop.f32.mrf.mxu0
    %v6468 = vadd.f32 0.0, %v6467
    %v6469 = vpop.f32.mrf.mxu0
    %6470 = vmatprep.mubr.f32.mxu0 0.0
    %6471 = vmatmul.mubr.f32.gmra.mxu0 %v6169
    %v6472 = vpop.f32.mrf.mxu0
    %v6473 = vadd.f32 0.0, %v6472
    %v6474 = vpop.f32.mrf.mxu0
    %6475 = vmatprep.mubr.f32.mxu0 0.0
    %6476 = vmatmul.mubr.f32.gmra.mxu0 %v6172
    %v6477 = vpop.f32.mrf.mxu0
    %v6478 = vadd.f32 0.0, %v6477
    %v6479 = vpop.f32.mrf.mxu0
    %6480 = vmatprep.mubr.f32.mxu0 0.0
    %6481 = vmatmul.mubr.f32.gmra.mxu0 %v6175
    %v6482 = vpop.f32.mrf.mxu0
    %v6483 = vadd.f32 0.0, %v6482
    %v6484 = vpop.f32.mrf.mxu0
    %6485 = vmatprep.mubr.f32.mxu0 0.0
    %6486 = vmatmul.mubr.f32.gmra.mxu0 %v6178
    %v6487 = vpop.f32.mrf.mxu0
    %v6488 = vadd.f32 0.0, %v6487
    %v6489 = vpop.f32.mrf.mxu0
    %6490 = vmatprep.mubr.f32.mxu0 0.0
    %6491 = vmatmul.mubr.f32.gmra.mxu0 %v6181
    %v6492 = vpop.f32.mrf.mxu0
    %v6493 = vadd.f32 0.0, %v6492
    %v6494 = vpop.f32.mrf.mxu0
    %6495 = vmatprep.mubr.f32.mxu0 0.0
    %6496 = vmatmul.mubr.f32.gmra.mxu0 %v6184
    %v6497 = vpop.f32.mrf.mxu0
    %v6498 = vadd.f32 0.0, %v6497
    %v6499 = vpop.f32.mrf.mxu0
    %6500 = vmatprep.mubr.f32.mxu0 0.0
    %6501 = vmatmul.mubr.f32.gmra.mxu0 %v6187
    %v6502 = vpop.f32.mrf.mxu0
    %v6503 = vadd.f32 0.0, %v6502
    %v6504 = vpop.f32.mrf.mxu0
    %6505 = vmatprep.mubr.f32.mxu0 0.0
    %6506 = vmatmul.mubr.f32.gmra.mxu0 %v6190
    %v6507 = vpop.f32.mrf.mxu0
    %v6508 = vadd.f32 0.0, %v6507
    %v6509 = vpop.f32.mrf.mxu0
    %6510 = vmatprep.mubr.f32.mxu0 0.0
    %6511 = vmatmul.mubr.f32.gmra.mxu0 %v6193
    %v6512 = vpop.f32.mrf.mxu0
    %v6513 = vadd.f32 0.0, %v6512
    %v6514 = vpop.f32.mrf.mxu0
    %6515 = vmatprep.mubr.f32.mxu0 0.0
    %6516 = vmatmul.mubr.f32.gmra.mxu0 %v6196
    %v6517 = vpop.f32.mrf.mxu0
    %v6518 = vadd.f32 0.0, %v6517
    %v6519 = vpop.f32.mrf.mxu0
    %6520 = vmatprep.mubr.f32.mxu0 0.0
    %6521 = vmatmul.mubr.f32.gmra.mxu0 %v6199
    %v6522 = vpop.f32.mrf.mxu0
    %v6523 = vadd.f32 0.0, %v6522
    %v6524 = vpop.f32.mrf.mxu0
    %6525 = vmatprep.mubr.f32.mxu0 0.0
    %6526 = vmatmul.mubr.f32.gmra.mxu0 %v6202
    %v6527 = vpop.f32.mrf.mxu0
    %v6528 = vadd.f32 0.0, %v6527
    %v6529 = vpop.f32.mrf.mxu0
    %6530 = vmatprep.mubr.f32.mxu0 0.0
    %6531 = vmatmul.mubr.f32.gmra.mxu0 %v6205
    %v6532 = vpop.f32.mrf.mxu0
    %v6533 = vadd.f32 0.0, %v6532
    %v6534 = vpop.f32.mrf.mxu0
    %6535 = vmatprep.mubr.f32.mxu0 0.0
    %6536 = vmatmul.mubr.f32.gmra.mxu0 %v6208
    %v6537 = vpop.f32.mrf.mxu0
    %v6538 = vadd.f32 0.0, %v6537
    %v6539 = vpop.f32.mrf.mxu0
    %6540 = vmatprep.mubr.f32.mxu0 0.0
    %6541 = vmatmul.mubr.f32.gmra.mxu0 %v6211
    %v6542 = vpop.f32.mrf.mxu0
    %v6543 = vadd.f32 0.0, %v6542
    %v6544 = vpop.f32.mrf.mxu0
    %6545 = vmatprep.mubr.f32.mxu0 0.0
    %6546 = vmatmul.mubr.f32.gmra.mxu0 %v6214
    %v6547 = vpop.f32.mrf.mxu0
    %v6548 = vadd.f32 0.0, %v6547
    %v6549 = vpop.f32.mrf.mxu0
    %6550 = vmatprep.mubr.f32.mxu0 0.0
    %6551 = vmatmul.mubr.f32.gmra.mxu0 %v6217
    %v6552 = vpop.f32.mrf.mxu0
    %v6553 = vadd.f32 0.0, %v6552
    %v6554 = vpop.f32.mrf.mxu0
    %6555 = vmatprep.mubr.f32.mxu0 0.0
    %6556 = vmatmul.mubr.f32.gmra.mxu0 %v6220
    %v6557 = vpop.f32.mrf.mxu0
    %v6558 = vadd.f32 0.0, %v6557
    %v6559 = vpop.f32.mrf.mxu0
    %6560 = vmatprep.mubr.f32.mxu0 0.0
    %6561 = vmatmul.mubr.f32.gmra.mxu0 %v6223
    %v6562 = vpop.f32.mrf.mxu0
    %v6563 = vadd.f32 0.0, %v6562
    %v6564 = vpop.f32.mrf.mxu0
    %6565 = vmatprep.mubr.f32.mxu0 0.0
    %6566 = vmatmul.mubr.f32.gmra.mxu0 %v6226
    %v6567 = vpop.f32.mrf.mxu0
    %v6568 = vadd.f32 0.0, %v6567
    %v6569 = vpop.f32.mrf.mxu0
    %6570 = vmatprep.mubr.f32.mxu0 0.0
    %6571 = vmatmul.mubr.f32.gmra.mxu0 %v6229
    %v6572 = vpop.f32.mrf.mxu0
    %v6573 = vadd.f32 0.0, %v6572
    %v6574 = vpop.f32.mrf.mxu0
    %6575 = vmatprep.mubr.f32.mxu0 0.0
    %6576 = vmatmul.mubr.f32.gmra.mxu0 %v6232
    %v6577 = vpop.f32.mrf.mxu0
    %v6578 = vadd.f32 0.0, %v6577
    %v6579 = vpop.f32.mrf.mxu0
    %6580 = vmatprep.mubr.f32.mxu0 0.0
    %6581 = vmatmul.mubr.f32.gmra.mxu0 %v6235
    %v6582 = vpop.f32.mrf.mxu0
    %v6583 = vadd.f32 0.0, %v6582
    %v6584 = vpop.f32.mrf.mxu0
    %6585 = vmatprep.mubr.f32.mxu0 0.0
    %6586 = vmatmul.mubr.f32.gmra.mxu0 %v6238
    %v6587 = vpop.f32.mrf.mxu0
    %v6588 = vadd.f32 0.0, %v6587
    %v6589 = vpop.f32.mrf.mxu0
    %6590 = vmatprep.mubr.f32.mxu0 0.0
    %6591 = vmatmul.mubr.f32.gmra.mxu0 %v6241
    %v6592 = vpop.f32.mrf.mxu0
    %v6593 = vadd.f32 0.0, %v6592
    %v6594 = vpop.f32.mrf.mxu0
    %6595 = vmatprep.mubr.f32.mxu0 0.0
    %6596 = vmatmul.mubr.f32.gmra.mxu0 %v6244
    %v6597 = vpop.f32.mrf.mxu0
    %v6598 = vadd.f32 0.0, %v6597
    %v6599 = vpop.f32.mrf.mxu0
    %6600 = vmatprep.mubr.f32.mxu0 0.0
    %6601 = vmatmul.mubr.f32.gmra.mxu0 %v6247
    %v6602 = vpop.f32.mrf.mxu0
    %v6603 = vadd.f32 0.0, %v6602
    %v6604 = vpop.f32.mrf.mxu0
    %6605 = vmatprep.mubr.f32.mxu0 0.0
    %6606 = vmatmul.mubr.f32.gmra.mxu0 %v6250
    %v6607 = vpop.f32.mrf.mxu0
    %v6608 = vadd.f32 0.0, %v6607
    %v6609 = vpop.f32.mrf.mxu0
    %6610 = vmatprep.mubr.f32.mxu0 0.0
    %6611 = vmatmul.mubr.f32.gmra.mxu0 %v6253
    %v6612 = vpop.f32.mrf.mxu0
    %v6613 = vadd.f32 0.0, %v6612
    %v6614 = vpop.f32.mrf.mxu0
    %6615 = vmatprep.mubr.f32.mxu0 0.0
    %6616 = vmatmul.mubr.f32.gmra.mxu0 %v6256
    %v6617 = vpop.f32.mrf.mxu0
    %v6618 = vadd.f32 0.0, %v6617
    %v6619 = vpop.f32.mrf.mxu0
    %6620 = vmatprep.mubr.f32.mxu0 0.0
    %6621 = vmatmul.mubr.f32.gmra.mxu0 %v6259
    %v6622 = vpop.f32.mrf.mxu0
    %v6623 = vadd.f32 0.0, %v6622
    %v6624 = vpop.f32.mrf.mxu0
    %6625 = vmatprep.mubr.f32.mxu0 0.0
    %6626 = vmatmul.mubr.f32.gmra.mxu0 %v6262
    %v6627 = vpop.f32.mrf.mxu0
    %v6628 = vadd.f32 0.0, %v6627
    %v6629 = vpop.f32.mrf.mxu0
    %6630 = vmatprep.mubr.f32.mxu0 0.0
    %6631 = vmatmul.mubr.f32.gmra.mxu0 %v6265
    %v6632 = vpop.f32.mrf.mxu0
    %v6633 = vadd.f32 0.0, %v6632
    %v6634 = vpop.f32.mrf.mxu0
    %6635 = vmatprep.mubr.f32.mxu0 0.0
    %6636 = vmatmul.mubr.f32.gmra.mxu0 %v6268
    %v6637 = vpop.f32.mrf.mxu0
    %v6638 = vadd.f32 0.0, %v6637
    %v6639 = vpop.f32.mrf.mxu0
    %6640 = vmatprep.mubr.f32.mxu0 0.0
    %6641 = vmatmul.mubr.f32.gmra.mxu0 %v6271
    %v6642 = vpop.f32.mrf.mxu0
    %v6643 = vadd.f32 0.0, %v6642
    %v6644 = vpop.f32.mrf.mxu0
    %6645 = vmatprep.mubr.f32.mxu0 0.0
    %6646 = vmatmul.mubr.f32.gmra.mxu0 %v6274
    %v6647 = vpop.f32.mrf.mxu0
    %v6648 = vadd.f32 0.0, %v6647
    %v6649 = vpop.f32.mrf.mxu0
    %6650 = vmatprep.mubr.f32.mxu0 0.0
    %6651 = vmatmul.mubr.f32.gmra.mxu0 %v6277
    %v6652 = vpop.f32.mrf.mxu0
    %v6653 = vadd.f32 0.0, %v6652
    %v6654 = vpop.f32.mrf.mxu0
    %6655 = vmatprep.mubr.f32.mxu0 0.0
    %6656 = vmatmul.mubr.f32.gmra.mxu0 %v6280
    %v6657 = vpop.f32.mrf.mxu0
    %v6658 = vadd.f32 0.0, %v6657
    %v6659 = vpop.f32.mrf.mxu0
    %6660 = vmatprep.mubr.f32.mxu0 0.0
    %6661 = vmatmul.mubr.f32.gmra.mxu0 %v6283
    %v6662 = vpop.f32.mrf.mxu0
    %v6663 = vadd.f32 0.0, %v6662
    %v6664 = vpop.f32.mrf.mxu0
    %6665 = vmatprep.mubr.f32.mxu0 0.0
    %6666 = vmatmul.mubr.f32.gmra.mxu0 %v6286
    %v6667 = vpop.f32.mrf.mxu0
    %v6668 = vadd.f32 0.0, %v6667
    %v6669 = vpop.f32.mrf.mxu0
    %6670 = vmatprep.mubr.f32.mxu0 0.0
    %6671 = vmatmul.mubr.f32.gmra.mxu0 %v6289
    %v6672 = vpop.f32.mrf.mxu0
    %v6673 = vadd.f32 0.0, %v6672
    %v6674 = vpop.f32.mrf.mxu0
    %6675 = vdwg.mxu0
    %6676 = vset.pattern.permute.xlu0 6
    %6677 = vperm.xlu0 %6676, %v694
    %v6678 = vpop.permute.xlu0 %6677
    %6680 = vset.pattern.permute.xlu0 6
    %6681 = vperm.xlu0 %6680, %v695
    %v6682 = vpop.permute.xlu0 %6681
    %6684 = vset.pattern.permute.xlu0 6
    %6685 = vperm.xlu0 %6684, %v696
    %v6686 = vpop.permute.xlu0 %6685
    %6688 = vset.pattern.permute.xlu0 6
    %6689 = vperm.xlu0 %6688, %v697
    %v6690 = vpop.permute.xlu0 %6689
    %6692 = vset.pattern.permute.xlu0 6
    %6693 = vperm.xlu0 %6692, %v698
    %v6694 = vpop.permute.xlu0 %6693
    %6696 = vset.pattern.permute.xlu0 6
    %6697 = vperm.xlu0 %6696, %v699
    %v6698 = vpop.permute.xlu0 %6697
    %6700 = vset.pattern.permute.xlu0 6
    %6701 = vperm.xlu0 %6700, %v700
    %v6702 = vpop.permute.xlu0 %6701
    %6704 = vset.pattern.permute.xlu0 6
    %6705 = vperm.xlu0 %6704, %v701
    %v6706 = vpop.permute.xlu0 %6705
    %6708 = vset.pattern.permute.xlu0 6
    %6709 = vperm.xlu0 %6708, %v702
    %v6710 = vpop.permute.xlu0 %6709
    %6712 = vset.pattern.permute.xlu0 6
    %6713 = vperm.xlu0 %6712, %v703
    %v6714 = vpop.permute.xlu0 %6713
    %6716 = vset.pattern.permute.xlu0 6
    %6717 = vperm.xlu0 %6716, %v704
    %v6718 = vpop.permute.xlu0 %6717
    %6720 = vset.pattern.permute.xlu0 6
    %6721 = vperm.xlu0 %6720, %v705
    %v6722 = vpop.permute.xlu0 %6721
    %6724 = vset.pattern.permute.xlu0 6
    %6725 = vperm.xlu0 %6724, %v706
    %v6726 = vpop.permute.xlu0 %6725
    %6728 = vset.pattern.permute.xlu0 6
    %6729 = vperm.xlu0 %6728, %v707
    %v6730 = vpop.permute.xlu0 %6729
    %6732 = vset.pattern.permute.xlu0 6
    %6733 = vperm.xlu0 %6732, %v708
    %v6734 = vpop.permute.xlu0 %6733
    %6736 = vset.pattern.permute.xlu0 6
    %6737 = vperm.xlu0 %6736, %v709
    %v6738 = vpop.permute.xlu0 %6737
    %6740 = vset.pattern.permute.xlu0 6
    %6741 = vperm.xlu0 %6740, %v710
    %v6742 = vpop.permute.xlu0 %6741
    %6744 = vset.pattern.permute.xlu0 6
    %6745 = vperm.xlu0 %6744, %v711
    %v6746 = vpop.permute.xlu0 %6745
    %6748 = vset.pattern.permute.xlu0 6
    %6749 = vperm.xlu0 %6748, %v712
    %v6750 = vpop.permute.xlu0 %6749
    %6752 = vset.pattern.permute.xlu0 6
    %6753 = vperm.xlu0 %6752, %v713
    %v6754 = vpop.permute.xlu0 %6753
    %6756 = vset.pattern.permute.xlu0 6
    %6757 = vperm.xlu0 %6756, %v714
    %v6758 = vpop.permute.xlu0 %6757
    %6760 = vset.pattern.permute.xlu0 6
    %6761 = vperm.xlu0 %6760, %v715
    %v6762 = vpop.permute.xlu0 %6761
    %6764 = vset.pattern.permute.xlu0 6
    %6765 = vperm.xlu0 %6764, %v716
    %v6766 = vpop.permute.xlu0 %6765
    %6768 = vset.pattern.permute.xlu0 6
    %6769 = vperm.xlu0 %6768, %v717
    %v6770 = vpop.permute.xlu0 %6769
    %6772 = vset.pattern.permute.xlu0 6
    %6773 = vperm.xlu0 %6772, %v718
    %v6774 = vpop.permute.xlu0 %6773
    %6776 = vset.pattern.permute.xlu0 6
    %6777 = vperm.xlu0 %6776, %v719
    %v6778 = vpop.permute.xlu0 %6777
    %6780 = vset.pattern.permute.xlu0 6
    %6781 = vperm.xlu0 %6780, %v720
    %v6782 = vpop.permute.xlu0 %6781
    %6784 = vset.pattern.permute.xlu0 6
    %6785 = vperm.xlu0 %6784, %v721
    %v6786 = vpop.permute.xlu0 %6785
    %6788 = vset.pattern.permute.xlu0 6
    %6789 = vperm.xlu0 %6788, %v722
    %v6790 = vpop.permute.xlu0 %6789
    %6792 = vset.pattern.permute.xlu0 6
    %6793 = vperm.xlu0 %6792, %v723
    %v6794 = vpop.permute.xlu0 %6793
    %6796 = vset.pattern.permute.xlu0 6
    %6797 = vperm.xlu0 %6796, %v724
    %v6798 = vpop.permute.xlu0 %6797
    %6800 = vset.pattern.permute.xlu0 6
    %6801 = vperm.xlu0 %6800, %v725
    %v6802 = vpop.permute.xlu0 %6801
    %6804 = vset.pattern.permute.xlu0 6
    %6805 = vperm.xlu0 %6804, %v726
    %v6806 = vpop.permute.xlu0 %6805
    %6808 = vset.pattern.permute.xlu0 6
    %6809 = vperm.xlu0 %6808, %v727
    %v6810 = vpop.permute.xlu0 %6809
    %6812 = vset.pattern.permute.xlu0 6
    %6813 = vperm.xlu0 %6812, %v728
    %v6814 = vpop.permute.xlu0 %6813
    %6816 = vset.pattern.permute.xlu0 6
    %6817 = vperm.xlu0 %6816, %v729
    %v6818 = vpop.permute.xlu0 %6817
    %6820 = vset.pattern.permute.xlu0 6
    %6821 = vperm.xlu0 %6820, %v730
    %v6822 = vpop.permute.xlu0 %6821
    %6824 = vset.pattern.permute.xlu0 6
    %6825 = vperm.xlu0 %6824, %v731
    %v6826 = vpop.permute.xlu0 %6825
    %6828 = vset.pattern.permute.xlu0 6
    %6829 = vperm.xlu0 %6828, %v732
    %v6830 = vpop.permute.xlu0 %6829
    %6832 = vset.pattern.permute.xlu0 6
    %6833 = vperm.xlu0 %6832, %v733
    %v6834 = vpop.permute.xlu0 %6833
    %6836 = vset.pattern.permute.xlu0 6
    %6837 = vperm.xlu0 %6836, %v734
    %v6838 = vpop.permute.xlu0 %6837
    %6840 = vset.pattern.permute.xlu0 6
    %6841 = vperm.xlu0 %6840, %v735
    %v6842 = vpop.permute.xlu0 %6841
    %6844 = vset.pattern.permute.xlu0 6
    %6845 = vperm.xlu0 %6844, %v736
    %v6846 = vpop.permute.xlu0 %6845
    %6848 = vset.pattern.permute.xlu0 6
    %6849 = vperm.xlu0 %6848, %v737
    %v6850 = vpop.permute.xlu0 %6849
    %6852 = vset.pattern.permute.xlu0 6
    %6853 = vperm.xlu0 %6852, %v738
    %v6854 = vpop.permute.xlu0 %6853
    %6856 = vset.pattern.permute.xlu0 6
    %6857 = vperm.xlu0 %6856, %v739
    %v6858 = vpop.permute.xlu0 %6857
    %6860 = vset.pattern.permute.xlu0 6
    %6861 = vperm.xlu0 %6860, %v740
    %v6862 = vpop.permute.xlu0 %6861
    %6864 = vset.pattern.permute.xlu0 6
    %6865 = vperm.xlu0 %6864, %v741
    %v6866 = vpop.permute.xlu0 %6865
    %6868 = vset.pattern.permute.xlu0 6
    %6869 = vperm.xlu0 %6868, %v742
    %v6870 = vpop.permute.xlu0 %6869
    %6872 = vset.pattern.permute.xlu0 6
    %6873 = vperm.xlu0 %6872, %v743
    %v6874 = vpop.permute.xlu0 %6873
    %6876 = vset.pattern.permute.xlu0 6
    %6877 = vperm.xlu0 %6876, %v744
    %v6878 = vpop.permute.xlu0 %6877
    %6880 = vset.pattern.permute.xlu0 6
    %6881 = vperm.xlu0 %6880, %v745
    %v6882 = vpop.permute.xlu0 %6881
    %6884 = vset.pattern.permute.xlu0 6
    %6885 = vperm.xlu0 %6884, %v746
    %v6886 = vpop.permute.xlu0 %6885
    %6888 = vset.pattern.permute.xlu0 6
    %6889 = vperm.xlu0 %6888, %v747
    %v6890 = vpop.permute.xlu0 %6889
    %6892 = vset.pattern.permute.xlu0 6
    %6893 = vperm.xlu0 %6892, %v748
    %v6894 = vpop.permute.xlu0 %6893
    %6896 = vset.pattern.permute.xlu0 6
    %6897 = vperm.xlu0 %6896, %v749
    %v6898 = vpop.permute.xlu0 %6897
    %6900 = vset.pattern.permute.xlu0 6
    %6901 = vperm.xlu0 %6900, %v750
    %v6902 = vpop.permute.xlu0 %6901
    %6904 = vset.pattern.permute.xlu0 6
    %6905 = vperm.xlu0 %6904, %v751
    %v6906 = vpop.permute.xlu0 %6905
    %6908 = vset.pattern.permute.xlu0 6
    %6909 = vperm.xlu0 %6908, %v752
    %v6910 = vpop.permute.xlu0 %6909
    %6912 = vset.pattern.permute.xlu0 6
    %6913 = vperm.xlu0 %6912, %v753
    %v6914 = vpop.permute.xlu0 %6913
    %6916 = vset.pattern.permute.xlu0 6
    %6917 = vperm.xlu0 %6916, %v754
    %v6918 = vpop.permute.xlu0 %6917
    %6920 = vset.pattern.permute.xlu0 6
    %6921 = vperm.xlu0 %6920, %v755
    %v6922 = vpop.permute.xlu0 %6921
    %6924 = vset.pattern.permute.xlu0 6
    %6925 = vperm.xlu0 %6924, %v756
    %v6926 = vpop.permute.xlu0 %6925
    %6928 = vset.pattern.permute.xlu0 6
    %6929 = vperm.xlu0 %6928, %v757
    %v6930 = vpop.permute.xlu0 %6929
    %v6932 = vmul.f32 %v6358, %v6678
    %v6933 = vmul.f32 %v6363, %v6682
    %v6934 = vmul.f32 %v6368, %v6686
    %v6935 = vmul.f32 %v6373, %v6690
    %v6936 = vmul.f32 %v6378, %v6694
    %v6937 = vmul.f32 %v6383, %v6698
    %v6938 = vmul.f32 %v6388, %v6702
    %v6939 = vmul.f32 %v6393, %v6706
    %v6940 = vmul.f32 %v6398, %v6710
    %v6941 = vmul.f32 %v6403, %v6714
    %v6942 = vmul.f32 %v6408, %v6718
    %v6943 = vmul.f32 %v6413, %v6722
    %v6944 = vmul.f32 %v6418, %v6726
    %v6945 = vmul.f32 %v6423, %v6730
    %v6946 = vmul.f32 %v6428, %v6734
    %v6947 = vmul.f32 %v6433, %v6738
    %v6948 = vmul.f32 %v6438, %v6742
    %v6949 = vmul.f32 %v6443, %v6746
    %v6950 = vmul.f32 %v6448, %v6750
    %v6951 = vmul.f32 %v6453, %v6754
    %v6952 = vmul.f32 %v6458, %v6758
    %v6953 = vmul.f32 %v6463, %v6762
    %v6954 = vmul.f32 %v6468, %v6766
    %v6955 = vmul.f32 %v6473, %v6770
    %v6956 = vmul.f32 %v6478, %v6774
    %v6957 = vmul.f32 %v6483, %v6778
    %v6958 = vmul.f32 %v6488, %v6782
    %v6959 = vmul.f32 %v6493, %v6786
    %v6960 = vmul.f32 %v6498, %v6790
    %v6961 = vmul.f32 %v6503, %v6794
    %v6962 = vmul.f32 %v6508, %v6798
    %v6963 = vmul.f32 %v6513, %v6802
    %v6964 = vmul.f32 %v6518, %v6806
    %v6965 = vmul.f32 %v6523, %v6810
    %v6966 = vmul.f32 %v6528, %v6814
    %v6967 = vmul.f32 %v6533, %v6818
    %v6968 = vmul.f32 %v6538, %v6822
    %v6969 = vmul.f32 %v6543, %v6826
    %v6970 = vmul.f32 %v6548, %v6830
    %v6971 = vmul.f32 %v6553, %v6834
    %v6972 = vmul.f32 %v6558, %v6838
    %v6973 = vmul.f32 %v6563, %v6842
    %v6974 = vmul.f32 %v6568, %v6846
    %v6975 = vmul.f32 %v6573, %v6850
    %v6976 = vmul.f32 %v6578, %v6854
    %v6977 = vmul.f32 %v6583, %v6858
    %v6978 = vmul.f32 %v6588, %v6862
    %v6979 = vmul.f32 %v6593, %v6866
    %v6980 = vmul.f32 %v6598, %v6870
    %v6981 = vmul.f32 %v6603, %v6874
    %v6982 = vmul.f32 %v6608, %v6878
    %v6983 = vmul.f32 %v6613, %v6882
    %v6984 = vmul.f32 %v6618, %v6886
    %v6985 = vmul.f32 %v6623, %v6890
    %v6986 = vmul.f32 %v6628, %v6894
    %v6987 = vmul.f32 %v6633, %v6898
    %v6988 = vmul.f32 %v6638, %v6902
    %v6989 = vmul.f32 %v6643, %v6906
    %v6990 = vmul.f32 %v6648, %v6910
    %v6991 = vmul.f32 %v6653, %v6914
    %v6992 = vmul.f32 %v6658, %v6918
    %v6993 = vmul.f32 %v6663, %v6922
    %v6994 = vmul.f32 %v6668, %v6926
    %v6995 = vmul.f32 %v6673, %v6930
    %v6996 = vadd.f32 %v5967, %v6932
    %v6997 = vadd.f32 %v5968, %v6933
    %v6998 = vadd.f32 %v5969, %v6934
    %v6999 = vadd.f32 %v5970, %v6935
    %v7000 = vadd.f32 %v5971, %v6936
    %v7001 = vadd.f32 %v5972, %v6937
    %v7002 = vadd.f32 %v5973, %v6938
    %v7003 = vadd.f32 %v5974, %v6939
    %v7004 = vadd.f32 %v5975, %v6940
    %v7005 = vadd.f32 %v5976, %v6941
    %v7006 = vadd.f32 %v5977, %v6942
    %v7007 = vadd.f32 %v5978, %v6943
    %v7008 = vadd.f32 %v5979, %v6944
    %v7009 = vadd.f32 %v5980, %v6945
    %v7010 = vadd.f32 %v5981, %v6946
    %v7011 = vadd.f32 %v5982, %v6947
    %v7012 = vadd.f32 %v5983, %v6948
    %v7013 = vadd.f32 %v5984, %v6949
    %v7014 = vadd.f32 %v5985, %v6950
    %v7015 = vadd.f32 %v5986, %v6951
    %v7016 = vadd.f32 %v5987, %v6952
    %v7017 = vadd.f32 %v5988, %v6953
    %v7018 = vadd.f32 %v5989, %v6954
    %v7019 = vadd.f32 %v5990, %v6955
    %v7020 = vadd.f32 %v5991, %v6956
    %v7021 = vadd.f32 %v5992, %v6957
    %v7022 = vadd.f32 %v5993, %v6958
    %v7023 = vadd.f32 %v5994, %v6959
    %v7024 = vadd.f32 %v5995, %v6960
    %v7025 = vadd.f32 %v5996, %v6961
    %v7026 = vadd.f32 %v5997, %v6962
    %v7027 = vadd.f32 %v5998, %v6963
    %v7028 = vadd.f32 %v5999, %v6964
    %v7029 = vadd.f32 %v6000, %v6965
    %v7030 = vadd.f32 %v6001, %v6966
    %v7031 = vadd.f32 %v6002, %v6967
    %v7032 = vadd.f32 %v6003, %v6968
    %v7033 = vadd.f32 %v6004, %v6969
    %v7034 = vadd.f32 %v6005, %v6970
    %v7035 = vadd.f32 %v6006, %v6971
    %v7036 = vadd.f32 %v6007, %v6972
    %v7037 = vadd.f32 %v6008, %v6973
    %v7038 = vadd.f32 %v6009, %v6974
    %v7039 = vadd.f32 %v6010, %v6975
    %v7040 = vadd.f32 %v6011, %v6976
    %v7041 = vadd.f32 %v6012, %v6977
    %v7042 = vadd.f32 %v6013, %v6978
    %v7043 = vadd.f32 %v6014, %v6979
    %v7044 = vadd.f32 %v6015, %v6980
    %v7045 = vadd.f32 %v6016, %v6981
    %v7046 = vadd.f32 %v6017, %v6982
    %v7047 = vadd.f32 %v6018, %v6983
    %v7048 = vadd.f32 %v6019, %v6984
    %v7049 = vadd.f32 %v6020, %v6985
    %v7050 = vadd.f32 %v6021, %v6986
    %v7051 = vadd.f32 %v6022, %v6987
    %v7052 = vadd.f32 %v6023, %v6988
    %v7053 = vadd.f32 %v6024, %v6989
    %v7054 = vadd.f32 %v6025, %v6990
    %v7055 = vadd.f32 %v6026, %v6991
    %v7056 = vadd.f32 %v6027, %v6992
    %v7057 = vadd.f32 %v6028, %v6993
    %v7058 = vadd.f32 %v6029, %v6994
    %v7059 = vadd.f32 %v6030, %v6995
    %v7060 = vld [vmem:[%s0 + $0x21] sm:$0xff]
    %v7061 = vld [vmem:[%s0 + $0x29] sm:$0xff]
    %v7062 = vld [vmem:[%s0 + $0x31] sm:$0xff]
    %v7063 = vld [vmem:[%s0 + $0x39] sm:$0xff]
    %v7064 = vld [vmem:[%s0 + $0x41] sm:$0xff]
    %v7065 = vld [vmem:[%s0 + $0x49] sm:$0xff]
    %v7066 = vld [vmem:[%s0 + $0x51] sm:$0xff]
    %v7067 = vld [vmem:[%s0 + $0x59] sm:$0xff]
    %v7068 = vld [vmem:[%s0 + $0x61] sm:$0xff]
    %v7069 = vld [vmem:[%s0 + $0x69] sm:$0xff]
    %v7070 = vld [vmem:[%s0 + $0x71] sm:$0xff]
    %v7071 = vld [vmem:[%s0 + $0x79] sm:$0xff]
    %v7072 = vld [vmem:[%s0 + $0x81] sm:$0xff]
    %v7073 = vld [vmem:[%s0 + $0x89] sm:$0xff]
    %v7074 = vld [vmem:[%s0 + $0x91] sm:$0xff]
    %v7075 = vld [vmem:[%s0 + $0x99] sm:$0xff]
    %v7076 = vld [vmem:[%s0 + $0xa1] sm:$0xff]
    %v7077 = vld [vmem:[%s0 + $0xa9] sm:$0xff]
    %v7078 = vld [vmem:[%s0 + $0xb1] sm:$0xff]
    %v7079 = vld [vmem:[%s0 + $0xb9] sm:$0xff]
    %v7080 = vld [vmem:[%s0 + $0xc1] sm:$0xff]
    %v7081 = vld [vmem:[%s0 + $0xc9] sm:$0xff]
    %v7082 = vld [vmem:[%s0 + $0xd1] sm:$0xff]
    %v7083 = vld [vmem:[%s0 + $0xd9] sm:$0xff]
    %v7084 = vld [vmem:[%s0 + $0xe1] sm:$0xff]
    %v7085 = vld [vmem:[%s0 + $0xe9] sm:$0xff]
    %v7086 = vld [vmem:[%s0 + $0xf1] sm:$0xff]
    %v7087 = vld [vmem:[%s0 + $0xf9] sm:$0xff]
    %v7088 = vld [vmem:[%s0 + $0x101] sm:$0xff]
    %v7089 = vld [vmem:[%s0 + $0x109] sm:$0xff]
    %v7090 = vld [vmem:[%s0 + $0x111] sm:$0xff]
    %v7091 = vld [vmem:[%s0 + $0x119] sm:$0xff]
    %v7092 = vld [vmem:[%s0 + $0x121] sm:$0xff]
    %v7093 = vld [vmem:[%s0 + $0x129] sm:$0xff]
    %v7094 = vld [vmem:[%s0 + $0x131] sm:$0xff]
    %v7095 = vld [vmem:[%s0 + $0x139] sm:$0xff]
    %v7096 = vld [vmem:[%s0 + $0x141] sm:$0xff]
    %v7097 = vld [vmem:[%s0 + $0x149] sm:$0xff]
    %v7098 = vld [vmem:[%s0 + $0x151] sm:$0xff]
    %v7099 = vld [vmem:[%s0 + $0x159] sm:$0xff]
    %v7100 = vld [vmem:[%s0 + $0x161] sm:$0xff]
    %v7101 = vld [vmem:[%s0 + $0x169] sm:$0xff]
    %v7102 = vld [vmem:[%s0 + $0x171] sm:$0xff]
    %v7103 = vld [vmem:[%s0 + $0x179] sm:$0xff]
    %v7104 = vld [vmem:[%s0 + $0x181] sm:$0xff]
    %v7105 = vld [vmem:[%s0 + $0x189] sm:$0xff]
    %v7106 = vld [vmem:[%s0 + $0x191] sm:$0xff]
    %v7107 = vld [vmem:[%s0 + $0x199] sm:$0xff]
    %v7108 = vld [vmem:[%s0 + $0x1a1] sm:$0xff]
    %v7109 = vld [vmem:[%s0 + $0x1a9] sm:$0xff]
    %v7110 = vld [vmem:[%s0 + $0x1b1] sm:$0xff]
    %v7111 = vld [vmem:[%s0 + $0x1b9] sm:$0xff]
    %v7112 = vld [vmem:[%s0 + $0x1c1] sm:$0xff]
    %v7113 = vld [vmem:[%s0 + $0x1c9] sm:$0xff]
    %v7114 = vld [vmem:[%s0 + $0x1d1] sm:$0xff]
    %v7115 = vld [vmem:[%s0 + $0x1d9] sm:$0xff]
    %v7116 = vld [vmem:[%s0 + $0x1e1] sm:$0xff]
    %v7117 = vld [vmem:[%s0 + $0x1e9] sm:$0xff]
    %v7118 = vld [vmem:[%s0 + $0x1f1] sm:$0xff]
    %v7119 = vld [vmem:[%s0 + $0x1f9] sm:$0xff]
    %v7120 = vld [vmem:[%s0 + $0x201] sm:$0xff]
    %v7121 = vld [vmem:[%s0 + $0x209] sm:$0xff]
    %v7122 = vld [vmem:[%s0 + $0x211] sm:$0xff]
    %v7123 = vld [vmem:[%s0 + $0x219] sm:$0xff]
    %v7124 = vld [vmem:[%s4 + $0xe0] sm:$0xff]
    %v7125 = vld [vmem:[%s4 + $0xe8] sm:$0xff]
    %v7126 = vld [vmem:[%s4 + $0xf0] sm:$0xff]
    %v7127 = vld [vmem:[%s4 + $0xf8] sm:$0xff]
    %v7129 = vsel %vm116, %v7060, 0
    %v7132 = vsel %vm116, %v7061, 0
    %v7135 = vsel %vm116, %v7062, 0
    %v7138 = vsel %vm116, %v7063, 0
    %v7141 = vsel %vm116, %v7064, 0
    %v7144 = vsel %vm116, %v7065, 0
    %v7147 = vsel %vm116, %v7066, 0
    %v7150 = vsel %vm116, %v7067, 0
    %v7153 = vsel %vm116, %v7068, 0
    %v7156 = vsel %vm116, %v7069, 0
    %v7159 = vsel %vm116, %v7070, 0
    %v7162 = vsel %vm116, %v7071, 0
    %v7165 = vsel %vm116, %v7072, 0
    %v7168 = vsel %vm116, %v7073, 0
    %v7171 = vsel %vm116, %v7074, 0
    %v7174 = vsel %vm116, %v7075, 0
    %v7177 = vsel %vm116, %v7076, 0
    %v7180 = vsel %vm116, %v7077, 0
    %v7183 = vsel %vm116, %v7078, 0
    %v7186 = vsel %vm116, %v7079, 0
    %v7189 = vsel %vm116, %v7080, 0
    %v7192 = vsel %vm116, %v7081, 0
    %v7195 = vsel %vm116, %v7082, 0
    %v7198 = vsel %vm116, %v7083, 0
    %v7201 = vsel %vm116, %v7084, 0
    %v7204 = vsel %vm116, %v7085, 0
    %v7207 = vsel %vm116, %v7086, 0
    %v7210 = vsel %vm116, %v7087, 0
    %v7213 = vsel %vm116, %v7088, 0
    %v7216 = vsel %vm116, %v7089, 0
    %v7219 = vsel %vm116, %v7090, 0
    %v7222 = vsel %vm116, %v7091, 0
    %v7225 = vsel %vm116, %v7092, 0
    %v7228 = vsel %vm116, %v7093, 0
    %v7231 = vsel %vm116, %v7094, 0
    %v7234 = vsel %vm116, %v7095, 0
    %v7237 = vsel %vm116, %v7096, 0
    %v7240 = vsel %vm116, %v7097, 0
    %v7243 = vsel %vm116, %v7098, 0
    %v7246 = vsel %vm116, %v7099, 0
    %v7249 = vsel %vm116, %v7100, 0
    %v7252 = vsel %vm116, %v7101, 0
    %v7255 = vsel %vm116, %v7102, 0
    %v7258 = vsel %vm116, %v7103, 0
    %v7261 = vsel %vm116, %v7104, 0
    %v7264 = vsel %vm116, %v7105, 0
    %v7267 = vsel %vm116, %v7106, 0
    %v7270 = vsel %vm116, %v7107, 0
    %v7273 = vsel %vm116, %v7108, 0
    %v7276 = vsel %vm116, %v7109, 0
    %v7279 = vsel %vm116, %v7110, 0
    %v7282 = vsel %vm116, %v7111, 0
    %v7285 = vsel %vm116, %v7112, 0
    %v7288 = vsel %vm116, %v7113, 0
    %v7291 = vsel %vm116, %v7114, 0
    %v7294 = vsel %vm116, %v7115, 0
    %v7297 = vsel %vm116, %v7116, 0
    %v7300 = vsel %vm116, %v7117, 0
    %v7303 = vsel %vm116, %v7118, 0
    %v7306 = vsel %vm116, %v7119, 0
    %v7309 = vsel %vm116, %v7120, 0
    %v7312 = vsel %vm116, %v7121, 0
    %v7315 = vsel %vm116, %v7122, 0
    %v7318 = vsel %vm116, %v7123, 0
    %7320 = vmatprep.subr.mxu0 0.0
    %7321 = vmatpush1.msra.mxu0 0.0
    %7322 = vmatprep.subr.mxu0 0.0
    %7323 = vmatpush1.msra.mxu0 0.0
    %7324 = vmatprep.subr.mxu0 0.0
    %7325 = vmatpush1.msra.mxu0 0.0
    %7326 = vmatprep.subr.mxu0 0.0
    %7327 = vmatpush1.msra.mxu0 0.0
    %7328 = vmatprep.subr.mxu0 0.0
    %7329 = vmatpush1.msra.mxu0 0.0
    %7330 = vmatprep.subr.mxu0 0.0
    %7331 = vmatpush1.msra.mxu0 0.0
    %7332 = vmatprep.subr.mxu0 0.0
    %7333 = vmatpush1.msra.mxu0 0.0
    %7334 = vmatprep.subr.mxu0 0.0
    %7335 = vmatpush1.msra.mxu0 0.0
    %7336 = vmatprep.subr.mxu0 0.0
    %7337 = vmatpush1.msra.mxu0 0.0
    %7338 = vmatprep.subr.mxu0 0.0
    %7339 = vmatpush1.msra.mxu0 0.0
    %7340 = vmatprep.subr.mxu0 0.0
    %7341 = vmatpush1.msra.mxu0 0.0
    %7342 = vmatprep.subr.mxu0 0.0
    %7343 = vmatpush1.msra.mxu0 0.0
    %7344 = vmatprep.subr.mxu0 0.0
    %7345 = vmatpush1.msra.mxu0 %v7127
    %7346 = vmatprep.subr.mxu0 0.0
    %7347 = vmatpush1.msra.mxu0 %v7126
    %7348 = vmatprep.subr.mxu0 0.0
    %7349 = vmatpush1.msra.mxu0 %v7125
    %7350 = vmatprep.subr.mxu0 0.0
    %7351 = vmatpush1.msra.mxu0 %v7124
    %7352 = vmatprep.subr.mxu0 0.0
    %7353 = vmatpush2.msra.mxu0 0.0
    %7354 = vmatprep.subr.mxu0 0.0
    %7355 = vmatpush2.msra.mxu0 0.0
    %7356 = vmatprep.subr.mxu0 0.0
    %7357 = vmatpush2.msra.mxu0 0.0
    %7358 = vmatprep.subr.mxu0 0.0
    %7359 = vmatpush2.msra.mxu0 0.0
    %7360 = vmatprep.subr.mxu0 0.0
    %7361 = vmatpush2.msra.mxu0 0.0
    %7362 = vmatprep.subr.mxu0 0.0
    %7363 = vmatpush2.msra.mxu0 0.0
    %7364 = vmatprep.subr.mxu0 0.0
    %7365 = vmatpush2.msra.mxu0 0.0
    %7366 = vmatprep.subr.mxu0 0.0
    %7367 = vmatpush2.msra.mxu0 0.0
    %7368 = vmatprep.subr.mxu0 0.0
    %7369 = vmatpush2.msra.mxu0 0.0
    %7370 = vmatprep.subr.mxu0 0.0
    %7371 = vmatpush2.msra.mxu0 0.0
    %7372 = vmatprep.subr.mxu0 0.0
    %7373 = vmatpush2.msra.mxu0 0.0
    %7374 = vmatprep.subr.mxu0 0.0
    %7375 = vmatpush2.msra.mxu0 0.0
    %7376 = vmatprep.subr.mxu0 0.0
    %7377 = vmatpush2.msra.mxu0 0.0
    %7378 = vmatprep.subr.mxu0 0.0
    %7379 = vmatpush2.msra.mxu0 0.0
    %7380 = vmatprep.subr.mxu0 0.0
    %7381 = vmatpush2.msra.mxu0 0.0
    %7382 = vmatprep.subr.mxu0 0.0
    %7383 = vmatpush2.msra.mxu0 0.0
    %7384 = vmatprep.mubr.f32.mxu0 0.0
    %7385 = vmatmul.mubr.f32.gmra.mxu0 %v7129
    %v7386 = vpop.f32.mrf.mxu0
    %v7387 = vadd.f32 0.0, %v7386
    %v7388 = vpop.f32.mrf.mxu0
    %7389 = vmatprep.mubr.f32.mxu0 0.0
    %7390 = vmatmul.mubr.f32.gmra.mxu0 %v7132
    %v7391 = vpop.f32.mrf.mxu0
    %v7392 = vadd.f32 0.0, %v7391
    %v7393 = vpop.f32.mrf.mxu0
    %7394 = vmatprep.mubr.f32.mxu0 0.0
    %7395 = vmatmul.mubr.f32.gmra.mxu0 %v7135
    %v7396 = vpop.f32.mrf.mxu0
    %v7397 = vadd.f32 0.0, %v7396
    %v7398 = vpop.f32.mrf.mxu0
    %7399 = vmatprep.mubr.f32.mxu0 0.0
    %7400 = vmatmul.mubr.f32.gmra.mxu0 %v7138
    %v7401 = vpop.f32.mrf.mxu0
    %v7402 = vadd.f32 0.0, %v7401
    %v7403 = vpop.f32.mrf.mxu0
    %7404 = vmatprep.mubr.f32.mxu0 0.0
    %7405 = vmatmul.mubr.f32.gmra.mxu0 %v7141
    %v7406 = vpop.f32.mrf.mxu0
    %v7407 = vadd.f32 0.0, %v7406
    %v7408 = vpop.f32.mrf.mxu0
    %7409 = vmatprep.mubr.f32.mxu0 0.0
    %7410 = vmatmul.mubr.f32.gmra.mxu0 %v7144
    %v7411 = vpop.f32.mrf.mxu0
    %v7412 = vadd.f32 0.0, %v7411
    %v7413 = vpop.f32.mrf.mxu0
    %7414 = vmatprep.mubr.f32.mxu0 0.0
    %7415 = vmatmul.mubr.f32.gmra.mxu0 %v7147
    %v7416 = vpop.f32.mrf.mxu0
    %v7417 = vadd.f32 0.0, %v7416
    %v7418 = vpop.f32.mrf.mxu0
    %7419 = vmatprep.mubr.f32.mxu0 0.0
    %7420 = vmatmul.mubr.f32.gmra.mxu0 %v7150
    %v7421 = vpop.f32.mrf.mxu0
    %v7422 = vadd.f32 0.0, %v7421
    %v7423 = vpop.f32.mrf.mxu0
    %7424 = vmatprep.mubr.f32.mxu0 0.0
    %7425 = vmatmul.mubr.f32.gmra.mxu0 %v7153
    %v7426 = vpop.f32.mrf.mxu0
    %v7427 = vadd.f32 0.0, %v7426
    %v7428 = vpop.f32.mrf.mxu0
    %7429 = vmatprep.mubr.f32.mxu0 0.0
    %7430 = vmatmul.mubr.f32.gmra.mxu0 %v7156
    %v7431 = vpop.f32.mrf.mxu0
    %v7432 = vadd.f32 0.0, %v7431
    %v7433 = vpop.f32.mrf.mxu0
    %7434 = vmatprep.mubr.f32.mxu0 0.0
    %7435 = vmatmul.mubr.f32.gmra.mxu0 %v7159
    %v7436 = vpop.f32.mrf.mxu0
    %v7437 = vadd.f32 0.0, %v7436
    %v7438 = vpop.f32.mrf.mxu0
    %7439 = vmatprep.mubr.f32.mxu0 0.0
    %7440 = vmatmul.mubr.f32.gmra.mxu0 %v7162
    %v7441 = vpop.f32.mrf.mxu0
    %v7442 = vadd.f32 0.0, %v7441
    %v7443 = vpop.f32.mrf.mxu0
    %7444 = vmatprep.mubr.f32.mxu0 0.0
    %7445 = vmatmul.mubr.f32.gmra.mxu0 %v7165
    %v7446 = vpop.f32.mrf.mxu0
    %v7447 = vadd.f32 0.0, %v7446
    %v7448 = vpop.f32.mrf.mxu0
    %7449 = vmatprep.mubr.f32.mxu0 0.0
    %7450 = vmatmul.mubr.f32.gmra.mxu0 %v7168
    %v7451 = vpop.f32.mrf.mxu0
    %v7452 = vadd.f32 0.0, %v7451
    %v7453 = vpop.f32.mrf.mxu0
    %7454 = vmatprep.mubr.f32.mxu0 0.0
    %7455 = vmatmul.mubr.f32.gmra.mxu0 %v7171
    %v7456 = vpop.f32.mrf.mxu0
    %v7457 = vadd.f32 0.0, %v7456
    %v7458 = vpop.f32.mrf.mxu0
    %7459 = vmatprep.mubr.f32.mxu0 0.0
    %7460 = vmatmul.mubr.f32.gmra.mxu0 %v7174
    %v7461 = vpop.f32.mrf.mxu0
    %v7462 = vadd.f32 0.0, %v7461
    %v7463 = vpop.f32.mrf.mxu0
    %7464 = vmatprep.mubr.f32.mxu0 0.0
    %7465 = vmatmul.mubr.f32.gmra.mxu0 %v7177
    %v7466 = vpop.f32.mrf.mxu0
    %v7467 = vadd.f32 0.0, %v7466
    %v7468 = vpop.f32.mrf.mxu0
    %7469 = vmatprep.mubr.f32.mxu0 0.0
    %7470 = vmatmul.mubr.f32.gmra.mxu0 %v7180
    %v7471 = vpop.f32.mrf.mxu0
    %v7472 = vadd.f32 0.0, %v7471
    %v7473 = vpop.f32.mrf.mxu0
    %7474 = vmatprep.mubr.f32.mxu0 0.0
    %7475 = vmatmul.mubr.f32.gmra.mxu0 %v7183
    %v7476 = vpop.f32.mrf.mxu0
    %v7477 = vadd.f32 0.0, %v7476
    %v7478 = vpop.f32.mrf.mxu0
    %7479 = vmatprep.mubr.f32.mxu0 0.0
    %7480 = vmatmul.mubr.f32.gmra.mxu0 %v7186
    %v7481 = vpop.f32.mrf.mxu0
    %v7482 = vadd.f32 0.0, %v7481
    %v7483 = vpop.f32.mrf.mxu0
    %7484 = vmatprep.mubr.f32.mxu0 0.0
    %7485 = vmatmul.mubr.f32.gmra.mxu0 %v7189
    %v7486 = vpop.f32.mrf.mxu0
    %v7487 = vadd.f32 0.0, %v7486
    %v7488 = vpop.f32.mrf.mxu0
    %7489 = vmatprep.mubr.f32.mxu0 0.0
    %7490 = vmatmul.mubr.f32.gmra.mxu0 %v7192
    %v7491 = vpop.f32.mrf.mxu0
    %v7492 = vadd.f32 0.0, %v7491
    %v7493 = vpop.f32.mrf.mxu0
    %7494 = vmatprep.mubr.f32.mxu0 0.0
    %7495 = vmatmul.mubr.f32.gmra.mxu0 %v7195
    %v7496 = vpop.f32.mrf.mxu0
    %v7497 = vadd.f32 0.0, %v7496
    %v7498 = vpop.f32.mrf.mxu0
    %7499 = vmatprep.mubr.f32.mxu0 0.0
    %7500 = vmatmul.mubr.f32.gmra.mxu0 %v7198
    %v7501 = vpop.f32.mrf.mxu0
    %v7502 = vadd.f32 0.0, %v7501
    %v7503 = vpop.f32.mrf.mxu0
    %7504 = vmatprep.mubr.f32.mxu0 0.0
    %7505 = vmatmul.mubr.f32.gmra.mxu0 %v7201
    %v7506 = vpop.f32.mrf.mxu0
    %v7507 = vadd.f32 0.0, %v7506
    %v7508 = vpop.f32.mrf.mxu0
    %7509 = vmatprep.mubr.f32.mxu0 0.0
    %7510 = vmatmul.mubr.f32.gmra.mxu0 %v7204
    %v7511 = vpop.f32.mrf.mxu0
    %v7512 = vadd.f32 0.0, %v7511
    %v7513 = vpop.f32.mrf.mxu0
    %7514 = vmatprep.mubr.f32.mxu0 0.0
    %7515 = vmatmul.mubr.f32.gmra.mxu0 %v7207
    %v7516 = vpop.f32.mrf.mxu0
    %v7517 = vadd.f32 0.0, %v7516
    %v7518 = vpop.f32.mrf.mxu0
    %7519 = vmatprep.mubr.f32.mxu0 0.0
    %7520 = vmatmul.mubr.f32.gmra.mxu0 %v7210
    %v7521 = vpop.f32.mrf.mxu0
    %v7522 = vadd.f32 0.0, %v7521
    %v7523 = vpop.f32.mrf.mxu0
    %7524 = vmatprep.mubr.f32.mxu0 0.0
    %7525 = vmatmul.mubr.f32.gmra.mxu0 %v7213
    %v7526 = vpop.f32.mrf.mxu0
    %v7527 = vadd.f32 0.0, %v7526
    %v7528 = vpop.f32.mrf.mxu0
    %7529 = vmatprep.mubr.f32.mxu0 0.0
    %7530 = vmatmul.mubr.f32.gmra.mxu0 %v7216
    %v7531 = vpop.f32.mrf.mxu0
    %v7532 = vadd.f32 0.0, %v7531
    %v7533 = vpop.f32.mrf.mxu0
    %7534 = vmatprep.mubr.f32.mxu0 0.0
    %7535 = vmatmul.mubr.f32.gmra.mxu0 %v7219
    %v7536 = vpop.f32.mrf.mxu0
    %v7537 = vadd.f32 0.0, %v7536
    %v7538 = vpop.f32.mrf.mxu0
    %7539 = vmatprep.mubr.f32.mxu0 0.0
    %7540 = vmatmul.mubr.f32.gmra.mxu0 %v7222
    %v7541 = vpop.f32.mrf.mxu0
    %v7542 = vadd.f32 0.0, %v7541
    %v7543 = vpop.f32.mrf.mxu0
    %7544 = vmatprep.mubr.f32.mxu0 0.0
    %7545 = vmatmul.mubr.f32.gmra.mxu0 %v7225
    %v7546 = vpop.f32.mrf.mxu0
    %v7547 = vadd.f32 0.0, %v7546
    %v7548 = vpop.f32.mrf.mxu0
    %7549 = vmatprep.mubr.f32.mxu0 0.0
    %7550 = vmatmul.mubr.f32.gmra.mxu0 %v7228
    %v7551 = vpop.f32.mrf.mxu0
    %v7552 = vadd.f32 0.0, %v7551
    %v7553 = vpop.f32.mrf.mxu0
    %7554 = vmatprep.mubr.f32.mxu0 0.0
    %7555 = vmatmul.mubr.f32.gmra.mxu0 %v7231
    %v7556 = vpop.f32.mrf.mxu0
    %v7557 = vadd.f32 0.0, %v7556
    %v7558 = vpop.f32.mrf.mxu0
    %7559 = vmatprep.mubr.f32.mxu0 0.0
    %7560 = vmatmul.mubr.f32.gmra.mxu0 %v7234
    %v7561 = vpop.f32.mrf.mxu0
    %v7562 = vadd.f32 0.0, %v7561
    %v7563 = vpop.f32.mrf.mxu0
    %7564 = vmatprep.mubr.f32.mxu0 0.0
    %7565 = vmatmul.mubr.f32.gmra.mxu0 %v7237
    %v7566 = vpop.f32.mrf.mxu0
    %v7567 = vadd.f32 0.0, %v7566
    %v7568 = vpop.f32.mrf.mxu0
    %7569 = vmatprep.mubr.f32.mxu0 0.0
    %7570 = vmatmul.mubr.f32.gmra.mxu0 %v7240
    %v7571 = vpop.f32.mrf.mxu0
    %v7572 = vadd.f32 0.0, %v7571
    %v7573 = vpop.f32.mrf.mxu0
    %7574 = vmatprep.mubr.f32.mxu0 0.0
    %7575 = vmatmul.mubr.f32.gmra.mxu0 %v7243
    %v7576 = vpop.f32.mrf.mxu0
    %v7577 = vadd.f32 0.0, %v7576
    %v7578 = vpop.f32.mrf.mxu0
    %7579 = vmatprep.mubr.f32.mxu0 0.0
    %7580 = vmatmul.mubr.f32.gmra.mxu0 %v7246
    %v7581 = vpop.f32.mrf.mxu0
    %v7582 = vadd.f32 0.0, %v7581
    %v7583 = vpop.f32.mrf.mxu0
    %7584 = vmatprep.mubr.f32.mxu0 0.0
    %7585 = vmatmul.mubr.f32.gmra.mxu0 %v7249
    %v7586 = vpop.f32.mrf.mxu0
    %v7587 = vadd.f32 0.0, %v7586
    %v7588 = vpop.f32.mrf.mxu0
    %7589 = vmatprep.mubr.f32.mxu0 0.0
    %7590 = vmatmul.mubr.f32.gmra.mxu0 %v7252
    %v7591 = vpop.f32.mrf.mxu0
    %v7592 = vadd.f32 0.0, %v7591
    %v7593 = vpop.f32.mrf.mxu0
    %7594 = vmatprep.mubr.f32.mxu0 0.0
    %7595 = vmatmul.mubr.f32.gmra.mxu0 %v7255
    %v7596 = vpop.f32.mrf.mxu0
    %v7597 = vadd.f32 0.0, %v7596
    %v7598 = vpop.f32.mrf.mxu0
    %7599 = vmatprep.mubr.f32.mxu0 0.0
    %7600 = vmatmul.mubr.f32.gmra.mxu0 %v7258
    %v7601 = vpop.f32.mrf.mxu0
    %v7602 = vadd.f32 0.0, %v7601
    %v7603 = vpop.f32.mrf.mxu0
    %7604 = vmatprep.mubr.f32.mxu0 0.0
    %7605 = vmatmul.mubr.f32.gmra.mxu0 %v7261
    %v7606 = vpop.f32.mrf.mxu0
    %v7607 = vadd.f32 0.0, %v7606
    %v7608 = vpop.f32.mrf.mxu0
    %7609 = vmatprep.mubr.f32.mxu0 0.0
    %7610 = vmatmul.mubr.f32.gmra.mxu0 %v7264
    %v7611 = vpop.f32.mrf.mxu0
    %v7612 = vadd.f32 0.0, %v7611
    %v7613 = vpop.f32.mrf.mxu0
    %7614 = vmatprep.mubr.f32.mxu0 0.0
    %7615 = vmatmul.mubr.f32.gmra.mxu0 %v7267
    %v7616 = vpop.f32.mrf.mxu0
    %v7617 = vadd.f32 0.0, %v7616
    %v7618 = vpop.f32.mrf.mxu0
    %7619 = vmatprep.mubr.f32.mxu0 0.0
    %7620 = vmatmul.mubr.f32.gmra.mxu0 %v7270
    %v7621 = vpop.f32.mrf.mxu0
    %v7622 = vadd.f32 0.0, %v7621
    %v7623 = vpop.f32.mrf.mxu0
    %7624 = vmatprep.mubr.f32.mxu0 0.0
    %7625 = vmatmul.mubr.f32.gmra.mxu0 %v7273
    %v7626 = vpop.f32.mrf.mxu0
    %v7627 = vadd.f32 0.0, %v7626
    %v7628 = vpop.f32.mrf.mxu0
    %7629 = vmatprep.mubr.f32.mxu0 0.0
    %7630 = vmatmul.mubr.f32.gmra.mxu0 %v7276
    %v7631 = vpop.f32.mrf.mxu0
    %v7632 = vadd.f32 0.0, %v7631
    %v7633 = vpop.f32.mrf.mxu0
    %7634 = vmatprep.mubr.f32.mxu0 0.0
    %7635 = vmatmul.mubr.f32.gmra.mxu0 %v7279
    %v7636 = vpop.f32.mrf.mxu0
    %v7637 = vadd.f32 0.0, %v7636
    %v7638 = vpop.f32.mrf.mxu0
    %7639 = vmatprep.mubr.f32.mxu0 0.0
    %7640 = vmatmul.mubr.f32.gmra.mxu0 %v7282
    %v7641 = vpop.f32.mrf.mxu0
    %v7642 = vadd.f32 0.0, %v7641
    %v7643 = vpop.f32.mrf.mxu0
    %7644 = vmatprep.mubr.f32.mxu0 0.0
    %7645 = vmatmul.mubr.f32.gmra.mxu0 %v7285
    %v7646 = vpop.f32.mrf.mxu0
    %v7647 = vadd.f32 0.0, %v7646
    %v7648 = vpop.f32.mrf.mxu0
    %7649 = vmatprep.mubr.f32.mxu0 0.0
    %7650 = vmatmul.mubr.f32.gmra.mxu0 %v7288
    %v7651 = vpop.f32.mrf.mxu0
    %v7652 = vadd.f32 0.0, %v7651
    %v7653 = vpop.f32.mrf.mxu0
    %7654 = vmatprep.mubr.f32.mxu0 0.0
    %7655 = vmatmul.mubr.f32.gmra.mxu0 %v7291
    %v7656 = vpop.f32.mrf.mxu0
    %v7657 = vadd.f32 0.0, %v7656
    %v7658 = vpop.f32.mrf.mxu0
    %7659 = vmatprep.mubr.f32.mxu0 0.0
    %7660 = vmatmul.mubr.f32.gmra.mxu0 %v7294
    %v7661 = vpop.f32.mrf.mxu0
    %v7662 = vadd.f32 0.0, %v7661
    %v7663 = vpop.f32.mrf.mxu0
    %7664 = vmatprep.mubr.f32.mxu0 0.0
    %7665 = vmatmul.mubr.f32.gmra.mxu0 %v7297
    %v7666 = vpop.f32.mrf.mxu0
    %v7667 = vadd.f32 0.0, %v7666
    %v7668 = vpop.f32.mrf.mxu0
    %7669 = vmatprep.mubr.f32.mxu0 0.0
    %7670 = vmatmul.mubr.f32.gmra.mxu0 %v7300
    %v7671 = vpop.f32.mrf.mxu0
    %v7672 = vadd.f32 0.0, %v7671
    %v7673 = vpop.f32.mrf.mxu0
    %7674 = vmatprep.mubr.f32.mxu0 0.0
    %7675 = vmatmul.mubr.f32.gmra.mxu0 %v7303
    %v7676 = vpop.f32.mrf.mxu0
    %v7677 = vadd.f32 0.0, %v7676
    %v7678 = vpop.f32.mrf.mxu0
    %7679 = vmatprep.mubr.f32.mxu0 0.0
    %7680 = vmatmul.mubr.f32.gmra.mxu0 %v7306
    %v7681 = vpop.f32.mrf.mxu0
    %v7682 = vadd.f32 0.0, %v7681
    %v7683 = vpop.f32.mrf.mxu0
    %7684 = vmatprep.mubr.f32.mxu0 0.0
    %7685 = vmatmul.mubr.f32.gmra.mxu0 %v7309
    %v7686 = vpop.f32.mrf.mxu0
    %v7687 = vadd.f32 0.0, %v7686
    %v7688 = vpop.f32.mrf.mxu0
    %7689 = vmatprep.mubr.f32.mxu0 0.0
    %7690 = vmatmul.mubr.f32.gmra.mxu0 %v7312
    %v7691 = vpop.f32.mrf.mxu0
    %v7692 = vadd.f32 0.0, %v7691
    %v7693 = vpop.f32.mrf.mxu0
    %7694 = vmatprep.mubr.f32.mxu0 0.0
    %7695 = vmatmul.mubr.f32.gmra.mxu0 %v7315
    %v7696 = vpop.f32.mrf.mxu0
    %v7697 = vadd.f32 0.0, %v7696
    %v7698 = vpop.f32.mrf.mxu0
    %7699 = vmatprep.mubr.f32.mxu0 0.0
    %7700 = vmatmul.mubr.f32.gmra.mxu0 %v7318
    %v7701 = vpop.f32.mrf.mxu0
    %v7702 = vadd.f32 0.0, %v7701
    %v7703 = vpop.f32.mrf.mxu0
    %7704 = vdwg.mxu0
    %7705 = vset.pattern.permute.xlu0 7
    %7706 = vperm.xlu0 %7705, %v694
    %v7707 = vpop.permute.xlu0 %7706
    %7709 = vset.pattern.permute.xlu0 7
    %7710 = vperm.xlu0 %7709, %v695
    %v7711 = vpop.permute.xlu0 %7710
    %7713 = vset.pattern.permute.xlu0 7
    %7714 = vperm.xlu0 %7713, %v696
    %v7715 = vpop.permute.xlu0 %7714
    %7717 = vset.pattern.permute.xlu0 7
    %7718 = vperm.xlu0 %7717, %v697
    %v7719 = vpop.permute.xlu0 %7718
    %7721 = vset.pattern.permute.xlu0 7
    %7722 = vperm.xlu0 %7721, %v698
    %v7723 = vpop.permute.xlu0 %7722
    %7725 = vset.pattern.permute.xlu0 7
    %7726 = vperm.xlu0 %7725, %v699
    %v7727 = vpop.permute.xlu0 %7726
    %7729 = vset.pattern.permute.xlu0 7
    %7730 = vperm.xlu0 %7729, %v700
    %v7731 = vpop.permute.xlu0 %7730
    %7733 = vset.pattern.permute.xlu0 7
    %7734 = vperm.xlu0 %7733, %v701
    %v7735 = vpop.permute.xlu0 %7734
    %7737 = vset.pattern.permute.xlu0 7
    %7738 = vperm.xlu0 %7737, %v702
    %v7739 = vpop.permute.xlu0 %7738
    %7741 = vset.pattern.permute.xlu0 7
    %7742 = vperm.xlu0 %7741, %v703
    %v7743 = vpop.permute.xlu0 %7742
    %7745 = vset.pattern.permute.xlu0 7
    %7746 = vperm.xlu0 %7745, %v704
    %v7747 = vpop.permute.xlu0 %7746
    %7749 = vset.pattern.permute.xlu0 7
    %7750 = vperm.xlu0 %7749, %v705
    %v7751 = vpop.permute.xlu0 %7750
    %7753 = vset.pattern.permute.xlu0 7
    %7754 = vperm.xlu0 %7753, %v706
    %v7755 = vpop.permute.xlu0 %7754
    %7757 = vset.pattern.permute.xlu0 7
    %7758 = vperm.xlu0 %7757, %v707
    %v7759 = vpop.permute.xlu0 %7758
    %7761 = vset.pattern.permute.xlu0 7
    %7762 = vperm.xlu0 %7761, %v708
    %v7763 = vpop.permute.xlu0 %7762
    %7765 = vset.pattern.permute.xlu0 7
    %7766 = vperm.xlu0 %7765, %v709
    %v7767 = vpop.permute.xlu0 %7766
    %7769 = vset.pattern.permute.xlu0 7
    %7770 = vperm.xlu0 %7769, %v710
    %v7771 = vpop.permute.xlu0 %7770
    %7773 = vset.pattern.permute.xlu0 7
    %7774 = vperm.xlu0 %7773, %v711
    %v7775 = vpop.permute.xlu0 %7774
    %7777 = vset.pattern.permute.xlu0 7
    %7778 = vperm.xlu0 %7777, %v712
    %v7779 = vpop.permute.xlu0 %7778
    %7781 = vset.pattern.permute.xlu0 7
    %7782 = vperm.xlu0 %7781, %v713
    %v7783 = vpop.permute.xlu0 %7782
    %7785 = vset.pattern.permute.xlu0 7
    %7786 = vperm.xlu0 %7785, %v714
    %v7787 = vpop.permute.xlu0 %7786
    %7789 = vset.pattern.permute.xlu0 7
    %7790 = vperm.xlu0 %7789, %v715
    %v7791 = vpop.permute.xlu0 %7790
    %7793 = vset.pattern.permute.xlu0 7
    %7794 = vperm.xlu0 %7793, %v716
    %v7795 = vpop.permute.xlu0 %7794
    %7797 = vset.pattern.permute.xlu0 7
    %7798 = vperm.xlu0 %7797, %v717
    %v7799 = vpop.permute.xlu0 %7798
    %7801 = vset.pattern.permute.xlu0 7
    %7802 = vperm.xlu0 %7801, %v718
    %v7803 = vpop.permute.xlu0 %7802
    %7805 = vset.pattern.permute.xlu0 7
    %7806 = vperm.xlu0 %7805, %v719
    %v7807 = vpop.permute.xlu0 %7806
    %7809 = vset.pattern.permute.xlu0 7
    %7810 = vperm.xlu0 %7809, %v720
    %v7811 = vpop.permute.xlu0 %7810
    %7813 = vset.pattern.permute.xlu0 7
    %7814 = vperm.xlu0 %7813, %v721
    %v7815 = vpop.permute.xlu0 %7814
    %7817 = vset.pattern.permute.xlu0 7
    %7818 = vperm.xlu0 %7817, %v722
    %v7819 = vpop.permute.xlu0 %7818
    %7821 = vset.pattern.permute.xlu0 7
    %7822 = vperm.xlu0 %7821, %v723
    %v7823 = vpop.permute.xlu0 %7822
    %7825 = vset.pattern.permute.xlu0 7
    %7826 = vperm.xlu0 %7825, %v724
    %v7827 = vpop.permute.xlu0 %7826
    %7829 = vset.pattern.permute.xlu0 7
    %7830 = vperm.xlu0 %7829, %v725
    %v7831 = vpop.permute.xlu0 %7830
    %7833 = vset.pattern.permute.xlu0 7
    %7834 = vperm.xlu0 %7833, %v726
    %v7835 = vpop.permute.xlu0 %7834
    %7837 = vset.pattern.permute.xlu0 7
    %7838 = vperm.xlu0 %7837, %v727
    %v7839 = vpop.permute.xlu0 %7838
    %7841 = vset.pattern.permute.xlu0 7
    %7842 = vperm.xlu0 %7841, %v728
    %v7843 = vpop.permute.xlu0 %7842
    %7845 = vset.pattern.permute.xlu0 7
    %7846 = vperm.xlu0 %7845, %v729
    %v7847 = vpop.permute.xlu0 %7846
    %7849 = vset.pattern.permute.xlu0 7
    %7850 = vperm.xlu0 %7849, %v730
    %v7851 = vpop.permute.xlu0 %7850
    %7853 = vset.pattern.permute.xlu0 7
    %7854 = vperm.xlu0 %7853, %v731
    %v7855 = vpop.permute.xlu0 %7854
    %7857 = vset.pattern.permute.xlu0 7
    %7858 = vperm.xlu0 %7857, %v732
    %v7859 = vpop.permute.xlu0 %7858
    %7861 = vset.pattern.permute.xlu0 7
    %7862 = vperm.xlu0 %7861, %v733
    %v7863 = vpop.permute.xlu0 %7862
    %7865 = vset.pattern.permute.xlu0 7
    %7866 = vperm.xlu0 %7865, %v734
    %v7867 = vpop.permute.xlu0 %7866
    %7869 = vset.pattern.permute.xlu0 7
    %7870 = vperm.xlu0 %7869, %v735
    %v7871 = vpop.permute.xlu0 %7870
    %7873 = vset.pattern.permute.xlu0 7
    %7874 = vperm.xlu0 %7873, %v736
    %v7875 = vpop.permute.xlu0 %7874
    %7877 = vset.pattern.permute.xlu0 7
    %7878 = vperm.xlu0 %7877, %v737
    %v7879 = vpop.permute.xlu0 %7878
    %7881 = vset.pattern.permute.xlu0 7
    %7882 = vperm.xlu0 %7881, %v738
    %v7883 = vpop.permute.xlu0 %7882
    %7885 = vset.pattern.permute.xlu0 7
    %7886 = vperm.xlu0 %7885, %v739
    %v7887 = vpop.permute.xlu0 %7886
    %7889 = vset.pattern.permute.xlu0 7
    %7890 = vperm.xlu0 %7889, %v740
    %v7891 = vpop.permute.xlu0 %7890
    %7893 = vset.pattern.permute.xlu0 7
    %7894 = vperm.xlu0 %7893, %v741
    %v7895 = vpop.permute.xlu0 %7894
    %7897 = vset.pattern.permute.xlu0 7
    %7898 = vperm.xlu0 %7897, %v742
    %v7899 = vpop.permute.xlu0 %7898
    %7901 = vset.pattern.permute.xlu0 7
    %7902 = vperm.xlu0 %7901, %v743
    %v7903 = vpop.permute.xlu0 %7902
    %7905 = vset.pattern.permute.xlu0 7
    %7906 = vperm.xlu0 %7905, %v744
    %v7907 = vpop.permute.xlu0 %7906
    %7909 = vset.pattern.permute.xlu0 7
    %7910 = vperm.xlu0 %7909, %v745
    %v7911 = vpop.permute.xlu0 %7910
    %7913 = vset.pattern.permute.xlu0 7
    %7914 = vperm.xlu0 %7913, %v746
    %v7915 = vpop.permute.xlu0 %7914
    %7917 = vset.pattern.permute.xlu0 7
    %7918 = vperm.xlu0 %7917, %v747
    %v7919 = vpop.permute.xlu0 %7918
    %7921 = vset.pattern.permute.xlu0 7
    %7922 = vperm.xlu0 %7921, %v748
    %v7923 = vpop.permute.xlu0 %7922
    %7925 = vset.pattern.permute.xlu0 7
    %7926 = vperm.xlu0 %7925, %v749
    %v7927 = vpop.permute.xlu0 %7926
    %7929 = vset.pattern.permute.xlu0 7
    %7930 = vperm.xlu0 %7929, %v750
    %v7931 = vpop.permute.xlu0 %7930
    %7933 = vset.pattern.permute.xlu0 7
    %7934 = vperm.xlu0 %7933, %v751
    %v7935 = vpop.permute.xlu0 %7934
    %7937 = vset.pattern.permute.xlu0 7
    %7938 = vperm.xlu0 %7937, %v752
    %v7939 = vpop.permute.xlu0 %7938
    %7941 = vset.pattern.permute.xlu0 7
    %7942 = vperm.xlu0 %7941, %v753
    %v7943 = vpop.permute.xlu0 %7942
    %7945 = vset.pattern.permute.xlu0 7
    %7946 = vperm.xlu0 %7945, %v754
    %v7947 = vpop.permute.xlu0 %7946
    %7949 = vset.pattern.permute.xlu0 7
    %7950 = vperm.xlu0 %7949, %v755
    %v7951 = vpop.permute.xlu0 %7950
    %7953 = vset.pattern.permute.xlu0 7
    %7954 = vperm.xlu0 %7953, %v756
    %v7955 = vpop.permute.xlu0 %7954
    %7957 = vset.pattern.permute.xlu0 7
    %7958 = vperm.xlu0 %7957, %v757
    %v7959 = vpop.permute.xlu0 %7958
    %v7961 = vmul.f32 %v7387, %v7707
    %v7962 = vmul.f32 %v7392, %v7711
    %v7963 = vmul.f32 %v7397, %v7715
    %v7964 = vmul.f32 %v7402, %v7719
    %v7965 = vmul.f32 %v7407, %v7723
    %v7966 = vmul.f32 %v7412, %v7727
    %v7967 = vmul.f32 %v7417, %v7731
    %v7968 = vmul.f32 %v7422, %v7735
    %v7969 = vmul.f32 %v7427, %v7739
    %v7970 = vmul.f32 %v7432, %v7743
    %v7971 = vmul.f32 %v7437, %v7747
    %v7972 = vmul.f32 %v7442, %v7751
    %v7973 = vmul.f32 %v7447, %v7755
    %v7974 = vmul.f32 %v7452, %v7759
    %v7975 = vmul.f32 %v7457, %v7763
    %v7976 = vmul.f32 %v7462, %v7767
    %v7977 = vmul.f32 %v7467, %v7771
    %v7978 = vmul.f32 %v7472, %v7775
    %v7979 = vmul.f32 %v7477, %v7779
    %v7980 = vmul.f32 %v7482, %v7783
    %v7981 = vmul.f32 %v7487, %v7787
    %v7982 = vmul.f32 %v7492, %v7791
    %v7983 = vmul.f32 %v7497, %v7795
    %v7984 = vmul.f32 %v7502, %v7799
    %v7985 = vmul.f32 %v7507, %v7803
    %v7986 = vmul.f32 %v7512, %v7807
    %v7987 = vmul.f32 %v7517, %v7811
    %v7988 = vmul.f32 %v7522, %v7815
    %v7989 = vmul.f32 %v7527, %v7819
    %v7990 = vmul.f32 %v7532, %v7823
    %v7991 = vmul.f32 %v7537, %v7827
    %v7992 = vmul.f32 %v7542, %v7831
    %v7993 = vmul.f32 %v7547, %v7835
    %v7994 = vmul.f32 %v7552, %v7839
    %v7995 = vmul.f32 %v7557, %v7843
    %v7996 = vmul.f32 %v7562, %v7847
    %v7997 = vmul.f32 %v7567, %v7851
    %v7998 = vmul.f32 %v7572, %v7855
    %v7999 = vmul.f32 %v7577, %v7859
    %v8000 = vmul.f32 %v7582, %v7863
    %v8001 = vmul.f32 %v7587, %v7867
    %v8002 = vmul.f32 %v7592, %v7871
    %v8003 = vmul.f32 %v7597, %v7875
    %v8004 = vmul.f32 %v7602, %v7879
    %v8005 = vmul.f32 %v7607, %v7883
    %v8006 = vmul.f32 %v7612, %v7887
    %v8007 = vmul.f32 %v7617, %v7891
    %v8008 = vmul.f32 %v7622, %v7895
    %v8009 = vmul.f32 %v7627, %v7899
    %v8010 = vmul.f32 %v7632, %v7903
    %v8011 = vmul.f32 %v7637, %v7907
    %v8012 = vmul.f32 %v7642, %v7911
    %v8013 = vmul.f32 %v7647, %v7915
    %v8014 = vmul.f32 %v7652, %v7919
    %v8015 = vmul.f32 %v7657, %v7923
    %v8016 = vmul.f32 %v7662, %v7927
    %v8017 = vmul.f32 %v7667, %v7931
    %v8018 = vmul.f32 %v7672, %v7935
    %v8019 = vmul.f32 %v7677, %v7939
    %v8020 = vmul.f32 %v7682, %v7943
    %v8021 = vmul.f32 %v7687, %v7947
    %v8022 = vmul.f32 %v7692, %v7951
    %v8023 = vmul.f32 %v7697, %v7955
    %v8024 = vmul.f32 %v7702, %v7959
    %v8025 = vadd.f32 %v6996, %v7961
    %v8026 = vadd.f32 %v6997, %v7962
    %v8027 = vadd.f32 %v6998, %v7963
    %v8028 = vadd.f32 %v6999, %v7964
    %v8029 = vadd.f32 %v7000, %v7965
    %v8030 = vadd.f32 %v7001, %v7966
    %v8031 = vadd.f32 %v7002, %v7967
    %v8032 = vadd.f32 %v7003, %v7968
    %v8033 = vadd.f32 %v7004, %v7969
    %v8034 = vadd.f32 %v7005, %v7970
    %v8035 = vadd.f32 %v7006, %v7971
    %v8036 = vadd.f32 %v7007, %v7972
    %v8037 = vadd.f32 %v7008, %v7973
    %v8038 = vadd.f32 %v7009, %v7974
    %v8039 = vadd.f32 %v7010, %v7975
    %v8040 = vadd.f32 %v7011, %v7976
    %v8041 = vadd.f32 %v7012, %v7977
    %v8042 = vadd.f32 %v7013, %v7978
    %v8043 = vadd.f32 %v7014, %v7979
    %v8044 = vadd.f32 %v7015, %v7980
    %v8045 = vadd.f32 %v7016, %v7981
    %v8046 = vadd.f32 %v7017, %v7982
    %v8047 = vadd.f32 %v7018, %v7983
    %v8048 = vadd.f32 %v7019, %v7984
    %v8049 = vadd.f32 %v7020, %v7985
    %v8050 = vadd.f32 %v7021, %v7986
    %v8051 = vadd.f32 %v7022, %v7987
    %v8052 = vadd.f32 %v7023, %v7988
    %v8053 = vadd.f32 %v7024, %v7989
    %v8054 = vadd.f32 %v7025, %v7990
    %v8055 = vadd.f32 %v7026, %v7991
    %v8056 = vadd.f32 %v7027, %v7992
    %v8057 = vadd.f32 %v7028, %v7993
    %v8058 = vadd.f32 %v7029, %v7994
    %v8059 = vadd.f32 %v7030, %v7995
    %v8060 = vadd.f32 %v7031, %v7996
    %v8061 = vadd.f32 %v7032, %v7997
    %v8062 = vadd.f32 %v7033, %v7998
    %v8063 = vadd.f32 %v7034, %v7999
    %v8064 = vadd.f32 %v7035, %v8000
    %v8065 = vadd.f32 %v7036, %v8001
    %v8066 = vadd.f32 %v7037, %v8002
    %v8067 = vadd.f32 %v7038, %v8003
    %v8068 = vadd.f32 %v7039, %v8004
    %v8069 = vadd.f32 %v7040, %v8005
    %v8070 = vadd.f32 %v7041, %v8006
    %v8071 = vadd.f32 %v7042, %v8007
    %v8072 = vadd.f32 %v7043, %v8008
    %v8073 = vadd.f32 %v7044, %v8009
    %v8074 = vadd.f32 %v7045, %v8010
    %v8075 = vadd.f32 %v7046, %v8011
    %v8076 = vadd.f32 %v7047, %v8012
    %v8077 = vadd.f32 %v7048, %v8013
    %v8078 = vadd.f32 %v7049, %v8014
    %v8079 = vadd.f32 %v7050, %v8015
    %v8080 = vadd.f32 %v7051, %v8016
    %v8081 = vadd.f32 %v7052, %v8017
    %v8082 = vadd.f32 %v7053, %v8018
    %v8083 = vadd.f32 %v7054, %v8019
    %v8084 = vadd.f32 %v7055, %v8020
    %v8085 = vadd.f32 %v7056, %v8021
    %v8086 = vadd.f32 %v7057, %v8022
    %v8087 = vadd.f32 %v7058, %v8023
    %v8088 = vadd.f32 %v7059, %v8024
    %v8089 = vld [vmem:[%s0 + $0x22] sm:$0xff]
    %v8090 = vld [vmem:[%s0 + $0x2a] sm:$0xff]
    %v8091 = vld [vmem:[%s0 + $0x32] sm:$0xff]
    %v8092 = vld [vmem:[%s0 + $0x3a] sm:$0xff]
    %v8093 = vld [vmem:[%s0 + $0x42] sm:$0xff]
    %v8094 = vld [vmem:[%s0 + $0x4a] sm:$0xff]
    %v8095 = vld [vmem:[%s0 + $0x52] sm:$0xff]
    %v8096 = vld [vmem:[%s0 + $0x5a] sm:$0xff]
    %v8097 = vld [vmem:[%s0 + $0x62] sm:$0xff]
    %v8098 = vld [vmem:[%s0 + $0x6a] sm:$0xff]
    %v8099 = vld [vmem:[%s0 + $0x72] sm:$0xff]
    %v8100 = vld [vmem:[%s0 + $0x7a] sm:$0xff]
    %v8101 = vld [vmem:[%s0 + $0x82] sm:$0xff]
    %v8102 = vld [vmem:[%s0 + $0x8a] sm:$0xff]
    %v8103 = vld [vmem:[%s0 + $0x92] sm:$0xff]
    %v8104 = vld [vmem:[%s0 + $0x9a] sm:$0xff]
    %v8105 = vld [vmem:[%s0 + $0xa2] sm:$0xff]
    %v8106 = vld [vmem:[%s0 + $0xaa] sm:$0xff]
    %v8107 = vld [vmem:[%s0 + $0xb2] sm:$0xff]
    %v8108 = vld [vmem:[%s0 + $0xba] sm:$0xff]
    %v8109 = vld [vmem:[%s0 + $0xc2] sm:$0xff]
    %v8110 = vld [vmem:[%s0 + $0xca] sm:$0xff]
    %v8111 = vld [vmem:[%s0 + $0xd2] sm:$0xff]
    %v8112 = vld [vmem:[%s0 + $0xda] sm:$0xff]
    %v8113 = vld [vmem:[%s0 + $0xe2] sm:$0xff]
    %v8114 = vld [vmem:[%s0 + $0xea] sm:$0xff]
    %v8115 = vld [vmem:[%s0 + $0xf2] sm:$0xff]
    %v8116 = vld [vmem:[%s0 + $0xfa] sm:$0xff]
    %v8117 = vld [vmem:[%s0 + $0x102] sm:$0xff]
    %v8118 = vld [vmem:[%s0 + $0x10a] sm:$0xff]
    %v8119 = vld [vmem:[%s0 + $0x112] sm:$0xff]
    %v8120 = vld [vmem:[%s0 + $0x11a] sm:$0xff]
    %v8121 = vld [vmem:[%s0 + $0x122] sm:$0xff]
    %v8122 = vld [vmem:[%s0 + $0x12a] sm:$0xff]
    %v8123 = vld [vmem:[%s0 + $0x132] sm:$0xff]
    %v8124 = vld [vmem:[%s0 + $0x13a] sm:$0xff]
    %v8125 = vld [vmem:[%s0 + $0x142] sm:$0xff]
    %v8126 = vld [vmem:[%s0 + $0x14a] sm:$0xff]
    %v8127 = vld [vmem:[%s0 + $0x152] sm:$0xff]
    %v8128 = vld [vmem:[%s0 + $0x15a] sm:$0xff]
    %v8129 = vld [vmem:[%s0 + $0x162] sm:$0xff]
    %v8130 = vld [vmem:[%s0 + $0x16a] sm:$0xff]
    %v8131 = vld [vmem:[%s0 + $0x172] sm:$0xff]
    %v8132 = vld [vmem:[%s0 + $0x17a] sm:$0xff]
    %v8133 = vld [vmem:[%s0 + $0x182] sm:$0xff]
    %v8134 = vld [vmem:[%s0 + $0x18a] sm:$0xff]
    %v8135 = vld [vmem:[%s0 + $0x192] sm:$0xff]
    %v8136 = vld [vmem:[%s0 + $0x19a] sm:$0xff]
    %v8137 = vld [vmem:[%s0 + $0x1a2] sm:$0xff]
    %v8138 = vld [vmem:[%s0 + $0x1aa] sm:$0xff]
    %v8139 = vld [vmem:[%s0 + $0x1b2] sm:$0xff]
    %v8140 = vld [vmem:[%s0 + $0x1ba] sm:$0xff]
    %v8141 = vld [vmem:[%s0 + $0x1c2] sm:$0xff]
    %v8142 = vld [vmem:[%s0 + $0x1ca] sm:$0xff]
    %v8143 = vld [vmem:[%s0 + $0x1d2] sm:$0xff]
    %v8144 = vld [vmem:[%s0 + $0x1da] sm:$0xff]
    %v8145 = vld [vmem:[%s0 + $0x1e2] sm:$0xff]
    %v8146 = vld [vmem:[%s0 + $0x1ea] sm:$0xff]
    %v8147 = vld [vmem:[%s0 + $0x1f2] sm:$0xff]
    %v8148 = vld [vmem:[%s0 + $0x1fa] sm:$0xff]
    %v8149 = vld [vmem:[%s0 + $0x202] sm:$0xff]
    %v8150 = vld [vmem:[%s0 + $0x20a] sm:$0xff]
    %v8151 = vld [vmem:[%s0 + $0x212] sm:$0xff]
    %v8152 = vld [vmem:[%s0 + $0x21a] sm:$0xff]
    %v8153 = vld [vmem:[%s4 + $0x100] sm:$0xff]
    %v8154 = vld [vmem:[%s4 + $0x108] sm:$0xff]
    %v8155 = vld [vmem:[%s4 + $0x110] sm:$0xff]
    %v8156 = vld [vmem:[%s4 + $0x118] sm:$0xff]
    %v8158 = vsel %vm116, %v8089, 0
    %v8161 = vsel %vm116, %v8090, 0
    %v8164 = vsel %vm116, %v8091, 0
    %v8167 = vsel %vm116, %v8092, 0
    %v8170 = vsel %vm116, %v8093, 0
    %v8173 = vsel %vm116, %v8094, 0
    %v8176 = vsel %vm116, %v8095, 0
    %v8179 = vsel %vm116, %v8096, 0
    %v8182 = vsel %vm116, %v8097, 0
    %v8185 = vsel %vm116, %v8098, 0
    %v8188 = vsel %vm116, %v8099, 0
    %v8191 = vsel %vm116, %v8100, 0
    %v8194 = vsel %vm116, %v8101, 0
    %v8197 = vsel %vm116, %v8102, 0
    %v8200 = vsel %vm116, %v8103, 0
    %v8203 = vsel %vm116, %v8104, 0
    %v8206 = vsel %vm116, %v8105, 0
    %v8209 = vsel %vm116, %v8106, 0
    %v8212 = vsel %vm116, %v8107, 0
    %v8215 = vsel %vm116, %v8108, 0
    %v8218 = vsel %vm116, %v8109, 0
    %v8221 = vsel %vm116, %v8110, 0
    %v8224 = vsel %vm116, %v8111, 0
    %v8227 = vsel %vm116, %v8112, 0
    %v8230 = vsel %vm116, %v8113, 0
    %v8233 = vsel %vm116, %v8114, 0
    %v8236 = vsel %vm116, %v8115, 0
    %v8239 = vsel %vm116, %v8116, 0
    %v8242 = vsel %vm116, %v8117, 0
    %v8245 = vsel %vm116, %v8118, 0
    %v8248 = vsel %vm116, %v8119, 0
    %v8251 = vsel %vm116, %v8120, 0
    %v8254 = vsel %vm116, %v8121, 0
    %v8257 = vsel %vm116, %v8122, 0
    %v8260 = vsel %vm116, %v8123, 0
    %v8263 = vsel %vm116, %v8124, 0
    %v8266 = vsel %vm116, %v8125, 0
    %v8269 = vsel %vm116, %v8126, 0
    %v8272 = vsel %vm116, %v8127, 0
    %v8275 = vsel %vm116, %v8128, 0
    %v8278 = vsel %vm116, %v8129, 0
    %v8281 = vsel %vm116, %v8130, 0
    %v8284 = vsel %vm116, %v8131, 0
    %v8287 = vsel %vm116, %v8132, 0
    %v8290 = vsel %vm116, %v8133, 0
    %v8293 = vsel %vm116, %v8134, 0
    %v8296 = vsel %vm116, %v8135, 0
    %v8299 = vsel %vm116, %v8136, 0
    %v8302 = vsel %vm116, %v8137, 0
    %v8305 = vsel %vm116, %v8138, 0
    %v8308 = vsel %vm116, %v8139, 0
    %v8311 = vsel %vm116, %v8140, 0
    %v8314 = vsel %vm116, %v8141, 0
    %v8317 = vsel %vm116, %v8142, 0
    %v8320 = vsel %vm116, %v8143, 0
    %v8323 = vsel %vm116, %v8144, 0
    %v8326 = vsel %vm116, %v8145, 0
    %v8329 = vsel %vm116, %v8146, 0
    %v8332 = vsel %vm116, %v8147, 0
    %v8335 = vsel %vm116, %v8148, 0
    %v8338 = vsel %vm116, %v8149, 0
    %v8341 = vsel %vm116, %v8150, 0
    %v8344 = vsel %vm116, %v8151, 0
    %v8347 = vsel %vm116, %v8152, 0
    %8349 = vmatprep.subr.mxu0 0.0
    %8350 = vmatpush1.msra.mxu0 0.0
    %8351 = vmatprep.subr.mxu0 0.0
    %8352 = vmatpush1.msra.mxu0 0.0
    %8353 = vmatprep.subr.mxu0 0.0
    %8354 = vmatpush1.msra.mxu0 0.0
    %8355 = vmatprep.subr.mxu0 0.0
    %8356 = vmatpush1.msra.mxu0 0.0
    %8357 = vmatprep.subr.mxu0 0.0
    %8358 = vmatpush1.msra.mxu0 0.0
    %8359 = vmatprep.subr.mxu0 0.0
    %8360 = vmatpush1.msra.mxu0 0.0
    %8361 = vmatprep.subr.mxu0 0.0
    %8362 = vmatpush1.msra.mxu0 0.0
    %8363 = vmatprep.subr.mxu0 0.0
    %8364 = vmatpush1.msra.mxu0 0.0
    %8365 = vmatprep.subr.mxu0 0.0
    %8366 = vmatpush1.msra.mxu0 0.0
    %8367 = vmatprep.subr.mxu0 0.0
    %8368 = vmatpush1.msra.mxu0 0.0
    %8369 = vmatprep.subr.mxu0 0.0
    %8370 = vmatpush1.msra.mxu0 0.0
    %8371 = vmatprep.subr.mxu0 0.0
    %8372 = vmatpush1.msra.mxu0 0.0
    %8373 = vmatprep.subr.mxu0 0.0
    %8374 = vmatpush1.msra.mxu0 %v8156
    %8375 = vmatprep.subr.mxu0 0.0
    %8376 = vmatpush1.msra.mxu0 %v8155
    %8377 = vmatprep.subr.mxu0 0.0
    %8378 = vmatpush1.msra.mxu0 %v8154
    %8379 = vmatprep.subr.mxu0 0.0
    %8380 = vmatpush1.msra.mxu0 %v8153
    %8381 = vmatprep.subr.mxu0 0.0
    %8382 = vmatpush2.msra.mxu0 0.0
    %8383 = vmatprep.subr.mxu0 0.0
    %8384 = vmatpush2.msra.mxu0 0.0
    %8385 = vmatprep.subr.mxu0 0.0
    %8386 = vmatpush2.msra.mxu0 0.0
    %8387 = vmatprep.subr.mxu0 0.0
    %8388 = vmatpush2.msra.mxu0 0.0
    %8389 = vmatprep.subr.mxu0 0.0
    %8390 = vmatpush2.msra.mxu0 0.0
    %8391 = vmatprep.subr.mxu0 0.0
    %8392 = vmatpush2.msra.mxu0 0.0
    %8393 = vmatprep.subr.mxu0 0.0
    %8394 = vmatpush2.msra.mxu0 0.0
    %8395 = vmatprep.subr.mxu0 0.0
    %8396 = vmatpush2.msra.mxu0 0.0
    %8397 = vmatprep.subr.mxu0 0.0
    %8398 = vmatpush2.msra.mxu0 0.0
    %8399 = vmatprep.subr.mxu0 0.0
    %8400 = vmatpush2.msra.mxu0 0.0
    %8401 = vmatprep.subr.mxu0 0.0
    %8402 = vmatpush2.msra.mxu0 0.0
    %8403 = vmatprep.subr.mxu0 0.0
    %8404 = vmatpush2.msra.mxu0 0.0
    %8405 = vmatprep.subr.mxu0 0.0
    %8406 = vmatpush2.msra.mxu0 0.0
    %8407 = vmatprep.subr.mxu0 0.0
    %8408 = vmatpush2.msra.mxu0 0.0
    %8409 = vmatprep.subr.mxu0 0.0
    %8410 = vmatpush2.msra.mxu0 0.0
    %8411 = vmatprep.subr.mxu0 0.0
    %8412 = vmatpush2.msra.mxu0 0.0
    %8413 = vmatprep.mubr.f32.mxu0 0.0
    %8414 = vmatmul.mubr.f32.gmra.mxu0 %v8158
    %v8415 = vpop.f32.mrf.mxu0
    %v8416 = vadd.f32 0.0, %v8415
    %v8417 = vpop.f32.mrf.mxu0
    %8418 = vmatprep.mubr.f32.mxu0 0.0
    %8419 = vmatmul.mubr.f32.gmra.mxu0 %v8161
    %v8420 = vpop.f32.mrf.mxu0
    %v8421 = vadd.f32 0.0, %v8420
    %v8422 = vpop.f32.mrf.mxu0
    %8423 = vmatprep.mubr.f32.mxu0 0.0
    %8424 = vmatmul.mubr.f32.gmra.mxu0 %v8164
    %v8425 = vpop.f32.mrf.mxu0
    %v8426 = vadd.f32 0.0, %v8425
    %v8427 = vpop.f32.mrf.mxu0
    %8428 = vmatprep.mubr.f32.mxu0 0.0
    %8429 = vmatmul.mubr.f32.gmra.mxu0 %v8167
    %v8430 = vpop.f32.mrf.mxu0
    %v8431 = vadd.f32 0.0, %v8430
    %v8432 = vpop.f32.mrf.mxu0
    %8433 = vmatprep.mubr.f32.mxu0 0.0
    %8434 = vmatmul.mubr.f32.gmra.mxu0 %v8170
    %v8435 = vpop.f32.mrf.mxu0
    %v8436 = vadd.f32 0.0, %v8435
    %v8437 = vpop.f32.mrf.mxu0
    %8438 = vmatprep.mubr.f32.mxu0 0.0
    %8439 = vmatmul.mubr.f32.gmra.mxu0 %v8173
    %v8440 = vpop.f32.mrf.mxu0
    %v8441 = vadd.f32 0.0, %v8440
    %v8442 = vpop.f32.mrf.mxu0
    %8443 = vmatprep.mubr.f32.mxu0 0.0
    %8444 = vmatmul.mubr.f32.gmra.mxu0 %v8176
    %v8445 = vpop.f32.mrf.mxu0
    %v8446 = vadd.f32 0.0, %v8445
    %v8447 = vpop.f32.mrf.mxu0
    %8448 = vmatprep.mubr.f32.mxu0 0.0
    %8449 = vmatmul.mubr.f32.gmra.mxu0 %v8179
    %v8450 = vpop.f32.mrf.mxu0
    %v8451 = vadd.f32 0.0, %v8450
    %v8452 = vpop.f32.mrf.mxu0
    %8453 = vmatprep.mubr.f32.mxu0 0.0
    %8454 = vmatmul.mubr.f32.gmra.mxu0 %v8182
    %v8455 = vpop.f32.mrf.mxu0
    %v8456 = vadd.f32 0.0, %v8455
    %v8457 = vpop.f32.mrf.mxu0
    %8458 = vmatprep.mubr.f32.mxu0 0.0
    %8459 = vmatmul.mubr.f32.gmra.mxu0 %v8185
    %v8460 = vpop.f32.mrf.mxu0
    %v8461 = vadd.f32 0.0, %v8460
    %v8462 = vpop.f32.mrf.mxu0
    %8463 = vmatprep.mubr.f32.mxu0 0.0
    %8464 = vmatmul.mubr.f32.gmra.mxu0 %v8188
    %v8465 = vpop.f32.mrf.mxu0
    %v8466 = vadd.f32 0.0, %v8465
    %v8467 = vpop.f32.mrf.mxu0
    %8468 = vmatprep.mubr.f32.mxu0 0.0
    %8469 = vmatmul.mubr.f32.gmra.mxu0 %v8191
    %v8470 = vpop.f32.mrf.mxu0
    %v8471 = vadd.f32 0.0, %v8470
    %v8472 = vpop.f32.mrf.mxu0
    %8473 = vmatprep.mubr.f32.mxu0 0.0
    %8474 = vmatmul.mubr.f32.gmra.mxu0 %v8194
    %v8475 = vpop.f32.mrf.mxu0
    %v8476 = vadd.f32 0.0, %v8475
    %v8477 = vpop.f32.mrf.mxu0
    %8478 = vmatprep.mubr.f32.mxu0 0.0
    %8479 = vmatmul.mubr.f32.gmra.mxu0 %v8197
    %v8480 = vpop.f32.mrf.mxu0
    %v8481 = vadd.f32 0.0, %v8480
    %v8482 = vpop.f32.mrf.mxu0
    %8483 = vmatprep.mubr.f32.mxu0 0.0
    %8484 = vmatmul.mubr.f32.gmra.mxu0 %v8200
    %v8485 = vpop.f32.mrf.mxu0
    %v8486 = vadd.f32 0.0, %v8485
    %v8487 = vpop.f32.mrf.mxu0
    %8488 = vmatprep.mubr.f32.mxu0 0.0
    %8489 = vmatmul.mubr.f32.gmra.mxu0 %v8203
    %v8490 = vpop.f32.mrf.mxu0
    %v8491 = vadd.f32 0.0, %v8490
    %v8492 = vpop.f32.mrf.mxu0
    %8493 = vmatprep.mubr.f32.mxu0 0.0
    %8494 = vmatmul.mubr.f32.gmra.mxu0 %v8206
    %v8495 = vpop.f32.mrf.mxu0
    %v8496 = vadd.f32 0.0, %v8495
    %v8497 = vpop.f32.mrf.mxu0
    %8498 = vmatprep.mubr.f32.mxu0 0.0
    %8499 = vmatmul.mubr.f32.gmra.mxu0 %v8209
    %v8500 = vpop.f32.mrf.mxu0
    %v8501 = vadd.f32 0.0, %v8500
    %v8502 = vpop.f32.mrf.mxu0
    %8503 = vmatprep.mubr.f32.mxu0 0.0
    %8504 = vmatmul.mubr.f32.gmra.mxu0 %v8212
    %v8505 = vpop.f32.mrf.mxu0
    %v8506 = vadd.f32 0.0, %v8505
    %v8507 = vpop.f32.mrf.mxu0
    %8508 = vmatprep.mubr.f32.mxu0 0.0
    %8509 = vmatmul.mubr.f32.gmra.mxu0 %v8215
    %v8510 = vpop.f32.mrf.mxu0
    %v8511 = vadd.f32 0.0, %v8510
    %v8512 = vpop.f32.mrf.mxu0
    %8513 = vmatprep.mubr.f32.mxu0 0.0
    %8514 = vmatmul.mubr.f32.gmra.mxu0 %v8218
    %v8515 = vpop.f32.mrf.mxu0
    %v8516 = vadd.f32 0.0, %v8515
    %v8517 = vpop.f32.mrf.mxu0
    %8518 = vmatprep.mubr.f32.mxu0 0.0
    %8519 = vmatmul.mubr.f32.gmra.mxu0 %v8221
    %v8520 = vpop.f32.mrf.mxu0
    %v8521 = vadd.f32 0.0, %v8520
    %v8522 = vpop.f32.mrf.mxu0
    %8523 = vmatprep.mubr.f32.mxu0 0.0
    %8524 = vmatmul.mubr.f32.gmra.mxu0 %v8224
    %v8525 = vpop.f32.mrf.mxu0
    %v8526 = vadd.f32 0.0, %v8525
    %v8527 = vpop.f32.mrf.mxu0
    %8528 = vmatprep.mubr.f32.mxu0 0.0
    %8529 = vmatmul.mubr.f32.gmra.mxu0 %v8227
    %v8530 = vpop.f32.mrf.mxu0
    %v8531 = vadd.f32 0.0, %v8530
    %v8532 = vpop.f32.mrf.mxu0
    %8533 = vmatprep.mubr.f32.mxu0 0.0
    %8534 = vmatmul.mubr.f32.gmra.mxu0 %v8230
    %v8535 = vpop.f32.mrf.mxu0
    %v8536 = vadd.f32 0.0, %v8535
    %v8537 = vpop.f32.mrf.mxu0
    %8538 = vmatprep.mubr.f32.mxu0 0.0
    %8539 = vmatmul.mubr.f32.gmra.mxu0 %v8233
    %v8540 = vpop.f32.mrf.mxu0
    %v8541 = vadd.f32 0.0, %v8540
    %v8542 = vpop.f32.mrf.mxu0
    %8543 = vmatprep.mubr.f32.mxu0 0.0
    %8544 = vmatmul.mubr.f32.gmra.mxu0 %v8236
    %v8545 = vpop.f32.mrf.mxu0
    %v8546 = vadd.f32 0.0, %v8545
    %v8547 = vpop.f32.mrf.mxu0
    %8548 = vmatprep.mubr.f32.mxu0 0.0
    %8549 = vmatmul.mubr.f32.gmra.mxu0 %v8239
    %v8550 = vpop.f32.mrf.mxu0
    %v8551 = vadd.f32 0.0, %v8550
    %v8552 = vpop.f32.mrf.mxu0
    %8553 = vmatprep.mubr.f32.mxu0 0.0
    %8554 = vmatmul.mubr.f32.gmra.mxu0 %v8242
    %v8555 = vpop.f32.mrf.mxu0
    %v8556 = vadd.f32 0.0, %v8555
    %v8557 = vpop.f32.mrf.mxu0
    %8558 = vmatprep.mubr.f32.mxu0 0.0
    %8559 = vmatmul.mubr.f32.gmra.mxu0 %v8245
    %v8560 = vpop.f32.mrf.mxu0
    %v8561 = vadd.f32 0.0, %v8560
    %v8562 = vpop.f32.mrf.mxu0
    %8563 = vmatprep.mubr.f32.mxu0 0.0
    %8564 = vmatmul.mubr.f32.gmra.mxu0 %v8248
    %v8565 = vpop.f32.mrf.mxu0
    %v8566 = vadd.f32 0.0, %v8565
    %v8567 = vpop.f32.mrf.mxu0
    %8568 = vmatprep.mubr.f32.mxu0 0.0
    %8569 = vmatmul.mubr.f32.gmra.mxu0 %v8251
    %v8570 = vpop.f32.mrf.mxu0
    %v8571 = vadd.f32 0.0, %v8570
    %v8572 = vpop.f32.mrf.mxu0
    %8573 = vmatprep.mubr.f32.mxu0 0.0
    %8574 = vmatmul.mubr.f32.gmra.mxu0 %v8254
    %v8575 = vpop.f32.mrf.mxu0
    %v8576 = vadd.f32 0.0, %v8575
    %v8577 = vpop.f32.mrf.mxu0
    %8578 = vmatprep.mubr.f32.mxu0 0.0
    %8579 = vmatmul.mubr.f32.gmra.mxu0 %v8257
    %v8580 = vpop.f32.mrf.mxu0
    %v8581 = vadd.f32 0.0, %v8580
    %v8582 = vpop.f32.mrf.mxu0
    %8583 = vmatprep.mubr.f32.mxu0 0.0
    %8584 = vmatmul.mubr.f32.gmra.mxu0 %v8260
    %v8585 = vpop.f32.mrf.mxu0
    %v8586 = vadd.f32 0.0, %v8585
    %v8587 = vpop.f32.mrf.mxu0
    %8588 = vmatprep.mubr.f32.mxu0 0.0
    %8589 = vmatmul.mubr.f32.gmra.mxu0 %v8263
    %v8590 = vpop.f32.mrf.mxu0
    %v8591 = vadd.f32 0.0, %v8590
    %v8592 = vpop.f32.mrf.mxu0
    %8593 = vmatprep.mubr.f32.mxu0 0.0
    %8594 = vmatmul.mubr.f32.gmra.mxu0 %v8266
    %v8595 = vpop.f32.mrf.mxu0
    %v8596 = vadd.f32 0.0, %v8595
    %v8597 = vpop.f32.mrf.mxu0
    %8598 = vmatprep.mubr.f32.mxu0 0.0
    %8599 = vmatmul.mubr.f32.gmra.mxu0 %v8269
    %v8600 = vpop.f32.mrf.mxu0
    %v8601 = vadd.f32 0.0, %v8600
    %v8602 = vpop.f32.mrf.mxu0
    %8603 = vmatprep.mubr.f32.mxu0 0.0
    %8604 = vmatmul.mubr.f32.gmra.mxu0 %v8272
    %v8605 = vpop.f32.mrf.mxu0
    %v8606 = vadd.f32 0.0, %v8605
    %v8607 = vpop.f32.mrf.mxu0
    %8608 = vmatprep.mubr.f32.mxu0 0.0
    %8609 = vmatmul.mubr.f32.gmra.mxu0 %v8275
    %v8610 = vpop.f32.mrf.mxu0
    %v8611 = vadd.f32 0.0, %v8610
    %v8612 = vpop.f32.mrf.mxu0
    %8613 = vmatprep.mubr.f32.mxu0 0.0
    %8614 = vmatmul.mubr.f32.gmra.mxu0 %v8278
    %v8615 = vpop.f32.mrf.mxu0
    %v8616 = vadd.f32 0.0, %v8615
    %v8617 = vpop.f32.mrf.mxu0
    %8618 = vmatprep.mubr.f32.mxu0 0.0
    %8619 = vmatmul.mubr.f32.gmra.mxu0 %v8281
    %v8620 = vpop.f32.mrf.mxu0
    %v8621 = vadd.f32 0.0, %v8620
    %v8622 = vpop.f32.mrf.mxu0
    %8623 = vmatprep.mubr.f32.mxu0 0.0
    %8624 = vmatmul.mubr.f32.gmra.mxu0 %v8284
    %v8625 = vpop.f32.mrf.mxu0
    %v8626 = vadd.f32 0.0, %v8625
    %v8627 = vpop.f32.mrf.mxu0
    %8628 = vmatprep.mubr.f32.mxu0 0.0
    %8629 = vmatmul.mubr.f32.gmra.mxu0 %v8287
    %v8630 = vpop.f32.mrf.mxu0
    %v8631 = vadd.f32 0.0, %v8630
    %v8632 = vpop.f32.mrf.mxu0
    %8633 = vmatprep.mubr.f32.mxu0 0.0
    %8634 = vmatmul.mubr.f32.gmra.mxu0 %v8290
    %v8635 = vpop.f32.mrf.mxu0
    %v8636 = vadd.f32 0.0, %v8635
    %v8637 = vpop.f32.mrf.mxu0
    %8638 = vmatprep.mubr.f32.mxu0 0.0
    %8639 = vmatmul.mubr.f32.gmra.mxu0 %v8293
    %v8640 = vpop.f32.mrf.mxu0
    %v8641 = vadd.f32 0.0, %v8640
    %v8642 = vpop.f32.mrf.mxu0
    %8643 = vmatprep.mubr.f32.mxu0 0.0
    %8644 = vmatmul.mubr.f32.gmra.mxu0 %v8296
    %v8645 = vpop.f32.mrf.mxu0
    %v8646 = vadd.f32 0.0, %v8645
    %v8647 = vpop.f32.mrf.mxu0
    %8648 = vmatprep.mubr.f32.mxu0 0.0
    %8649 = vmatmul.mubr.f32.gmra.mxu0 %v8299
    %v8650 = vpop.f32.mrf.mxu0
    %v8651 = vadd.f32 0.0, %v8650
    %v8652 = vpop.f32.mrf.mxu0
    %8653 = vmatprep.mubr.f32.mxu0 0.0
    %8654 = vmatmul.mubr.f32.gmra.mxu0 %v8302
    %v8655 = vpop.f32.mrf.mxu0
    %v8656 = vadd.f32 0.0, %v8655
    %v8657 = vpop.f32.mrf.mxu0
    %8658 = vmatprep.mubr.f32.mxu0 0.0
    %8659 = vmatmul.mubr.f32.gmra.mxu0 %v8305
    %v8660 = vpop.f32.mrf.mxu0
    %v8661 = vadd.f32 0.0, %v8660
    %v8662 = vpop.f32.mrf.mxu0
    %8663 = vmatprep.mubr.f32.mxu0 0.0
    %8664 = vmatmul.mubr.f32.gmra.mxu0 %v8308
    %v8665 = vpop.f32.mrf.mxu0
    %v8666 = vadd.f32 0.0, %v8665
    %v8667 = vpop.f32.mrf.mxu0
    %8668 = vmatprep.mubr.f32.mxu0 0.0
    %8669 = vmatmul.mubr.f32.gmra.mxu0 %v8311
    %v8670 = vpop.f32.mrf.mxu0
    %v8671 = vadd.f32 0.0, %v8670
    %v8672 = vpop.f32.mrf.mxu0
    %8673 = vmatprep.mubr.f32.mxu0 0.0
    %8674 = vmatmul.mubr.f32.gmra.mxu0 %v8314
    %v8675 = vpop.f32.mrf.mxu0
    %v8676 = vadd.f32 0.0, %v8675
    %v8677 = vpop.f32.mrf.mxu0
    %8678 = vmatprep.mubr.f32.mxu0 0.0
    %8679 = vmatmul.mubr.f32.gmra.mxu0 %v8317
    %v8680 = vpop.f32.mrf.mxu0
    %v8681 = vadd.f32 0.0, %v8680
    %v8682 = vpop.f32.mrf.mxu0
    %8683 = vmatprep.mubr.f32.mxu0 0.0
    %8684 = vmatmul.mubr.f32.gmra.mxu0 %v8320
    %v8685 = vpop.f32.mrf.mxu0
    %v8686 = vadd.f32 0.0, %v8685
    %v8687 = vpop.f32.mrf.mxu0
    %8688 = vmatprep.mubr.f32.mxu0 0.0
    %8689 = vmatmul.mubr.f32.gmra.mxu0 %v8323
    %v8690 = vpop.f32.mrf.mxu0
    %v8691 = vadd.f32 0.0, %v8690
    %v8692 = vpop.f32.mrf.mxu0
    %8693 = vmatprep.mubr.f32.mxu0 0.0
    %8694 = vmatmul.mubr.f32.gmra.mxu0 %v8326
    %v8695 = vpop.f32.mrf.mxu0
    %v8696 = vadd.f32 0.0, %v8695
    %v8697 = vpop.f32.mrf.mxu0
    %8698 = vmatprep.mubr.f32.mxu0 0.0
    %8699 = vmatmul.mubr.f32.gmra.mxu0 %v8329
    %v8700 = vpop.f32.mrf.mxu0
    %v8701 = vadd.f32 0.0, %v8700
    %v8702 = vpop.f32.mrf.mxu0
    %8703 = vmatprep.mubr.f32.mxu0 0.0
    %8704 = vmatmul.mubr.f32.gmra.mxu0 %v8332
    %v8705 = vpop.f32.mrf.mxu0
    %v8706 = vadd.f32 0.0, %v8705
    %v8707 = vpop.f32.mrf.mxu0
    %8708 = vmatprep.mubr.f32.mxu0 0.0
    %8709 = vmatmul.mubr.f32.gmra.mxu0 %v8335
    %v8710 = vpop.f32.mrf.mxu0
    %v8711 = vadd.f32 0.0, %v8710
    %v8712 = vpop.f32.mrf.mxu0
    %8713 = vmatprep.mubr.f32.mxu0 0.0
    %8714 = vmatmul.mubr.f32.gmra.mxu0 %v8338
    %v8715 = vpop.f32.mrf.mxu0
    %v8716 = vadd.f32 0.0, %v8715
    %v8717 = vpop.f32.mrf.mxu0
    %8718 = vmatprep.mubr.f32.mxu0 0.0
    %8719 = vmatmul.mubr.f32.gmra.mxu0 %v8341
    %v8720 = vpop.f32.mrf.mxu0
    %v8721 = vadd.f32 0.0, %v8720
    %v8722 = vpop.f32.mrf.mxu0
    %8723 = vmatprep.mubr.f32.mxu0 0.0
    %8724 = vmatmul.mubr.f32.gmra.mxu0 %v8344
    %v8725 = vpop.f32.mrf.mxu0
    %v8726 = vadd.f32 0.0, %v8725
    %v8727 = vpop.f32.mrf.mxu0
    %8728 = vmatprep.mubr.f32.mxu0 0.0
    %8729 = vmatmul.mubr.f32.gmra.mxu0 %v8347
    %v8730 = vpop.f32.mrf.mxu0
    %v8731 = vadd.f32 0.0, %v8730
    %v8732 = vpop.f32.mrf.mxu0
    %8733 = vdwg.mxu0
    %8734 = vset.pattern.permute.xlu0 8
    %8735 = vperm.xlu0 %8734, %v694
    %v8736 = vpop.permute.xlu0 %8735
    %8738 = vset.pattern.permute.xlu0 8
    %8739 = vperm.xlu0 %8738, %v695
    %v8740 = vpop.permute.xlu0 %8739
    %8742 = vset.pattern.permute.xlu0 8
    %8743 = vperm.xlu0 %8742, %v696
    %v8744 = vpop.permute.xlu0 %8743
    %8746 = vset.pattern.permute.xlu0 8
    %8747 = vperm.xlu0 %8746, %v697
    %v8748 = vpop.permute.xlu0 %8747
    %8750 = vset.pattern.permute.xlu0 8
    %8751 = vperm.xlu0 %8750, %v698
    %v8752 = vpop.permute.xlu0 %8751
    %8754 = vset.pattern.permute.xlu0 8
    %8755 = vperm.xlu0 %8754, %v699
    %v8756 = vpop.permute.xlu0 %8755
    %8758 = vset.pattern.permute.xlu0 8
    %8759 = vperm.xlu0 %8758, %v700
    %v8760 = vpop.permute.xlu0 %8759
    %8762 = vset.pattern.permute.xlu0 8
    %8763 = vperm.xlu0 %8762, %v701
    %v8764 = vpop.permute.xlu0 %8763
    %8766 = vset.pattern.permute.xlu0 8
    %8767 = vperm.xlu0 %8766, %v702
    %v8768 = vpop.permute.xlu0 %8767
    %8770 = vset.pattern.permute.xlu0 8
    %8771 = vperm.xlu0 %8770, %v703
    %v8772 = vpop.permute.xlu0 %8771
    %8774 = vset.pattern.permute.xlu0 8
    %8775 = vperm.xlu0 %8774, %v704
    %v8776 = vpop.permute.xlu0 %8775
    %8778 = vset.pattern.permute.xlu0 8
    %8779 = vperm.xlu0 %8778, %v705
    %v8780 = vpop.permute.xlu0 %8779
    %8782 = vset.pattern.permute.xlu0 8
    %8783 = vperm.xlu0 %8782, %v706
    %v8784 = vpop.permute.xlu0 %8783
    %8786 = vset.pattern.permute.xlu0 8
    %8787 = vperm.xlu0 %8786, %v707
    %v8788 = vpop.permute.xlu0 %8787
    %8790 = vset.pattern.permute.xlu0 8
    %8791 = vperm.xlu0 %8790, %v708
    %v8792 = vpop.permute.xlu0 %8791
    %8794 = vset.pattern.permute.xlu0 8
    %8795 = vperm.xlu0 %8794, %v709
    %v8796 = vpop.permute.xlu0 %8795
    %8798 = vset.pattern.permute.xlu0 8
    %8799 = vperm.xlu0 %8798, %v710
    %v8800 = vpop.permute.xlu0 %8799
    %8802 = vset.pattern.permute.xlu0 8
    %8803 = vperm.xlu0 %8802, %v711
    %v8804 = vpop.permute.xlu0 %8803
    %8806 = vset.pattern.permute.xlu0 8
    %8807 = vperm.xlu0 %8806, %v712
    %v8808 = vpop.permute.xlu0 %8807
    %8810 = vset.pattern.permute.xlu0 8
    %8811 = vperm.xlu0 %8810, %v713
    %v8812 = vpop.permute.xlu0 %8811
    %8814 = vset.pattern.permute.xlu0 8
    %8815 = vperm.xlu0 %8814, %v714
    %v8816 = vpop.permute.xlu0 %8815
    %8818 = vset.pattern.permute.xlu0 8
    %8819 = vperm.xlu0 %8818, %v715
    %v8820 = vpop.permute.xlu0 %8819
    %8822 = vset.pattern.permute.xlu0 8
    %8823 = vperm.xlu0 %8822, %v716
    %v8824 = vpop.permute.xlu0 %8823
    %8826 = vset.pattern.permute.xlu0 8
    %8827 = vperm.xlu0 %8826, %v717
    %v8828 = vpop.permute.xlu0 %8827
    %8830 = vset.pattern.permute.xlu0 8
    %8831 = vperm.xlu0 %8830, %v718
    %v8832 = vpop.permute.xlu0 %8831
    %8834 = vset.pattern.permute.xlu0 8
    %8835 = vperm.xlu0 %8834, %v719
    %v8836 = vpop.permute.xlu0 %8835
    %8838 = vset.pattern.permute.xlu0 8
    %8839 = vperm.xlu0 %8838, %v720
    %v8840 = vpop.permute.xlu0 %8839
    %8842 = vset.pattern.permute.xlu0 8
    %8843 = vperm.xlu0 %8842, %v721
    %v8844 = vpop.permute.xlu0 %8843
    %8846 = vset.pattern.permute.xlu0 8
    %8847 = vperm.xlu0 %8846, %v722
    %v8848 = vpop.permute.xlu0 %8847
    %8850 = vset.pattern.permute.xlu0 8
    %8851 = vperm.xlu0 %8850, %v723
    %v8852 = vpop.permute.xlu0 %8851
    %8854 = vset.pattern.permute.xlu0 8
    %8855 = vperm.xlu0 %8854, %v724
    %v8856 = vpop.permute.xlu0 %8855
    %8858 = vset.pattern.permute.xlu0 8
    %8859 = vperm.xlu0 %8858, %v725
    %v8860 = vpop.permute.xlu0 %8859
    %8862 = vset.pattern.permute.xlu0 8
    %8863 = vperm.xlu0 %8862, %v726
    %v8864 = vpop.permute.xlu0 %8863
    %8866 = vset.pattern.permute.xlu0 8
    %8867 = vperm.xlu0 %8866, %v727
    %v8868 = vpop.permute.xlu0 %8867
    %8870 = vset.pattern.permute.xlu0 8
    %8871 = vperm.xlu0 %8870, %v728
    %v8872 = vpop.permute.xlu0 %8871
    %8874 = vset.pattern.permute.xlu0 8
    %8875 = vperm.xlu0 %8874, %v729
    %v8876 = vpop.permute.xlu0 %8875
    %8878 = vset.pattern.permute.xlu0 8
    %8879 = vperm.xlu0 %8878, %v730
    %v8880 = vpop.permute.xlu0 %8879
    %8882 = vset.pattern.permute.xlu0 8
    %8883 = vperm.xlu0 %8882, %v731
    %v8884 = vpop.permute.xlu0 %8883
    %8886 = vset.pattern.permute.xlu0 8
    %8887 = vperm.xlu0 %8886, %v732
    %v8888 = vpop.permute.xlu0 %8887
    %8890 = vset.pattern.permute.xlu0 8
    %8891 = vperm.xlu0 %8890, %v733
    %v8892 = vpop.permute.xlu0 %8891
    %8894 = vset.pattern.permute.xlu0 8
    %8895 = vperm.xlu0 %8894, %v734
    %v8896 = vpop.permute.xlu0 %8895
    %8898 = vset.pattern.permute.xlu0 8
    %8899 = vperm.xlu0 %8898, %v735
    %v8900 = vpop.permute.xlu0 %8899
    %8902 = vset.pattern.permute.xlu0 8
    %8903 = vperm.xlu0 %8902, %v736
    %v8904 = vpop.permute.xlu0 %8903
    %8906 = vset.pattern.permute.xlu0 8
    %8907 = vperm.xlu0 %8906, %v737
    %v8908 = vpop.permute.xlu0 %8907
    %8910 = vset.pattern.permute.xlu0 8
    %8911 = vperm.xlu0 %8910, %v738
    %v8912 = vpop.permute.xlu0 %8911
    %8914 = vset.pattern.permute.xlu0 8
    %8915 = vperm.xlu0 %8914, %v739
    %v8916 = vpop.permute.xlu0 %8915
    %8918 = vset.pattern.permute.xlu0 8
    %8919 = vperm.xlu0 %8918, %v740
    %v8920 = vpop.permute.xlu0 %8919
    %8922 = vset.pattern.permute.xlu0 8
    %8923 = vperm.xlu0 %8922, %v741
    %v8924 = vpop.permute.xlu0 %8923
    %8926 = vset.pattern.permute.xlu0 8
    %8927 = vperm.xlu0 %8926, %v742
    %v8928 = vpop.permute.xlu0 %8927
    %8930 = vset.pattern.permute.xlu0 8
    %8931 = vperm.xlu0 %8930, %v743
    %v8932 = vpop.permute.xlu0 %8931
    %8934 = vset.pattern.permute.xlu0 8
    %8935 = vperm.xlu0 %8934, %v744
    %v8936 = vpop.permute.xlu0 %8935
    %8938 = vset.pattern.permute.xlu0 8
    %8939 = vperm.xlu0 %8938, %v745
    %v8940 = vpop.permute.xlu0 %8939
    %8942 = vset.pattern.permute.xlu0 8
    %8943 = vperm.xlu0 %8942, %v746
    %v8944 = vpop.permute.xlu0 %8943
    %8946 = vset.pattern.permute.xlu0 8
    %8947 = vperm.xlu0 %8946, %v747
    %v8948 = vpop.permute.xlu0 %8947
    %8950 = vset.pattern.permute.xlu0 8
    %8951 = vperm.xlu0 %8950, %v748
    %v8952 = vpop.permute.xlu0 %8951
    %8954 = vset.pattern.permute.xlu0 8
    %8955 = vperm.xlu0 %8954, %v749
    %v8956 = vpop.permute.xlu0 %8955
    %8958 = vset.pattern.permute.xlu0 8
    %8959 = vperm.xlu0 %8958, %v750
    %v8960 = vpop.permute.xlu0 %8959
    %8962 = vset.pattern.permute.xlu0 8
    %8963 = vperm.xlu0 %8962, %v751
    %v8964 = vpop.permute.xlu0 %8963
    %8966 = vset.pattern.permute.xlu0 8
    %8967 = vperm.xlu0 %8966, %v752
    %v8968 = vpop.permute.xlu0 %8967
    %8970 = vset.pattern.permute.xlu0 8
    %8971 = vperm.xlu0 %8970, %v753
    %v8972 = vpop.permute.xlu0 %8971
    %8974 = vset.pattern.permute.xlu0 8
    %8975 = vperm.xlu0 %8974, %v754
    %v8976 = vpop.permute.xlu0 %8975
    %8978 = vset.pattern.permute.xlu0 8
    %8979 = vperm.xlu0 %8978, %v755
    %v8980 = vpop.permute.xlu0 %8979
    %8982 = vset.pattern.permute.xlu0 8
    %8983 = vperm.xlu0 %8982, %v756
    %v8984 = vpop.permute.xlu0 %8983
    %8986 = vset.pattern.permute.xlu0 8
    %8987 = vperm.xlu0 %8986, %v757
    %v8988 = vpop.permute.xlu0 %8987
    %v8990 = vmul.f32 %v8416, %v8736
    %v8991 = vmul.f32 %v8421, %v8740
    %v8992 = vmul.f32 %v8426, %v8744
    %v8993 = vmul.f32 %v8431, %v8748
    %v8994 = vmul.f32 %v8436, %v8752
    %v8995 = vmul.f32 %v8441, %v8756
    %v8996 = vmul.f32 %v8446, %v8760
    %v8997 = vmul.f32 %v8451, %v8764
    %v8998 = vmul.f32 %v8456, %v8768
    %v8999 = vmul.f32 %v8461, %v8772
    %v9000 = vmul.f32 %v8466, %v8776
    %v9001 = vmul.f32 %v8471, %v8780
    %v9002 = vmul.f32 %v8476, %v8784
    %v9003 = vmul.f32 %v8481, %v8788
    %v9004 = vmul.f32 %v8486, %v8792
    %v9005 = vmul.f32 %v8491, %v8796
    %v9006 = vmul.f32 %v8496, %v8800
    %v9007 = vmul.f32 %v8501, %v8804
    %v9008 = vmul.f32 %v8506, %v8808
    %v9009 = vmul.f32 %v8511, %v8812
    %v9010 = vmul.f32 %v8516, %v8816
    %v9011 = vmul.f32 %v8521, %v8820
    %v9012 = vmul.f32 %v8526, %v8824
    %v9013 = vmul.f32 %v8531, %v8828
    %v9014 = vmul.f32 %v8536, %v8832
    %v9015 = vmul.f32 %v8541, %v8836
    %v9016 = vmul.f32 %v8546, %v8840
    %v9017 = vmul.f32 %v8551, %v8844
    %v9018 = vmul.f32 %v8556, %v8848
    %v9019 = vmul.f32 %v8561, %v8852
    %v9020 = vmul.f32 %v8566, %v8856
    %v9021 = vmul.f32 %v8571, %v8860
    %v9022 = vmul.f32 %v8576, %v8864
    %v9023 = vmul.f32 %v8581, %v8868
    %v9024 = vmul.f32 %v8586, %v8872
    %v9025 = vmul.f32 %v8591, %v8876
    %v9026 = vmul.f32 %v8596, %v8880
    %v9027 = vmul.f32 %v8601, %v8884
    %v9028 = vmul.f32 %v8606, %v8888
    %v9029 = vmul.f32 %v8611, %v8892
    %v9030 = vmul.f32 %v8616, %v8896
    %v9031 = vmul.f32 %v8621, %v8900
    %v9032 = vmul.f32 %v8626, %v8904
    %v9033 = vmul.f32 %v8631, %v8908
    %v9034 = vmul.f32 %v8636, %v8912
    %v9035 = vmul.f32 %v8641, %v8916
    %v9036 = vmul.f32 %v8646, %v8920
    %v9037 = vmul.f32 %v8651, %v8924
    %v9038 = vmul.f32 %v8656, %v8928
    %v9039 = vmul.f32 %v8661, %v8932
    %v9040 = vmul.f32 %v8666, %v8936
    %v9041 = vmul.f32 %v8671, %v8940
    %v9042 = vmul.f32 %v8676, %v8944
    %v9043 = vmul.f32 %v8681, %v8948
    %v9044 = vmul.f32 %v8686, %v8952
    %v9045 = vmul.f32 %v8691, %v8956
    %v9046 = vmul.f32 %v8696, %v8960
    %v9047 = vmul.f32 %v8701, %v8964
    %v9048 = vmul.f32 %v8706, %v8968
    %v9049 = vmul.f32 %v8711, %v8972
    %v9050 = vmul.f32 %v8716, %v8976
    %v9051 = vmul.f32 %v8721, %v8980
    %v9052 = vmul.f32 %v8726, %v8984
    %v9053 = vmul.f32 %v8731, %v8988
    %v9054 = vadd.f32 %v8025, %v8990
    %v9055 = vadd.f32 %v8026, %v8991
    %v9056 = vadd.f32 %v8027, %v8992
    %v9057 = vadd.f32 %v8028, %v8993
    %v9058 = vadd.f32 %v8029, %v8994
    %v9059 = vadd.f32 %v8030, %v8995
    %v9060 = vadd.f32 %v8031, %v8996
    %v9061 = vadd.f32 %v8032, %v8997
    %v9062 = vadd.f32 %v8033, %v8998
    %v9063 = vadd.f32 %v8034, %v8999
    %v9064 = vadd.f32 %v8035, %v9000
    %v9065 = vadd.f32 %v8036, %v9001
    %v9066 = vadd.f32 %v8037, %v9002
    %v9067 = vadd.f32 %v8038, %v9003
    %v9068 = vadd.f32 %v8039, %v9004
    %v9069 = vadd.f32 %v8040, %v9005
    %v9070 = vadd.f32 %v8041, %v9006
    %v9071 = vadd.f32 %v8042, %v9007
    %v9072 = vadd.f32 %v8043, %v9008
    %v9073 = vadd.f32 %v8044, %v9009
    %v9074 = vadd.f32 %v8045, %v9010
    %v9075 = vadd.f32 %v8046, %v9011
    %v9076 = vadd.f32 %v8047, %v9012
    %v9077 = vadd.f32 %v8048, %v9013
    %v9078 = vadd.f32 %v8049, %v9014
    %v9079 = vadd.f32 %v8050, %v9015
    %v9080 = vadd.f32 %v8051, %v9016
    %v9081 = vadd.f32 %v8052, %v9017
    %v9082 = vadd.f32 %v8053, %v9018
    %v9083 = vadd.f32 %v8054, %v9019
    %v9084 = vadd.f32 %v8055, %v9020
    %v9085 = vadd.f32 %v8056, %v9021
    %v9086 = vadd.f32 %v8057, %v9022
    %v9087 = vadd.f32 %v8058, %v9023
    %v9088 = vadd.f32 %v8059, %v9024
    %v9089 = vadd.f32 %v8060, %v9025
    %v9090 = vadd.f32 %v8061, %v9026
    %v9091 = vadd.f32 %v8062, %v9027
    %v9092 = vadd.f32 %v8063, %v9028
    %v9093 = vadd.f32 %v8064, %v9029
    %v9094 = vadd.f32 %v8065, %v9030
    %v9095 = vadd.f32 %v8066, %v9031
    %v9096 = vadd.f32 %v8067, %v9032
    %v9097 = vadd.f32 %v8068, %v9033
    %v9098 = vadd.f32 %v8069, %v9034
    %v9099 = vadd.f32 %v8070, %v9035
    %v9100 = vadd.f32 %v8071, %v9036
    %v9101 = vadd.f32 %v8072, %v9037
    %v9102 = vadd.f32 %v8073, %v9038
    %v9103 = vadd.f32 %v8074, %v9039
    %v9104 = vadd.f32 %v8075, %v9040
    %v9105 = vadd.f32 %v8076, %v9041
    %v9106 = vadd.f32 %v8077, %v9042
    %v9107 = vadd.f32 %v8078, %v9043
    %v9108 = vadd.f32 %v8079, %v9044
    %v9109 = vadd.f32 %v8080, %v9045
    %v9110 = vadd.f32 %v8081, %v9046
    %v9111 = vadd.f32 %v8082, %v9047
    %v9112 = vadd.f32 %v8083, %v9048
    %v9113 = vadd.f32 %v8084, %v9049
    %v9114 = vadd.f32 %v8085, %v9050
    %v9115 = vadd.f32 %v8086, %v9051
    %v9116 = vadd.f32 %v8087, %v9052
    %v9117 = vadd.f32 %v8088, %v9053
    %v9118 = vld [vmem:[%s5] sm:$0x1]
    %v9120 = vlaneseq
    %v9121 = vshrl.u32 %v9120, 7
    %v9122 = vsub.s32 0, %v9121
    %v9123 = vrot.slane %v9118, %v9122
    %v9125 = vadd.f32 %v9054, %v9123
    %v9126 = vadd.f32 %v9055, %v9123
    %v9127 = vadd.f32 %v9056, %v9123
    %v9128 = vadd.f32 %v9057, %v9123
    %v9129 = vadd.f32 %v9058, %v9123
    %v9130 = vadd.f32 %v9059, %v9123
    %v9131 = vadd.f32 %v9060, %v9123
    %v9132 = vadd.f32 %v9061, %v9123
    %v9133 = vadd.f32 %v9062, %v9123
    %v9134 = vadd.f32 %v9063, %v9123
    %v9135 = vadd.f32 %v9064, %v9123
    %v9136 = vadd.f32 %v9065, %v9123
    %v9137 = vadd.f32 %v9066, %v9123
    %v9138 = vadd.f32 %v9067, %v9123
    %v9139 = vadd.f32 %v9068, %v9123
    %v9140 = vadd.f32 %v9069, %v9123
    %v9141 = vadd.f32 %v9070, %v9123
    %v9142 = vadd.f32 %v9071, %v9123
    %v9143 = vadd.f32 %v9072, %v9123
    %v9144 = vadd.f32 %v9073, %v9123
    %v9145 = vadd.f32 %v9074, %v9123
    %v9146 = vadd.f32 %v9075, %v9123
    %v9147 = vadd.f32 %v9076, %v9123
    %v9148 = vadd.f32 %v9077, %v9123
    %v9149 = vadd.f32 %v9078, %v9123
    %v9150 = vadd.f32 %v9079, %v9123
    %v9151 = vadd.f32 %v9080, %v9123
    %v9152 = vadd.f32 %v9081, %v9123
    %v9153 = vadd.f32 %v9082, %v9123
    %v9154 = vadd.f32 %v9083, %v9123
    %v9155 = vadd.f32 %v9084, %v9123
    %v9156 = vadd.f32 %v9085, %v9123
    %v9157 = vadd.f32 %v9086, %v9123
    %v9158 = vadd.f32 %v9087, %v9123
    %v9159 = vadd.f32 %v9088, %v9123
    %v9160 = vadd.f32 %v9089, %v9123
    %v9161 = vadd.f32 %v9090, %v9123
    %v9162 = vadd.f32 %v9091, %v9123
    %v9163 = vadd.f32 %v9092, %v9123
    %v9164 = vadd.f32 %v9093, %v9123
    %v9165 = vadd.f32 %v9094, %v9123
    %v9166 = vadd.f32 %v9095, %v9123
    %v9167 = vadd.f32 %v9096, %v9123
    %v9168 = vadd.f32 %v9097, %v9123
    %v9169 = vadd.f32 %v9098, %v9123
    %v9170 = vadd.f32 %v9099, %v9123
    %v9171 = vadd.f32 %v9100, %v9123
    %v9172 = vadd.f32 %v9101, %v9123
    %v9173 = vadd.f32 %v9102, %v9123
    %v9174 = vadd.f32 %v9103, %v9123
    %v9175 = vadd.f32 %v9104, %v9123
    %v9176 = vadd.f32 %v9105, %v9123
    %v9177 = vadd.f32 %v9106, %v9123
    %v9178 = vadd.f32 %v9107, %v9123
    %v9179 = vadd.f32 %v9108, %v9123
    %v9180 = vadd.f32 %v9109, %v9123
    %v9181 = vadd.f32 %v9110, %v9123
    %v9182 = vadd.f32 %v9111, %v9123
    %v9183 = vadd.f32 %v9112, %v9123
    %v9184 = vadd.f32 %v9113, %v9123
    %v9185 = vadd.f32 %v9114, %v9123
    %v9186 = vadd.f32 %v9115, %v9123
    %v9187 = vadd.f32 %v9116, %v9123
    %v9188 = vadd.f32 %v9117, %v9123
    %v9189 = vld [vmem:[%s6] sm:$0x1]
    %v9190 = vld [vmem:[%s7] sm:$0x1]
    %vm9191 = vcmask 130048
    %v9192 = vsel %vm9191, %v9125, 0.0
    %v9193 = vsel %vm9191, %v9126, 0.0
    %v9194 = vadd.f32 %v9192, %v9193
    %v9195 = vsel %vm9191, %v9127, 0.0
    %v9196 = vadd.f32 %v9194, %v9195
    %v9197 = vsel %vm9191, %v9128, 0.0
    %v9198 = vadd.f32 %v9196, %v9197
    %v9199 = vsel %vm9191, %v9129, 0.0
    %v9200 = vadd.f32 %v9198, %v9199
    %v9201 = vsel %vm9191, %v9130, 0.0
    %v9202 = vadd.f32 %v9200, %v9201
    %v9203 = vsel %vm9191, %v9131, 0.0
    %v9204 = vadd.f32 %v9202, %v9203
    %v9205 = vsel %vm9191, %v9132, 0.0
    %v9206 = vadd.f32 %v9204, %v9205
    %v9207 = vsel %vm9191, %v9133, 0.0
    %v9208 = vadd.f32 %v9206, %v9207
    %v9209 = vsel %vm9191, %v9134, 0.0
    %v9210 = vadd.f32 %v9208, %v9209
    %v9211 = vsel %vm9191, %v9135, 0.0
    %v9212 = vadd.f32 %v9210, %v9211
    %v9213 = vsel %vm9191, %v9136, 0.0
    %v9214 = vadd.f32 %v9212, %v9213
    %v9215 = vsel %vm9191, %v9137, 0.0
    %v9216 = vadd.f32 %v9214, %v9215
    %v9217 = vsel %vm9191, %v9138, 0.0
    %v9218 = vadd.f32 %v9216, %v9217
    %v9219 = vsel %vm9191, %v9139, 0.0
    %v9220 = vadd.f32 %v9218, %v9219
    %v9221 = vsel %vm9191, %v9140, 0.0
    %v9222 = vadd.f32 %v9220, %v9221
    %v9223 = vsel %vm9191, %v9141, 0.0
    %v9224 = vadd.f32 %v9222, %v9223
    %v9225 = vsel %vm9191, %v9142, 0.0
    %v9226 = vadd.f32 %v9224, %v9225
    %v9227 = vsel %vm9191, %v9143, 0.0
    %v9228 = vadd.f32 %v9226, %v9227
    %v9229 = vsel %vm9191, %v9144, 0.0
    %v9230 = vadd.f32 %v9228, %v9229
    %v9231 = vsel %vm9191, %v9145, 0.0
    %v9232 = vadd.f32 %v9230, %v9231
    %v9233 = vsel %vm9191, %v9146, 0.0
    %v9234 = vadd.f32 %v9232, %v9233
    %v9235 = vsel %vm9191, %v9147, 0.0
    %v9236 = vadd.f32 %v9234, %v9235
    %v9237 = vsel %vm9191, %v9148, 0.0
    %v9238 = vadd.f32 %v9236, %v9237
    %v9239 = vsel %vm9191, %v9149, 0.0
    %v9240 = vadd.f32 %v9238, %v9239
    %v9241 = vsel %vm9191, %v9150, 0.0
    %v9242 = vadd.f32 %v9240, %v9241
    %v9243 = vsel %vm9191, %v9151, 0.0
    %v9244 = vadd.f32 %v9242, %v9243
    %v9245 = vsel %vm9191, %v9152, 0.0
    %v9246 = vadd.f32 %v9244, %v9245
    %v9247 = vsel %vm9191, %v9153, 0.0
    %v9248 = vadd.f32 %v9246, %v9247
    %v9249 = vsel %vm9191, %v9154, 0.0
    %v9250 = vadd.f32 %v9248, %v9249
    %v9251 = vsel %vm9191, %v9155, 0.0
    %v9252 = vadd.f32 %v9250, %v9251
    %v9253 = vsel %vm9191, %v9156, 0.0
    %v9254 = vadd.f32 %v9252, %v9253
    %v9255 = vsel %vm9191, %v9157, 0.0
    %v9256 = vadd.f32 %v9254, %v9255
    %v9257 = vsel %vm9191, %v9158, 0.0
    %v9258 = vadd.f32 %v9256, %v9257
    %v9259 = vsel %vm9191, %v9159, 0.0
    %v9260 = vadd.f32 %v9258, %v9259
    %v9261 = vsel %vm9191, %v9160, 0.0
    %v9262 = vadd.f32 %v9260, %v9261
    %v9263 = vsel %vm9191, %v9161, 0.0
    %v9264 = vadd.f32 %v9262, %v9263
    %v9265 = vsel %vm9191, %v9162, 0.0
    %v9266 = vadd.f32 %v9264, %v9265
    %v9267 = vsel %vm9191, %v9163, 0.0
    %v9268 = vadd.f32 %v9266, %v9267
    %v9269 = vsel %vm9191, %v9164, 0.0
    %v9270 = vadd.f32 %v9268, %v9269
    %v9271 = vsel %vm9191, %v9165, 0.0
    %v9272 = vadd.f32 %v9270, %v9271
    %v9273 = vsel %vm9191, %v9166, 0.0
    %v9274 = vadd.f32 %v9272, %v9273
    %v9275 = vsel %vm9191, %v9167, 0.0
    %v9276 = vadd.f32 %v9274, %v9275
    %v9277 = vsel %vm9191, %v9168, 0.0
    %v9278 = vadd.f32 %v9276, %v9277
    %v9279 = vsel %vm9191, %v9169, 0.0
    %v9280 = vadd.f32 %v9278, %v9279
    %v9281 = vsel %vm9191, %v9170, 0.0
    %v9282 = vadd.f32 %v9280, %v9281
    %v9283 = vsel %vm9191, %v9171, 0.0
    %v9284 = vadd.f32 %v9282, %v9283
    %v9285 = vsel %vm9191, %v9172, 0.0
    %v9286 = vadd.f32 %v9284, %v9285
    %v9287 = vsel %vm9191, %v9173, 0.0
    %v9288 = vadd.f32 %v9286, %v9287
    %v9289 = vsel %vm9191, %v9174, 0.0
    %v9290 = vadd.f32 %v9288, %v9289
    %v9291 = vsel %vm9191, %v9175, 0.0
    %v9292 = vadd.f32 %v9290, %v9291
    %v9293 = vsel %vm9191, %v9176, 0.0
    %v9294 = vadd.f32 %v9292, %v9293
    %v9295 = vsel %vm9191, %v9177, 0.0
    %v9296 = vadd.f32 %v9294, %v9295
    %v9297 = vsel %vm9191, %v9178, 0.0
    %v9298 = vadd.f32 %v9296, %v9297
    %v9299 = vsel %vm9191, %v9179, 0.0
    %v9300 = vadd.f32 %v9298, %v9299
    %v9301 = vsel %vm9191, %v9180, 0.0
    %v9302 = vadd.f32 %v9300, %v9301
    %v9303 = vsel %vm9191, %v9181, 0.0
    %v9304 = vadd.f32 %v9302, %v9303
    %v9305 = vsel %vm9191, %v9182, 0.0
    %v9306 = vadd.f32 %v9304, %v9305
    %v9307 = vsel %vm9191, %v9183, 0.0
    %v9308 = vadd.f32 %v9306, %v9307
    %v9309 = vsel %vm9191, %v9184, 0.0
    %v9310 = vadd.f32 %v9308, %v9309
    %v9311 = vsel %vm9191, %v9185, 0.0
    %v9312 = vadd.f32 %v9310, %v9311
    %v9313 = vsel %vm9191, %v9186, 0.0
    %v9314 = vadd.f32 %v9312, %v9313
    %v9315 = vsel %vm9191, %v9187, 0.0
    %v9316 = vadd.f32 %v9314, %v9315
    %v9317 = vsel %vm9191, %v9188, 0.0
    %v9318 = vadd.f32 %v9316, %v9317
    %v9319 = vrot.slane %v9318, 4
    %v9320 = vadd.f32 %v9318, %v9319
    %v9321 = vrot.slane %v9320, 2
    %v9322 = vadd.f32 %v9320, %v9321
    %v9323 = vrot.slane %v9322, 1
    %v9324 = vadd.f32 %v9322, %v9323
    %v9325 = vrcp.pop 512.0
    %v9326 = vmul.f32 %v9324, %v9325
    %v9327 = vsub.f32 %v9125, %v9326
    %v9328 = vsub.f32 %v9126, %v9326
    %v9329 = vsub.f32 %v9127, %v9326
    %v9330 = vsub.f32 %v9128, %v9326
    %v9331 = vsub.f32 %v9129, %v9326
    %v9332 = vsub.f32 %v9130, %v9326
    %v9333 = vsub.f32 %v9131, %v9326
    %v9334 = vsub.f32 %v9132, %v9326
    %v9335 = vsub.f32 %v9133, %v9326
    %v9336 = vsub.f32 %v9134, %v9326
    %v9337 = vsub.f32 %v9135, %v9326
    %v9338 = vsub.f32 %v9136, %v9326
    %v9339 = vsub.f32 %v9137, %v9326
    %v9340 = vsub.f32 %v9138, %v9326
    %v9341 = vsub.f32 %v9139, %v9326
    %v9342 = vsub.f32 %v9140, %v9326
    %v9343 = vsub.f32 %v9141, %v9326
    %v9344 = vsub.f32 %v9142, %v9326
    %v9345 = vsub.f32 %v9143, %v9326
    %v9346 = vsub.f32 %v9144, %v9326
    %v9347 = vsub.f32 %v9145, %v9326
    %v9348 = vsub.f32 %v9146, %v9326
    %v9349 = vsub.f32 %v9147, %v9326
    %v9350 = vsub.f32 %v9148, %v9326
    %v9351 = vsub.f32 %v9149, %v9326
    %v9352 = vsub.f32 %v9150, %v9326
    %v9353 = vsub.f32 %v9151, %v9326
    %v9354 = vsub.f32 %v9152, %v9326
    %v9355 = vsub.f32 %v9153, %v9326
    %v9356 = vsub.f32 %v9154, %v9326
    %v9357 = vsub.f32 %v9155, %v9326
    %v9358 = vsub.f32 %v9156, %v9326
    %v9359 = vsub.f32 %v9157, %v9326
    %v9360 = vsub.f32 %v9158, %v9326
    %v9361 = vsub.f32 %v9159, %v9326
    %v9362 = vsub.f32 %v9160, %v9326
    %v9363 = vsub.f32 %v9161, %v9326
    %v9364 = vsub.f32 %v9162, %v9326
    %v9365 = vsub.f32 %v9163, %v9326
    %v9366 = vsub.f32 %v9164, %v9326
    %v9367 = vsub.f32 %v9165, %v9326
    %v9368 = vsub.f32 %v9166, %v9326
    %v9369 = vsub.f32 %v9167, %v9326
    %v9370 = vsub.f32 %v9168, %v9326
    %v9371 = vsub.f32 %v9169, %v9326
    %v9372 = vsub.f32 %v9170, %v9326
    %v9373 = vsub.f32 %v9171, %v9326
    %v9374 = vsub.f32 %v9172, %v9326
    %v9375 = vsub.f32 %v9173, %v9326
    %v9376 = vsub.f32 %v9174, %v9326
    %v9377 = vsub.f32 %v9175, %v9326
    %v9378 = vsub.f32 %v9176, %v9326
    %v9379 = vsub.f32 %v9177, %v9326
    %v9380 = vsub.f32 %v9178, %v9326
    %v9381 = vsub.f32 %v9179, %v9326
    %v9382 = vsub.f32 %v9180, %v9326
    %v9383 = vsub.f32 %v9181, %v9326
    %v9384 = vsub.f32 %v9182, %v9326
    %v9385 = vsub.f32 %v9183, %v9326
    %v9386 = vsub.f32 %v9184, %v9326
    %v9387 = vsub.f32 %v9185, %v9326
    %v9388 = vsub.f32 %v9186, %v9326
    %v9389 = vsub.f32 %v9187, %v9326
    %v9390 = vsub.f32 %v9188, %v9326
    %v9391 = vmul.f32 %v9327, %v9327
    %v9392 = vmul.f32 %v9328, %v9328
    %v9393 = vmul.f32 %v9329, %v9329
    %v9394 = vmul.f32 %v9330, %v9330
    %v9395 = vmul.f32 %v9331, %v9331
    %v9396 = vmul.f32 %v9332, %v9332
    %v9397 = vmul.f32 %v9333, %v9333
    %v9398 = vmul.f32 %v9334, %v9334
    %v9399 = vmul.f32 %v9335, %v9335
    %v9400 = vmul.f32 %v9336, %v9336
    %v9401 = vmul.f32 %v9337, %v9337
    %v9402 = vmul.f32 %v9338, %v9338
    %v9403 = vmul.f32 %v9339, %v9339
    %v9404 = vmul.f32 %v9340, %v9340
    %v9405 = vmul.f32 %v9341, %v9341
    %v9406 = vmul.f32 %v9342, %v9342
    %v9407 = vmul.f32 %v9343, %v9343
    %v9408 = vmul.f32 %v9344, %v9344
    %v9409 = vmul.f32 %v9345, %v9345
    %v9410 = vmul.f32 %v9346, %v9346
    %v9411 = vmul.f32 %v9347, %v9347
    %v9412 = vmul.f32 %v9348, %v9348
    %v9413 = vmul.f32 %v9349, %v9349
    %v9414 = vmul.f32 %v9350, %v9350
    %v9415 = vmul.f32 %v9351, %v9351
    %v9416 = vmul.f32 %v9352, %v9352
    %v9417 = vmul.f32 %v9353, %v9353
    %v9418 = vmul.f32 %v9354, %v9354
    %v9419 = vmul.f32 %v9355, %v9355
    %v9420 = vmul.f32 %v9356, %v9356
    %v9421 = vmul.f32 %v9357, %v9357
    %v9422 = vmul.f32 %v9358, %v9358
    %v9423 = vmul.f32 %v9359, %v9359
    %v9424 = vmul.f32 %v9360, %v9360
    %v9425 = vmul.f32 %v9361, %v9361
    %v9426 = vmul.f32 %v9362, %v9362
    %v9427 = vmul.f32 %v9363, %v9363
    %v9428 = vmul.f32 %v9364, %v9364
    %v9429 = vmul.f32 %v9365, %v9365
    %v9430 = vmul.f32 %v9366, %v9366
    %v9431 = vmul.f32 %v9367, %v9367
    %v9432 = vmul.f32 %v9368, %v9368
    %v9433 = vmul.f32 %v9369, %v9369
    %v9434 = vmul.f32 %v9370, %v9370
    %v9435 = vmul.f32 %v9371, %v9371
    %v9436 = vmul.f32 %v9372, %v9372
    %v9437 = vmul.f32 %v9373, %v9373
    %v9438 = vmul.f32 %v9374, %v9374
    %v9439 = vmul.f32 %v9375, %v9375
    %v9440 = vmul.f32 %v9376, %v9376
    %v9441 = vmul.f32 %v9377, %v9377
    %v9442 = vmul.f32 %v9378, %v9378
    %v9443 = vmul.f32 %v9379, %v9379
    %v9444 = vmul.f32 %v9380, %v9380
    %v9445 = vmul.f32 %v9381, %v9381
    %v9446 = vmul.f32 %v9382, %v9382
    %v9447 = vmul.f32 %v9383, %v9383
    %v9448 = vmul.f32 %v9384, %v9384
    %v9449 = vmul.f32 %v9385, %v9385
    %v9450 = vmul.f32 %v9386, %v9386
    %v9451 = vmul.f32 %v9387, %v9387
    %v9452 = vmul.f32 %v9388, %v9388
    %v9453 = vmul.f32 %v9389, %v9389
    %v9454 = vmul.f32 %v9390, %v9390
    %v9455 = vsel %vm9191, %v9391, 0.0
    %v9456 = vsel %vm9191, %v9392, 0.0
    %v9457 = vadd.f32 %v9455, %v9456
    %v9458 = vsel %vm9191, %v9393, 0.0
    %v9459 = vadd.f32 %v9457, %v9458
    %v9460 = vsel %vm9191, %v9394, 0.0
    %v9461 = vadd.f32 %v9459, %v9460
    %v9462 = vsel %vm9191, %v9395, 0.0
    %v9463 = vadd.f32 %v9461, %v9462
    %v9464 = vsel %vm9191, %v9396, 0.0
    %v9465 = vadd.f32 %v9463, %v9464
    %v9466 = vsel %vm9191, %v9397, 0.0
    %v9467 = vadd.f32 %v9465, %v9466
    %v9468 = vsel %vm9191, %v9398, 0.0
    %v9469 = vadd.f32 %v9467, %v9468
    %v9470 = vsel %vm9191, %v9399, 0.0
    %v9471 = vadd.f32 %v9469, %v9470
    %v9472 = vsel %vm9191, %v9400, 0.0
    %v9473 = vadd.f32 %v9471, %v9472
    %v9474 = vsel %vm9191, %v9401, 0.0
    %v9475 = vadd.f32 %v9473, %v9474
    %v9476 = vsel %vm9191, %v9402, 0.0
    %v9477 = vadd.f32 %v9475, %v9476
    %v9478 = vsel %vm9191, %v9403, 0.0
    %v9479 = vadd.f32 %v9477, %v9478
    %v9480 = vsel %vm9191, %v9404, 0.0
    %v9481 = vadd.f32 %v9479, %v9480
    %v9482 = vsel %vm9191, %v9405, 0.0
    %v9483 = vadd.f32 %v9481, %v9482
    %v9484 = vsel %vm9191, %v9406, 0.0
    %v9485 = vadd.f32 %v9483, %v9484
    %v9486 = vsel %vm9191, %v9407, 0.0
    %v9487 = vadd.f32 %v9485, %v9486
    %v9488 = vsel %vm9191, %v9408, 0.0
    %v9489 = vadd.f32 %v9487, %v9488
    %v9490 = vsel %vm9191, %v9409, 0.0
    %v9491 = vadd.f32 %v9489, %v9490
    %v9492 = vsel %vm9191, %v9410, 0.0
    %v9493 = vadd.f32 %v9491, %v9492
    %v9494 = vsel %vm9191, %v9411, 0.0
    %v9495 = vadd.f32 %v9493, %v9494
    %v9496 = vsel %vm9191, %v9412, 0.0
    %v9497 = vadd.f32 %v9495, %v9496
    %v9498 = vsel %vm9191, %v9413, 0.0
    %v9499 = vadd.f32 %v9497, %v9498
    %v9500 = vsel %vm9191, %v9414, 0.0
    %v9501 = vadd.f32 %v9499, %v9500
    %v9502 = vsel %vm9191, %v9415, 0.0
    %v9503 = vadd.f32 %v9501, %v9502
    %v9504 = vsel %vm9191, %v9416, 0.0
    %v9505 = vadd.f32 %v9503, %v9504
    %v9506 = vsel %vm9191, %v9417, 0.0
    %v9507 = vadd.f32 %v9505, %v9506
    %v9508 = vsel %vm9191, %v9418, 0.0
    %v9509 = vadd.f32 %v9507, %v9508
    %v9510 = vsel %vm9191, %v9419, 0.0
    %v9511 = vadd.f32 %v9509, %v9510
    %v9512 = vsel %vm9191, %v9420, 0.0
    %v9513 = vadd.f32 %v9511, %v9512
    %v9514 = vsel %vm9191, %v9421, 0.0
    %v9515 = vadd.f32 %v9513, %v9514
    %v9516 = vsel %vm9191, %v9422, 0.0
    %v9517 = vadd.f32 %v9515, %v9516
    %v9518 = vsel %vm9191, %v9423, 0.0
    %v9519 = vadd.f32 %v9517, %v9518
    %v9520 = vsel %vm9191, %v9424, 0.0
    %v9521 = vadd.f32 %v9519, %v9520
    %v9522 = vsel %vm9191, %v9425, 0.0
    %v9523 = vadd.f32 %v9521, %v9522
    %v9524 = vsel %vm9191, %v9426, 0.0
    %v9525 = vadd.f32 %v9523, %v9524
    %v9526 = vsel %vm9191, %v9427, 0.0
    %v9527 = vadd.f32 %v9525, %v9526
    %v9528 = vsel %vm9191, %v9428, 0.0
    %v9529 = vadd.f32 %v9527, %v9528
    %v9530 = vsel %vm9191, %v9429, 0.0
    %v9531 = vadd.f32 %v9529, %v9530
    %v9532 = vsel %vm9191, %v9430, 0.0
    %v9533 = vadd.f32 %v9531, %v9532
    %v9534 = vsel %vm9191, %v9431, 0.0
    %v9535 = vadd.f32 %v9533, %v9534
    %v9536 = vsel %vm9191, %v9432, 0.0
    %v9537 = vadd.f32 %v9535, %v9536
    %v9538 = vsel %vm9191, %v9433, 0.0
    %v9539 = vadd.f32 %v9537, %v9538
    %v9540 = vsel %vm9191, %v9434, 0.0
    %v9541 = vadd.f32 %v9539, %v9540
    %v9542 = vsel %vm9191, %v9435, 0.0
    %v9543 = vadd.f32 %v9541, %v9542
    %v9544 = vsel %vm9191, %v9436, 0.0
    %v9545 = vadd.f32 %v9543, %v9544
    %v9546 = vsel %vm9191, %v9437, 0.0
    %v9547 = vadd.f32 %v9545, %v9546
    %v9548 = vsel %vm9191, %v9438, 0.0
    %v9549 = vadd.f32 %v9547, %v9548
    %v9550 = vsel %vm9191, %v9439, 0.0
    %v9551 = vadd.f32 %v9549, %v9550
    %v9552 = vsel %vm9191, %v9440, 0.0
    %v9553 = vadd.f32 %v9551, %v9552
    %v9554 = vsel %vm9191, %v9441, 0.0
    %v9555 = vadd.f32 %v9553, %v9554
    %v9556 = vsel %vm9191, %v9442, 0.0
    %v9557 = vadd.f32 %v9555, %v9556
    %v9558 = vsel %vm9191, %v9443, 0.0
    %v9559 = vadd.f32 %v9557, %v9558
    %v9560 = vsel %vm9191, %v9444, 0.0
    %v9561 = vadd.f32 %v9559, %v9560
    %v9562 = vsel %vm9191, %v9445, 0.0
    %v9563 = vadd.f32 %v9561, %v9562
    %v9564 = vsel %vm9191, %v9446, 0.0
    %v9565 = vadd.f32 %v9563, %v9564
    %v9566 = vsel %vm9191, %v9447, 0.0
    %v9567 = vadd.f32 %v9565, %v9566
    %v9568 = vsel %vm9191, %v9448, 0.0
    %v9569 = vadd.f32 %v9567, %v9568
    %v9570 = vsel %vm9191, %v9449, 0.0
    %v9571 = vadd.f32 %v9569, %v9570
    %v9572 = vsel %vm9191, %v9450, 0.0
    %v9573 = vadd.f32 %v9571, %v9572
    %v9574 = vsel %vm9191, %v9451, 0.0
    %v9575 = vadd.f32 %v9573, %v9574
    %v9576 = vsel %vm9191, %v9452, 0.0
    %v9577 = vadd.f32 %v9575, %v9576
    %v9578 = vsel %vm9191, %v9453, 0.0
    %v9579 = vadd.f32 %v9577, %v9578
    %v9580 = vsel %vm9191, %v9454, 0.0
    %v9581 = vadd.f32 %v9579, %v9580
    %v9582 = vrot.slane %v9581, 4
    %v9583 = vadd.f32 %v9581, %v9582
    %v9584 = vrot.slane %v9583, 2
    %v9585 = vadd.f32 %v9583, %v9584
    %v9586 = vrot.slane %v9585, 1
    %v9587 = vadd.f32 %v9585, %v9586
    %v9588 = vmul.f32 %v9587, %v9325
    %v9589 = vadd.f32 %v9588, 1e-05
    %v9590 = vrsqrt.pop %v9589
    %v9591 = vmul.f32 %v9327, %v9590
    %v9592 = vmul.f32 %v9328, %v9590
    %v9593 = vmul.f32 %v9329, %v9590
    %v9594 = vmul.f32 %v9330, %v9590
    %v9595 = vmul.f32 %v9331, %v9590
    %v9596 = vmul.f32 %v9332, %v9590
    %v9597 = vmul.f32 %v9333, %v9590
    %v9598 = vmul.f32 %v9334, %v9590
    %v9599 = vmul.f32 %v9335, %v9590
    %v9600 = vmul.f32 %v9336, %v9590
    %v9601 = vmul.f32 %v9337, %v9590
    %v9602 = vmul.f32 %v9338, %v9590
    %v9603 = vmul.f32 %v9339, %v9590
    %v9604 = vmul.f32 %v9340, %v9590
    %v9605 = vmul.f32 %v9341, %v9590
    %v9606 = vmul.f32 %v9342, %v9590
    %v9607 = vmul.f32 %v9343, %v9590
    %v9608 = vmul.f32 %v9344, %v9590
    %v9609 = vmul.f32 %v9345, %v9590
    %v9610 = vmul.f32 %v9346, %v9590
    %v9611 = vmul.f32 %v9347, %v9590
    %v9612 = vmul.f32 %v9348, %v9590
    %v9613 = vmul.f32 %v9349, %v9590
    %v9614 = vmul.f32 %v9350, %v9590
    %v9615 = vmul.f32 %v9351, %v9590
    %v9616 = vmul.f32 %v9352, %v9590
    %v9617 = vmul.f32 %v9353, %v9590
    %v9618 = vmul.f32 %v9354, %v9590
    %v9619 = vmul.f32 %v9355, %v9590
    %v9620 = vmul.f32 %v9356, %v9590
    %v9621 = vmul.f32 %v9357, %v9590
    %v9622 = vmul.f32 %v9358, %v9590
    %v9623 = vmul.f32 %v9359, %v9590
    %v9624 = vmul.f32 %v9360, %v9590
    %v9625 = vmul.f32 %v9361, %v9590
    %v9626 = vmul.f32 %v9362, %v9590
    %v9627 = vmul.f32 %v9363, %v9590
    %v9628 = vmul.f32 %v9364, %v9590
    %v9629 = vmul.f32 %v9365, %v9590
    %v9630 = vmul.f32 %v9366, %v9590
    %v9631 = vmul.f32 %v9367, %v9590
    %v9632 = vmul.f32 %v9368, %v9590
    %v9633 = vmul.f32 %v9369, %v9590
    %v9634 = vmul.f32 %v9370, %v9590
    %v9635 = vmul.f32 %v9371, %v9590
    %v9636 = vmul.f32 %v9372, %v9590
    %v9637 = vmul.f32 %v9373, %v9590
    %v9638 = vmul.f32 %v9374, %v9590
    %v9639 = vmul.f32 %v9375, %v9590
    %v9640 = vmul.f32 %v9376, %v9590
    %v9641 = vmul.f32 %v9377, %v9590
    %v9642 = vmul.f32 %v9378, %v9590
    %v9643 = vmul.f32 %v9379, %v9590
    %v9644 = vmul.f32 %v9380, %v9590
    %v9645 = vmul.f32 %v9381, %v9590
    %v9646 = vmul.f32 %v9382, %v9590
    %v9647 = vmul.f32 %v9383, %v9590
    %v9648 = vmul.f32 %v9384, %v9590
    %v9649 = vmul.f32 %v9385, %v9590
    %v9650 = vmul.f32 %v9386, %v9590
    %v9651 = vmul.f32 %v9387, %v9590
    %v9652 = vmul.f32 %v9388, %v9590
    %v9653 = vmul.f32 %v9389, %v9590
    %v9654 = vmul.f32 %v9390, %v9590
    %v9656 = vlaneseq
    %v9657 = vshrl.u32 %v9656, 7
    %v9658 = vsub.s32 0, %v9657
    %v9659 = vrot.slane %v9189, %v9658
    %v9661 = vmul.f32 %v9591, %v9659
    %v9662 = vmul.f32 %v9592, %v9659
    %v9663 = vmul.f32 %v9593, %v9659
    %v9664 = vmul.f32 %v9594, %v9659
    %v9665 = vmul.f32 %v9595, %v9659
    %v9666 = vmul.f32 %v9596, %v9659
    %v9667 = vmul.f32 %v9597, %v9659
    %v9668 = vmul.f32 %v9598, %v9659
    %v9669 = vmul.f32 %v9599, %v9659
    %v9670 = vmul.f32 %v9600, %v9659
    %v9671 = vmul.f32 %v9601, %v9659
    %v9672 = vmul.f32 %v9602, %v9659
    %v9673 = vmul.f32 %v9603, %v9659
    %v9674 = vmul.f32 %v9604, %v9659
    %v9675 = vmul.f32 %v9605, %v9659
    %v9676 = vmul.f32 %v9606, %v9659
    %v9677 = vmul.f32 %v9607, %v9659
    %v9678 = vmul.f32 %v9608, %v9659
    %v9679 = vmul.f32 %v9609, %v9659
    %v9680 = vmul.f32 %v9610, %v9659
    %v9681 = vmul.f32 %v9611, %v9659
    %v9682 = vmul.f32 %v9612, %v9659
    %v9683 = vmul.f32 %v9613, %v9659
    %v9684 = vmul.f32 %v9614, %v9659
    %v9685 = vmul.f32 %v9615, %v9659
    %v9686 = vmul.f32 %v9616, %v9659
    %v9687 = vmul.f32 %v9617, %v9659
    %v9688 = vmul.f32 %v9618, %v9659
    %v9689 = vmul.f32 %v9619, %v9659
    %v9690 = vmul.f32 %v9620, %v9659
    %v9691 = vmul.f32 %v9621, %v9659
    %v9692 = vmul.f32 %v9622, %v9659
    %v9693 = vmul.f32 %v9623, %v9659
    %v9694 = vmul.f32 %v9624, %v9659
    %v9695 = vmul.f32 %v9625, %v9659
    %v9696 = vmul.f32 %v9626, %v9659
    %v9697 = vmul.f32 %v9627, %v9659
    %v9698 = vmul.f32 %v9628, %v9659
    %v9699 = vmul.f32 %v9629, %v9659
    %v9700 = vmul.f32 %v9630, %v9659
    %v9701 = vmul.f32 %v9631, %v9659
    %v9702 = vmul.f32 %v9632, %v9659
    %v9703 = vmul.f32 %v9633, %v9659
    %v9704 = vmul.f32 %v9634, %v9659
    %v9705 = vmul.f32 %v9635, %v9659
    %v9706 = vmul.f32 %v9636, %v9659
    %v9707 = vmul.f32 %v9637, %v9659
    %v9708 = vmul.f32 %v9638, %v9659
    %v9709 = vmul.f32 %v9639, %v9659
    %v9710 = vmul.f32 %v9640, %v9659
    %v9711 = vmul.f32 %v9641, %v9659
    %v9712 = vmul.f32 %v9642, %v9659
    %v9713 = vmul.f32 %v9643, %v9659
    %v9714 = vmul.f32 %v9644, %v9659
    %v9715 = vmul.f32 %v9645, %v9659
    %v9716 = vmul.f32 %v9646, %v9659
    %v9717 = vmul.f32 %v9647, %v9659
    %v9718 = vmul.f32 %v9648, %v9659
    %v9719 = vmul.f32 %v9649, %v9659
    %v9720 = vmul.f32 %v9650, %v9659
    %v9721 = vmul.f32 %v9651, %v9659
    %v9722 = vmul.f32 %v9652, %v9659
    %v9723 = vmul.f32 %v9653, %v9659
    %v9724 = vmul.f32 %v9654, %v9659
    %v9726 = vlaneseq
    %v9727 = vshrl.u32 %v9726, 7
    %v9728 = vsub.s32 0, %v9727
    %v9729 = vrot.slane %v9190, %v9728
    %v9731 = vadd.f32 %v9661, %v9729
    %v9732 = vadd.f32 %v9662, %v9729
    %v9733 = vadd.f32 %v9663, %v9729
    %v9734 = vadd.f32 %v9664, %v9729
    %v9735 = vadd.f32 %v9665, %v9729
    %v9736 = vadd.f32 %v9666, %v9729
    %v9737 = vadd.f32 %v9667, %v9729
    %v9738 = vadd.f32 %v9668, %v9729
    %v9739 = vadd.f32 %v9669, %v9729
    %v9740 = vadd.f32 %v9670, %v9729
    %v9741 = vadd.f32 %v9671, %v9729
    %v9742 = vadd.f32 %v9672, %v9729
    %v9743 = vadd.f32 %v9673, %v9729
    %v9744 = vadd.f32 %v9674, %v9729
    %v9745 = vadd.f32 %v9675, %v9729
    %v9746 = vadd.f32 %v9676, %v9729
    %v9747 = vadd.f32 %v9677, %v9729
    %v9748 = vadd.f32 %v9678, %v9729
    %v9749 = vadd.f32 %v9679, %v9729
    %v9750 = vadd.f32 %v9680, %v9729
    %v9751 = vadd.f32 %v9681, %v9729
    %v9752 = vadd.f32 %v9682, %v9729
    %v9753 = vadd.f32 %v9683, %v9729
    %v9754 = vadd.f32 %v9684, %v9729
    %v9755 = vadd.f32 %v9685, %v9729
    %v9756 = vadd.f32 %v9686, %v9729
    %v9757 = vadd.f32 %v9687, %v9729
    %v9758 = vadd.f32 %v9688, %v9729
    %v9759 = vadd.f32 %v9689, %v9729
    %v9760 = vadd.f32 %v9690, %v9729
    %v9761 = vadd.f32 %v9691, %v9729
    %v9762 = vadd.f32 %v9692, %v9729
    %v9763 = vadd.f32 %v9693, %v9729
    %v9764 = vadd.f32 %v9694, %v9729
    %v9765 = vadd.f32 %v9695, %v9729
    %v9766 = vadd.f32 %v9696, %v9729
    %v9767 = vadd.f32 %v9697, %v9729
    %v9768 = vadd.f32 %v9698, %v9729
    %v9769 = vadd.f32 %v9699, %v9729
    %v9770 = vadd.f32 %v9700, %v9729
    %v9771 = vadd.f32 %v9701, %v9729
    %v9772 = vadd.f32 %v9702, %v9729
    %v9773 = vadd.f32 %v9703, %v9729
    %v9774 = vadd.f32 %v9704, %v9729
    %v9775 = vadd.f32 %v9705, %v9729
    %v9776 = vadd.f32 %v9706, %v9729
    %v9777 = vadd.f32 %v9707, %v9729
    %v9778 = vadd.f32 %v9708, %v9729
    %v9779 = vadd.f32 %v9709, %v9729
    %v9780 = vadd.f32 %v9710, %v9729
    %v9781 = vadd.f32 %v9711, %v9729
    %v9782 = vadd.f32 %v9712, %v9729
    %v9783 = vadd.f32 %v9713, %v9729
    %v9784 = vadd.f32 %v9714, %v9729
    %v9785 = vadd.f32 %v9715, %v9729
    %v9786 = vadd.f32 %v9716, %v9729
    %v9787 = vadd.f32 %v9717, %v9729
    %v9788 = vadd.f32 %v9718, %v9729
    %v9789 = vadd.f32 %v9719, %v9729
    %v9790 = vadd.f32 %v9720, %v9729
    %v9791 = vadd.f32 %v9721, %v9729
    %v9792 = vadd.f32 %v9722, %v9729
    %v9793 = vadd.f32 %v9723, %v9729
    %v9794 = vadd.f32 %v9724, %v9729
    %vm9795 = vcmp.gt.f32.partialorder %v9731, 0.0
    %vm9796 = vcmp.gt.f32.partialorder %v9732, 0.0
    %vm9797 = vcmp.gt.f32.partialorder %v9733, 0.0
    %vm9798 = vcmp.gt.f32.partialorder %v9734, 0.0
    %vm9799 = vcmp.gt.f32.partialorder %v9735, 0.0
    %vm9800 = vcmp.gt.f32.partialorder %v9736, 0.0
    %vm9801 = vcmp.gt.f32.partialorder %v9737, 0.0
    %vm9802 = vcmp.gt.f32.partialorder %v9738, 0.0
    %vm9803 = vcmp.gt.f32.partialorder %v9739, 0.0
    %vm9804 = vcmp.gt.f32.partialorder %v9740, 0.0
    %vm9805 = vcmp.gt.f32.partialorder %v9741, 0.0
    %vm9806 = vcmp.gt.f32.partialorder %v9742, 0.0
    %vm9807 = vcmp.gt.f32.partialorder %v9743, 0.0
    %vm9808 = vcmp.gt.f32.partialorder %v9744, 0.0
    %vm9809 = vcmp.gt.f32.partialorder %v9745, 0.0
    %vm9810 = vcmp.gt.f32.partialorder %v9746, 0.0
    %vm9811 = vcmp.gt.f32.partialorder %v9747, 0.0
    %vm9812 = vcmp.gt.f32.partialorder %v9748, 0.0
    %vm9813 = vcmp.gt.f32.partialorder %v9749, 0.0
    %vm9814 = vcmp.gt.f32.partialorder %v9750, 0.0
    %vm9815 = vcmp.gt.f32.partialorder %v9751, 0.0
    %vm9816 = vcmp.gt.f32.partialorder %v9752, 0.0
    %vm9817 = vcmp.gt.f32.partialorder %v9753, 0.0
    %vm9818 = vcmp.gt.f32.partialorder %v9754, 0.0
    %vm9819 = vcmp.gt.f32.partialorder %v9755, 0.0
    %vm9820 = vcmp.gt.f32.partialorder %v9756, 0.0
    %vm9821 = vcmp.gt.f32.partialorder %v9757, 0.0
    %vm9822 = vcmp.gt.f32.partialorder %v9758, 0.0
    %vm9823 = vcmp.gt.f32.partialorder %v9759, 0.0
    %vm9824 = vcmp.gt.f32.partialorder %v9760, 0.0
    %vm9825 = vcmp.gt.f32.partialorder %v9761, 0.0
    %vm9826 = vcmp.gt.f32.partialorder %v9762, 0.0
    %vm9827 = vcmp.gt.f32.partialorder %v9763, 0.0
    %vm9828 = vcmp.gt.f32.partialorder %v9764, 0.0
    %vm9829 = vcmp.gt.f32.partialorder %v9765, 0.0
    %vm9830 = vcmp.gt.f32.partialorder %v9766, 0.0
    %vm9831 = vcmp.gt.f32.partialorder %v9767, 0.0
    %vm9832 = vcmp.gt.f32.partialorder %v9768, 0.0
    %vm9833 = vcmp.gt.f32.partialorder %v9769, 0.0
    %vm9834 = vcmp.gt.f32.partialorder %v9770, 0.0
    %vm9835 = vcmp.gt.f32.partialorder %v9771, 0.0
    %vm9836 = vcmp.gt.f32.partialorder %v9772, 0.0
    %vm9837 = vcmp.gt.f32.partialorder %v9773, 0.0
    %vm9838 = vcmp.gt.f32.partialorder %v9774, 0.0
    %vm9839 = vcmp.gt.f32.partialorder %v9775, 0.0
    %vm9840 = vcmp.gt.f32.partialorder %v9776, 0.0
    %vm9841 = vcmp.gt.f32.partialorder %v9777, 0.0
    %vm9842 = vcmp.gt.f32.partialorder %v9778, 0.0
    %vm9843 = vcmp.gt.f32.partialorder %v9779, 0.0
    %vm9844 = vcmp.gt.f32.partialorder %v9780, 0.0
    %vm9845 = vcmp.gt.f32.partialorder %v9781, 0.0
    %vm9846 = vcmp.gt.f32.partialorder %v9782, 0.0
    %vm9847 = vcmp.gt.f32.partialorder %v9783, 0.0
    %vm9848 = vcmp.gt.f32.partialorder %v9784, 0.0
    %vm9849 = vcmp.gt.f32.partialorder %v9785, 0.0
    %vm9850 = vcmp.gt.f32.partialorder %v9786, 0.0
    %vm9851 = vcmp.gt.f32.partialorder %v9787, 0.0
    %vm9852 = vcmp.gt.f32.partialorder %v9788, 0.0
    %vm9853 = vcmp.gt.f32.partialorder %v9789, 0.0
    %vm9854 = vcmp.gt.f32.partialorder %v9790, 0.0
    %vm9855 = vcmp.gt.f32.partialorder %v9791, 0.0
    %vm9856 = vcmp.gt.f32.partialorder %v9792, 0.0
    %vm9857 = vcmp.gt.f32.partialorder %v9793, 0.0
    %vm9858 = vcmp.gt.f32.partialorder %v9794, 0.0
    %v9859 = vmul.f32 %v9731, 0.2
    %v9860 = vmul.f32 %v9732, 0.2
    %v9861 = vmul.f32 %v9733, 0.2
    %v9862 = vmul.f32 %v9734, 0.2
    %v9863 = vmul.f32 %v9735, 0.2
    %v9864 = vmul.f32 %v9736, 0.2
    %v9865 = vmul.f32 %v9737, 0.2
    %v9866 = vmul.f32 %v9738, 0.2
    %v9867 = vmul.f32 %v9739, 0.2
    %v9868 = vmul.f32 %v9740, 0.2
    %v9869 = vmul.f32 %v9741, 0.2
    %v9870 = vmul.f32 %v9742, 0.2
    %v9871 = vmul.f32 %v9743, 0.2
    %v9872 = vmul.f32 %v9744, 0.2
    %v9873 = vmul.f32 %v9745, 0.2
    %v9874 = vmul.f32 %v9746, 0.2
    %v9875 = vmul.f32 %v9747, 0.2
    %v9876 = vmul.f32 %v9748, 0.2
    %v9877 = vmul.f32 %v9749, 0.2
    %v9878 = vmul.f32 %v9750, 0.2
    %v9879 = vmul.f32 %v9751, 0.2
    %v9880 = vmul.f32 %v9752, 0.2
    %v9881 = vmul.f32 %v9753, 0.2
    %v9882 = vmul.f32 %v9754, 0.2
    %v9883 = vmul.f32 %v9755, 0.2
    %v9884 = vmul.f32 %v9756, 0.2
    %v9885 = vmul.f32 %v9757, 0.2
    %v9886 = vmul.f32 %v9758, 0.2
    %v9887 = vmul.f32 %v9759, 0.2
    %v9888 = vmul.f32 %v9760, 0.2
    %v9889 = vmul.f32 %v9761, 0.2
    %v9890 = vmul.f32 %v9762, 0.2
    %v9891 = vmul.f32 %v9763, 0.2
    %v9892 = vmul.f32 %v9764, 0.2
    %v9893 = vmul.f32 %v9765, 0.2
    %v9894 = vmul.f32 %v9766, 0.2
    %v9895 = vmul.f32 %v9767, 0.2
    %v9896 = vmul.f32 %v9768, 0.2
    %v9897 = vmul.f32 %v9769, 0.2
    %v9898 = vmul.f32 %v9770, 0.2
    %v9899 = vmul.f32 %v9771, 0.2
    %v9900 = vmul.f32 %v9772, 0.2
    %v9901 = vmul.f32 %v9773, 0.2
    %v9902 = vmul.f32 %v9774, 0.2
    %v9903 = vmul.f32 %v9775, 0.2
    %v9904 = vmul.f32 %v9776, 0.2
    %v9905 = vmul.f32 %v9777, 0.2
    %v9906 = vmul.f32 %v9778, 0.2
    %v9907 = vmul.f32 %v9779, 0.2
    %v9908 = vmul.f32 %v9780, 0.2
    %v9909 = vmul.f32 %v9781, 0.2
    %v9910 = vmul.f32 %v9782, 0.2
    %v9911 = vmul.f32 %v9783, 0.2
    %v9912 = vmul.f32 %v9784, 0.2
    %v9913 = vmul.f32 %v9785, 0.2
    %v9914 = vmul.f32 %v9786, 0.2
    %v9915 = vmul.f32 %v9787, 0.2
    %v9916 = vmul.f32 %v9788, 0.2
    %v9917 = vmul.f32 %v9789, 0.2
    %v9918 = vmul.f32 %v9790, 0.2
    %v9919 = vmul.f32 %v9791, 0.2
    %v9920 = vmul.f32 %v9792, 0.2
    %v9921 = vmul.f32 %v9793, 0.2
    %v9922 = vmul.f32 %v9794, 0.2
    %v9923 = vsel %vm9795, %v9731, %v9859
    %v9924 = vsel %vm9796, %v9732, %v9860
    %v9925 = vsel %vm9797, %v9733, %v9861
    %v9926 = vsel %vm9798, %v9734, %v9862
    %v9927 = vsel %vm9799, %v9735, %v9863
    %v9928 = vsel %vm9800, %v9736, %v9864
    %v9929 = vsel %vm9801, %v9737, %v9865
    %v9930 = vsel %vm9802, %v9738, %v9866
    %v9931 = vsel %vm9803, %v9739, %v9867
    %v9932 = vsel %vm9804, %v9740, %v9868
    %v9933 = vsel %vm9805, %v9741, %v9869
    %v9934 = vsel %vm9806, %v9742, %v9870
    %v9935 = vsel %vm9807, %v9743, %v9871
    %v9936 = vsel %vm9808, %v9744, %v9872
    %v9937 = vsel %vm9809, %v9745, %v9873
    %v9938 = vsel %vm9810, %v9746, %v9874
    %v9939 = vsel %vm9811, %v9747, %v9875
    %v9940 = vsel %vm9812, %v9748, %v9876
    %v9941 = vsel %vm9813, %v9749, %v9877
    %v9942 = vsel %vm9814, %v9750, %v9878
    %v9943 = vsel %vm9815, %v9751, %v9879
    %v9944 = vsel %vm9816, %v9752, %v9880
    %v9945 = vsel %vm9817, %v9753, %v9881
    %v9946 = vsel %vm9818, %v9754, %v9882
    %v9947 = vsel %vm9819, %v9755, %v9883
    %v9948 = vsel %vm9820, %v9756, %v9884
    %v9949 = vsel %vm9821, %v9757, %v9885
    %v9950 = vsel %vm9822, %v9758, %v9886
    %v9951 = vsel %vm9823, %v9759, %v9887
    %v9952 = vsel %vm9824, %v9760, %v9888
    %v9953 = vsel %vm9825, %v9761, %v9889
    %v9954 = vsel %vm9826, %v9762, %v9890
    %v9955 = vsel %vm9827, %v9763, %v9891
    %v9956 = vsel %vm9828, %v9764, %v9892
    %v9957 = vsel %vm9829, %v9765, %v9893
    %v9958 = vsel %vm9830, %v9766, %v9894
    %v9959 = vsel %vm9831, %v9767, %v9895
    %v9960 = vsel %vm9832, %v9768, %v9896
    %v9961 = vsel %vm9833, %v9769, %v9897
    %v9962 = vsel %vm9834, %v9770, %v9898
    %v9963 = vsel %vm9835, %v9771, %v9899
    %v9964 = vsel %vm9836, %v9772, %v9900
    %v9965 = vsel %vm9837, %v9773, %v9901
    %v9966 = vsel %vm9838, %v9774, %v9902
    %v9967 = vsel %vm9839, %v9775, %v9903
    %v9968 = vsel %vm9840, %v9776, %v9904
    %v9969 = vsel %vm9841, %v9777, %v9905
    %v9970 = vsel %vm9842, %v9778, %v9906
    %v9971 = vsel %vm9843, %v9779, %v9907
    %v9972 = vsel %vm9844, %v9780, %v9908
    %v9973 = vsel %vm9845, %v9781, %v9909
    %v9974 = vsel %vm9846, %v9782, %v9910
    %v9975 = vsel %vm9847, %v9783, %v9911
    %v9976 = vsel %vm9848, %v9784, %v9912
    %v9977 = vsel %vm9849, %v9785, %v9913
    %v9978 = vsel %vm9850, %v9786, %v9914
    %v9979 = vsel %vm9851, %v9787, %v9915
    %v9980 = vsel %vm9852, %v9788, %v9916
    %v9981 = vsel %vm9853, %v9789, %v9917
    %v9982 = vsel %vm9854, %v9790, %v9918
    %v9983 = vsel %vm9855, %v9791, %v9919
    %v9984 = vsel %vm9856, %v9792, %v9920
    %v9985 = vsel %vm9857, %v9793, %v9921
    %v9986 = vsel %vm9858, %v9794, %v9922
    %v9987 = vld [vmem:[%s1] sm:$0xff]
    %v9988 = vld [vmem:[%s1 + $0x8] sm:$0xff]
    %v9989 = vld [vmem:[%s1 + $0x10] sm:$0xff]
    %v9990 = vld [vmem:[%s1 + $0x18] sm:$0xff]
    %v9991 = vld [vmem:[%s1 + $0x20] sm:$0xff]
    %v9992 = vld [vmem:[%s1 + $0x28] sm:$0xff]
    %v9993 = vld [vmem:[%s1 + $0x30] sm:$0xff]
    %v9994 = vld [vmem:[%s1 + $0x38] sm:$0xff]
    %v9995 = vld [vmem:[%s1 + $0x40] sm:$0xff]
    %v9996 = vld [vmem:[%s1 + $0x48] sm:$0xff]
    %v9997 = vld [vmem:[%s1 + $0x50] sm:$0xff]
    %v9998 = vld [vmem:[%s1 + $0x58] sm:$0xff]
    %v9999 = vld [vmem:[%s1 + $0x60] sm:$0xff]
    %v10000 = vld [vmem:[%s1 + $0x68] sm:$0xff]
    %v10001 = vld [vmem:[%s1 + $0x70] sm:$0xff]
    %v10002 = vld [vmem:[%s1 + $0x78] sm:$0xff]
    %v10003 = vld [vmem:[%s1 + $0x80] sm:$0xff]
    %v10004 = vld [vmem:[%s1 + $0x88] sm:$0xff]
    %v10005 = vld [vmem:[%s1 + $0x90] sm:$0xff]
    %v10006 = vld [vmem:[%s1 + $0x98] sm:$0xff]
    %v10007 = vld [vmem:[%s1 + $0xa0] sm:$0xff]
    %v10008 = vld [vmem:[%s1 + $0xa8] sm:$0xff]
    %v10009 = vld [vmem:[%s1 + $0xb0] sm:$0xff]
    %v10010 = vld [vmem:[%s1 + $0xb8] sm:$0xff]
    %v10011 = vld [vmem:[%s1 + $0xc0] sm:$0xff]
    %v10012 = vld [vmem:[%s1 + $0xc8] sm:$0xff]
    %v10013 = vld [vmem:[%s1 + $0xd0] sm:$0xff]
    %v10014 = vld [vmem:[%s1 + $0xd8] sm:$0xff]
    %v10015 = vld [vmem:[%s1 + $0xe0] sm:$0xff]
    %v10016 = vld [vmem:[%s1 + $0xe8] sm:$0xff]
    %v10017 = vld [vmem:[%s1 + $0xf0] sm:$0xff]
    %v10018 = vld [vmem:[%s1 + $0xf8] sm:$0xff]
    %v10019 = vld [vmem:[%s1 + $0x100] sm:$0xff]
    %v10020 = vld [vmem:[%s1 + $0x108] sm:$0xff]
    %v10021 = vld [vmem:[%s1 + $0x110] sm:$0xff]
    %v10022 = vld [vmem:[%s1 + $0x118] sm:$0xff]
    %v10023 = vld [vmem:[%s1 + $0x120] sm:$0xff]
    %v10024 = vld [vmem:[%s1 + $0x128] sm:$0xff]
    %v10025 = vld [vmem:[%s1 + $0x130] sm:$0xff]
    %v10026 = vld [vmem:[%s1 + $0x138] sm:$0xff]
    %v10027 = vld [vmem:[%s1 + $0x140] sm:$0xff]
    %v10028 = vld [vmem:[%s1 + $0x148] sm:$0xff]
    %v10029 = vld [vmem:[%s1 + $0x150] sm:$0xff]
    %v10030 = vld [vmem:[%s1 + $0x158] sm:$0xff]
    %v10031 = vld [vmem:[%s1 + $0x160] sm:$0xff]
    %v10032 = vld [vmem:[%s1 + $0x168] sm:$0xff]
    %v10033 = vld [vmem:[%s1 + $0x170] sm:$0xff]
    %v10034 = vld [vmem:[%s1 + $0x178] sm:$0xff]
    %v10035 = vld [vmem:[%s1 + $0x180] sm:$0xff]
    %v10036 = vld [vmem:[%s1 + $0x188] sm:$0xff]
    %v10037 = vld [vmem:[%s1 + $0x190] sm:$0xff]
    %v10038 = vld [vmem:[%s1 + $0x198] sm:$0xff]
    %v10039 = vld [vmem:[%s1 + $0x1a0] sm:$0xff]
    %v10040 = vld [vmem:[%s1 + $0x1a8] sm:$0xff]
    %v10041 = vld [vmem:[%s1 + $0x1b0] sm:$0xff]
    %v10042 = vld [vmem:[%s1 + $0x1b8] sm:$0xff]
    %v10043 = vld [vmem:[%s1 + $0x1c0] sm:$0xff]
    %v10044 = vld [vmem:[%s1 + $0x1c8] sm:$0xff]
    %v10045 = vld [vmem:[%s1 + $0x1d0] sm:$0xff]
    %v10046 = vld [vmem:[%s1 + $0x1d8] sm:$0xff]
    %v10047 = vld [vmem:[%s1 + $0x1e0] sm:$0xff]
    %v10048 = vld [vmem:[%s1 + $0x1e8] sm:$0xff]
    %v10049 = vld [vmem:[%s1 + $0x1f0] sm:$0xff]
    %v10050 = vld [vmem:[%s1 + $0x1f8] sm:$0xff]
    %vm10051 = vcmask 31744
    %v10052 = vsel %vm10051, %v9987, 0.0
    %10053 = vadd.xlane.f32.xlu0 %v10052
    %v10054 = vpop.xlane.xlu0 %10053
    %v10055 = vsel %vm10051, %v9988, 0.0
    %10056 = vadd.xlane.f32.xlu0 %v10055
    %v10057 = vpop.xlane.xlu0 %10056
    %v10058 = vsel %vm10051, %v9989, 0.0
    %10059 = vadd.xlane.f32.xlu0 %v10058
    %v10060 = vpop.xlane.xlu0 %10059
    %v10061 = vsel %vm10051, %v9990, 0.0
    %10062 = vadd.xlane.f32.xlu0 %v10061
    %v10063 = vpop.xlane.xlu0 %10062
    %v10064 = vsel %vm10051, %v9991, 0.0
    %10065 = vadd.xlane.f32.xlu0 %v10064
    %v10066 = vpop.xlane.xlu0 %10065
    %v10067 = vsel %vm10051, %v9992, 0.0
    %10068 = vadd.xlane.f32.xlu0 %v10067
    %v10069 = vpop.xlane.xlu0 %10068
    %v10070 = vsel %vm10051, %v9993, 0.0
    %10071 = vadd.xlane.f32.xlu0 %v10070
    %v10072 = vpop.xlane.xlu0 %10071
    %v10073 = vsel %vm10051, %v9994, 0.0
    %10074 = vadd.xlane.f32.xlu0 %v10073
    %v10075 = vpop.xlane.xlu0 %10074
    %v10076 = vsel %vm10051, %v9995, 0.0
    %10077 = vadd.xlane.f32.xlu0 %v10076
    %v10078 = vpop.xlane.xlu0 %10077
    %v10079 = vsel %vm10051, %v9996, 0.0
    %10080 = vadd.xlane.f32.xlu0 %v10079
    %v10081 = vpop.xlane.xlu0 %10080
    %v10082 = vsel %vm10051, %v9997, 0.0
    %10083 = vadd.xlane.f32.xlu0 %v10082
    %v10084 = vpop.xlane.xlu0 %10083
    %v10085 = vsel %vm10051, %v9998, 0.0
    %10086 = vadd.xlane.f32.xlu0 %v10085
    %v10087 = vpop.xlane.xlu0 %10086
    %v10088 = vsel %vm10051, %v9999, 0.0
    %10089 = vadd.xlane.f32.xlu0 %v10088
    %v10090 = vpop.xlane.xlu0 %10089
    %v10091 = vsel %vm10051, %v10000, 0.0
    %10092 = vadd.xlane.f32.xlu0 %v10091
    %v10093 = vpop.xlane.xlu0 %10092
    %v10094 = vsel %vm10051, %v10001, 0.0
    %10095 = vadd.xlane.f32.xlu0 %v10094
    %v10096 = vpop.xlane.xlu0 %10095
    %v10097 = vsel %vm10051, %v10002, 0.0
    %10098 = vadd.xlane.f32.xlu0 %v10097
    %v10099 = vpop.xlane.xlu0 %10098
    %v10100 = vsel %vm10051, %v10003, 0.0
    %10101 = vadd.xlane.f32.xlu0 %v10100
    %v10102 = vpop.xlane.xlu0 %10101
    %v10103 = vsel %vm10051, %v10004, 0.0
    %10104 = vadd.xlane.f32.xlu0 %v10103
    %v10105 = vpop.xlane.xlu0 %10104
    %v10106 = vsel %vm10051, %v10005, 0.0
    %10107 = vadd.xlane.f32.xlu0 %v10106
    %v10108 = vpop.xlane.xlu0 %10107
    %v10109 = vsel %vm10051, %v10006, 0.0
    %10110 = vadd.xlane.f32.xlu0 %v10109
    %v10111 = vpop.xlane.xlu0 %10110
    %v10112 = vsel %vm10051, %v10007, 0.0
    %10113 = vadd.xlane.f32.xlu0 %v10112
    %v10114 = vpop.xlane.xlu0 %10113
    %v10115 = vsel %vm10051, %v10008, 0.0
    %10116 = vadd.xlane.f32.xlu0 %v10115
    %v10117 = vpop.xlane.xlu0 %10116
    %v10118 = vsel %vm10051, %v10009, 0.0
    %10119 = vadd.xlane.f32.xlu0 %v10118
    %v10120 = vpop.xlane.xlu0 %10119
    %v10121 = vsel %vm10051, %v10010, 0.0
    %10122 = vadd.xlane.f32.xlu0 %v10121
    %v10123 = vpop.xlane.xlu0 %10122
    %v10124 = vsel %vm10051, %v10011, 0.0
    %10125 = vadd.xlane.f32.xlu0 %v10124
    %v10126 = vpop.xlane.xlu0 %10125
    %v10127 = vsel %vm10051, %v10012, 0.0
    %10128 = vadd.xlane.f32.xlu0 %v10127
    %v10129 = vpop.xlane.xlu0 %10128
    %v10130 = vsel %vm10051, %v10013, 0.0
    %10131 = vadd.xlane.f32.xlu0 %v10130
    %v10132 = vpop.xlane.xlu0 %10131
    %v10133 = vsel %vm10051, %v10014, 0.0
    %10134 = vadd.xlane.f32.xlu0 %v10133
    %v10135 = vpop.xlane.xlu0 %10134
    %v10136 = vsel %vm10051, %v10015, 0.0
    %10137 = vadd.xlane.f32.xlu0 %v10136
    %v10138 = vpop.xlane.xlu0 %10137
    %v10139 = vsel %vm10051, %v10016, 0.0
    %10140 = vadd.xlane.f32.xlu0 %v10139
    %v10141 = vpop.xlane.xlu0 %10140
    %v10142 = vsel %vm10051, %v10017, 0.0
    %10143 = vadd.xlane.f32.xlu0 %v10142
    %v10144 = vpop.xlane.xlu0 %10143
    %v10145 = vsel %vm10051, %v10018, 0.0
    %10146 = vadd.xlane.f32.xlu0 %v10145
    %v10147 = vpop.xlane.xlu0 %10146
    %v10148 = vsel %vm10051, %v10019, 0.0
    %10149 = vadd.xlane.f32.xlu0 %v10148
    %v10150 = vpop.xlane.xlu0 %10149
    %v10151 = vsel %vm10051, %v10020, 0.0
    %10152 = vadd.xlane.f32.xlu0 %v10151
    %v10153 = vpop.xlane.xlu0 %10152
    %v10154 = vsel %vm10051, %v10021, 0.0
    %10155 = vadd.xlane.f32.xlu0 %v10154
    %v10156 = vpop.xlane.xlu0 %10155
    %v10157 = vsel %vm10051, %v10022, 0.0
    %10158 = vadd.xlane.f32.xlu0 %v10157
    %v10159 = vpop.xlane.xlu0 %10158
    %v10160 = vsel %vm10051, %v10023, 0.0
    %10161 = vadd.xlane.f32.xlu0 %v10160
    %v10162 = vpop.xlane.xlu0 %10161
    %v10163 = vsel %vm10051, %v10024, 0.0
    %10164 = vadd.xlane.f32.xlu0 %v10163
    %v10165 = vpop.xlane.xlu0 %10164
    %v10166 = vsel %vm10051, %v10025, 0.0
    %10167 = vadd.xlane.f32.xlu0 %v10166
    %v10168 = vpop.xlane.xlu0 %10167
    %v10169 = vsel %vm10051, %v10026, 0.0
    %10170 = vadd.xlane.f32.xlu0 %v10169
    %v10171 = vpop.xlane.xlu0 %10170
    %v10172 = vsel %vm10051, %v10027, 0.0
    %10173 = vadd.xlane.f32.xlu0 %v10172
    %v10174 = vpop.xlane.xlu0 %10173
    %v10175 = vsel %vm10051, %v10028, 0.0
    %10176 = vadd.xlane.f32.xlu0 %v10175
    %v10177 = vpop.xlane.xlu0 %10176
    %v10178 = vsel %vm10051, %v10029, 0.0
    %10179 = vadd.xlane.f32.xlu0 %v10178
    %v10180 = vpop.xlane.xlu0 %10179
    %v10181 = vsel %vm10051, %v10030, 0.0
    %10182 = vadd.xlane.f32.xlu0 %v10181
    %v10183 = vpop.xlane.xlu0 %10182
    %v10184 = vsel %vm10051, %v10031, 0.0
    %10185 = vadd.xlane.f32.xlu0 %v10184
    %v10186 = vpop.xlane.xlu0 %10185
    %v10187 = vsel %vm10051, %v10032, 0.0
    %10188 = vadd.xlane.f32.xlu0 %v10187
    %v10189 = vpop.xlane.xlu0 %10188
    %v10190 = vsel %vm10051, %v10033, 0.0
    %10191 = vadd.xlane.f32.xlu0 %v10190
    %v10192 = vpop.xlane.xlu0 %10191
    %v10193 = vsel %vm10051, %v10034, 0.0
    %10194 = vadd.xlane.f32.xlu0 %v10193
    %v10195 = vpop.xlane.xlu0 %10194
    %v10196 = vsel %vm10051, %v10035, 0.0
    %10197 = vadd.xlane.f32.xlu0 %v10196
    %v10198 = vpop.xlane.xlu0 %10197
    %v10199 = vsel %vm10051, %v10036, 0.0
    %10200 = vadd.xlane.f32.xlu0 %v10199
    %v10201 = vpop.xlane.xlu0 %10200
    %v10202 = vsel %vm10051, %v10037, 0.0
    %10203 = vadd.xlane.f32.xlu0 %v10202
    %v10204 = vpop.xlane.xlu0 %10203
    %v10205 = vsel %vm10051, %v10038, 0.0
    %10206 = vadd.xlane.f32.xlu0 %v10205
    %v10207 = vpop.xlane.xlu0 %10206
    %v10208 = vsel %vm10051, %v10039, 0.0
    %10209 = vadd.xlane.f32.xlu0 %v10208
    %v10210 = vpop.xlane.xlu0 %10209
    %v10211 = vsel %vm10051, %v10040, 0.0
    %10212 = vadd.xlane.f32.xlu0 %v10211
    %v10213 = vpop.xlane.xlu0 %10212
    %v10214 = vsel %vm10051, %v10041, 0.0
    %10215 = vadd.xlane.f32.xlu0 %v10214
    %v10216 = vpop.xlane.xlu0 %10215
    %v10217 = vsel %vm10051, %v10042, 0.0
    %10218 = vadd.xlane.f32.xlu0 %v10217
    %v10219 = vpop.xlane.xlu0 %10218
    %v10220 = vsel %vm10051, %v10043, 0.0
    %10221 = vadd.xlane.f32.xlu0 %v10220
    %v10222 = vpop.xlane.xlu0 %10221
    %v10223 = vsel %vm10051, %v10044, 0.0
    %10224 = vadd.xlane.f32.xlu0 %v10223
    %v10225 = vpop.xlane.xlu0 %10224
    %v10226 = vsel %vm10051, %v10045, 0.0
    %10227 = vadd.xlane.f32.xlu0 %v10226
    %v10228 = vpop.xlane.xlu0 %10227
    %v10229 = vsel %vm10051, %v10046, 0.0
    %10230 = vadd.xlane.f32.xlu0 %v10229
    %v10231 = vpop.xlane.xlu0 %10230
    %v10232 = vsel %vm10051, %v10047, 0.0
    %10233 = vadd.xlane.f32.xlu0 %v10232
    %v10234 = vpop.xlane.xlu0 %10233
    %v10235 = vsel %vm10051, %v10048, 0.0
    %10236 = vadd.xlane.f32.xlu0 %v10235
    %v10237 = vpop.xlane.xlu0 %10236
    %v10238 = vsel %vm10051, %v10049, 0.0
    %10239 = vadd.xlane.f32.xlu0 %v10238
    %v10240 = vpop.xlane.xlu0 %10239
    %v10241 = vsel %vm10051, %v10050, 0.0
    %10242 = vadd.xlane.f32.xlu0 %v10241
    %v10243 = vpop.xlane.xlu0 %10242
    %v10244 = vmax.f32 %v10054, 0.0
    %v10245 = vmax.f32 %v10057, 0.0
    %v10246 = vmax.f32 %v10060, 0.0
    %v10247 = vmax.f32 %v10063, 0.0
    %v10248 = vmax.f32 %v10066, 0.0
    %v10249 = vmax.f32 %v10069, 0.0
    %v10250 = vmax.f32 %v10072, 0.0
    %v10251 = vmax.f32 %v10075, 0.0
    %v10252 = vmax.f32 %v10078, 0.0
    %v10253 = vmax.f32 %v10081, 0.0
    %v10254 = vmax.f32 %v10084, 0.0
    %v10255 = vmax.f32 %v10087, 0.0
    %v10256 = vmax.f32 %v10090, 0.0
    %v10257 = vmax.f32 %v10093, 0.0
    %v10258 = vmax.f32 %v10096, 0.0
    %v10259 = vmax.f32 %v10099, 0.0
    %v10260 = vmax.f32 %v10102, 0.0
    %v10261 = vmax.f32 %v10105, 0.0
    %v10262 = vmax.f32 %v10108, 0.0
    %v10263 = vmax.f32 %v10111, 0.0
    %v10264 = vmax.f32 %v10114, 0.0
    %v10265 = vmax.f32 %v10117, 0.0
    %v10266 = vmax.f32 %v10120, 0.0
    %v10267 = vmax.f32 %v10123, 0.0
    %v10268 = vmax.f32 %v10126, 0.0
    %v10269 = vmax.f32 %v10129, 0.0
    %v10270 = vmax.f32 %v10132, 0.0
    %v10271 = vmax.f32 %v10135, 0.0
    %v10272 = vmax.f32 %v10138, 0.0
    %v10273 = vmax.f32 %v10141, 0.0
    %v10274 = vmax.f32 %v10144, 0.0
    %v10275 = vmax.f32 %v10147, 0.0
    %v10276 = vmax.f32 %v10150, 0.0
    %v10277 = vmax.f32 %v10153, 0.0
    %v10278 = vmax.f32 %v10156, 0.0
    %v10279 = vmax.f32 %v10159, 0.0
    %v10280 = vmax.f32 %v10162, 0.0
    %v10281 = vmax.f32 %v10165, 0.0
    %v10282 = vmax.f32 %v10168, 0.0
    %v10283 = vmax.f32 %v10171, 0.0
    %v10284 = vmax.f32 %v10174, 0.0
    %v10285 = vmax.f32 %v10177, 0.0
    %v10286 = vmax.f32 %v10180, 0.0
    %v10287 = vmax.f32 %v10183, 0.0
    %v10288 = vmax.f32 %v10186, 0.0
    %v10289 = vmax.f32 %v10189, 0.0
    %v10290 = vmax.f32 %v10192, 0.0
    %v10291 = vmax.f32 %v10195, 0.0
    %v10292 = vmax.f32 %v10198, 0.0
    %v10293 = vmax.f32 %v10201, 0.0
    %v10294 = vmax.f32 %v10204, 0.0
    %v10295 = vmax.f32 %v10207, 0.0
    %v10296 = vmax.f32 %v10210, 0.0
    %v10297 = vmax.f32 %v10213, 0.0
    %v10298 = vmax.f32 %v10216, 0.0
    %v10299 = vmax.f32 %v10219, 0.0
    %v10300 = vmax.f32 %v10222, 0.0
    %v10301 = vmax.f32 %v10225, 0.0
    %v10302 = vmax.f32 %v10228, 0.0
    %v10303 = vmax.f32 %v10231, 0.0
    %v10304 = vmax.f32 %v10234, 0.0
    %v10305 = vmax.f32 %v10237, 0.0
    %v10306 = vmax.f32 %v10240, 0.0
    %v10307 = vmax.f32 %v10243, 0.0
    %v10308 = vmin.f32 %v10244, 1.0
    %v10309 = vmin.f32 %v10245, 1.0
    %v10310 = vmin.f32 %v10246, 1.0
    %v10311 = vmin.f32 %v10247, 1.0
    %v10312 = vmin.f32 %v10248, 1.0
    %v10313 = vmin.f32 %v10249, 1.0
    %v10314 = vmin.f32 %v10250, 1.0
    %v10315 = vmin.f32 %v10251, 1.0
    %v10316 = vmin.f32 %v10252, 1.0
    %v10317 = vmin.f32 %v10253, 1.0
    %v10318 = vmin.f32 %v10254, 1.0
    %v10319 = vmin.f32 %v10255, 1.0
    %v10320 = vmin.f32 %v10256, 1.0
    %v10321 = vmin.f32 %v10257, 1.0
    %v10322 = vmin.f32 %v10258, 1.0
    %v10323 = vmin.f32 %v10259, 1.0
    %v10324 = vmin.f32 %v10260, 1.0
    %v10325 = vmin.f32 %v10261, 1.0
    %v10326 = vmin.f32 %v10262, 1.0
    %v10327 = vmin.f32 %v10263, 1.0
    %v10328 = vmin.f32 %v10264, 1.0
    %v10329 = vmin.f32 %v10265, 1.0
    %v10330 = vmin.f32 %v10266, 1.0
    %v10331 = vmin.f32 %v10267, 1.0
    %v10332 = vmin.f32 %v10268, 1.0
    %v10333 = vmin.f32 %v10269, 1.0
    %v10334 = vmin.f32 %v10270, 1.0
    %v10335 = vmin.f32 %v10271, 1.0
    %v10336 = vmin.f32 %v10272, 1.0
    %v10337 = vmin.f32 %v10273, 1.0
    %v10338 = vmin.f32 %v10274, 1.0
    %v10339 = vmin.f32 %v10275, 1.0
    %v10340 = vmin.f32 %v10276, 1.0
    %v10341 = vmin.f32 %v10277, 1.0
    %v10342 = vmin.f32 %v10278, 1.0
    %v10343 = vmin.f32 %v10279, 1.0
    %v10344 = vmin.f32 %v10280, 1.0
    %v10345 = vmin.f32 %v10281, 1.0
    %v10346 = vmin.f32 %v10282, 1.0
    %v10347 = vmin.f32 %v10283, 1.0
    %v10348 = vmin.f32 %v10284, 1.0
    %v10349 = vmin.f32 %v10285, 1.0
    %v10350 = vmin.f32 %v10286, 1.0
    %v10351 = vmin.f32 %v10287, 1.0
    %v10352 = vmin.f32 %v10288, 1.0
    %v10353 = vmin.f32 %v10289, 1.0
    %v10354 = vmin.f32 %v10290, 1.0
    %v10355 = vmin.f32 %v10291, 1.0
    %v10356 = vmin.f32 %v10292, 1.0
    %v10357 = vmin.f32 %v10293, 1.0
    %v10358 = vmin.f32 %v10294, 1.0
    %v10359 = vmin.f32 %v10295, 1.0
    %v10360 = vmin.f32 %v10296, 1.0
    %v10361 = vmin.f32 %v10297, 1.0
    %v10362 = vmin.f32 %v10298, 1.0
    %v10363 = vmin.f32 %v10299, 1.0
    %v10364 = vmin.f32 %v10300, 1.0
    %v10365 = vmin.f32 %v10301, 1.0
    %v10366 = vmin.f32 %v10302, 1.0
    %v10367 = vmin.f32 %v10303, 1.0
    %v10368 = vmin.f32 %v10304, 1.0
    %v10369 = vmin.f32 %v10305, 1.0
    %v10370 = vmin.f32 %v10306, 1.0
    %v10371 = vmin.f32 %v10307, 1.0
    %v10372 = vmul.f32 %v9923, %v10308
    %v10373 = vmul.f32 %v9924, %v10309
    %v10374 = vmul.f32 %v9925, %v10310
    %v10375 = vmul.f32 %v9926, %v10311
    %v10376 = vmul.f32 %v9927, %v10312
    %v10377 = vmul.f32 %v9928, %v10313
    %v10378 = vmul.f32 %v9929, %v10314
    %v10379 = vmul.f32 %v9930, %v10315
    %v10380 = vmul.f32 %v9931, %v10316
    %v10381 = vmul.f32 %v9932, %v10317
    %v10382 = vmul.f32 %v9933, %v10318
    %v10383 = vmul.f32 %v9934, %v10319
    %v10384 = vmul.f32 %v9935, %v10320
    %v10385 = vmul.f32 %v9936, %v10321
    %v10386 = vmul.f32 %v9937, %v10322
    %v10387 = vmul.f32 %v9938, %v10323
    %v10388 = vmul.f32 %v9939, %v10324
    %v10389 = vmul.f32 %v9940, %v10325
    %v10390 = vmul.f32 %v9941, %v10326
    %v10391 = vmul.f32 %v9942, %v10327
    %v10392 = vmul.f32 %v9943, %v10328
    %v10393 = vmul.f32 %v9944, %v10329
    %v10394 = vmul.f32 %v9945, %v10330
    %v10395 = vmul.f32 %v9946, %v10331
    %v10396 = vmul.f32 %v9947, %v10332
    %v10397 = vmul.f32 %v9948, %v10333
    %v10398 = vmul.f32 %v9949, %v10334
    %v10399 = vmul.f32 %v9950, %v10335
    %v10400 = vmul.f32 %v9951, %v10336
    %v10401 = vmul.f32 %v9952, %v10337
    %v10402 = vmul.f32 %v9953, %v10338
    %v10403 = vmul.f32 %v9954, %v10339
    %v10404 = vmul.f32 %v9955, %v10340
    %v10405 = vmul.f32 %v9956, %v10341
    %v10406 = vmul.f32 %v9957, %v10342
    %v10407 = vmul.f32 %v9958, %v10343
    %v10408 = vmul.f32 %v9959, %v10344
    %v10409 = vmul.f32 %v9960, %v10345
    %v10410 = vmul.f32 %v9961, %v10346
    %v10411 = vmul.f32 %v9962, %v10347
    %v10412 = vmul.f32 %v9963, %v10348
    %v10413 = vmul.f32 %v9964, %v10349
    %v10414 = vmul.f32 %v9965, %v10350
    %v10415 = vmul.f32 %v9966, %v10351
    %v10416 = vmul.f32 %v9967, %v10352
    %v10417 = vmul.f32 %v9968, %v10353
    %v10418 = vmul.f32 %v9969, %v10354
    %v10419 = vmul.f32 %v9970, %v10355
    %v10420 = vmul.f32 %v9971, %v10356
    %v10421 = vmul.f32 %v9972, %v10357
    %v10422 = vmul.f32 %v9973, %v10358
    %v10423 = vmul.f32 %v9974, %v10359
    %v10424 = vmul.f32 %v9975, %v10360
    %v10425 = vmul.f32 %v9976, %v10361
    %v10426 = vmul.f32 %v9977, %v10362
    %v10427 = vmul.f32 %v9978, %v10363
    %v10428 = vmul.f32 %v9979, %v10364
    %v10429 = vmul.f32 %v9980, %v10365
    %v10430 = vmul.f32 %v9981, %v10366
    %v10431 = vmul.f32 %v9982, %v10367
    %v10432 = vmul.f32 %v9983, %v10368
    %v10433 = vmul.f32 %v9984, %v10369
    %v10434 = vmul.f32 %v9985, %v10370
    %v10435 = vmul.f32 %v9986, %v10371
    %v10436 = vld [vmem:[%s8] sm:$0xff]
    %v10437 = vld [vmem:[%s8 + $0x8] sm:$0xff]
    %v10438 = vld [vmem:[%s8 + $0x10] sm:$0xf]
    %v10440 = vsel %vm10051, %v9987, 0
    %v10443 = vsel %vm10051, %v9988, 0
    %v10446 = vsel %vm10051, %v9989, 0
    %v10449 = vsel %vm10051, %v9990, 0
    %v10452 = vsel %vm10051, %v9991, 0
    %v10455 = vsel %vm10051, %v9992, 0
    %v10458 = vsel %vm10051, %v9993, 0
    %v10461 = vsel %vm10051, %v9994, 0
    %v10464 = vsel %vm10051, %v9995, 0
    %v10467 = vsel %vm10051, %v9996, 0
    %v10470 = vsel %vm10051, %v9997, 0
    %v10473 = vsel %vm10051, %v9998, 0
    %v10476 = vsel %vm10051, %v9999, 0
    %v10479 = vsel %vm10051, %v10000, 0
    %v10482 = vsel %vm10051, %v10001, 0
    %v10485 = vsel %vm10051, %v10002, 0
    %v10488 = vsel %vm10051, %v10003, 0
    %v10491 = vsel %vm10051, %v10004, 0
    %v10494 = vsel %vm10051, %v10005, 0
    %v10497 = vsel %vm10051, %v10006, 0
    %v10500 = vsel %vm10051, %v10007, 0
    %v10503 = vsel %vm10051, %v10008, 0
    %v10506 = vsel %vm10051, %v10009, 0
    %v10509 = vsel %vm10051, %v10010, 0
    %v10512 = vsel %vm10051, %v10011, 0
    %v10515 = vsel %vm10051, %v10012, 0
    %v10518 = vsel %vm10051, %v10013, 0
    %v10521 = vsel %vm10051, %v10014, 0
    %v10524 = vsel %vm10051, %v10015, 0
    %v10527 = vsel %vm10051, %v10016, 0
    %v10530 = vsel %vm10051, %v10017, 0
    %v10533 = vsel %vm10051, %v10018, 0
    %v10536 = vsel %vm10051, %v10019, 0
    %v10539 = vsel %vm10051, %v10020, 0
    %v10542 = vsel %vm10051, %v10021, 0
    %v10545 = vsel %vm10051, %v10022, 0
    %v10548 = vsel %vm10051, %v10023, 0
    %v10551 = vsel %vm10051, %v10024, 0
    %v10554 = vsel %vm10051, %v10025, 0
    %v10557 = vsel %vm10051, %v10026, 0
    %v10560 = vsel %vm10051, %v10027, 0
    %v10563 = vsel %vm10051, %v10028, 0
    %v10566 = vsel %vm10051, %v10029, 0
    %v10569 = vsel %vm10051, %v10030, 0
    %v10572 = vsel %vm10051, %v10031, 0
    %v10575 = vsel %vm10051, %v10032, 0
    %v10578 = vsel %vm10051, %v10033, 0
    %v10581 = vsel %vm10051, %v10034, 0
    %v10584 = vsel %vm10051, %v10035, 0
    %v10587 = vsel %vm10051, %v10036, 0
    %v10590 = vsel %vm10051, %v10037, 0
    %v10593 = vsel %vm10051, %v10038, 0
    %v10596 = vsel %vm10051, %v10039, 0
    %v10599 = vsel %vm10051, %v10040, 0
    %v10602 = vsel %vm10051, %v10041, 0
    %v10605 = vsel %vm10051, %v10042, 0
    %v10608 = vsel %vm10051, %v10043, 0
    %v10611 = vsel %vm10051, %v10044, 0
    %v10614 = vsel %vm10051, %v10045, 0
    %v10617 = vsel %vm10051, %v10046, 0
    %v10620 = vsel %vm10051, %v10047, 0
    %v10623 = vsel %vm10051, %v10048, 0
    %v10626 = vsel %vm10051, %v10049, 0
    %v10629 = vsel %vm10051, %v10050, 0
    %vm10631 = vcmask 1043456
    %v10633 = vsel %vm10631, %v10438, 0
    %10635 = vmatprep.subr.mxu0 0.0
    %10636 = vmatpush1.msra.mxu0 0.0
    %10637 = vmatprep.subr.mxu0 0.0
    %10638 = vmatpush1.msra.mxu0 0.0
    %10639 = vmatprep.subr.mxu0 0.0
    %10640 = vmatpush1.msra.mxu0 0.0
    %10641 = vmatprep.subr.mxu0 0.0
    %10642 = vmatpush1.msra.mxu0 0.0
    %10643 = vmatprep.subr.mxu0 0.0
    %10644 = vmatpush1.msra.mxu0 0.0
    %10645 = vmatprep.subr.mxu0 0.0
    %10646 = vmatpush1.msra.mxu0 0.0
    %10647 = vmatprep.subr.mxu0 0.0
    %10648 = vmatpush1.msra.mxu0 0.0
    %10649 = vmatprep.subr.mxu0 0.0
    %10650 = vmatpush1.msra.mxu0 0.0
    %10651 = vmatprep.subr.mxu0 0.0
    %10652 = vmatpush1.msra.mxu0 0.0
    %10653 = vmatprep.subr.mxu0 0.0
    %10654 = vmatpush1.msra.mxu0 0.0
    %10655 = vmatprep.subr.mxu0 0.0
    %10656 = vmatpush1.msra.mxu0 0.0
    %10657 = vmatprep.subr.mxu0 0.0
    %10658 = vmatpush1.msra.mxu0 0.0
    %10659 = vmatprep.subr.mxu0 0.0
    %10660 = vmatpush1.msra.mxu0 0.0
    %10661 = vmatprep.subr.mxu0 0.0
    %10662 = vmatpush1.msra.mxu0 0.0
    %10663 = vmatprep.subr.mxu0 0.0
    %10664 = vmatpush1.msra.mxu0 0.0
    %10665 = vmatprep.subr.mxu0 0.0
    %10666 = vmatpush1.msra.mxu0 %v10633
    %10667 = vmatprep.subr.mxu0 0.0
    %10668 = vmatpush2.msra.mxu0 0.0
    %10669 = vmatprep.subr.mxu0 0.0
    %10670 = vmatpush2.msra.mxu0 0.0
    %10671 = vmatprep.subr.mxu0 0.0
    %10672 = vmatpush2.msra.mxu0 0.0
    %10673 = vmatprep.subr.mxu0 0.0
    %10674 = vmatpush2.msra.mxu0 0.0
    %10675 = vmatprep.subr.mxu0 0.0
    %10676 = vmatpush2.msra.mxu0 0.0
    %10677 = vmatprep.subr.mxu0 0.0
    %10678 = vmatpush2.msra.mxu0 0.0
    %10679 = vmatprep.subr.mxu0 0.0
    %10680 = vmatpush2.msra.mxu0 0.0
    %10681 = vmatprep.subr.mxu0 0.0
    %10682 = vmatpush2.msra.mxu0 0.0
    %10683 = vmatprep.subr.mxu0 0.0
    %10684 = vmatpush2.msra.mxu0 0.0
    %10685 = vmatprep.subr.mxu0 0.0
    %10686 = vmatpush2.msra.mxu0 0.0
    %10687 = vmatprep.subr.mxu0 0.0
    %10688 = vmatpush2.msra.mxu0 0.0
    %10689 = vmatprep.subr.mxu0 0.0
    %10690 = vmatpush2.msra.mxu0 0.0
    %10691 = vmatprep.subr.mxu0 0.0
    %10692 = vmatpush2.msra.mxu0 0.0
    %10693 = vmatprep.subr.mxu0 0.0
    %10694 = vmatpush2.msra.mxu0 0.0
    %10695 = vmatprep.subr.mxu0 0.0
    %10696 = vmatpush2.msra.mxu0 0.0
    %10697 = vmatprep.subr.mxu0 0.0
    %10698 = vmatpush2.msra.mxu0 0.0
    %10699 = vmatprep.mubr.f32.mxu0 0.0
    %10700 = vmatmul.mubr.f32.gmra.mxu0 %v10440
    %v10701 = vpop.f32.mrf.mxu0
    %v10702 = vadd.f32 0.0, %v10701
    %v10703 = vpop.f32.mrf.mxu0
    %10704 = vmatprep.mubr.f32.mxu0 0.0
    %10705 = vmatmul.mubr.f32.gmra.mxu0 %v10443
    %v10706 = vpop.f32.mrf.mxu0
    %v10707 = vadd.f32 0.0, %v10706
    %v10708 = vpop.f32.mrf.mxu0
    %10709 = vmatprep.mubr.f32.mxu0 0.0
    %10710 = vmatmul.mubr.f32.gmra.mxu0 %v10446
    %v10711 = vpop.f32.mrf.mxu0
    %v10712 = vadd.f32 0.0, %v10711
    %v10713 = vpop.f32.mrf.mxu0
    %10714 = vmatprep.mubr.f32.mxu0 0.0
    %10715 = vmatmul.mubr.f32.gmra.mxu0 %v10449
    %v10716 = vpop.f32.mrf.mxu0
    %v10717 = vadd.f32 0.0, %v10716
    %v10718 = vpop.f32.mrf.mxu0
    %10719 = vmatprep.mubr.f32.mxu0 0.0
    %10720 = vmatmul.mubr.f32.gmra.mxu0 %v10452
    %v10721 = vpop.f32.mrf.mxu0
    %v10722 = vadd.f32 0.0, %v10721
    %v10723 = vpop.f32.mrf.mxu0
    %10724 = vmatprep.mubr.f32.mxu0 0.0
    %10725 = vmatmul.mubr.f32.gmra.mxu0 %v10455
    %v10726 = vpop.f32.mrf.mxu0
    %v10727 = vadd.f32 0.0, %v10726
    %v10728 = vpop.f32.mrf.mxu0
    %10729 = vmatprep.mubr.f32.mxu0 0.0
    %10730 = vmatmul.mubr.f32.gmra.mxu0 %v10458
    %v10731 = vpop.f32.mrf.mxu0
    %v10732 = vadd.f32 0.0, %v10731
    %v10733 = vpop.f32.mrf.mxu0
    %10734 = vmatprep.mubr.f32.mxu0 0.0
    %10735 = vmatmul.mubr.f32.gmra.mxu0 %v10461
    %v10736 = vpop.f32.mrf.mxu0
    %v10737 = vadd.f32 0.0, %v10736
    %v10738 = vpop.f32.mrf.mxu0
    %10739 = vmatprep.mubr.f32.mxu0 0.0
    %10740 = vmatmul.mubr.f32.gmra.mxu0 %v10464
    %v10741 = vpop.f32.mrf.mxu0
    %v10742 = vadd.f32 0.0, %v10741
    %v10743 = vpop.f32.mrf.mxu0
    %10744 = vmatprep.mubr.f32.mxu0 0.0
    %10745 = vmatmul.mubr.f32.gmra.mxu0 %v10467
    %v10746 = vpop.f32.mrf.mxu0
    %v10747 = vadd.f32 0.0, %v10746
    %v10748 = vpop.f32.mrf.mxu0
    %10749 = vmatprep.mubr.f32.mxu0 0.0
    %10750 = vmatmul.mubr.f32.gmra.mxu0 %v10470
    %v10751 = vpop.f32.mrf.mxu0
    %v10752 = vadd.f32 0.0, %v10751
    %v10753 = vpop.f32.mrf.mxu0
    %10754 = vmatprep.mubr.f32.mxu0 0.0
    %10755 = vmatmul.mubr.f32.gmra.mxu0 %v10473
    %v10756 = vpop.f32.mrf.mxu0
    %v10757 = vadd.f32 0.0, %v10756
    %v10758 = vpop.f32.mrf.mxu0
    %10759 = vmatprep.mubr.f32.mxu0 0.0
    %10760 = vmatmul.mubr.f32.gmra.mxu0 %v10476
    %v10761 = vpop.f32.mrf.mxu0
    %v10762 = vadd.f32 0.0, %v10761
    %v10763 = vpop.f32.mrf.mxu0
    %10764 = vmatprep.mubr.f32.mxu0 0.0
    %10765 = vmatmul.mubr.f32.gmra.mxu0 %v10479
    %v10766 = vpop.f32.mrf.mxu0
    %v10767 = vadd.f32 0.0, %v10766
    %v10768 = vpop.f32.mrf.mxu0
    %10769 = vmatprep.mubr.f32.mxu0 0.0
    %10770 = vmatmul.mubr.f32.gmra.mxu0 %v10482
    %v10771 = vpop.f32.mrf.mxu0
    %v10772 = vadd.f32 0.0, %v10771
    %v10773 = vpop.f32.mrf.mxu0
    %10774 = vmatprep.mubr.f32.mxu0 0.0
    %10775 = vmatmul.mubr.f32.gmra.mxu0 %v10485
    %v10776 = vpop.f32.mrf.mxu0
    %v10777 = vadd.f32 0.0, %v10776
    %v10778 = vpop.f32.mrf.mxu0
    %10779 = vmatprep.mubr.f32.mxu0 0.0
    %10780 = vmatmul.mubr.f32.gmra.mxu0 %v10488
    %v10781 = vpop.f32.mrf.mxu0
    %v10782 = vadd.f32 0.0, %v10781
    %v10783 = vpop.f32.mrf.mxu0
    %10784 = vmatprep.mubr.f32.mxu0 0.0
    %10785 = vmatmul.mubr.f32.gmra.mxu0 %v10491
    %v10786 = vpop.f32.mrf.mxu0
    %v10787 = vadd.f32 0.0, %v10786
    %v10788 = vpop.f32.mrf.mxu0
    %10789 = vmatprep.mubr.f32.mxu0 0.0
    %10790 = vmatmul.mubr.f32.gmra.mxu0 %v10494
    %v10791 = vpop.f32.mrf.mxu0
    %v10792 = vadd.f32 0.0, %v10791
    %v10793 = vpop.f32.mrf.mxu0
    %10794 = vmatprep.mubr.f32.mxu0 0.0
    %10795 = vmatmul.mubr.f32.gmra.mxu0 %v10497
    %v10796 = vpop.f32.mrf.mxu0
    %v10797 = vadd.f32 0.0, %v10796
    %v10798 = vpop.f32.mrf.mxu0
    %10799 = vmatprep.mubr.f32.mxu0 0.0
    %10800 = vmatmul.mubr.f32.gmra.mxu0 %v10500
    %v10801 = vpop.f32.mrf.mxu0
    %v10802 = vadd.f32 0.0, %v10801
    %v10803 = vpop.f32.mrf.mxu0
    %10804 = vmatprep.mubr.f32.mxu0 0.0
    %10805 = vmatmul.mubr.f32.gmra.mxu0 %v10503
    %v10806 = vpop.f32.mrf.mxu0
    %v10807 = vadd.f32 0.0, %v10806
    %v10808 = vpop.f32.mrf.mxu0
    %10809 = vmatprep.mubr.f32.mxu0 0.0
    %10810 = vmatmul.mubr.f32.gmra.mxu0 %v10506
    %v10811 = vpop.f32.mrf.mxu0
    %v10812 = vadd.f32 0.0, %v10811
    %v10813 = vpop.f32.mrf.mxu0
    %10814 = vmatprep.mubr.f32.mxu0 0.0
    %10815 = vmatmul.mubr.f32.gmra.mxu0 %v10509
    %v10816 = vpop.f32.mrf.mxu0
    %v10817 = vadd.f32 0.0, %v10816
    %v10818 = vpop.f32.mrf.mxu0
    %10819 = vmatprep.mubr.f32.mxu0 0.0
    %10820 = vmatmul.mubr.f32.gmra.mxu0 %v10512
    %v10821 = vpop.f32.mrf.mxu0
    %v10822 = vadd.f32 0.0, %v10821
    %v10823 = vpop.f32.mrf.mxu0
    %10824 = vmatprep.mubr.f32.mxu0 0.0
    %10825 = vmatmul.mubr.f32.gmra.mxu0 %v10515
    %v10826 = vpop.f32.mrf.mxu0
    %v10827 = vadd.f32 0.0, %v10826
    %v10828 = vpop.f32.mrf.mxu0
    %10829 = vmatprep.mubr.f32.mxu0 0.0
    %10830 = vmatmul.mubr.f32.gmra.mxu0 %v10518
    %v10831 = vpop.f32.mrf.mxu0
    %v10832 = vadd.f32 0.0, %v10831
    %v10833 = vpop.f32.mrf.mxu0
    %10834 = vmatprep.mubr.f32.mxu0 0.0
    %10835 = vmatmul.mubr.f32.gmra.mxu0 %v10521
    %v10836 = vpop.f32.mrf.mxu0
    %v10837 = vadd.f32 0.0, %v10836
    %v10838 = vpop.f32.mrf.mxu0
    %10839 = vmatprep.mubr.f32.mxu0 0.0
    %10840 = vmatmul.mubr.f32.gmra.mxu0 %v10524
    %v10841 = vpop.f32.mrf.mxu0
    %v10842 = vadd.f32 0.0, %v10841
    %v10843 = vpop.f32.mrf.mxu0
    %10844 = vmatprep.mubr.f32.mxu0 0.0
    %10845 = vmatmul.mubr.f32.gmra.mxu0 %v10527
    %v10846 = vpop.f32.mrf.mxu0
    %v10847 = vadd.f32 0.0, %v10846
    %v10848 = vpop.f32.mrf.mxu0
    %10849 = vmatprep.mubr.f32.mxu0 0.0
    %10850 = vmatmul.mubr.f32.gmra.mxu0 %v10530
    %v10851 = vpop.f32.mrf.mxu0
    %v10852 = vadd.f32 0.0, %v10851
    %v10853 = vpop.f32.mrf.mxu0
    %10854 = vmatprep.mubr.f32.mxu0 0.0
    %10855 = vmatmul.mubr.f32.gmra.mxu0 %v10533
    %v10856 = vpop.f32.mrf.mxu0
    %v10857 = vadd.f32 0.0, %v10856
    %v10858 = vpop.f32.mrf.mxu0
    %10859 = vmatprep.mubr.f32.mxu0 0.0
    %10860 = vmatmul.mubr.f32.gmra.mxu0 %v10536
    %v10861 = vpop.f32.mrf.mxu0
    %v10862 = vadd.f32 0.0, %v10861
    %v10863 = vpop.f32.mrf.mxu0
    %10864 = vmatprep.mubr.f32.mxu0 0.0
    %10865 = vmatmul.mubr.f32.gmra.mxu0 %v10539
    %v10866 = vpop.f32.mrf.mxu0
    %v10867 = vadd.f32 0.0, %v10866
    %v10868 = vpop.f32.mrf.mxu0
    %10869 = vmatprep.mubr.f32.mxu0 0.0
    %10870 = vmatmul.mubr.f32.gmra.mxu0 %v10542
    %v10871 = vpop.f32.mrf.mxu0
    %v10872 = vadd.f32 0.0, %v10871
    %v10873 = vpop.f32.mrf.mxu0
    %10874 = vmatprep.mubr.f32.mxu0 0.0
    %10875 = vmatmul.mubr.f32.gmra.mxu0 %v10545
    %v10876 = vpop.f32.mrf.mxu0
    %v10877 = vadd.f32 0.0, %v10876
    %v10878 = vpop.f32.mrf.mxu0
    %10879 = vmatprep.mubr.f32.mxu0 0.0
    %10880 = vmatmul.mubr.f32.gmra.mxu0 %v10548
    %v10881 = vpop.f32.mrf.mxu0
    %v10882 = vadd.f32 0.0, %v10881
    %v10883 = vpop.f32.mrf.mxu0
    %10884 = vmatprep.mubr.f32.mxu0 0.0
    %10885 = vmatmul.mubr.f32.gmra.mxu0 %v10551
    %v10886 = vpop.f32.mrf.mxu0
    %v10887 = vadd.f32 0.0, %v10886
    %v10888 = vpop.f32.mrf.mxu0
    %10889 = vmatprep.mubr.f32.mxu0 0.0
    %10890 = vmatmul.mubr.f32.gmra.mxu0 %v10554
    %v10891 = vpop.f32.mrf.mxu0
    %v10892 = vadd.f32 0.0, %v10891
    %v10893 = vpop.f32.mrf.mxu0
    %10894 = vmatprep.mubr.f32.mxu0 0.0
    %10895 = vmatmul.mubr.f32.gmra.mxu0 %v10557
    %v10896 = vpop.f32.mrf.mxu0
    %v10897 = vadd.f32 0.0, %v10896
    %v10898 = vpop.f32.mrf.mxu0
    %10899 = vmatprep.mubr.f32.mxu0 0.0
    %10900 = vmatmul.mubr.f32.gmra.mxu0 %v10560
    %v10901 = vpop.f32.mrf.mxu0
    %v10902 = vadd.f32 0.0, %v10901
    %v10903 = vpop.f32.mrf.mxu0
    %10904 = vmatprep.mubr.f32.mxu0 0.0
    %10905 = vmatmul.mubr.f32.gmra.mxu0 %v10563
    %v10906 = vpop.f32.mrf.mxu0
    %v10907 = vadd.f32 0.0, %v10906
    %v10908 = vpop.f32.mrf.mxu0
    %10909 = vmatprep.mubr.f32.mxu0 0.0
    %10910 = vmatmul.mubr.f32.gmra.mxu0 %v10566
    %v10911 = vpop.f32.mrf.mxu0
    %v10912 = vadd.f32 0.0, %v10911
    %v10913 = vpop.f32.mrf.mxu0
    %10914 = vmatprep.mubr.f32.mxu0 0.0
    %10915 = vmatmul.mubr.f32.gmra.mxu0 %v10569
    %v10916 = vpop.f32.mrf.mxu0
    %v10917 = vadd.f32 0.0, %v10916
    %v10918 = vpop.f32.mrf.mxu0
    %10919 = vmatprep.mubr.f32.mxu0 0.0
    %10920 = vmatmul.mubr.f32.gmra.mxu0 %v10572
    %v10921 = vpop.f32.mrf.mxu0
    %v10922 = vadd.f32 0.0, %v10921
    %v10923 = vpop.f32.mrf.mxu0
    %10924 = vmatprep.mubr.f32.mxu0 0.0
    %10925 = vmatmul.mubr.f32.gmra.mxu0 %v10575
    %v10926 = vpop.f32.mrf.mxu0
    %v10927 = vadd.f32 0.0, %v10926
    %v10928 = vpop.f32.mrf.mxu0
    %10929 = vmatprep.mubr.f32.mxu0 0.0
    %10930 = vmatmul.mubr.f32.gmra.mxu0 %v10578
    %v10931 = vpop.f32.mrf.mxu0
    %v10932 = vadd.f32 0.0, %v10931
    %v10933 = vpop.f32.mrf.mxu0
    %10934 = vmatprep.mubr.f32.mxu0 0.0
    %10935 = vmatmul.mubr.f32.gmra.mxu0 %v10581
    %v10936 = vpop.f32.mrf.mxu0
    %v10937 = vadd.f32 0.0, %v10936
    %v10938 = vpop.f32.mrf.mxu0
    %10939 = vmatprep.mubr.f32.mxu0 0.0
    %10940 = vmatmul.mubr.f32.gmra.mxu0 %v10584
    %v10941 = vpop.f32.mrf.mxu0
    %v10942 = vadd.f32 0.0, %v10941
    %v10943 = vpop.f32.mrf.mxu0
    %10944 = vmatprep.mubr.f32.mxu0 0.0
    %10945 = vmatmul.mubr.f32.gmra.mxu0 %v10587
    %v10946 = vpop.f32.mrf.mxu0
    %v10947 = vadd.f32 0.0, %v10946
    %v10948 = vpop.f32.mrf.mxu0
    %10949 = vmatprep.mubr.f32.mxu0 0.0
    %10950 = vmatmul.mubr.f32.gmra.mxu0 %v10590
    %v10951 = vpop.f32.mrf.mxu0
    %v10952 = vadd.f32 0.0, %v10951
    %v10953 = vpop.f32.mrf.mxu0
    %10954 = vmatprep.mubr.f32.mxu0 0.0
    %10955 = vmatmul.mubr.f32.gmra.mxu0 %v10593
    %v10956 = vpop.f32.mrf.mxu0
    %v10957 = vadd.f32 0.0, %v10956
    %v10958 = vpop.f32.mrf.mxu0
    %10959 = vmatprep.mubr.f32.mxu0 0.0
    %10960 = vmatmul.mubr.f32.gmra.mxu0 %v10596
    %v10961 = vpop.f32.mrf.mxu0
    %v10962 = vadd.f32 0.0, %v10961
    %v10963 = vpop.f32.mrf.mxu0
    %10964 = vmatprep.mubr.f32.mxu0 0.0
    %10965 = vmatmul.mubr.f32.gmra.mxu0 %v10599
    %v10966 = vpop.f32.mrf.mxu0
    %v10967 = vadd.f32 0.0, %v10966
    %v10968 = vpop.f32.mrf.mxu0
    %10969 = vmatprep.mubr.f32.mxu0 0.0
    %10970 = vmatmul.mubr.f32.gmra.mxu0 %v10602
    %v10971 = vpop.f32.mrf.mxu0
    %v10972 = vadd.f32 0.0, %v10971
    %v10973 = vpop.f32.mrf.mxu0
    %10974 = vmatprep.mubr.f32.mxu0 0.0
    %10975 = vmatmul.mubr.f32.gmra.mxu0 %v10605
    %v10976 = vpop.f32.mrf.mxu0
    %v10977 = vadd.f32 0.0, %v10976
    %v10978 = vpop.f32.mrf.mxu0
    %10979 = vmatprep.mubr.f32.mxu0 0.0
    %10980 = vmatmul.mubr.f32.gmra.mxu0 %v10608
    %v10981 = vpop.f32.mrf.mxu0
    %v10982 = vadd.f32 0.0, %v10981
    %v10983 = vpop.f32.mrf.mxu0
    %10984 = vmatprep.mubr.f32.mxu0 0.0
    %10985 = vmatmul.mubr.f32.gmra.mxu0 %v10611
    %v10986 = vpop.f32.mrf.mxu0
    %v10987 = vadd.f32 0.0, %v10986
    %v10988 = vpop.f32.mrf.mxu0
    %10989 = vmatprep.mubr.f32.mxu0 0.0
    %10990 = vmatmul.mubr.f32.gmra.mxu0 %v10614
    %v10991 = vpop.f32.mrf.mxu0
    %v10992 = vadd.f32 0.0, %v10991
    %v10993 = vpop.f32.mrf.mxu0
    %10994 = vmatprep.mubr.f32.mxu0 0.0
    %10995 = vmatmul.mubr.f32.gmra.mxu0 %v10617
    %v10996 = vpop.f32.mrf.mxu0
    %v10997 = vadd.f32 0.0, %v10996
    %v10998 = vpop.f32.mrf.mxu0
    %10999 = vmatprep.mubr.f32.mxu0 0.0
    %11000 = vmatmul.mubr.f32.gmra.mxu0 %v10620
    %v11001 = vpop.f32.mrf.mxu0
    %v11002 = vadd.f32 0.0, %v11001
    %v11003 = vpop.f32.mrf.mxu0
    %11004 = vmatprep.mubr.f32.mxu0 0.0
    %11005 = vmatmul.mubr.f32.gmra.mxu0 %v10623
    %v11006 = vpop.f32.mrf.mxu0
    %v11007 = vadd.f32 0.0, %v11006
    %v11008 = vpop.f32.mrf.mxu0
    %11009 = vmatprep.mubr.f32.mxu0 0.0
    %11010 = vmatmul.mubr.f32.gmra.mxu0 %v10626
    %v11011 = vpop.f32.mrf.mxu0
    %v11012 = vadd.f32 0.0, %v11011
    %v11013 = vpop.f32.mrf.mxu0
    %11014 = vmatprep.mubr.f32.mxu0 0.0
    %11015 = vmatmul.mubr.f32.gmra.mxu0 %v10629
    %v11016 = vpop.f32.mrf.mxu0
    %v11017 = vadd.f32 0.0, %v11016
    %v11018 = vpop.f32.mrf.mxu0
    %11019 = vdwg.mxu0
    %v11021 = vsel %vm9191, %v10372, 0
    %v11024 = vsel %vm9191, %v10373, 0
    %v11027 = vsel %vm9191, %v10374, 0
    %v11030 = vsel %vm9191, %v10375, 0
    %v11033 = vsel %vm9191, %v10376, 0
    %v11036 = vsel %vm9191, %v10377, 0
    %v11039 = vsel %vm9191, %v10378, 0
    %v11042 = vsel %vm9191, %v10379, 0
    %v11045 = vsel %vm9191, %v10380, 0
    %v11048 = vsel %vm9191, %v10381, 0
    %v11051 = vsel %vm9191, %v10382, 0
    %v11054 = vsel %vm9191, %v10383, 0
    %v11057 = vsel %vm9191, %v10384, 0
    %v11060 = vsel %vm9191, %v10385, 0
    %v11063 = vsel %vm9191, %v10386, 0
    %v11066 = vsel %vm9191, %v10387, 0
    %v11069 = vsel %vm9191, %v10388, 0
    %v11072 = vsel %vm9191, %v10389, 0
    %v11075 = vsel %vm9191, %v10390, 0
    %v11078 = vsel %vm9191, %v10391, 0
    %v11081 = vsel %vm9191, %v10392, 0
    %v11084 = vsel %vm9191, %v10393, 0
    %v11087 = vsel %vm9191, %v10394, 0
    %v11090 = vsel %vm9191, %v10395, 0
    %v11093 = vsel %vm9191, %v10396, 0
    %v11096 = vsel %vm9191, %v10397, 0
    %v11099 = vsel %vm9191, %v10398, 0
    %v11102 = vsel %vm9191, %v10399, 0
    %v11105 = vsel %vm9191, %v10400, 0
    %v11108 = vsel %vm9191, %v10401, 0
    %v11111 = vsel %vm9191, %v10402, 0
    %v11114 = vsel %vm9191, %v10403, 0
    %v11117 = vsel %vm9191, %v10404, 0
    %v11120 = vsel %vm9191, %v10405, 0
    %v11123 = vsel %vm9191, %v10406, 0
    %v11126 = vsel %vm9191, %v10407, 0
    %v11129 = vsel %vm9191, %v10408, 0
    %v11132 = vsel %vm9191, %v10409, 0
    %v11135 = vsel %vm9191, %v10410, 0
    %v11138 = vsel %vm9191, %v10411, 0
    %v11141 = vsel %vm9191, %v10412, 0
    %v11144 = vsel %vm9191, %v10413, 0
    %v11147 = vsel %vm9191, %v10414, 0
    %v11150 = vsel %vm9191, %v10415, 0
    %v11153 = vsel %vm9191, %v10416, 0
    %v11156 = vsel %vm9191, %v10417, 0
    %v11159 = vsel %vm9191, %v10418, 0
    %v11162 = vsel %vm9191, %v10419, 0
    %v11165 = vsel %vm9191, %v10420, 0
    %v11168 = vsel %vm9191, %v10421, 0
    %v11171 = vsel %vm9191, %v10422, 0
    %v11174 = vsel %vm9191, %v10423, 0
    %v11177 = vsel %vm9191, %v10424, 0
    %v11180 = vsel %vm9191, %v10425, 0
    %v11183 = vsel %vm9191, %v10426, 0
    %v11186 = vsel %vm9191, %v10427, 0
    %v11189 = vsel %vm9191, %v10428, 0
    %v11192 = vsel %vm9191, %v10429, 0
    %v11195 = vsel %vm9191, %v10430, 0
    %v11198 = vsel %vm9191, %v10431, 0
    %v11201 = vsel %vm9191, %v10432, 0
    %v11204 = vsel %vm9191, %v10433, 0
    %v11207 = vsel %vm9191, %v10434, 0
    %v11210 = vsel %vm9191, %v10435, 0
    %11212 = vmatprep.subr.mxu0 0.0
    %11213 = vmatpush1.msra.mxu0 0.0
    %11214 = vmatprep.subr.mxu0 0.0
    %11215 = vmatpush1.msra.mxu0 0.0
    %11216 = vmatprep.subr.mxu0 0.0
    %11217 = vmatpush1.msra.mxu0 0.0
    %11218 = vmatprep.subr.mxu0 0.0
    %11219 = vmatpush1.msra.mxu0 0.0
    %11220 = vmatprep.subr.mxu0 0.0
    %11221 = vmatpush1.msra.mxu0 0.0
    %11222 = vmatprep.subr.mxu0 0.0
    %11223 = vmatpush1.msra.mxu0 0.0
    %11224 = vmatprep.subr.mxu0 0.0
    %11225 = vmatpush1.msra.mxu0 0.0
    %11226 = vmatprep.subr.mxu0 0.0
    %11227 = vmatpush1.msra.mxu0 0.0
    %11228 = vmatprep.subr.mxu0 0.0
    %11229 = vmatpush1.msra.mxu0 0.0
    %11230 = vmatprep.subr.mxu0 0.0
    %11231 = vmatpush1.msra.mxu0 0.0
    %11232 = vmatprep.subr.mxu0 0.0
    %11233 = vmatpush1.msra.mxu0 0.0
    %11234 = vmatprep.subr.mxu0 0.0
    %11235 = vmatpush1.msra.mxu0 0.0
    %11236 = vmatprep.subr.mxu0 0.0
    %11237 = vmatpush1.msra.mxu0 0.0
    %11238 = vmatprep.subr.mxu0 0.0
    %11239 = vmatpush1.msra.mxu0 0.0
    %11240 = vmatprep.subr.mxu0 0.0
    %11241 = vmatpush1.msra.mxu0 %v10437
    %11242 = vmatprep.subr.mxu0 0.0
    %11243 = vmatpush1.msra.mxu0 %v10436
    %11244 = vmatprep.subr.mxu0 0.0
    %11245 = vmatpush2.msra.mxu0 0.0
    %11246 = vmatprep.subr.mxu0 0.0
    %11247 = vmatpush2.msra.mxu0 0.0
    %11248 = vmatprep.subr.mxu0 0.0
    %11249 = vmatpush2.msra.mxu0 0.0
    %11250 = vmatprep.subr.mxu0 0.0
    %11251 = vmatpush2.msra.mxu0 0.0
    %11252 = vmatprep.subr.mxu0 0.0
    %11253 = vmatpush2.msra.mxu0 0.0
    %11254 = vmatprep.subr.mxu0 0.0
    %11255 = vmatpush2.msra.mxu0 0.0
    %11256 = vmatprep.subr.mxu0 0.0
    %11257 = vmatpush2.msra.mxu0 0.0
    %11258 = vmatprep.subr.mxu0 0.0
    %11259 = vmatpush2.msra.mxu0 0.0
    %11260 = vmatprep.subr.mxu0 0.0
    %11261 = vmatpush2.msra.mxu0 0.0
    %11262 = vmatprep.subr.mxu0 0.0
    %11263 = vmatpush2.msra.mxu0 0.0
    %11264 = vmatprep.subr.mxu0 0.0
    %11265 = vmatpush2.msra.mxu0 0.0
    %11266 = vmatprep.subr.mxu0 0.0
    %11267 = vmatpush2.msra.mxu0 0.0
    %11268 = vmatprep.subr.mxu0 0.0
    %11269 = vmatpush2.msra.mxu0 0.0
    %11270 = vmatprep.subr.mxu0 0.0
    %11271 = vmatpush2.msra.mxu0 0.0
    %11272 = vmatprep.subr.mxu0 0.0
    %11273 = vmatpush2.msra.mxu0 0.0
    %11274 = vmatprep.subr.mxu0 0.0
    %11275 = vmatpush2.msra.mxu0 0.0
    %11276 = vmatprep.mubr.f32.mxu0 0.0
    %11277 = vmatmul.mubr.f32.gmra.mxu0 %v11021
    %v11278 = vpop.f32.mrf.mxu0
    %v11279 = vadd.f32 %v10702, %v11278
    %v11280 = vpop.f32.mrf.mxu0
    %11281 = vmatprep.mubr.f32.mxu0 0.0
    %11282 = vmatmul.mubr.f32.gmra.mxu0 %v11024
    %v11283 = vpop.f32.mrf.mxu0
    %v11284 = vadd.f32 %v10707, %v11283
    %v11285 = vpop.f32.mrf.mxu0
    %11286 = vmatprep.mubr.f32.mxu0 0.0
    %11287 = vmatmul.mubr.f32.gmra.mxu0 %v11027
    %v11288 = vpop.f32.mrf.mxu0
    %v11289 = vadd.f32 %v10712, %v11288
    %v11290 = vpop.f32.mrf.mxu0
    %11291 = vmatprep.mubr.f32.mxu0 0.0
    %11292 = vmatmul.mubr.f32.gmra.mxu0 %v11030
    %v11293 = vpop.f32.mrf.mxu0
    %v11294 = vadd.f32 %v10717, %v11293
    %v11295 = vpop.f32.mrf.mxu0
    %11296 = vmatprep.mubr.f32.mxu0 0.0
    %11297 = vmatmul.mubr.f32.gmra.mxu0 %v11033
    %v11298 = vpop.f32.mrf.mxu0
    %v11299 = vadd.f32 %v10722, %v11298
    %v11300 = vpop.f32.mrf.mxu0
    %11301 = vmatprep.mubr.f32.mxu0 0.0
    %11302 = vmatmul.mubr.f32.gmra.mxu0 %v11036
    %v11303 = vpop.f32.mrf.mxu0
    %v11304 = vadd.f32 %v10727, %v11303
    %v11305 = vpop.f32.mrf.mxu0
    %11306 = vmatprep.mubr.f32.mxu0 0.0
    %11307 = vmatmul.mubr.f32.gmra.mxu0 %v11039
    %v11308 = vpop.f32.mrf.mxu0
    %v11309 = vadd.f32 %v10732, %v11308
    %v11310 = vpop.f32.mrf.mxu0
    %11311 = vmatprep.mubr.f32.mxu0 0.0
    %11312 = vmatmul.mubr.f32.gmra.mxu0 %v11042
    %v11313 = vpop.f32.mrf.mxu0
    %v11314 = vadd.f32 %v10737, %v11313
    %v11315 = vpop.f32.mrf.mxu0
    %11316 = vmatprep.mubr.f32.mxu0 0.0
    %11317 = vmatmul.mubr.f32.gmra.mxu0 %v11045
    %v11318 = vpop.f32.mrf.mxu0
    %v11319 = vadd.f32 %v10742, %v11318
    %v11320 = vpop.f32.mrf.mxu0
    %11321 = vmatprep.mubr.f32.mxu0 0.0
    %11322 = vmatmul.mubr.f32.gmra.mxu0 %v11048
    %v11323 = vpop.f32.mrf.mxu0
    %v11324 = vadd.f32 %v10747, %v11323
    %v11325 = vpop.f32.mrf.mxu0
    %11326 = vmatprep.mubr.f32.mxu0 0.0
    %11327 = vmatmul.mubr.f32.gmra.mxu0 %v11051
    %v11328 = vpop.f32.mrf.mxu0
    %v11329 = vadd.f32 %v10752, %v11328
    %v11330 = vpop.f32.mrf.mxu0
    %11331 = vmatprep.mubr.f32.mxu0 0.0
    %11332 = vmatmul.mubr.f32.gmra.mxu0 %v11054
    %v11333 = vpop.f32.mrf.mxu0
    %v11334 = vadd.f32 %v10757, %v11333
    %v11335 = vpop.f32.mrf.mxu0
    %11336 = vmatprep.mubr.f32.mxu0 0.0
    %11337 = vmatmul.mubr.f32.gmra.mxu0 %v11057
    %v11338 = vpop.f32.mrf.mxu0
    %v11339 = vadd.f32 %v10762, %v11338
    %v11340 = vpop.f32.mrf.mxu0
    %11341 = vmatprep.mubr.f32.mxu0 0.0
    %11342 = vmatmul.mubr.f32.gmra.mxu0 %v11060
    %v11343 = vpop.f32.mrf.mxu0
    %v11344 = vadd.f32 %v10767, %v11343
    %v11345 = vpop.f32.mrf.mxu0
    %11346 = vmatprep.mubr.f32.mxu0 0.0
    %11347 = vmatmul.mubr.f32.gmra.mxu0 %v11063
    %v11348 = vpop.f32.mrf.mxu0
    %v11349 = vadd.f32 %v10772, %v11348
    %v11350 = vpop.f32.mrf.mxu0
    %11351 = vmatprep.mubr.f32.mxu0 0.0
    %11352 = vmatmul.mubr.f32.gmra.mxu0 %v11066
    %v11353 = vpop.f32.mrf.mxu0
    %v11354 = vadd.f32 %v10777, %v11353
    %v11355 = vpop.f32.mrf.mxu0
    %11356 = vmatprep.mubr.f32.mxu0 0.0
    %11357 = vmatmul.mubr.f32.gmra.mxu0 %v11069
    %v11358 = vpop.f32.mrf.mxu0
    %v11359 = vadd.f32 %v10782, %v11358
    %v11360 = vpop.f32.mrf.mxu0
    %11361 = vmatprep.mubr.f32.mxu0 0.0
    %11362 = vmatmul.mubr.f32.gmra.mxu0 %v11072
    %v11363 = vpop.f32.mrf.mxu0
    %v11364 = vadd.f32 %v10787, %v11363
    %v11365 = vpop.f32.mrf.mxu0
    %11366 = vmatprep.mubr.f32.mxu0 0.0
    %11367 = vmatmul.mubr.f32.gmra.mxu0 %v11075
    %v11368 = vpop.f32.mrf.mxu0
    %v11369 = vadd.f32 %v10792, %v11368
    %v11370 = vpop.f32.mrf.mxu0
    %11371 = vmatprep.mubr.f32.mxu0 0.0
    %11372 = vmatmul.mubr.f32.gmra.mxu0 %v11078
    %v11373 = vpop.f32.mrf.mxu0
    %v11374 = vadd.f32 %v10797, %v11373
    %v11375 = vpop.f32.mrf.mxu0
    %11376 = vmatprep.mubr.f32.mxu0 0.0
    %11377 = vmatmul.mubr.f32.gmra.mxu0 %v11081
    %v11378 = vpop.f32.mrf.mxu0
    %v11379 = vadd.f32 %v10802, %v11378
    %v11380 = vpop.f32.mrf.mxu0
    %11381 = vmatprep.mubr.f32.mxu0 0.0
    %11382 = vmatmul.mubr.f32.gmra.mxu0 %v11084
    %v11383 = vpop.f32.mrf.mxu0
    %v11384 = vadd.f32 %v10807, %v11383
    %v11385 = vpop.f32.mrf.mxu0
    %11386 = vmatprep.mubr.f32.mxu0 0.0
    %11387 = vmatmul.mubr.f32.gmra.mxu0 %v11087
    %v11388 = vpop.f32.mrf.mxu0
    %v11389 = vadd.f32 %v10812, %v11388
    %v11390 = vpop.f32.mrf.mxu0
    %11391 = vmatprep.mubr.f32.mxu0 0.0
    %11392 = vmatmul.mubr.f32.gmra.mxu0 %v11090
    %v11393 = vpop.f32.mrf.mxu0
    %v11394 = vadd.f32 %v10817, %v11393
    %v11395 = vpop.f32.mrf.mxu0
    %11396 = vmatprep.mubr.f32.mxu0 0.0
    %11397 = vmatmul.mubr.f32.gmra.mxu0 %v11093
    %v11398 = vpop.f32.mrf.mxu0
    %v11399 = vadd.f32 %v10822, %v11398
    %v11400 = vpop.f32.mrf.mxu0
    %11401 = vmatprep.mubr.f32.mxu0 0.0
    %11402 = vmatmul.mubr.f32.gmra.mxu0 %v11096
    %v11403 = vpop.f32.mrf.mxu0
    %v11404 = vadd.f32 %v10827, %v11403
    %v11405 = vpop.f32.mrf.mxu0
    %11406 = vmatprep.mubr.f32.mxu0 0.0
    %11407 = vmatmul.mubr.f32.gmra.mxu0 %v11099
    %v11408 = vpop.f32.mrf.mxu0
    %v11409 = vadd.f32 %v10832, %v11408
    %v11410 = vpop.f32.mrf.mxu0
    %11411 = vmatprep.mubr.f32.mxu0 0.0
    %11412 = vmatmul.mubr.f32.gmra.mxu0 %v11102
    %v11413 = vpop.f32.mrf.mxu0
    %v11414 = vadd.f32 %v10837, %v11413
    %v11415 = vpop.f32.mrf.mxu0
    %11416 = vmatprep.mubr.f32.mxu0 0.0
    %11417 = vmatmul.mubr.f32.gmra.mxu0 %v11105
    %v11418 = vpop.f32.mrf.mxu0
    %v11419 = vadd.f32 %v10842, %v11418
    %v11420 = vpop.f32.mrf.mxu0
    %11421 = vmatprep.mubr.f32.mxu0 0.0
    %11422 = vmatmul.mubr.f32.gmra.mxu0 %v11108
    %v11423 = vpop.f32.mrf.mxu0
    %v11424 = vadd.f32 %v10847, %v11423
    %v11425 = vpop.f32.mrf.mxu0
    %11426 = vmatprep.mubr.f32.mxu0 0.0
    %11427 = vmatmul.mubr.f32.gmra.mxu0 %v11111
    %v11428 = vpop.f32.mrf.mxu0
    %v11429 = vadd.f32 %v10852, %v11428
    %v11430 = vpop.f32.mrf.mxu0
    %11431 = vmatprep.mubr.f32.mxu0 0.0
    %11432 = vmatmul.mubr.f32.gmra.mxu0 %v11114
    %v11433 = vpop.f32.mrf.mxu0
    %v11434 = vadd.f32 %v10857, %v11433
    %v11435 = vpop.f32.mrf.mxu0
    %11436 = vmatprep.mubr.f32.mxu0 0.0
    %11437 = vmatmul.mubr.f32.gmra.mxu0 %v11117
    %v11438 = vpop.f32.mrf.mxu0
    %v11439 = vadd.f32 %v10862, %v11438
    %v11440 = vpop.f32.mrf.mxu0
    %11441 = vmatprep.mubr.f32.mxu0 0.0
    %11442 = vmatmul.mubr.f32.gmra.mxu0 %v11120
    %v11443 = vpop.f32.mrf.mxu0
    %v11444 = vadd.f32 %v10867, %v11443
    %v11445 = vpop.f32.mrf.mxu0
    %11446 = vmatprep.mubr.f32.mxu0 0.0
    %11447 = vmatmul.mubr.f32.gmra.mxu0 %v11123
    %v11448 = vpop.f32.mrf.mxu0
    %v11449 = vadd.f32 %v10872, %v11448
    %v11450 = vpop.f32.mrf.mxu0
    %11451 = vmatprep.mubr.f32.mxu0 0.0
    %11452 = vmatmul.mubr.f32.gmra.mxu0 %v11126
    %v11453 = vpop.f32.mrf.mxu0
    %v11454 = vadd.f32 %v10877, %v11453
    %v11455 = vpop.f32.mrf.mxu0
    %11456 = vmatprep.mubr.f32.mxu0 0.0
    %11457 = vmatmul.mubr.f32.gmra.mxu0 %v11129
    %v11458 = vpop.f32.mrf.mxu0
    %v11459 = vadd.f32 %v10882, %v11458
    %v11460 = vpop.f32.mrf.mxu0
    %11461 = vmatprep.mubr.f32.mxu0 0.0
    %11462 = vmatmul.mubr.f32.gmra.mxu0 %v11132
    %v11463 = vpop.f32.mrf.mxu0
    %v11464 = vadd.f32 %v10887, %v11463
    %v11465 = vpop.f32.mrf.mxu0
    %11466 = vmatprep.mubr.f32.mxu0 0.0
    %11467 = vmatmul.mubr.f32.gmra.mxu0 %v11135
    %v11468 = vpop.f32.mrf.mxu0
    %v11469 = vadd.f32 %v10892, %v11468
    %v11470 = vpop.f32.mrf.mxu0
    %11471 = vmatprep.mubr.f32.mxu0 0.0
    %11472 = vmatmul.mubr.f32.gmra.mxu0 %v11138
    %v11473 = vpop.f32.mrf.mxu0
    %v11474 = vadd.f32 %v10897, %v11473
    %v11475 = vpop.f32.mrf.mxu0
    %11476 = vmatprep.mubr.f32.mxu0 0.0
    %11477 = vmatmul.mubr.f32.gmra.mxu0 %v11141
    %v11478 = vpop.f32.mrf.mxu0
    %v11479 = vadd.f32 %v10902, %v11478
    %v11480 = vpop.f32.mrf.mxu0
    %11481 = vmatprep.mubr.f32.mxu0 0.0
    %11482 = vmatmul.mubr.f32.gmra.mxu0 %v11144
    %v11483 = vpop.f32.mrf.mxu0
    %v11484 = vadd.f32 %v10907, %v11483
    %v11485 = vpop.f32.mrf.mxu0
    %11486 = vmatprep.mubr.f32.mxu0 0.0
    %11487 = vmatmul.mubr.f32.gmra.mxu0 %v11147
    %v11488 = vpop.f32.mrf.mxu0
    %v11489 = vadd.f32 %v10912, %v11488
    %v11490 = vpop.f32.mrf.mxu0
    %11491 = vmatprep.mubr.f32.mxu0 0.0
    %11492 = vmatmul.mubr.f32.gmra.mxu0 %v11150
    %v11493 = vpop.f32.mrf.mxu0
    %v11494 = vadd.f32 %v10917, %v11493
    %v11495 = vpop.f32.mrf.mxu0
    %11496 = vmatprep.mubr.f32.mxu0 0.0
    %11497 = vmatmul.mubr.f32.gmra.mxu0 %v11153
    %v11498 = vpop.f32.mrf.mxu0
    %v11499 = vadd.f32 %v10922, %v11498
    %v11500 = vpop.f32.mrf.mxu0
    %11501 = vmatprep.mubr.f32.mxu0 0.0
    %11502 = vmatmul.mubr.f32.gmra.mxu0 %v11156
    %v11503 = vpop.f32.mrf.mxu0
    %v11504 = vadd.f32 %v10927, %v11503
    %v11505 = vpop.f32.mrf.mxu0
    %11506 = vmatprep.mubr.f32.mxu0 0.0
    %11507 = vmatmul.mubr.f32.gmra.mxu0 %v11159
    %v11508 = vpop.f32.mrf.mxu0
    %v11509 = vadd.f32 %v10932, %v11508
    %v11510 = vpop.f32.mrf.mxu0
    %11511 = vmatprep.mubr.f32.mxu0 0.0
    %11512 = vmatmul.mubr.f32.gmra.mxu0 %v11162
    %v11513 = vpop.f32.mrf.mxu0
    %v11514 = vadd.f32 %v10937, %v11513
    %v11515 = vpop.f32.mrf.mxu0
    %11516 = vmatprep.mubr.f32.mxu0 0.0
    %11517 = vmatmul.mubr.f32.gmra.mxu0 %v11165
    %v11518 = vpop.f32.mrf.mxu0
    %v11519 = vadd.f32 %v10942, %v11518
    %v11520 = vpop.f32.mrf.mxu0
    %11521 = vmatprep.mubr.f32.mxu0 0.0
    %11522 = vmatmul.mubr.f32.gmra.mxu0 %v11168
    %v11523 = vpop.f32.mrf.mxu0
    %v11524 = vadd.f32 %v10947, %v11523
    %v11525 = vpop.f32.mrf.mxu0
    %11526 = vmatprep.mubr.f32.mxu0 0.0
    %11527 = vmatmul.mubr.f32.gmra.mxu0 %v11171
    %v11528 = vpop.f32.mrf.mxu0
    %v11529 = vadd.f32 %v10952, %v11528
    %v11530 = vpop.f32.mrf.mxu0
    %11531 = vmatprep.mubr.f32.mxu0 0.0
    %11532 = vmatmul.mubr.f32.gmra.mxu0 %v11174
    %v11533 = vpop.f32.mrf.mxu0
    %v11534 = vadd.f32 %v10957, %v11533
    %v11535 = vpop.f32.mrf.mxu0
    %11536 = vmatprep.mubr.f32.mxu0 0.0
    %11537 = vmatmul.mubr.f32.gmra.mxu0 %v11177
    %v11538 = vpop.f32.mrf.mxu0
    %v11539 = vadd.f32 %v10962, %v11538
    %v11540 = vpop.f32.mrf.mxu0
    %11541 = vmatprep.mubr.f32.mxu0 0.0
    %11542 = vmatmul.mubr.f32.gmra.mxu0 %v11180
    %v11543 = vpop.f32.mrf.mxu0
    %v11544 = vadd.f32 %v10967, %v11543
    %v11545 = vpop.f32.mrf.mxu0
    %11546 = vmatprep.mubr.f32.mxu0 0.0
    %11547 = vmatmul.mubr.f32.gmra.mxu0 %v11183
    %v11548 = vpop.f32.mrf.mxu0
    %v11549 = vadd.f32 %v10972, %v11548
    %v11550 = vpop.f32.mrf.mxu0
    %11551 = vmatprep.mubr.f32.mxu0 0.0
    %11552 = vmatmul.mubr.f32.gmra.mxu0 %v11186
    %v11553 = vpop.f32.mrf.mxu0
    %v11554 = vadd.f32 %v10977, %v11553
    %v11555 = vpop.f32.mrf.mxu0
    %11556 = vmatprep.mubr.f32.mxu0 0.0
    %11557 = vmatmul.mubr.f32.gmra.mxu0 %v11189
    %v11558 = vpop.f32.mrf.mxu0
    %v11559 = vadd.f32 %v10982, %v11558
    %v11560 = vpop.f32.mrf.mxu0
    %11561 = vmatprep.mubr.f32.mxu0 0.0
    %11562 = vmatmul.mubr.f32.gmra.mxu0 %v11192
    %v11563 = vpop.f32.mrf.mxu0
    %v11564 = vadd.f32 %v10987, %v11563
    %v11565 = vpop.f32.mrf.mxu0
    %11566 = vmatprep.mubr.f32.mxu0 0.0
    %11567 = vmatmul.mubr.f32.gmra.mxu0 %v11195
    %v11568 = vpop.f32.mrf.mxu0
    %v11569 = vadd.f32 %v10992, %v11568
    %v11570 = vpop.f32.mrf.mxu0
    %11571 = vmatprep.mubr.f32.mxu0 0.0
    %11572 = vmatmul.mubr.f32.gmra.mxu0 %v11198
    %v11573 = vpop.f32.mrf.mxu0
    %v11574 = vadd.f32 %v10997, %v11573
    %v11575 = vpop.f32.mrf.mxu0
    %11576 = vmatprep.mubr.f32.mxu0 0.0
    %11577 = vmatmul.mubr.f32.gmra.mxu0 %v11201
    %v11578 = vpop.f32.mrf.mxu0
    %v11579 = vadd.f32 %v11002, %v11578
    %v11580 = vpop.f32.mrf.mxu0
    %11581 = vmatprep.mubr.f32.mxu0 0.0
    %11582 = vmatmul.mubr.f32.gmra.mxu0 %v11204
    %v11583 = vpop.f32.mrf.mxu0
    %v11584 = vadd.f32 %v11007, %v11583
    %v11585 = vpop.f32.mrf.mxu0
    %11586 = vmatprep.mubr.f32.mxu0 0.0
    %11587 = vmatmul.mubr.f32.gmra.mxu0 %v11207
    %v11588 = vpop.f32.mrf.mxu0
    %v11589 = vadd.f32 %v11012, %v11588
    %v11590 = vpop.f32.mrf.mxu0
    %11591 = vmatprep.mubr.f32.mxu0 0.0
    %11592 = vmatmul.mubr.f32.gmra.mxu0 %v11210
    %v11593 = vpop.f32.mrf.mxu0
    %v11594 = vadd.f32 %v11017, %v11593
    %v11595 = vpop.f32.mrf.mxu0
    %11596 = vdwg.mxu0
    %v11597 = vld [vmem:[%s9] sm:$0x1]
    %v11599 = vlaneseq
    %v11600 = vshrl.u32 %v11599, 7
    %v11601 = vsub.s32 0, %v11600
    %v11602 = vrot.slane %v11597, %v11601
    %v11604 = vadd.f32 %v11279, %v11602
    %v11605 = vadd.f32 %v11284, %v11602
    %v11606 = vadd.f32 %v11289, %v11602
    %v11607 = vadd.f32 %v11294, %v11602
    %v11608 = vadd.f32 %v11299, %v11602
    %v11609 = vadd.f32 %v11304, %v11602
    %v11610 = vadd.f32 %v11309, %v11602
    %v11611 = vadd.f32 %v11314, %v11602
    %v11612 = vadd.f32 %v11319, %v11602
    %v11613 = vadd.f32 %v11324, %v11602
    %v11614 = vadd.f32 %v11329, %v11602
    %v11615 = vadd.f32 %v11334, %v11602
    %v11616 = vadd.f32 %v11339, %v11602
    %v11617 = vadd.f32 %v11344, %v11602
    %v11618 = vadd.f32 %v11349, %v11602
    %v11619 = vadd.f32 %v11354, %v11602
    %v11620 = vadd.f32 %v11359, %v11602
    %v11621 = vadd.f32 %v11364, %v11602
    %v11622 = vadd.f32 %v11369, %v11602
    %v11623 = vadd.f32 %v11374, %v11602
    %v11624 = vadd.f32 %v11379, %v11602
    %v11625 = vadd.f32 %v11384, %v11602
    %v11626 = vadd.f32 %v11389, %v11602
    %v11627 = vadd.f32 %v11394, %v11602
    %v11628 = vadd.f32 %v11399, %v11602
    %v11629 = vadd.f32 %v11404, %v11602
    %v11630 = vadd.f32 %v11409, %v11602
    %v11631 = vadd.f32 %v11414, %v11602
    %v11632 = vadd.f32 %v11419, %v11602
    %v11633 = vadd.f32 %v11424, %v11602
    %v11634 = vadd.f32 %v11429, %v11602
    %v11635 = vadd.f32 %v11434, %v11602
    %v11636 = vadd.f32 %v11439, %v11602
    %v11637 = vadd.f32 %v11444, %v11602
    %v11638 = vadd.f32 %v11449, %v11602
    %v11639 = vadd.f32 %v11454, %v11602
    %v11640 = vadd.f32 %v11459, %v11602
    %v11641 = vadd.f32 %v11464, %v11602
    %v11642 = vadd.f32 %v11469, %v11602
    %v11643 = vadd.f32 %v11474, %v11602
    %v11644 = vadd.f32 %v11479, %v11602
    %v11645 = vadd.f32 %v11484, %v11602
    %v11646 = vadd.f32 %v11489, %v11602
    %v11647 = vadd.f32 %v11494, %v11602
    %v11648 = vadd.f32 %v11499, %v11602
    %v11649 = vadd.f32 %v11504, %v11602
    %v11650 = vadd.f32 %v11509, %v11602
    %v11651 = vadd.f32 %v11514, %v11602
    %v11652 = vadd.f32 %v11519, %v11602
    %v11653 = vadd.f32 %v11524, %v11602
    %v11654 = vadd.f32 %v11529, %v11602
    %v11655 = vadd.f32 %v11534, %v11602
    %v11656 = vadd.f32 %v11539, %v11602
    %v11657 = vadd.f32 %v11544, %v11602
    %v11658 = vadd.f32 %v11549, %v11602
    %v11659 = vadd.f32 %v11554, %v11602
    %v11660 = vadd.f32 %v11559, %v11602
    %v11661 = vadd.f32 %v11564, %v11602
    %v11662 = vadd.f32 %v11569, %v11602
    %v11663 = vadd.f32 %v11574, %v11602
    %v11664 = vadd.f32 %v11579, %v11602
    %v11665 = vadd.f32 %v11584, %v11602
    %v11666 = vadd.f32 %v11589, %v11602
    %v11667 = vadd.f32 %v11594, %v11602
    %v11668 = vld [vmem:[%s10] sm:$0x1]
    %v11669 = vld [vmem:[%s11] sm:$0x1]
    %v11670 = vsel %vm9191, %v11604, 0.0
    %v11671 = vsel %vm9191, %v11605, 0.0
    %v11672 = vadd.f32 %v11670, %v11671
    %v11673 = vsel %vm9191, %v11606, 0.0
    %v11674 = vadd.f32 %v11672, %v11673
    %v11675 = vsel %vm9191, %v11607, 0.0
    %v11676 = vadd.f32 %v11674, %v11675
    %v11677 = vsel %vm9191, %v11608, 0.0
    %v11678 = vadd.f32 %v11676, %v11677
    %v11679 = vsel %vm9191, %v11609, 0.0
    %v11680 = vadd.f32 %v11678, %v11679
    %v11681 = vsel %vm9191, %v11610, 0.0
    %v11682 = vadd.f32 %v11680, %v11681
    %v11683 = vsel %vm9191, %v11611, 0.0
    %v11684 = vadd.f32 %v11682, %v11683
    %v11685 = vsel %vm9191, %v11612, 0.0
    %v11686 = vadd.f32 %v11684, %v11685
    %v11687 = vsel %vm9191, %v11613, 0.0
    %v11688 = vadd.f32 %v11686, %v11687
    %v11689 = vsel %vm9191, %v11614, 0.0
    %v11690 = vadd.f32 %v11688, %v11689
    %v11691 = vsel %vm9191, %v11615, 0.0
    %v11692 = vadd.f32 %v11690, %v11691
    %v11693 = vsel %vm9191, %v11616, 0.0
    %v11694 = vadd.f32 %v11692, %v11693
    %v11695 = vsel %vm9191, %v11617, 0.0
    %v11696 = vadd.f32 %v11694, %v11695
    %v11697 = vsel %vm9191, %v11618, 0.0
    %v11698 = vadd.f32 %v11696, %v11697
    %v11699 = vsel %vm9191, %v11619, 0.0
    %v11700 = vadd.f32 %v11698, %v11699
    %v11701 = vsel %vm9191, %v11620, 0.0
    %v11702 = vadd.f32 %v11700, %v11701
    %v11703 = vsel %vm9191, %v11621, 0.0
    %v11704 = vadd.f32 %v11702, %v11703
    %v11705 = vsel %vm9191, %v11622, 0.0
    %v11706 = vadd.f32 %v11704, %v11705
    %v11707 = vsel %vm9191, %v11623, 0.0
    %v11708 = vadd.f32 %v11706, %v11707
    %v11709 = vsel %vm9191, %v11624, 0.0
    %v11710 = vadd.f32 %v11708, %v11709
    %v11711 = vsel %vm9191, %v11625, 0.0
    %v11712 = vadd.f32 %v11710, %v11711
    %v11713 = vsel %vm9191, %v11626, 0.0
    %v11714 = vadd.f32 %v11712, %v11713
    %v11715 = vsel %vm9191, %v11627, 0.0
    %v11716 = vadd.f32 %v11714, %v11715
    %v11717 = vsel %vm9191, %v11628, 0.0
    %v11718 = vadd.f32 %v11716, %v11717
    %v11719 = vsel %vm9191, %v11629, 0.0
    %v11720 = vadd.f32 %v11718, %v11719
    %v11721 = vsel %vm9191, %v11630, 0.0
    %v11722 = vadd.f32 %v11720, %v11721
    %v11723 = vsel %vm9191, %v11631, 0.0
    %v11724 = vadd.f32 %v11722, %v11723
    %v11725 = vsel %vm9191, %v11632, 0.0
    %v11726 = vadd.f32 %v11724, %v11725
    %v11727 = vsel %vm9191, %v11633, 0.0
    %v11728 = vadd.f32 %v11726, %v11727
    %v11729 = vsel %vm9191, %v11634, 0.0
    %v11730 = vadd.f32 %v11728, %v11729
    %v11731 = vsel %vm9191, %v11635, 0.0
    %v11732 = vadd.f32 %v11730, %v11731
    %v11733 = vsel %vm9191, %v11636, 0.0
    %v11734 = vadd.f32 %v11732, %v11733
    %v11735 = vsel %vm9191, %v11637, 0.0
    %v11736 = vadd.f32 %v11734, %v11735
    %v11737 = vsel %vm9191, %v11638, 0.0
    %v11738 = vadd.f32 %v11736, %v11737
    %v11739 = vsel %vm9191, %v11639, 0.0
    %v11740 = vadd.f32 %v11738, %v11739
    %v11741 = vsel %vm9191, %v11640, 0.0
    %v11742 = vadd.f32 %v11740, %v11741
    %v11743 = vsel %vm9191, %v11641, 0.0
    %v11744 = vadd.f32 %v11742, %v11743
    %v11745 = vsel %vm9191, %v11642, 0.0
    %v11746 = vadd.f32 %v11744, %v11745
    %v11747 = vsel %vm9191, %v11643, 0.0
    %v11748 = vadd.f32 %v11746, %v11747
    %v11749 = vsel %vm9191, %v11644, 0.0
    %v11750 = vadd.f32 %v11748, %v11749
    %v11751 = vsel %vm9191, %v11645, 0.0
    %v11752 = vadd.f32 %v11750, %v11751
    %v11753 = vsel %vm9191, %v11646, 0.0
    %v11754 = vadd.f32 %v11752, %v11753
    %v11755 = vsel %vm9191, %v11647, 0.0
    %v11756 = vadd.f32 %v11754, %v11755
    %v11757 = vsel %vm9191, %v11648, 0.0
    %v11758 = vadd.f32 %v11756, %v11757
    %v11759 = vsel %vm9191, %v11649, 0.0
    %v11760 = vadd.f32 %v11758, %v11759
    %v11761 = vsel %vm9191, %v11650, 0.0
    %v11762 = vadd.f32 %v11760, %v11761
    %v11763 = vsel %vm9191, %v11651, 0.0
    %v11764 = vadd.f32 %v11762, %v11763
    %v11765 = vsel %vm9191, %v11652, 0.0
    %v11766 = vadd.f32 %v11764, %v11765
    %v11767 = vsel %vm9191, %v11653, 0.0
    %v11768 = vadd.f32 %v11766, %v11767
    %v11769 = vsel %vm9191, %v11654, 0.0
    %v11770 = vadd.f32 %v11768, %v11769
    %v11771 = vsel %vm9191, %v11655, 0.0
    %v11772 = vadd.f32 %v11770, %v11771
    %v11773 = vsel %vm9191, %v11656, 0.0
    %v11774 = vadd.f32 %v11772, %v11773
    %v11775 = vsel %vm9191, %v11657, 0.0
    %v11776 = vadd.f32 %v11774, %v11775
    %v11777 = vsel %vm9191, %v11658, 0.0
    %v11778 = vadd.f32 %v11776, %v11777
    %v11779 = vsel %vm9191, %v11659, 0.0
    %v11780 = vadd.f32 %v11778, %v11779
    %v11781 = vsel %vm9191, %v11660, 0.0
    %v11782 = vadd.f32 %v11780, %v11781
    %v11783 = vsel %vm9191, %v11661, 0.0
    %v11784 = vadd.f32 %v11782, %v11783
    %v11785 = vsel %vm9191, %v11662, 0.0
    %v11786 = vadd.f32 %v11784, %v11785
    %v11787 = vsel %vm9191, %v11663, 0.0
    %v11788 = vadd.f32 %v11786, %v11787
    %v11789 = vsel %vm9191, %v11664, 0.0
    %v11790 = vadd.f32 %v11788, %v11789
    %v11791 = vsel %vm9191, %v11665, 0.0
    %v11792 = vadd.f32 %v11790, %v11791
    %v11793 = vsel %vm9191, %v11666, 0.0
    %v11794 = vadd.f32 %v11792, %v11793
    %v11795 = vsel %vm9191, %v11667, 0.0
    %v11796 = vadd.f32 %v11794, %v11795
    %v11797 = vrot.slane %v11796, 4
    %v11798 = vadd.f32 %v11796, %v11797
    %v11799 = vrot.slane %v11798, 2
    %v11800 = vadd.f32 %v11798, %v11799
    %v11801 = vrot.slane %v11800, 1
    %v11802 = vadd.f32 %v11800, %v11801
    %v11803 = vmul.f32 %v11802, %v9325
    %v11804 = vsub.f32 %v11604, %v11803
    %v11805 = vsub.f32 %v11605, %v11803
    %v11806 = vsub.f32 %v11606, %v11803
    %v11807 = vsub.f32 %v11607, %v11803
    %v11808 = vsub.f32 %v11608, %v11803
    %v11809 = vsub.f32 %v11609, %v11803
    %v11810 = vsub.f32 %v11610, %v11803
    %v11811 = vsub.f32 %v11611, %v11803
    %v11812 = vsub.f32 %v11612, %v11803
    %v11813 = vsub.f32 %v11613, %v11803
    %v11814 = vsub.f32 %v11614, %v11803
    %v11815 = vsub.f32 %v11615, %v11803
    %v11816 = vsub.f32 %v11616, %v11803
    %v11817 = vsub.f32 %v11617, %v11803
    %v11818 = vsub.f32 %v11618, %v11803
    %v11819 = vsub.f32 %v11619, %v11803
    %v11820 = vsub.f32 %v11620, %v11803
    %v11821 = vsub.f32 %v11621, %v11803
    %v11822 = vsub.f32 %v11622, %v11803
    %v11823 = vsub.f32 %v11623, %v11803
    %v11824 = vsub.f32 %v11624, %v11803
    %v11825 = vsub.f32 %v11625, %v11803
    %v11826 = vsub.f32 %v11626, %v11803
    %v11827 = vsub.f32 %v11627, %v11803
    %v11828 = vsub.f32 %v11628, %v11803
    %v11829 = vsub.f32 %v11629, %v11803
    %v11830 = vsub.f32 %v11630, %v11803
    %v11831 = vsub.f32 %v11631, %v11803
    %v11832 = vsub.f32 %v11632, %v11803
    %v11833 = vsub.f32 %v11633, %v11803
    %v11834 = vsub.f32 %v11634, %v11803
    %v11835 = vsub.f32 %v11635, %v11803
    %v11836 = vsub.f32 %v11636, %v11803
    %v11837 = vsub.f32 %v11637, %v11803
    %v11838 = vsub.f32 %v11638, %v11803
    %v11839 = vsub.f32 %v11639, %v11803
    %v11840 = vsub.f32 %v11640, %v11803
    %v11841 = vsub.f32 %v11641, %v11803
    %v11842 = vsub.f32 %v11642, %v11803
    %v11843 = vsub.f32 %v11643, %v11803
    %v11844 = vsub.f32 %v11644, %v11803
    %v11845 = vsub.f32 %v11645, %v11803
    %v11846 = vsub.f32 %v11646, %v11803
    %v11847 = vsub.f32 %v11647, %v11803
    %v11848 = vsub.f32 %v11648, %v11803
    %v11849 = vsub.f32 %v11649, %v11803
    %v11850 = vsub.f32 %v11650, %v11803
    %v11851 = vsub.f32 %v11651, %v11803
    %v11852 = vsub.f32 %v11652, %v11803
    %v11853 = vsub.f32 %v11653, %v11803
    %v11854 = vsub.f32 %v11654, %v11803
    %v11855 = vsub.f32 %v11655, %v11803
    %v11856 = vsub.f32 %v11656, %v11803
    %v11857 = vsub.f32 %v11657, %v11803
    %v11858 = vsub.f32 %v11658, %v11803
    %v11859 = vsub.f32 %v11659, %v11803
    %v11860 = vsub.f32 %v11660, %v11803
    %v11861 = vsub.f32 %v11661, %v11803
    %v11862 = vsub.f32 %v11662, %v11803
    %v11863 = vsub.f32 %v11663, %v11803
    %v11864 = vsub.f32 %v11664, %v11803
    %v11865 = vsub.f32 %v11665, %v11803
    %v11866 = vsub.f32 %v11666, %v11803
    %v11867 = vsub.f32 %v11667, %v11803
    %v11868 = vmul.f32 %v11804, %v11804
    %v11869 = vmul.f32 %v11805, %v11805
    %v11870 = vmul.f32 %v11806, %v11806
    %v11871 = vmul.f32 %v11807, %v11807
    %v11872 = vmul.f32 %v11808, %v11808
    %v11873 = vmul.f32 %v11809, %v11809
    %v11874 = vmul.f32 %v11810, %v11810
    %v11875 = vmul.f32 %v11811, %v11811
    %v11876 = vmul.f32 %v11812, %v11812
    %v11877 = vmul.f32 %v11813, %v11813
    %v11878 = vmul.f32 %v11814, %v11814
    %v11879 = vmul.f32 %v11815, %v11815
    %v11880 = vmul.f32 %v11816, %v11816
    %v11881 = vmul.f32 %v11817, %v11817
    %v11882 = vmul.f32 %v11818, %v11818
    %v11883 = vmul.f32 %v11819, %v11819
    %v11884 = vmul.f32 %v11820, %v11820
    %v11885 = vmul.f32 %v11821, %v11821
    %v11886 = vmul.f32 %v11822, %v11822
    %v11887 = vmul.f32 %v11823, %v11823
    %v11888 = vmul.f32 %v11824, %v11824
    %v11889 = vmul.f32 %v11825, %v11825
    %v11890 = vmul.f32 %v11826, %v11826
    %v11891 = vmul.f32 %v11827, %v11827
    %v11892 = vmul.f32 %v11828, %v11828
    %v11893 = vmul.f32 %v11829, %v11829
    %v11894 = vmul.f32 %v11830, %v11830
    %v11895 = vmul.f32 %v11831, %v11831
    %v11896 = vmul.f32 %v11832, %v11832
    %v11897 = vmul.f32 %v11833, %v11833
    %v11898 = vmul.f32 %v11834, %v11834
    %v11899 = vmul.f32 %v11835, %v11835
    %v11900 = vmul.f32 %v11836, %v11836
    %v11901 = vmul.f32 %v11837, %v11837
    %v11902 = vmul.f32 %v11838, %v11838
    %v11903 = vmul.f32 %v11839, %v11839
    %v11904 = vmul.f32 %v11840, %v11840
    %v11905 = vmul.f32 %v11841, %v11841
    %v11906 = vmul.f32 %v11842, %v11842
    %v11907 = vmul.f32 %v11843, %v11843
    %v11908 = vmul.f32 %v11844, %v11844
    %v11909 = vmul.f32 %v11845, %v11845
    %v11910 = vmul.f32 %v11846, %v11846
    %v11911 = vmul.f32 %v11847, %v11847
    %v11912 = vmul.f32 %v11848, %v11848
    %v11913 = vmul.f32 %v11849, %v11849
    %v11914 = vmul.f32 %v11850, %v11850
    %v11915 = vmul.f32 %v11851, %v11851
    %v11916 = vmul.f32 %v11852, %v11852
    %v11917 = vmul.f32 %v11853, %v11853
    %v11918 = vmul.f32 %v11854, %v11854
    %v11919 = vmul.f32 %v11855, %v11855
    %v11920 = vmul.f32 %v11856, %v11856
    %v11921 = vmul.f32 %v11857, %v11857
    %v11922 = vmul.f32 %v11858, %v11858
    %v11923 = vmul.f32 %v11859, %v11859
    %v11924 = vmul.f32 %v11860, %v11860
    %v11925 = vmul.f32 %v11861, %v11861
    %v11926 = vmul.f32 %v11862, %v11862
    %v11927 = vmul.f32 %v11863, %v11863
    %v11928 = vmul.f32 %v11864, %v11864
    %v11929 = vmul.f32 %v11865, %v11865
    %v11930 = vmul.f32 %v11866, %v11866
    %v11931 = vmul.f32 %v11867, %v11867
    %v11932 = vsel %vm9191, %v11868, 0.0
    %v11933 = vsel %vm9191, %v11869, 0.0
    %v11934 = vadd.f32 %v11932, %v11933
    %v11935 = vsel %vm9191, %v11870, 0.0
    %v11936 = vadd.f32 %v11934, %v11935
    %v11937 = vsel %vm9191, %v11871, 0.0
    %v11938 = vadd.f32 %v11936, %v11937
    %v11939 = vsel %vm9191, %v11872, 0.0
    %v11940 = vadd.f32 %v11938, %v11939
    %v11941 = vsel %vm9191, %v11873, 0.0
    %v11942 = vadd.f32 %v11940, %v11941
    %v11943 = vsel %vm9191, %v11874, 0.0
    %v11944 = vadd.f32 %v11942, %v11943
    %v11945 = vsel %vm9191, %v11875, 0.0
    %v11946 = vadd.f32 %v11944, %v11945
    %v11947 = vsel %vm9191, %v11876, 0.0
    %v11948 = vadd.f32 %v11946, %v11947
    %v11949 = vsel %vm9191, %v11877, 0.0
    %v11950 = vadd.f32 %v11948, %v11949
    %v11951 = vsel %vm9191, %v11878, 0.0
    %v11952 = vadd.f32 %v11950, %v11951
    %v11953 = vsel %vm9191, %v11879, 0.0
    %v11954 = vadd.f32 %v11952, %v11953
    %v11955 = vsel %vm9191, %v11880, 0.0
    %v11956 = vadd.f32 %v11954, %v11955
    %v11957 = vsel %vm9191, %v11881, 0.0
    %v11958 = vadd.f32 %v11956, %v11957
    %v11959 = vsel %vm9191, %v11882, 0.0
    %v11960 = vadd.f32 %v11958, %v11959
    %v11961 = vsel %vm9191, %v11883, 0.0
    %v11962 = vadd.f32 %v11960, %v11961
    %v11963 = vsel %vm9191, %v11884, 0.0
    %v11964 = vadd.f32 %v11962, %v11963
    %v11965 = vsel %vm9191, %v11885, 0.0
    %v11966 = vadd.f32 %v11964, %v11965
    %v11967 = vsel %vm9191, %v11886, 0.0
    %v11968 = vadd.f32 %v11966, %v11967
    %v11969 = vsel %vm9191, %v11887, 0.0
    %v11970 = vadd.f32 %v11968, %v11969
    %v11971 = vsel %vm9191, %v11888, 0.0
    %v11972 = vadd.f32 %v11970, %v11971
    %v11973 = vsel %vm9191, %v11889, 0.0
    %v11974 = vadd.f32 %v11972, %v11973
    %v11975 = vsel %vm9191, %v11890, 0.0
    %v11976 = vadd.f32 %v11974, %v11975
    %v11977 = vsel %vm9191, %v11891, 0.0
    %v11978 = vadd.f32 %v11976, %v11977
    %v11979 = vsel %vm9191, %v11892, 0.0
    %v11980 = vadd.f32 %v11978, %v11979
    %v11981 = vsel %vm9191, %v11893, 0.0
    %v11982 = vadd.f32 %v11980, %v11981
    %v11983 = vsel %vm9191, %v11894, 0.0
    %v11984 = vadd.f32 %v11982, %v11983
    %v11985 = vsel %vm9191, %v11895, 0.0
    %v11986 = vadd.f32 %v11984, %v11985
    %v11987 = vsel %vm9191, %v11896, 0.0
    %v11988 = vadd.f32 %v11986, %v11987
    %v11989 = vsel %vm9191, %v11897, 0.0
    %v11990 = vadd.f32 %v11988, %v11989
    %v11991 = vsel %vm9191, %v11898, 0.0
    %v11992 = vadd.f32 %v11990, %v11991
    %v11993 = vsel %vm9191, %v11899, 0.0
    %v11994 = vadd.f32 %v11992, %v11993
    %v11995 = vsel %vm9191, %v11900, 0.0
    %v11996 = vadd.f32 %v11994, %v11995
    %v11997 = vsel %vm9191, %v11901, 0.0
    %v11998 = vadd.f32 %v11996, %v11997
    %v11999 = vsel %vm9191, %v11902, 0.0
    %v12000 = vadd.f32 %v11998, %v11999
    %v12001 = vsel %vm9191, %v11903, 0.0
    %v12002 = vadd.f32 %v12000, %v12001
    %v12003 = vsel %vm9191, %v11904, 0.0
    %v12004 = vadd.f32 %v12002, %v12003
    %v12005 = vsel %vm9191, %v11905, 0.0
    %v12006 = vadd.f32 %v12004, %v12005
    %v12007 = vsel %vm9191, %v11906, 0.0
    %v12008 = vadd.f32 %v12006, %v12007
    %v12009 = vsel %vm9191, %v11907, 0.0
    %v12010 = vadd.f32 %v12008, %v12009
    %v12011 = vsel %vm9191, %v11908, 0.0
    %v12012 = vadd.f32 %v12010, %v12011
    %v12013 = vsel %vm9191, %v11909, 0.0
    %v12014 = vadd.f32 %v12012, %v12013
    %v12015 = vsel %vm9191, %v11910, 0.0
    %v12016 = vadd.f32 %v12014, %v12015
    %v12017 = vsel %vm9191, %v11911, 0.0
    %v12018 = vadd.f32 %v12016, %v12017
    %v12019 = vsel %vm9191, %v11912, 0.0
    %v12020 = vadd.f32 %v12018, %v12019
    %v12021 = vsel %vm9191, %v11913, 0.0
    %v12022 = vadd.f32 %v12020, %v12021
    %v12023 = vsel %vm9191, %v11914, 0.0
    %v12024 = vadd.f32 %v12022, %v12023
    %v12025 = vsel %vm9191, %v11915, 0.0
    %v12026 = vadd.f32 %v12024, %v12025
    %v12027 = vsel %vm9191, %v11916, 0.0
    %v12028 = vadd.f32 %v12026, %v12027
    %v12029 = vsel %vm9191, %v11917, 0.0
    %v12030 = vadd.f32 %v12028, %v12029
    %v12031 = vsel %vm9191, %v11918, 0.0
    %v12032 = vadd.f32 %v12030, %v12031
    %v12033 = vsel %vm9191, %v11919, 0.0
    %v12034 = vadd.f32 %v12032, %v12033
    %v12035 = vsel %vm9191, %v11920, 0.0
    %v12036 = vadd.f32 %v12034, %v12035
    %v12037 = vsel %vm9191, %v11921, 0.0
    %v12038 = vadd.f32 %v12036, %v12037
    %v12039 = vsel %vm9191, %v11922, 0.0
    %v12040 = vadd.f32 %v12038, %v12039
    %v12041 = vsel %vm9191, %v11923, 0.0
    %v12042 = vadd.f32 %v12040, %v12041
    %v12043 = vsel %vm9191, %v11924, 0.0
    %v12044 = vadd.f32 %v12042, %v12043
    %v12045 = vsel %vm9191, %v11925, 0.0
    %v12046 = vadd.f32 %v12044, %v12045
    %v12047 = vsel %vm9191, %v11926, 0.0
    %v12048 = vadd.f32 %v12046, %v12047
    %v12049 = vsel %vm9191, %v11927, 0.0
    %v12050 = vadd.f32 %v12048, %v12049
    %v12051 = vsel %vm9191, %v11928, 0.0
    %v12052 = vadd.f32 %v12050, %v12051
    %v12053 = vsel %vm9191, %v11929, 0.0
    %v12054 = vadd.f32 %v12052, %v12053
    %v12055 = vsel %vm9191, %v11930, 0.0
    %v12056 = vadd.f32 %v12054, %v12055
    %v12057 = vsel %vm9191, %v11931, 0.0
    %v12058 = vadd.f32 %v12056, %v12057
    %v12059 = vrot.slane %v12058, 4
    %v12060 = vadd.f32 %v12058, %v12059
    %v12061 = vrot.slane %v12060, 2
    %v12062 = vadd.f32 %v12060, %v12061
    %v12063 = vrot.slane %v12062, 1
    %v12064 = vadd.f32 %v12062, %v12063
    %v12065 = vmul.f32 %v12064, %v9325
    %v12066 = vadd.f32 %v12065, 1e-05
    %v12067 = vrsqrt.pop %v12066
    %v12068 = vmul.f32 %v11804, %v12067
    %v12069 = vmul.f32 %v11805, %v12067
    %v12070 = vmul.f32 %v11806, %v12067
    %v12071 = vmul.f32 %v11807, %v12067
    %v12072 = vmul.f32 %v11808, %v12067
    %v12073 = vmul.f32 %v11809, %v12067
    %v12074 = vmul.f32 %v11810, %v12067
    %v12075 = vmul.f32 %v11811, %v12067
    %v12076 = vmul.f32 %v11812, %v12067
    %v12077 = vmul.f32 %v11813, %v12067
    %v12078 = vmul.f32 %v11814, %v12067
    %v12079 = vmul.f32 %v11815, %v12067
    %v12080 = vmul.f32 %v11816, %v12067
    %v12081 = vmul.f32 %v11817, %v12067
    %v12082 = vmul.f32 %v11818, %v12067
    %v12083 = vmul.f32 %v11819, %v12067
    %v12084 = vmul.f32 %v11820, %v12067
    %v12085 = vmul.f32 %v11821, %v12067
    %v12086 = vmul.f32 %v11822, %v12067
    %v12087 = vmul.f32 %v11823, %v12067
    %v12088 = vmul.f32 %v11824, %v12067
    %v12089 = vmul.f32 %v11825, %v12067
    %v12090 = vmul.f32 %v11826, %v12067
    %v12091 = vmul.f32 %v11827, %v12067
    %v12092 = vmul.f32 %v11828, %v12067
    %v12093 = vmul.f32 %v11829, %v12067
    %v12094 = vmul.f32 %v11830, %v12067
    %v12095 = vmul.f32 %v11831, %v12067
    %v12096 = vmul.f32 %v11832, %v12067
    %v12097 = vmul.f32 %v11833, %v12067
    %v12098 = vmul.f32 %v11834, %v12067
    %v12099 = vmul.f32 %v11835, %v12067
    %v12100 = vmul.f32 %v11836, %v12067
    %v12101 = vmul.f32 %v11837, %v12067
    %v12102 = vmul.f32 %v11838, %v12067
    %v12103 = vmul.f32 %v11839, %v12067
    %v12104 = vmul.f32 %v11840, %v12067
    %v12105 = vmul.f32 %v11841, %v12067
    %v12106 = vmul.f32 %v11842, %v12067
    %v12107 = vmul.f32 %v11843, %v12067
    %v12108 = vmul.f32 %v11844, %v12067
    %v12109 = vmul.f32 %v11845, %v12067
    %v12110 = vmul.f32 %v11846, %v12067
    %v12111 = vmul.f32 %v11847, %v12067
    %v12112 = vmul.f32 %v11848, %v12067
    %v12113 = vmul.f32 %v11849, %v12067
    %v12114 = vmul.f32 %v11850, %v12067
    %v12115 = vmul.f32 %v11851, %v12067
    %v12116 = vmul.f32 %v11852, %v12067
    %v12117 = vmul.f32 %v11853, %v12067
    %v12118 = vmul.f32 %v11854, %v12067
    %v12119 = vmul.f32 %v11855, %v12067
    %v12120 = vmul.f32 %v11856, %v12067
    %v12121 = vmul.f32 %v11857, %v12067
    %v12122 = vmul.f32 %v11858, %v12067
    %v12123 = vmul.f32 %v11859, %v12067
    %v12124 = vmul.f32 %v11860, %v12067
    %v12125 = vmul.f32 %v11861, %v12067
    %v12126 = vmul.f32 %v11862, %v12067
    %v12127 = vmul.f32 %v11863, %v12067
    %v12128 = vmul.f32 %v11864, %v12067
    %v12129 = vmul.f32 %v11865, %v12067
    %v12130 = vmul.f32 %v11866, %v12067
    %v12131 = vmul.f32 %v11867, %v12067
    %v12133 = vlaneseq
    %v12134 = vshrl.u32 %v12133, 7
    %v12135 = vsub.s32 0, %v12134
    %v12136 = vrot.slane %v11668, %v12135
    %v12138 = vmul.f32 %v12068, %v12136
    %v12139 = vmul.f32 %v12069, %v12136
    %v12140 = vmul.f32 %v12070, %v12136
    %v12141 = vmul.f32 %v12071, %v12136
    %v12142 = vmul.f32 %v12072, %v12136
    %v12143 = vmul.f32 %v12073, %v12136
    %v12144 = vmul.f32 %v12074, %v12136
    %v12145 = vmul.f32 %v12075, %v12136
    %v12146 = vmul.f32 %v12076, %v12136
    %v12147 = vmul.f32 %v12077, %v12136
    %v12148 = vmul.f32 %v12078, %v12136
    %v12149 = vmul.f32 %v12079, %v12136
    %v12150 = vmul.f32 %v12080, %v12136
    %v12151 = vmul.f32 %v12081, %v12136
    %v12152 = vmul.f32 %v12082, %v12136
    %v12153 = vmul.f32 %v12083, %v12136
    %v12154 = vmul.f32 %v12084, %v12136
    %v12155 = vmul.f32 %v12085, %v12136
    %v12156 = vmul.f32 %v12086, %v12136
    %v12157 = vmul.f32 %v12087, %v12136
    %v12158 = vmul.f32 %v12088, %v12136
    %v12159 = vmul.f32 %v12089, %v12136
    %v12160 = vmul.f32 %v12090, %v12136
    %v12161 = vmul.f32 %v12091, %v12136
    %v12162 = vmul.f32 %v12092, %v12136
    %v12163 = vmul.f32 %v12093, %v12136
    %v12164 = vmul.f32 %v12094, %v12136
    %v12165 = vmul.f32 %v12095, %v12136
    %v12166 = vmul.f32 %v12096, %v12136
    %v12167 = vmul.f32 %v12097, %v12136
    %v12168 = vmul.f32 %v12098, %v12136
    %v12169 = vmul.f32 %v12099, %v12136
    %v12170 = vmul.f32 %v12100, %v12136
    %v12171 = vmul.f32 %v12101, %v12136
    %v12172 = vmul.f32 %v12102, %v12136
    %v12173 = vmul.f32 %v12103, %v12136
    %v12174 = vmul.f32 %v12104, %v12136
    %v12175 = vmul.f32 %v12105, %v12136
    %v12176 = vmul.f32 %v12106, %v12136
    %v12177 = vmul.f32 %v12107, %v12136
    %v12178 = vmul.f32 %v12108, %v12136
    %v12179 = vmul.f32 %v12109, %v12136
    %v12180 = vmul.f32 %v12110, %v12136
    %v12181 = vmul.f32 %v12111, %v12136
    %v12182 = vmul.f32 %v12112, %v12136
    %v12183 = vmul.f32 %v12113, %v12136
    %v12184 = vmul.f32 %v12114, %v12136
    %v12185 = vmul.f32 %v12115, %v12136
    %v12186 = vmul.f32 %v12116, %v12136
    %v12187 = vmul.f32 %v12117, %v12136
    %v12188 = vmul.f32 %v12118, %v12136
    %v12189 = vmul.f32 %v12119, %v12136
    %v12190 = vmul.f32 %v12120, %v12136
    %v12191 = vmul.f32 %v12121, %v12136
    %v12192 = vmul.f32 %v12122, %v12136
    %v12193 = vmul.f32 %v12123, %v12136
    %v12194 = vmul.f32 %v12124, %v12136
    %v12195 = vmul.f32 %v12125, %v12136
    %v12196 = vmul.f32 %v12126, %v12136
    %v12197 = vmul.f32 %v12127, %v12136
    %v12198 = vmul.f32 %v12128, %v12136
    %v12199 = vmul.f32 %v12129, %v12136
    %v12200 = vmul.f32 %v12130, %v12136
    %v12201 = vmul.f32 %v12131, %v12136
    %v12203 = vlaneseq
    %v12204 = vshrl.u32 %v12203, 7
    %v12205 = vsub.s32 0, %v12204
    %v12206 = vrot.slane %v11669, %v12205
    %v12208 = vadd.f32 %v12138, %v12206
    %v12209 = vadd.f32 %v12139, %v12206
    %v12210 = vadd.f32 %v12140, %v12206
    %v12211 = vadd.f32 %v12141, %v12206
    %v12212 = vadd.f32 %v12142, %v12206
    %v12213 = vadd.f32 %v12143, %v12206
    %v12214 = vadd.f32 %v12144, %v12206
    %v12215 = vadd.f32 %v12145, %v12206
    %v12216 = vadd.f32 %v12146, %v12206
    %v12217 = vadd.f32 %v12147, %v12206
    %v12218 = vadd.f32 %v12148, %v12206
    %v12219 = vadd.f32 %v12149, %v12206
    %v12220 = vadd.f32 %v12150, %v12206
    %v12221 = vadd.f32 %v12151, %v12206
    %v12222 = vadd.f32 %v12152, %v12206
    %v12223 = vadd.f32 %v12153, %v12206
    %v12224 = vadd.f32 %v12154, %v12206
    %v12225 = vadd.f32 %v12155, %v12206
    %v12226 = vadd.f32 %v12156, %v12206
    %v12227 = vadd.f32 %v12157, %v12206
    %v12228 = vadd.f32 %v12158, %v12206
    %v12229 = vadd.f32 %v12159, %v12206
    %v12230 = vadd.f32 %v12160, %v12206
    %v12231 = vadd.f32 %v12161, %v12206
    %v12232 = vadd.f32 %v12162, %v12206
    %v12233 = vadd.f32 %v12163, %v12206
    %v12234 = vadd.f32 %v12164, %v12206
    %v12235 = vadd.f32 %v12165, %v12206
    %v12236 = vadd.f32 %v12166, %v12206
    %v12237 = vadd.f32 %v12167, %v12206
    %v12238 = vadd.f32 %v12168, %v12206
    %v12239 = vadd.f32 %v12169, %v12206
    %v12240 = vadd.f32 %v12170, %v12206
    %v12241 = vadd.f32 %v12171, %v12206
    %v12242 = vadd.f32 %v12172, %v12206
    %v12243 = vadd.f32 %v12173, %v12206
    %v12244 = vadd.f32 %v12174, %v12206
    %v12245 = vadd.f32 %v12175, %v12206
    %v12246 = vadd.f32 %v12176, %v12206
    %v12247 = vadd.f32 %v12177, %v12206
    %v12248 = vadd.f32 %v12178, %v12206
    %v12249 = vadd.f32 %v12179, %v12206
    %v12250 = vadd.f32 %v12180, %v12206
    %v12251 = vadd.f32 %v12181, %v12206
    %v12252 = vadd.f32 %v12182, %v12206
    %v12253 = vadd.f32 %v12183, %v12206
    %v12254 = vadd.f32 %v12184, %v12206
    %v12255 = vadd.f32 %v12185, %v12206
    %v12256 = vadd.f32 %v12186, %v12206
    %v12257 = vadd.f32 %v12187, %v12206
    %v12258 = vadd.f32 %v12188, %v12206
    %v12259 = vadd.f32 %v12189, %v12206
    %v12260 = vadd.f32 %v12190, %v12206
    %v12261 = vadd.f32 %v12191, %v12206
    %v12262 = vadd.f32 %v12192, %v12206
    %v12263 = vadd.f32 %v12193, %v12206
    %v12264 = vadd.f32 %v12194, %v12206
    %v12265 = vadd.f32 %v12195, %v12206
    %v12266 = vadd.f32 %v12196, %v12206
    %v12267 = vadd.f32 %v12197, %v12206
    %v12268 = vadd.f32 %v12198, %v12206
    %v12269 = vadd.f32 %v12199, %v12206
    %v12270 = vadd.f32 %v12200, %v12206
    %v12271 = vadd.f32 %v12201, %v12206
    %vm12272 = vcmp.gt.f32.partialorder %v12208, 0.0
    %vm12273 = vcmp.gt.f32.partialorder %v12209, 0.0
    %vm12274 = vcmp.gt.f32.partialorder %v12210, 0.0
    %vm12275 = vcmp.gt.f32.partialorder %v12211, 0.0
    %vm12276 = vcmp.gt.f32.partialorder %v12212, 0.0
    %vm12277 = vcmp.gt.f32.partialorder %v12213, 0.0
    %vm12278 = vcmp.gt.f32.partialorder %v12214, 0.0
    %vm12279 = vcmp.gt.f32.partialorder %v12215, 0.0
    %vm12280 = vcmp.gt.f32.partialorder %v12216, 0.0
    %vm12281 = vcmp.gt.f32.partialorder %v12217, 0.0
    %vm12282 = vcmp.gt.f32.partialorder %v12218, 0.0
    %vm12283 = vcmp.gt.f32.partialorder %v12219, 0.0
    %vm12284 = vcmp.gt.f32.partialorder %v12220, 0.0
    %vm12285 = vcmp.gt.f32.partialorder %v12221, 0.0
    %vm12286 = vcmp.gt.f32.partialorder %v12222, 0.0
    %vm12287 = vcmp.gt.f32.partialorder %v12223, 0.0
    %vm12288 = vcmp.gt.f32.partialorder %v12224, 0.0
    %vm12289 = vcmp.gt.f32.partialorder %v12225, 0.0
    %vm12290 = vcmp.gt.f32.partialorder %v12226, 0.0
    %vm12291 = vcmp.gt.f32.partialorder %v12227, 0.0
    %vm12292 = vcmp.gt.f32.partialorder %v12228, 0.0
    %vm12293 = vcmp.gt.f32.partialorder %v12229, 0.0
    %vm12294 = vcmp.gt.f32.partialorder %v12230, 0.0
    %vm12295 = vcmp.gt.f32.partialorder %v12231, 0.0
    %vm12296 = vcmp.gt.f32.partialorder %v12232, 0.0
    %vm12297 = vcmp.gt.f32.partialorder %v12233, 0.0
    %vm12298 = vcmp.gt.f32.partialorder %v12234, 0.0
    %vm12299 = vcmp.gt.f32.partialorder %v12235, 0.0
    %vm12300 = vcmp.gt.f32.partialorder %v12236, 0.0
    %vm12301 = vcmp.gt.f32.partialorder %v12237, 0.0
    %vm12302 = vcmp.gt.f32.partialorder %v12238, 0.0
    %vm12303 = vcmp.gt.f32.partialorder %v12239, 0.0
    %vm12304 = vcmp.gt.f32.partialorder %v12240, 0.0
    %vm12305 = vcmp.gt.f32.partialorder %v12241, 0.0
    %vm12306 = vcmp.gt.f32.partialorder %v12242, 0.0
    %vm12307 = vcmp.gt.f32.partialorder %v12243, 0.0
    %vm12308 = vcmp.gt.f32.partialorder %v12244, 0.0
    %vm12309 = vcmp.gt.f32.partialorder %v12245, 0.0
    %vm12310 = vcmp.gt.f32.partialorder %v12246, 0.0
    %vm12311 = vcmp.gt.f32.partialorder %v12247, 0.0
    %vm12312 = vcmp.gt.f32.partialorder %v12248, 0.0
    %vm12313 = vcmp.gt.f32.partialorder %v12249, 0.0
    %vm12314 = vcmp.gt.f32.partialorder %v12250, 0.0
    %vm12315 = vcmp.gt.f32.partialorder %v12251, 0.0
    %vm12316 = vcmp.gt.f32.partialorder %v12252, 0.0
    %vm12317 = vcmp.gt.f32.partialorder %v12253, 0.0
    %vm12318 = vcmp.gt.f32.partialorder %v12254, 0.0
    %vm12319 = vcmp.gt.f32.partialorder %v12255, 0.0
    %vm12320 = vcmp.gt.f32.partialorder %v12256, 0.0
    %vm12321 = vcmp.gt.f32.partialorder %v12257, 0.0
    %vm12322 = vcmp.gt.f32.partialorder %v12258, 0.0
    %vm12323 = vcmp.gt.f32.partialorder %v12259, 0.0
    %vm12324 = vcmp.gt.f32.partialorder %v12260, 0.0
    %vm12325 = vcmp.gt.f32.partialorder %v12261, 0.0
    %vm12326 = vcmp.gt.f32.partialorder %v12262, 0.0
    %vm12327 = vcmp.gt.f32.partialorder %v12263, 0.0
    %vm12328 = vcmp.gt.f32.partialorder %v12264, 0.0
    %vm12329 = vcmp.gt.f32.partialorder %v12265, 0.0
    %vm12330 = vcmp.gt.f32.partialorder %v12266, 0.0
    %vm12331 = vcmp.gt.f32.partialorder %v12267, 0.0
    %vm12332 = vcmp.gt.f32.partialorder %v12268, 0.0
    %vm12333 = vcmp.gt.f32.partialorder %v12269, 0.0
    %vm12334 = vcmp.gt.f32.partialorder %v12270, 0.0
    %vm12335 = vcmp.gt.f32.partialorder %v12271, 0.0
    %v12336 = vmul.f32 %v12208, 0.2
    %v12337 = vmul.f32 %v12209, 0.2
    %v12338 = vmul.f32 %v12210, 0.2
    %v12339 = vmul.f32 %v12211, 0.2
    %v12340 = vmul.f32 %v12212, 0.2
    %v12341 = vmul.f32 %v12213, 0.2
    %v12342 = vmul.f32 %v12214, 0.2
    %v12343 = vmul.f32 %v12215, 0.2
    %v12344 = vmul.f32 %v12216, 0.2
    %v12345 = vmul.f32 %v12217, 0.2
    %v12346 = vmul.f32 %v12218, 0.2
    %v12347 = vmul.f32 %v12219, 0.2
    %v12348 = vmul.f32 %v12220, 0.2
    %v12349 = vmul.f32 %v12221, 0.2
    %v12350 = vmul.f32 %v12222, 0.2
    %v12351 = vmul.f32 %v12223, 0.2
    %v12352 = vmul.f32 %v12224, 0.2
    %v12353 = vmul.f32 %v12225, 0.2
    %v12354 = vmul.f32 %v12226, 0.2
    %v12355 = vmul.f32 %v12227, 0.2
    %v12356 = vmul.f32 %v12228, 0.2
    %v12357 = vmul.f32 %v12229, 0.2
    %v12358 = vmul.f32 %v12230, 0.2
    %v12359 = vmul.f32 %v12231, 0.2
    %v12360 = vmul.f32 %v12232, 0.2
    %v12361 = vmul.f32 %v12233, 0.2
    %v12362 = vmul.f32 %v12234, 0.2
    %v12363 = vmul.f32 %v12235, 0.2
    %v12364 = vmul.f32 %v12236, 0.2
    %v12365 = vmul.f32 %v12237, 0.2
    %v12366 = vmul.f32 %v12238, 0.2
    %v12367 = vmul.f32 %v12239, 0.2
    %v12368 = vmul.f32 %v12240, 0.2
    %v12369 = vmul.f32 %v12241, 0.2
    %v12370 = vmul.f32 %v12242, 0.2
    %v12371 = vmul.f32 %v12243, 0.2
    %v12372 = vmul.f32 %v12244, 0.2
    %v12373 = vmul.f32 %v12245, 0.2
    %v12374 = vmul.f32 %v12246, 0.2
    %v12375 = vmul.f32 %v12247, 0.2
    %v12376 = vmul.f32 %v12248, 0.2
    %v12377 = vmul.f32 %v12249, 0.2
    %v12378 = vmul.f32 %v12250, 0.2
    %v12379 = vmul.f32 %v12251, 0.2
    %v12380 = vmul.f32 %v12252, 0.2
    %v12381 = vmul.f32 %v12253, 0.2
    %v12382 = vmul.f32 %v12254, 0.2
    %v12383 = vmul.f32 %v12255, 0.2
    %v12384 = vmul.f32 %v12256, 0.2
    %v12385 = vmul.f32 %v12257, 0.2
    %v12386 = vmul.f32 %v12258, 0.2
    %v12387 = vmul.f32 %v12259, 0.2
    %v12388 = vmul.f32 %v12260, 0.2
    %v12389 = vmul.f32 %v12261, 0.2
    %v12390 = vmul.f32 %v12262, 0.2
    %v12391 = vmul.f32 %v12263, 0.2
    %v12392 = vmul.f32 %v12264, 0.2
    %v12393 = vmul.f32 %v12265, 0.2
    %v12394 = vmul.f32 %v12266, 0.2
    %v12395 = vmul.f32 %v12267, 0.2
    %v12396 = vmul.f32 %v12268, 0.2
    %v12397 = vmul.f32 %v12269, 0.2
    %v12398 = vmul.f32 %v12270, 0.2
    %v12399 = vmul.f32 %v12271, 0.2
    %v12400 = vsel %vm12272, %v12208, %v12336
    %v12401 = vsel %vm12273, %v12209, %v12337
    %v12402 = vsel %vm12274, %v12210, %v12338
    %v12403 = vsel %vm12275, %v12211, %v12339
    %v12404 = vsel %vm12276, %v12212, %v12340
    %v12405 = vsel %vm12277, %v12213, %v12341
    %v12406 = vsel %vm12278, %v12214, %v12342
    %v12407 = vsel %vm12279, %v12215, %v12343
    %v12408 = vsel %vm12280, %v12216, %v12344
    %v12409 = vsel %vm12281, %v12217, %v12345
    %v12410 = vsel %vm12282, %v12218, %v12346
    %v12411 = vsel %vm12283, %v12219, %v12347
    %v12412 = vsel %vm12284, %v12220, %v12348
    %v12413 = vsel %vm12285, %v12221, %v12349
    %v12414 = vsel %vm12286, %v12222, %v12350
    %v12415 = vsel %vm12287, %v12223, %v12351
    %v12416 = vsel %vm12288, %v12224, %v12352
    %v12417 = vsel %vm12289, %v12225, %v12353
    %v12418 = vsel %vm12290, %v12226, %v12354
    %v12419 = vsel %vm12291, %v12227, %v12355
    %v12420 = vsel %vm12292, %v12228, %v12356
    %v12421 = vsel %vm12293, %v12229, %v12357
    %v12422 = vsel %vm12294, %v12230, %v12358
    %v12423 = vsel %vm12295, %v12231, %v12359
    %v12424 = vsel %vm12296, %v12232, %v12360
    %v12425 = vsel %vm12297, %v12233, %v12361
    %v12426 = vsel %vm12298, %v12234, %v12362
    %v12427 = vsel %vm12299, %v12235, %v12363
    %v12428 = vsel %vm12300, %v12236, %v12364
    %v12429 = vsel %vm12301, %v12237, %v12365
    %v12430 = vsel %vm12302, %v12238, %v12366
    %v12431 = vsel %vm12303, %v12239, %v12367
    %v12432 = vsel %vm12304, %v12240, %v12368
    %v12433 = vsel %vm12305, %v12241, %v12369
    %v12434 = vsel %vm12306, %v12242, %v12370
    %v12435 = vsel %vm12307, %v12243, %v12371
    %v12436 = vsel %vm12308, %v12244, %v12372
    %v12437 = vsel %vm12309, %v12245, %v12373
    %v12438 = vsel %vm12310, %v12246, %v12374
    %v12439 = vsel %vm12311, %v12247, %v12375
    %v12440 = vsel %vm12312, %v12248, %v12376
    %v12441 = vsel %vm12313, %v12249, %v12377
    %v12442 = vsel %vm12314, %v12250, %v12378
    %v12443 = vsel %vm12315, %v12251, %v12379
    %v12444 = vsel %vm12316, %v12252, %v12380
    %v12445 = vsel %vm12317, %v12253, %v12381
    %v12446 = vsel %vm12318, %v12254, %v12382
    %v12447 = vsel %vm12319, %v12255, %v12383
    %v12448 = vsel %vm12320, %v12256, %v12384
    %v12449 = vsel %vm12321, %v12257, %v12385
    %v12450 = vsel %vm12322, %v12258, %v12386
    %v12451 = vsel %vm12323, %v12259, %v12387
    %v12452 = vsel %vm12324, %v12260, %v12388
    %v12453 = vsel %vm12325, %v12261, %v12389
    %v12454 = vsel %vm12326, %v12262, %v12390
    %v12455 = vsel %vm12327, %v12263, %v12391
    %v12456 = vsel %vm12328, %v12264, %v12392
    %v12457 = vsel %vm12329, %v12265, %v12393
    %v12458 = vsel %vm12330, %v12266, %v12394
    %v12459 = vsel %vm12331, %v12267, %v12395
    %v12460 = vsel %vm12332, %v12268, %v12396
    %v12461 = vsel %vm12333, %v12269, %v12397
    %v12462 = vsel %vm12334, %v12270, %v12398
    %v12463 = vsel %vm12335, %v12271, %v12399
    %v12464 = vld [vmem:[%s3] sm:$0x3]
    %v12465 = vld [vmem:[%s3 + $0x8] sm:$0x3]
    %v12466 = vld [vmem:[%s3 + $0x10] sm:$0x3]
    %v12467 = vld [vmem:[%s3 + $0x18] sm:$0x3]
    %12468 = vmatprep.subr.mxu0 0.0
    %12469 = vmatpush1.msra.mxu0 %v12415
    %12470 = vmatprep.subr.mxu0 0.0
    %12471 = vmatpush1.msra.mxu0 %v12414
    %12472 = vmatprep.subr.mxu0 0.0
    %12473 = vmatpush1.msra.mxu0 %v12413
    %12474 = vmatprep.subr.mxu0 0.0
    %12475 = vmatpush1.msra.mxu0 %v12412
    %12476 = vmatprep.subr.mxu0 0.0
    %12477 = vmatpush1.msra.mxu0 %v12411
    %12478 = vmatprep.subr.mxu0 0.0
    %12479 = vmatpush1.msra.mxu0 %v12410
    %12480 = vmatprep.subr.mxu0 0.0
    %12481 = vmatpush1.msra.mxu0 %v12409
    %12482 = vmatprep.subr.mxu0 0.0
    %12483 = vmatpush1.msra.mxu0 %v12408
    %12484 = vmatprep.subr.mxu0 0.0
    %12485 = vmatpush1.msra.mxu0 %v12407
    %12486 = vmatprep.subr.mxu0 0.0
    %12487 = vmatpush1.msra.mxu0 %v12406
    %12488 = vmatprep.subr.mxu0 0.0
    %12489 = vmatpush1.msra.mxu0 %v12405
    %12490 = vmatprep.subr.mxu0 0.0
    %12491 = vmatpush1.msra.mxu0 %v12404
    %12492 = vmatprep.subr.mxu0 0.0
    %12493 = vmatpush1.msra.mxu0 %v12403
    %12494 = vmatprep.subr.mxu0 0.0
    %12495 = vmatpush1.msra.mxu0 %v12402
    %12496 = vmatprep.subr.mxu0 0.0
    %12497 = vmatpush1.msra.mxu0 %v12401
    %12498 = vmatprep.subr.mxu0 0.0
    %12499 = vmatpush1.msra.mxu0 %v12400
    %12500 = vmatprep.subr.mxu0 0.0
    %12501 = vmatpush2.msra.mxu0 %v12431
    %12502 = vmatprep.subr.mxu0 0.0
    %12503 = vmatpush2.msra.mxu0 %v12430
    %12504 = vmatprep.subr.mxu0 0.0
    %12505 = vmatpush2.msra.mxu0 %v12429
    %12506 = vmatprep.subr.mxu0 0.0
    %12507 = vmatpush2.msra.mxu0 %v12428
    %12508 = vmatprep.subr.mxu0 0.0
    %12509 = vmatpush2.msra.mxu0 %v12427
    %12510 = vmatprep.subr.mxu0 0.0
    %12511 = vmatpush2.msra.mxu0 %v12426
    %12512 = vmatprep.subr.mxu0 0.0
    %12513 = vmatpush2.msra.mxu0 %v12425
    %12514 = vmatprep.subr.mxu0 0.0
    %12515 = vmatpush2.msra.mxu0 %v12424
    %12516 = vmatprep.subr.mxu0 0.0
    %12517 = vmatpush2.msra.mxu0 %v12423
    %12518 = vmatprep.subr.mxu0 0.0
    %12519 = vmatpush2.msra.mxu0 %v12422
    %12520 = vmatprep.subr.mxu0 0.0
    %12521 = vmatpush2.msra.mxu0 %v12421
    %12522 = vmatprep.subr.mxu0 0.0
    %12523 = vmatpush2.msra.mxu0 %v12420
    %12524 = vmatprep.subr.mxu0 0.0
    %12525 = vmatpush2.msra.mxu0 %v12419
    %12526 = vmatprep.subr.mxu0 0.0
    %12527 = vmatpush2.msra.mxu0 %v12418
    %12528 = vmatprep.subr.mxu0 0.0
    %12529 = vmatpush2.msra.mxu0 %v12417
    %12530 = vmatprep.subr.mxu0 0.0
    %12531 = vmatpush2.msra.mxu0 %v12416
    %12532 = vmatprep.mubr.f32.mxu0 %v12465
    %12533 = vmatmul.mubr.f32.gmra.mxu0 %v12464
    %v12534 = vpop.f32.mrf.mxu0
    %v12535 = vadd.f32 0.0, %v12534
    %v12536 = vpop.f32.mrf.mxu0
    %12537 = vdwg.mxu0
    %12538 = vmatprep.subr.mxu0 0.0
    %12539 = vmatpush1.msra.mxu0 %v12447
    %12540 = vmatprep.subr.mxu0 0.0
    %12541 = vmatpush1.msra.mxu0 %v12446
    %12542 = vmatprep.subr.mxu0 0.0
    %12543 = vmatpush1.msra.mxu0 %v12445
    %12544 = vmatprep.subr.mxu0 0.0
    %12545 = vmatpush1.msra.mxu0 %v12444
    %12546 = vmatprep.subr.mxu0 0.0
    %12547 = vmatpush1.msra.mxu0 %v12443
    %12548 = vmatprep.subr.mxu0 0.0
    %12549 = vmatpush1.msra.mxu0 %v12442
    %12550 = vmatprep.subr.mxu0 0.0
    %12551 = vmatpush1.msra.mxu0 %v12441
    %12552 = vmatprep.subr.mxu0 0.0
    %12553 = vmatpush1.msra.mxu0 %v12440
    %12554 = vmatprep.subr.mxu0 0.0
    %12555 = vmatpush1.msra.mxu0 %v12439
    %12556 = vmatprep.subr.mxu0 0.0
    %12557 = vmatpush1.msra.mxu0 %v12438
    %12558 = vmatprep.subr.mxu0 0.0
    %12559 = vmatpush1.msra.mxu0 %v12437
    %12560 = vmatprep.subr.mxu0 0.0
    %12561 = vmatpush1.msra.mxu0 %v12436
    %12562 = vmatprep.subr.mxu0 0.0
    %12563 = vmatpush1.msra.mxu0 %v12435
    %12564 = vmatprep.subr.mxu0 0.0
    %12565 = vmatpush1.msra.mxu0 %v12434
    %12566 = vmatprep.subr.mxu0 0.0
    %12567 = vmatpush1.msra.mxu0 %v12433
    %12568 = vmatprep.subr.mxu0 0.0
    %12569 = vmatpush1.msra.mxu0 %v12432
    %12570 = vmatprep.subr.mxu0 0.0
    %12571 = vmatpush2.msra.mxu0 %v12463
    %12572 = vmatprep.subr.mxu0 0.0
    %12573 = vmatpush2.msra.mxu0 %v12462
    %12574 = vmatprep.subr.mxu0 0.0
    %12575 = vmatpush2.msra.mxu0 %v12461
    %12576 = vmatprep.subr.mxu0 0.0
    %12577 = vmatpush2.msra.mxu0 %v12460
    %12578 = vmatprep.subr.mxu0 0.0
    %12579 = vmatpush2.msra.mxu0 %v12459
    %12580 = vmatprep.subr.mxu0 0.0
    %12581 = vmatpush2.msra.mxu0 %v12458
    %12582 = vmatprep.subr.mxu0 0.0
    %12583 = vmatpush2.msra.mxu0 %v12457
    %12584 = vmatprep.subr.mxu0 0.0
    %12585 = vmatpush2.msra.mxu0 %v12456
    %12586 = vmatprep.subr.mxu0 0.0
    %12587 = vmatpush2.msra.mxu0 %v12455
    %12588 = vmatprep.subr.mxu0 0.0
    %12589 = vmatpush2.msra.mxu0 %v12454
    %12590 = vmatprep.subr.mxu0 0.0
    %12591 = vmatpush2.msra.mxu0 %v12453
    %12592 = vmatprep.subr.mxu0 0.0
    %12593 = vmatpush2.msra.mxu0 %v12452
    %12594 = vmatprep.subr.mxu0 0.0
    %12595 = vmatpush2.msra.mxu0 %v12451
    %12596 = vmatprep.subr.mxu0 0.0
    %12597 = vmatpush2.msra.mxu0 %v12450
    %12598 = vmatprep.subr.mxu0 0.0
    %12599 = vmatpush2.msra.mxu0 %v12449
    %12600 = vmatprep.subr.mxu0 0.0
    %12601 = vmatpush2.msra.mxu0 %v12448
    %12602 = vmatprep.mubr.f32.mxu0 %v12467
    %12603 = vmatmul.mubr.f32.gmra.mxu0 %v12466
    %v12604 = vpop.f32.mrf.mxu0
    %v12605 = vadd.f32 %v12535, %v12604
    %v12606 = vpop.f32.mrf.mxu0
    %12607 = vdwg.mxu0
    %v12608 = vld [vmem:[%s12] sm:$0xff]
    %v12609 = vld [vmem:[%s12 + $0x8] sm:$0xff]
    %v12610 = vld [vmem:[%s3] sm:$0xc]
    %v12611 = vld [vmem:[%s3 + $0x8] sm:$0xc]
    %v12612 = vld [vmem:[%s3 + $0x10] sm:$0xc]
    %v12613 = vld [vmem:[%s3 + $0x18] sm:$0xc]
    %v12618 = vrot.slane %v12610, 2
    %v12619 = vrot.slane %v12611, 2
    %v12620 = vrot.slane %v12612, 2
    %v12621 = vrot.slane %v12613, 2
    %12626 = vmatprep.subr.mxu0 0.0
    %12627 = vmatpush1.msra.mxu0 %v12415
    %12628 = vmatprep.subr.mxu0 0.0
    %12629 = vmatpush1.msra.mxu0 %v12414
    %12630 = vmatprep.subr.mxu0 0.0
    %12631 = vmatpush1.msra.mxu0 %v12413
    %12632 = vmatprep.subr.mxu0 0.0
    %12633 = vmatpush1.msra.mxu0 %v12412
    %12634 = vmatprep.subr.mxu0 0.0
    %12635 = vmatpush1.msra.mxu0 %v12411
    %12636 = vmatprep.subr.mxu0 0.0
    %12637 = vmatpush1.msra.mxu0 %v12410
    %12638 = vmatprep.subr.mxu0 0.0
    %12639 = vmatpush1.msra.mxu0 %v12409
    %12640 = vmatprep.subr.mxu0 0.0
    %12641 = vmatpush1.msra.mxu0 %v12408
    %12642 = vmatprep.subr.mxu0 0.0
    %12643 = vmatpush1.msra.mxu0 %v12407
    %12644 = vmatprep.subr.mxu0 0.0
    %12645 = vmatpush1.msra.mxu0 %v12406
    %12646 = vmatprep.subr.mxu0 0.0
    %12647 = vmatpush1.msra.mxu0 %v12405
    %12648 = vmatprep.subr.mxu0 0.0
    %12649 = vmatpush1.msra.mxu0 %v12404
    %12650 = vmatprep.subr.mxu0 0.0
    %12651 = vmatpush1.msra.mxu0 %v12403
    %12652 = vmatprep.subr.mxu0 0.0
    %12653 = vmatpush1.msra.mxu0 %v12402
    %12654 = vmatprep.subr.mxu0 0.0
    %12655 = vmatpush1.msra.mxu0 %v12401
    %12656 = vmatprep.subr.mxu0 0.0
    %12657 = vmatpush1.msra.mxu0 %v12400
    %12658 = vmatprep.subr.mxu0 0.0
    %12659 = vmatpush2.msra.mxu0 %v12431
    %12660 = vmatprep.subr.mxu0 0.0
    %12661 = vmatpush2.msra.mxu0 %v12430
    %12662 = vmatprep.subr.mxu0 0.0
    %12663 = vmatpush2.msra.mxu0 %v12429
    %12664 = vmatprep.subr.mxu0 0.0
    %12665 = vmatpush2.msra.mxu0 %v12428
    %12666 = vmatprep.subr.mxu0 0.0
    %12667 = vmatpush2.msra.mxu0 %v12427
    %12668 = vmatprep.subr.mxu0 0.0
    %12669 = vmatpush2.msra.mxu0 %v12426
    %12670 = vmatprep.subr.mxu0 0.0
    %12671 = vmatpush2.msra.mxu0 %v12425
    %12672 = vmatprep.subr.mxu0 0.0
    %12673 = vmatpush2.msra.mxu0 %v12424
    %12674 = vmatprep.subr.mxu0 0.0
    %12675 = vmatpush2.msra.mxu0 %v12423
    %12676 = vmatprep.subr.mxu0 0.0
    %12677 = vmatpush2.msra.mxu0 %v12422
    %12678 = vmatprep.subr.mxu0 0.0
    %12679 = vmatpush2.msra.mxu0 %v12421
    %12680 = vmatprep.subr.mxu0 0.0
    %12681 = vmatpush2.msra.mxu0 %v12420
    %12682 = vmatprep.subr.mxu0 0.0
    %12683 = vmatpush2.msra.mxu0 %v12419
    %12684 = vmatprep.subr.mxu0 0.0
    %12685 = vmatpush2.msra.mxu0 %v12418
    %12686 = vmatprep.subr.mxu0 0.0
    %12687 = vmatpush2.msra.mxu0 %v12417
    %12688 = vmatprep.subr.mxu0 0.0
    %12689 = vmatpush2.msra.mxu0 %v12416
    %12690 = vmatprep.mubr.f32.mxu0 %v12619
    %12691 = vmatmul.mubr.f32.gmra.mxu0 %v12618
    %v12692 = vpop.f32.mrf.mxu0
    %v12693 = vadd.f32 0.0, %v12692
    %v12694 = vpop.f32.mrf.mxu0
    %12695 = vdwg.mxu0
    %12696 = vmatprep.subr.mxu0 0.0
    %12697 = vmatpush1.msra.mxu0 %v12447
    %12698 = vmatprep.subr.mxu0 0.0
    %12699 = vmatpush1.msra.mxu0 %v12446
    %12700 = vmatprep.subr.mxu0 0.0
    %12701 = vmatpush1.msra.mxu0 %v12445
    %12702 = vmatprep.subr.mxu0 0.0
    %12703 = vmatpush1.msra.mxu0 %v12444
    %12704 = vmatprep.subr.mxu0 0.0
    %12705 = vmatpush1.msra.mxu0 %v12443
    %12706 = vmatprep.subr.mxu0 0.0
    %12707 = vmatpush1.msra.mxu0 %v12442
    %12708 = vmatprep.subr.mxu0 0.0
    %12709 = vmatpush1.msra.mxu0 %v12441
    %12710 = vmatprep.subr.mxu0 0.0
    %12711 = vmatpush1.msra.mxu0 %v12440
    %12712 = vmatprep.subr.mxu0 0.0
    %12713 = vmatpush1.msra.mxu0 %v12439
    %12714 = vmatprep.subr.mxu0 0.0
    %12715 = vmatpush1.msra.mxu0 %v12438
    %12716 = vmatprep.subr.mxu0 0.0
    %12717 = vmatpush1.msra.mxu0 %v12437
    %12718 = vmatprep.subr.mxu0 0.0
    %12719 = vmatpush1.msra.mxu0 %v12436
    %12720 = vmatprep.subr.mxu0 0.0
    %12721 = vmatpush1.msra.mxu0 %v12435
    %12722 = vmatprep.subr.mxu0 0.0
    %12723 = vmatpush1.msra.mxu0 %v12434
    %12724 = vmatprep.subr.mxu0 0.0
    %12725 = vmatpush1.msra.mxu0 %v12433
    %12726 = vmatprep.subr.mxu0 0.0
    %12727 = vmatpush1.msra.mxu0 %v12432
    %12728 = vmatprep.subr.mxu0 0.0
    %12729 = vmatpush2.msra.mxu0 %v12463
    %12730 = vmatprep.subr.mxu0 0.0
    %12731 = vmatpush2.msra.mxu0 %v12462
    %12732 = vmatprep.subr.mxu0 0.0
    %12733 = vmatpush2.msra.mxu0 %v12461
    %12734 = vmatprep.subr.mxu0 0.0
    %12735 = vmatpush2.msra.mxu0 %v12460
    %12736 = vmatprep.subr.mxu0 0.0
    %12737 = vmatpush2.msra.mxu0 %v12459
    %12738 = vmatprep.subr.mxu0 0.0
    %12739 = vmatpush2.msra.mxu0 %v12458
    %12740 = vmatprep.subr.mxu0 0.0
    %12741 = vmatpush2.msra.mxu0 %v12457
    %12742 = vmatprep.subr.mxu0 0.0
    %12743 = vmatpush2.msra.mxu0 %v12456
    %12744 = vmatprep.subr.mxu0 0.0
    %12745 = vmatpush2.msra.mxu0 %v12455
    %12746 = vmatprep.subr.mxu0 0.0
    %12747 = vmatpush2.msra.mxu0 %v12454
    %12748 = vmatprep.subr.mxu0 0.0
    %12749 = vmatpush2.msra.mxu0 %v12453
    %12750 = vmatprep.subr.mxu0 0.0
    %12751 = vmatpush2.msra.mxu0 %v12452
    %12752 = vmatprep.subr.mxu0 0.0
    %12753 = vmatpush2.msra.mxu0 %v12451
    %12754 = vmatprep.subr.mxu0 0.0
    %12755 = vmatpush2.msra.mxu0 %v12450
    %12756 = vmatprep.subr.mxu0 0.0
    %12757 = vmatpush2.msra.mxu0 %v12449
    %12758 = vmatprep.subr.mxu0 0.0
    %12759 = vmatpush2.msra.mxu0 %v12448
    %12760 = vmatprep.mubr.f32.mxu0 %v12621
    %12761 = vmatmul.mubr.f32.gmra.mxu0 %v12620
    %v12762 = vpop.f32.mrf.mxu0
    %v12763 = vadd.f32 %v12693, %v12762
    %v12764 = vpop.f32.mrf.mxu0
    %12765 = vdwg.mxu0
    %v12766 = vld [vmem:[%s12 + $0x10] sm:$0xff]
    %v12767 = vld [vmem:[%s12 + $0x18] sm:$0xff]
    %v12769 = vsel %vm9191, %v12763, 0
    %12771 = vmatprep.subr.mxu0 0.0
    %12772 = vmatpush1.msra.mxu0 0.0
    %12773 = vmatprep.subr.mxu0 0.0
    %12774 = vmatpush1.msra.mxu0 0.0
    %12775 = vmatprep.subr.mxu0 0.0
    %12776 = vmatpush1.msra.mxu0 0.0
    %12777 = vmatprep.subr.mxu0 0.0
    %12778 = vmatpush1.msra.mxu0 0.0
    %12779 = vmatprep.subr.mxu0 0.0
    %12780 = vmatpush1.msra.mxu0 0.0
    %12781 = vmatprep.subr.mxu0 0.0
    %12782 = vmatpush1.msra.mxu0 0.0
    %12783 = vmatprep.subr.mxu0 0.0
    %12784 = vmatpush1.msra.mxu0 0.0
    %12785 = vmatprep.subr.mxu0 0.0
    %12786 = vmatpush1.msra.mxu0 0.0
    %12787 = vmatprep.subr.mxu0 0.0
    %12788 = vmatpush1.msra.mxu0 0.0
    %12789 = vmatprep.subr.mxu0 0.0
    %12790 = vmatpush1.msra.mxu0 0.0
    %12791 = vmatprep.subr.mxu0 0.0
    %12792 = vmatpush1.msra.mxu0 0.0
    %12793 = vmatprep.subr.mxu0 0.0
    %12794 = vmatpush1.msra.mxu0 0.0
    %12795 = vmatprep.subr.mxu0 0.0
    %12796 = vmatpush1.msra.mxu0 0.0
    %12797 = vmatprep.subr.mxu0 0.0
    %12798 = vmatpush1.msra.mxu0 0.0
    %12799 = vmatprep.subr.mxu0 0.0
    %12800 = vmatpush1.msra.mxu0 %v12767
    %12801 = vmatprep.subr.mxu0 0.0
    %12802 = vmatpush1.msra.mxu0 %v12766
    %12803 = vmatprep.subr.mxu0 0.0
    %12804 = vmatpush2.msra.mxu0 0.0
    %12805 = vmatprep.subr.mxu0 0.0
    %12806 = vmatpush2.msra.mxu0 0.0
    %12807 = vmatprep.subr.mxu0 0.0
    %12808 = vmatpush2.msra.mxu0 0.0
    %12809 = vmatprep.subr.mxu0 0.0
    %12810 = vmatpush2.msra.mxu0 0.0
    %12811 = vmatprep.subr.mxu0 0.0
    %12812 = vmatpush2.msra.mxu0 0.0
    %12813 = vmatprep.subr.mxu0 0.0
    %12814 = vmatpush2.msra.mxu0 0.0
    %12815 = vmatprep.subr.mxu0 0.0
    %12816 = vmatpush2.msra.mxu0 0.0
    %12817 = vmatprep.subr.mxu0 0.0
    %12818 = vmatpush2.msra.mxu0 0.0
    %12819 = vmatprep.subr.mxu0 0.0
    %12820 = vmatpush2.msra.mxu0 0.0
    %12821 = vmatprep.subr.mxu0 0.0
    %12822 = vmatpush2.msra.mxu0 0.0
    %12823 = vmatprep.subr.mxu0 0.0
    %12824 = vmatpush2.msra.mxu0 0.0
    %12825 = vmatprep.subr.mxu0 0.0
    %12826 = vmatpush2.msra.mxu0 0.0
    %12827 = vmatprep.subr.mxu0 0.0
    %12828 = vmatpush2.msra.mxu0 0.0
    %12829 = vmatprep.subr.mxu0 0.0
    %12830 = vmatpush2.msra.mxu0 0.0
    %12831 = vmatprep.subr.mxu0 0.0
    %12832 = vmatpush2.msra.mxu0 0.0
    %12833 = vmatprep.subr.mxu0 0.0
    %12834 = vmatpush2.msra.mxu0 0.0
    %12835 = vmatprep.mubr.f32.mxu0 0.0
    %12836 = vmatmul.mubr.f32.gmra.mxu0 %v12769
    %v12837 = vpop.f32.mrf.mxu0
    %v12838 = vadd.f32 0.0, %v12837
    %v12839 = vpop.f32.mrf.mxu0
    %12840 = vdwg.mxu0
    %v12842 = vsel %vm9191, %v12605, 0
    %12844 = vmatprep.subr.mxu0 0.0
    %12845 = vmatpush1.msra.mxu0 0.0
    %12846 = vmatprep.subr.mxu0 0.0
    %12847 = vmatpush1.msra.mxu0 0.0
    %12848 = vmatprep.subr.mxu0 0.0
    %12849 = vmatpush1.msra.mxu0 0.0
    %12850 = vmatprep.subr.mxu0 0.0
    %12851 = vmatpush1.msra.mxu0 0.0
    %12852 = vmatprep.subr.mxu0 0.0
    %12853 = vmatpush1.msra.mxu0 0.0
    %12854 = vmatprep.subr.mxu0 0.0
    %12855 = vmatpush1.msra.mxu0 0.0
    %12856 = vmatprep.subr.mxu0 0.0
    %12857 = vmatpush1.msra.mxu0 0.0
    %12858 = vmatprep.subr.mxu0 0.0
    %12859 = vmatpush1.msra.mxu0 0.0
    %12860 = vmatprep.subr.mxu0 0.0
    %12861 = vmatpush1.msra.mxu0 0.0
    %12862 = vmatprep.subr.mxu0 0.0
    %12863 = vmatpush1.msra.mxu0 0.0
    %12864 = vmatprep.subr.mxu0 0.0
    %12865 = vmatpush1.msra.mxu0 0.0
    %12866 = vmatprep.subr.mxu0 0.0
    %12867 = vmatpush1.msra.mxu0 0.0
    %12868 = vmatprep.subr.mxu0 0.0
    %12869 = vmatpush1.msra.mxu0 0.0
    %12870 = vmatprep.subr.mxu0 0.0
    %12871 = vmatpush1.msra.mxu0 0.0
    %12872 = vmatprep.subr.mxu0 0.0
    %12873 = vmatpush1.msra.mxu0 %v12609
    %12874 = vmatprep.subr.mxu0 0.0
    %12875 = vmatpush1.msra.mxu0 %v12608
    %12876 = vmatprep.subr.mxu0 0.0
    %12877 = vmatpush2.msra.mxu0 0.0
    %12878 = vmatprep.subr.mxu0 0.0
    %12879 = vmatpush2.msra.mxu0 0.0
    %12880 = vmatprep.subr.mxu0 0.0
    %12881 = vmatpush2.msra.mxu0 0.0
    %12882 = vmatprep.subr.mxu0 0.0
    %12883 = vmatpush2.msra.mxu0 0.0
    %12884 = vmatprep.subr.mxu0 0.0
    %12885 = vmatpush2.msra.mxu0 0.0
    %12886 = vmatprep.subr.mxu0 0.0
    %12887 = vmatpush2.msra.mxu0 0.0
    %12888 = vmatprep.subr.mxu0 0.0
    %12889 = vmatpush2.msra.mxu0 0.0
    %12890 = vmatprep.subr.mxu0 0.0
    %12891 = vmatpush2.msra.mxu0 0.0
    %12892 = vmatprep.subr.mxu0 0.0
    %12893 = vmatpush2.msra.mxu0 0.0
    %12894 = vmatprep.subr.mxu0 0.0
    %12895 = vmatpush2.msra.mxu0 0.0
    %12896 = vmatprep.subr.mxu0 0.0
    %12897 = vmatpush2.msra.mxu0 0.0
    %12898 = vmatprep.subr.mxu0 0.0
    %12899 = vmatpush2.msra.mxu0 0.0
    %12900 = vmatprep.subr.mxu0 0.0
    %12901 = vmatpush2.msra.mxu0 0.0
    %12902 = vmatprep.subr.mxu0 0.0
    %12903 = vmatpush2.msra.mxu0 0.0
    %12904 = vmatprep.subr.mxu0 0.0
    %12905 = vmatpush2.msra.mxu0 0.0
    %12906 = vmatprep.subr.mxu0 0.0
    %12907 = vmatpush2.msra.mxu0 0.0
    %12908 = vmatprep.mubr.f32.mxu0 0.0
    %12909 = vmatmul.mubr.f32.gmra.mxu0 %v12842
    %v12910 = vpop.f32.mrf.mxu0
    %v12911 = vadd.f32 %v12838, %v12910
    %v12912 = vpop.f32.mrf.mxu0
    %12913 = vdwg.mxu0
    %v12914 = vld [vmem:[%s3] sm:$0x30]
    %v12915 = vld [vmem:[%s3 + $0x8] sm:$0x30]
    %v12916 = vld [vmem:[%s3 + $0x10] sm:$0x30]
    %v12917 = vld [vmem:[%s3 + $0x18] sm:$0x30]
    %v12922 = vrot.slane %v12914, 4
    %v12923 = vrot.slane %v12915, 4
    %v12924 = vrot.slane %v12916, 4
    %v12925 = vrot.slane %v12917, 4
    %12930 = vmatprep.subr.mxu0 0.0
    %12931 = vmatpush1.msra.mxu0 %v12415
    %12932 = vmatprep.subr.mxu0 0.0
    %12933 = vmatpush1.msra.mxu0 %v12414
    %12934 = vmatprep.subr.mxu0 0.0
    %12935 = vmatpush1.msra.mxu0 %v12413
    %12936 = vmatprep.subr.mxu0 0.0
    %12937 = vmatpush1.msra.mxu0 %v12412
    %12938 = vmatprep.subr.mxu0 0.0
    %12939 = vmatpush1.msra.mxu0 %v12411
    %12940 = vmatprep.subr.mxu0 0.0
    %12941 = vmatpush1.msra.mxu0 %v12410
    %12942 = vmatprep.subr.mxu0 0.0
    %12943 = vmatpush1.msra.mxu0 %v12409
    %12944 = vmatprep.subr.mxu0 0.0
    %12945 = vmatpush1.msra.mxu0 %v12408
    %12946 = vmatprep.subr.mxu0 0.0
    %12947 = vmatpush1.msra.mxu0 %v12407
    %12948 = vmatprep.subr.mxu0 0.0
    %12949 = vmatpush1.msra.mxu0 %v12406
    %12950 = vmatprep.subr.mxu0 0.0
    %12951 = vmatpush1.msra.mxu0 %v12405
    %12952 = vmatprep.subr.mxu0 0.0
    %12953 = vmatpush1.msra.mxu0 %v12404
    %12954 = vmatprep.subr.mxu0 0.0
    %12955 = vmatpush1.msra.mxu0 %v12403
    %12956 = vmatprep.subr.mxu0 0.0
    %12957 = vmatpush1.msra.mxu0 %v12402
    %12958 = vmatprep.subr.mxu0 0.0
    %12959 = vmatpush1.msra.mxu0 %v12401
    %12960 = vmatprep.subr.mxu0 0.0
    %12961 = vmatpush1.msra.mxu0 %v12400
    %12962 = vmatprep.subr.mxu0 0.0
    %12963 = vmatpush2.msra.mxu0 %v12431
    %12964 = vmatprep.subr.mxu0 0.0
    %12965 = vmatpush2.msra.mxu0 %v12430
    %12966 = vmatprep.subr.mxu0 0.0
    %12967 = vmatpush2.msra.mxu0 %v12429
    %12968 = vmatprep.subr.mxu0 0.0
    %12969 = vmatpush2.msra.mxu0 %v12428
    %12970 = vmatprep.subr.mxu0 0.0
    %12971 = vmatpush2.msra.mxu0 %v12427
    %12972 = vmatprep.subr.mxu0 0.0
    %12973 = vmatpush2.msra.mxu0 %v12426
    %12974 = vmatprep.subr.mxu0 0.0
    %12975 = vmatpush2.msra.mxu0 %v12425
    %12976 = vmatprep.subr.mxu0 0.0
    %12977 = vmatpush2.msra.mxu0 %v12424
    %12978 = vmatprep.subr.mxu0 0.0
    %12979 = vmatpush2.msra.mxu0 %v12423
    %12980 = vmatprep.subr.mxu0 0.0
    %12981 = vmatpush2.msra.mxu0 %v12422
    %12982 = vmatprep.subr.mxu0 0.0
    %12983 = vmatpush2.msra.mxu0 %v12421
    %12984 = vmatprep.subr.mxu0 0.0
    %12985 = vmatpush2.msra.mxu0 %v12420
    %12986 = vmatprep.subr.mxu0 0.0
    %12987 = vmatpush2.msra.mxu0 %v12419
    %12988 = vmatprep.subr.mxu0 0.0
    %12989 = vmatpush2.msra.mxu0 %v12418
    %12990 = vmatprep.subr.mxu0 0.0
    %12991 = vmatpush2.msra.mxu0 %v12417
    %12992 = vmatprep.subr.mxu0 0.0
    %12993 = vmatpush2.msra.mxu0 %v12416
    %12994 = vmatprep.mubr.f32.mxu0 %v12923
    %12995 = vmatmul.mubr.f32.gmra.mxu0 %v12922
    %v12996 = vpop.f32.mrf.mxu0
    %v12997 = vadd.f32 0.0, %v12996
    %v12998 = vpop.f32.mrf.mxu0
    %12999 = vdwg.mxu0
    %13000 = vmatprep.subr.mxu0 0.0
    %13001 = vmatpush1.msra.mxu0 %v12447
    %13002 = vmatprep.subr.mxu0 0.0
    %13003 = vmatpush1.msra.mxu0 %v12446
    %13004 = vmatprep.subr.mxu0 0.0
    %13005 = vmatpush1.msra.mxu0 %v12445
    %13006 = vmatprep.subr.mxu0 0.0
    %13007 = vmatpush1.msra.mxu0 %v12444
    %13008 = vmatprep.subr.mxu0 0.0
    %13009 = vmatpush1.msra.mxu0 %v12443
    %13010 = vmatprep.subr.mxu0 0.0
    %13011 = vmatpush1.msra.mxu0 %v12442
    %13012 = vmatprep.subr.mxu0 0.0
    %13013 = vmatpush1.msra.mxu0 %v12441
    %13014 = vmatprep.subr.mxu0 0.0
    %13015 = vmatpush1.msra.mxu0 %v12440
    %13016 = vmatprep.subr.mxu0 0.0
    %13017 = vmatpush1.msra.mxu0 %v12439
    %13018 = vmatprep.subr.mxu0 0.0
    %13019 = vmatpush1.msra.mxu0 %v12438
    %13020 = vmatprep.subr.mxu0 0.0
    %13021 = vmatpush1.msra.mxu0 %v12437
    %13022 = vmatprep.subr.mxu0 0.0
    %13023 = vmatpush1.msra.mxu0 %v12436
    %13024 = vmatprep.subr.mxu0 0.0
    %13025 = vmatpush1.msra.mxu0 %v12435
    %13026 = vmatprep.subr.mxu0 0.0
    %13027 = vmatpush1.msra.mxu0 %v12434
    %13028 = vmatprep.subr.mxu0 0.0
    %13029 = vmatpush1.msra.mxu0 %v12433
    %13030 = vmatprep.subr.mxu0 0.0
    %13031 = vmatpush1.msra.mxu0 %v12432
    %13032 = vmatprep.subr.mxu0 0.0
    %13033 = vmatpush2.msra.mxu0 %v12463
    %13034 = vmatprep.subr.mxu0 0.0
    %13035 = vmatpush2.msra.mxu0 %v12462
    %13036 = vmatprep.subr.mxu0 0.0
    %13037 = vmatpush2.msra.mxu0 %v12461
    %13038 = vmatprep.subr.mxu0 0.0
    %13039 = vmatpush2.msra.mxu0 %v12460
    %13040 = vmatprep.subr.mxu0 0.0
    %13041 = vmatpush2.msra.mxu0 %v12459
    %13042 = vmatprep.subr.mxu0 0.0
    %13043 = vmatpush2.msra.mxu0 %v12458
    %13044 = vmatprep.subr.mxu0 0.0
    %13045 = vmatpush2.msra.mxu0 %v12457
    %13046 = vmatprep.subr.mxu0 0.0
    %13047 = vmatpush2.msra.mxu0 %v12456
    %13048 = vmatprep.subr.mxu0 0.0
    %13049 = vmatpush2.msra.mxu0 %v12455
    %13050 = vmatprep.subr.mxu0 0.0
    %13051 = vmatpush2.msra.mxu0 %v12454
    %13052 = vmatprep.subr.mxu0 0.0
    %13053 = vmatpush2.msra.mxu0 %v12453
    %13054 = vmatprep.subr.mxu0 0.0
    %13055 = vmatpush2.msra.mxu0 %v12452
    %13056 = vmatprep.subr.mxu0 0.0
    %13057 = vmatpush2.msra.mxu0 %v12451
    %13058 = vmatprep.subr.mxu0 0.0
    %13059 = vmatpush2.msra.mxu0 %v12450
    %13060 = vmatprep.subr.mxu0 0.0
    %13061 = vmatpush2.msra.mxu0 %v12449
    %13062 = vmatprep.subr.mxu0 0.0
    %13063 = vmatpush2.msra.mxu0 %v12448
    %13064 = vmatprep.mubr.f32.mxu0 %v12925
    %13065 = vmatmul.mubr.f32.gmra.mxu0 %v12924
    %v13066 = vpop.f32.mrf.mxu0
    %v13067 = vadd.f32 %v12997, %v13066
    %v13068 = vpop.f32.mrf.mxu0
    %13069 = vdwg.mxu0
    %v13070 = vld [vmem:[%s12 + $0x20] sm:$0xff]
    %v13071 = vld [vmem:[%s12 + $0x28] sm:$0xff]
    %v13073 = vsel %vm9191, %v13067, 0
    %13075 = vmatprep.subr.mxu0 0.0
    %13076 = vmatpush1.msra.mxu0 0.0
    %13077 = vmatprep.subr.mxu0 0.0
    %13078 = vmatpush1.msra.mxu0 0.0
    %13079 = vmatprep.subr.mxu0 0.0
    %13080 = vmatpush1.msra.mxu0 0.0
    %13081 = vmatprep.subr.mxu0 0.0
    %13082 = vmatpush1.msra.mxu0 0.0
    %13083 = vmatprep.subr.mxu0 0.0
    %13084 = vmatpush1.msra.mxu0 0.0
    %13085 = vmatprep.subr.mxu0 0.0
    %13086 = vmatpush1.msra.mxu0 0.0
    %13087 = vmatprep.subr.mxu0 0.0
    %13088 = vmatpush1.msra.mxu0 0.0
    %13089 = vmatprep.subr.mxu0 0.0
    %13090 = vmatpush1.msra.mxu0 0.0
    %13091 = vmatprep.subr.mxu0 0.0
    %13092 = vmatpush1.msra.mxu0 0.0
    %13093 = vmatprep.subr.mxu0 0.0
    %13094 = vmatpush1.msra.mxu0 0.0
    %13095 = vmatprep.subr.mxu0 0.0
    %13096 = vmatpush1.msra.mxu0 0.0
    %13097 = vmatprep.subr.mxu0 0.0
    %13098 = vmatpush1.msra.mxu0 0.0
    %13099 = vmatprep.subr.mxu0 0.0
    %13100 = vmatpush1.msra.mxu0 0.0
    %13101 = vmatprep.subr.mxu0 0.0
    %13102 = vmatpush1.msra.mxu0 0.0
    %13103 = vmatprep.subr.mxu0 0.0
    %13104 = vmatpush1.msra.mxu0 %v13071
    %13105 = vmatprep.subr.mxu0 0.0
    %13106 = vmatpush1.msra.mxu0 %v13070
    %13107 = vmatprep.subr.mxu0 0.0
    %13108 = vmatpush2.msra.mxu0 0.0
    %13109 = vmatprep.subr.mxu0 0.0
    %13110 = vmatpush2.msra.mxu0 0.0
    %13111 = vmatprep.subr.mxu0 0.0
    %13112 = vmatpush2.msra.mxu0 0.0
    %13113 = vmatprep.subr.mxu0 0.0
    %13114 = vmatpush2.msra.mxu0 0.0
    %13115 = vmatprep.subr.mxu0 0.0
    %13116 = vmatpush2.msra.mxu0 0.0
    %13117 = vmatprep.subr.mxu0 0.0
    %13118 = vmatpush2.msra.mxu0 0.0
    %13119 = vmatprep.subr.mxu0 0.0
    %13120 = vmatpush2.msra.mxu0 0.0
    %13121 = vmatprep.subr.mxu0 0.0
    %13122 = vmatpush2.msra.mxu0 0.0
    %13123 = vmatprep.subr.mxu0 0.0
    %13124 = vmatpush2.msra.mxu0 0.0
    %13125 = vmatprep.subr.mxu0 0.0
    %13126 = vmatpush2.msra.mxu0 0.0
    %13127 = vmatprep.subr.mxu0 0.0
    %13128 = vmatpush2.msra.mxu0 0.0
    %13129 = vmatprep.subr.mxu0 0.0
    %13130 = vmatpush2.msra.mxu0 0.0
    %13131 = vmatprep.subr.mxu0 0.0
    %13132 = vmatpush2.msra.mxu0 0.0
    %13133 = vmatprep.subr.mxu0 0.0
    %13134 = vmatpush2.msra.mxu0 0.0
    %13135 = vmatprep.subr.mxu0 0.0
    %13136 = vmatpush2.msra.mxu0 0.0
    %13137 = vmatprep.subr.mxu0 0.0
    %13138 = vmatpush2.msra.mxu0 0.0
    %13139 = vmatprep.mubr.f32.mxu0 0.0
    %13140 = vmatmul.mubr.f32.gmra.mxu0 %v13073
    %v13141 = vpop.f32.mrf.mxu0
    %v13142 = vadd.f32 0.0, %v13141
    %v13143 = vpop.f32.mrf.mxu0
    %13144 = vdwg.mxu0
    %v13145 = vadd.f32 %v12911, %v13142
    %v13146 = vld [vmem:[%s3] sm:$0xc0]
    %v13147 = vld [vmem:[%s3 + $0x8] sm:$0xc0]
    %v13148 = vld [vmem:[%s3 + $0x10] sm:$0xc0]
    %v13149 = vld [vmem:[%s3 + $0x18] sm:$0xc0]
    %v13154 = vrot.slane %v13146, 6
    %v13155 = vrot.slane %v13147, 6
    %v13156 = vrot.slane %v13148, 6
    %v13157 = vrot.slane %v13149, 6
    %13162 = vmatprep.subr.mxu0 0.0
    %13163 = vmatpush1.msra.mxu0 %v12415
    %13164 = vmatprep.subr.mxu0 0.0
    %13165 = vmatpush1.msra.mxu0 %v12414
    %13166 = vmatprep.subr.mxu0 0.0
    %13167 = vmatpush1.msra.mxu0 %v12413
    %13168 = vmatprep.subr.mxu0 0.0
    %13169 = vmatpush1.msra.mxu0 %v12412
    %13170 = vmatprep.subr.mxu0 0.0
    %13171 = vmatpush1.msra.mxu0 %v12411
    %13172 = vmatprep.subr.mxu0 0.0
    %13173 = vmatpush1.msra.mxu0 %v12410
    %13174 = vmatprep.subr.mxu0 0.0
    %13175 = vmatpush1.msra.mxu0 %v12409
    %13176 = vmatprep.subr.mxu0 0.0
    %13177 = vmatpush1.msra.mxu0 %v12408
    %13178 = vmatprep.subr.mxu0 0.0
    %13179 = vmatpush1.msra.mxu0 %v12407
    %13180 = vmatprep.subr.mxu0 0.0
    %13181 = vmatpush1.msra.mxu0 %v12406
    %13182 = vmatprep.subr.mxu0 0.0
    %13183 = vmatpush1.msra.mxu0 %v12405
    %13184 = vmatprep.subr.mxu0 0.0
    %13185 = vmatpush1.msra.mxu0 %v12404
    %13186 = vmatprep.subr.mxu0 0.0
    %13187 = vmatpush1.msra.mxu0 %v12403
    %13188 = vmatprep.subr.mxu0 0.0
    %13189 = vmatpush1.msra.mxu0 %v12402
    %13190 = vmatprep.subr.mxu0 0.0
    %13191 = vmatpush1.msra.mxu0 %v12401
    %13192 = vmatprep.subr.mxu0 0.0
    %13193 = vmatpush1.msra.mxu0 %v12400
    %13194 = vmatprep.subr.mxu0 0.0
    %13195 = vmatpush2.msra.mxu0 %v12431
    %13196 = vmatprep.subr.mxu0 0.0
    %13197 = vmatpush2.msra.mxu0 %v12430
    %13198 = vmatprep.subr.mxu0 0.0
    %13199 = vmatpush2.msra.mxu0 %v12429
    %13200 = vmatprep.subr.mxu0 0.0
    %13201 = vmatpush2.msra.mxu0 %v12428
    %13202 = vmatprep.subr.mxu0 0.0
    %13203 = vmatpush2.msra.mxu0 %v12427
    %13204 = vmatprep.subr.mxu0 0.0
    %13205 = vmatpush2.msra.mxu0 %v12426
    %13206 = vmatprep.subr.mxu0 0.0
    %13207 = vmatpush2.msra.mxu0 %v12425
    %13208 = vmatprep.subr.mxu0 0.0
    %13209 = vmatpush2.msra.mxu0 %v12424
    %13210 = vmatprep.subr.mxu0 0.0
    %13211 = vmatpush2.msra.mxu0 %v12423
    %13212 = vmatprep.subr.mxu0 0.0
    %13213 = vmatpush2.msra.mxu0 %v12422
    %13214 = vmatprep.subr.mxu0 0.0
    %13215 = vmatpush2.msra.mxu0 %v12421
    %13216 = vmatprep.subr.mxu0 0.0
    %13217 = vmatpush2.msra.mxu0 %v12420
    %13218 = vmatprep.subr.mxu0 0.0
    %13219 = vmatpush2.msra.mxu0 %v12419
    %13220 = vmatprep.subr.mxu0 0.0
    %13221 = vmatpush2.msra.mxu0 %v12418
    %13222 = vmatprep.subr.mxu0 0.0
    %13223 = vmatpush2.msra.mxu0 %v12417
    %13224 = vmatprep.subr.mxu0 0.0
    %13225 = vmatpush2.msra.mxu0 %v12416
    %13226 = vmatprep.mubr.f32.mxu0 %v13155
    %13227 = vmatmul.mubr.f32.gmra.mxu0 %v13154
    %v13228 = vpop.f32.mrf.mxu0
    %v13229 = vadd.f32 0.0, %v13228
    %v13230 = vpop.f32.mrf.mxu0
    %13231 = vdwg.mxu0
    %13232 = vmatprep.subr.mxu0 0.0
    %13233 = vmatpush1.msra.mxu0 %v12447
    %13234 = vmatprep.subr.mxu0 0.0
    %13235 = vmatpush1.msra.mxu0 %v12446
    %13236 = vmatprep.subr.mxu0 0.0
    %13237 = vmatpush1.msra.mxu0 %v12445
    %13238 = vmatprep.subr.mxu0 0.0
    %13239 = vmatpush1.msra.mxu0 %v12444
    %13240 = vmatprep.subr.mxu0 0.0
    %13241 = vmatpush1.msra.mxu0 %v12443
    %13242 = vmatprep.subr.mxu0 0.0
    %13243 = vmatpush1.msra.mxu0 %v12442
    %13244 = vmatprep.subr.mxu0 0.0
    %13245 = vmatpush1.msra.mxu0 %v12441
    %13246 = vmatprep.subr.mxu0 0.0
    %13247 = vmatpush1.msra.mxu0 %v12440
    %13248 = vmatprep.subr.mxu0 0.0
    %13249 = vmatpush1.msra.mxu0 %v12439
    %13250 = vmatprep.subr.mxu0 0.0
    %13251 = vmatpush1.msra.mxu0 %v12438
    %13252 = vmatprep.subr.mxu0 0.0
    %13253 = vmatpush1.msra.mxu0 %v12437
    %13254 = vmatprep.subr.mxu0 0.0
    %13255 = vmatpush1.msra.mxu0 %v12436
    %13256 = vmatprep.subr.mxu0 0.0
    %13257 = vmatpush1.msra.mxu0 %v12435
    %13258 = vmatprep.subr.mxu0 0.0
    %13259 = vmatpush1.msra.mxu0 %v12434
    %13260 = vmatprep.subr.mxu0 0.0
    %13261 = vmatpush1.msra.mxu0 %v12433
    %13262 = vmatprep.subr.mxu0 0.0
    %13263 = vmatpush1.msra.mxu0 %v12432
    %13264 = vmatprep.subr.mxu0 0.0
    %13265 = vmatpush2.msra.mxu0 %v12463
    %13266 = vmatprep.subr.mxu0 0.0
    %13267 = vmatpush2.msra.mxu0 %v12462
    %13268 = vmatprep.subr.mxu0 0.0
    %13269 = vmatpush2.msra.mxu0 %v12461
    %13270 = vmatprep.subr.mxu0 0.0
    %13271 = vmatpush2.msra.mxu0 %v12460
    %13272 = vmatprep.subr.mxu0 0.0
    %13273 = vmatpush2.msra.mxu0 %v12459
    %13274 = vmatprep.subr.mxu0 0.0
    %13275 = vmatpush2.msra.mxu0 %v12458
    %13276 = vmatprep.subr.mxu0 0.0
    %13277 = vmatpush2.msra.mxu0 %v12457
    %13278 = vmatprep.subr.mxu0 0.0
    %13279 = vmatpush2.msra.mxu0 %v12456
    %13280 = vmatprep.subr.mxu0 0.0
    %13281 = vmatpush2.msra.mxu0 %v12455
    %13282 = vmatprep.subr.mxu0 0.0
    %13283 = vmatpush2.msra.mxu0 %v12454
    %13284 = vmatprep.subr.mxu0 0.0
    %13285 = vmatpush2.msra.mxu0 %v12453
    %13286 = vmatprep.subr.mxu0 0.0
    %13287 = vmatpush2.msra.mxu0 %v12452
    %13288 = vmatprep.subr.mxu0 0.0
    %13289 = vmatpush2.msra.mxu0 %v12451
    %13290 = vmatprep.subr.mxu0 0.0
    %13291 = vmatpush2.msra.mxu0 %v12450
    %13292 = vmatprep.subr.mxu0 0.0
    %13293 = vmatpush2.msra.mxu0 %v12449
    %13294 = vmatprep.subr.mxu0 0.0
    %13295 = vmatpush2.msra.mxu0 %v12448
    %13296 = vmatprep.mubr.f32.mxu0 %v13157
    %13297 = vmatmul.mubr.f32.gmra.mxu0 %v13156
    %v13298 = vpop.f32.mrf.mxu0
    %v13299 = vadd.f32 %v13229, %v13298
    %v13300 = vpop.f32.mrf.mxu0
    %13301 = vdwg.mxu0
    %v13302 = vld [vmem:[%s12 + $0x30] sm:$0xff]
    %v13303 = vld [vmem:[%s12 + $0x38] sm:$0xff]
    %v13305 = vsel %vm9191, %v13299, 0
    %13307 = vmatprep.subr.mxu0 0.0
    %13308 = vmatpush1.msra.mxu0 0.0
    %13309 = vmatprep.subr.mxu0 0.0
    %13310 = vmatpush1.msra.mxu0 0.0
    %13311 = vmatprep.subr.mxu0 0.0
    %13312 = vmatpush1.msra.mxu0 0.0
    %13313 = vmatprep.subr.mxu0 0.0
    %13314 = vmatpush1.msra.mxu0 0.0
    %13315 = vmatprep.subr.mxu0 0.0
    %13316 = vmatpush1.msra.mxu0 0.0
    %13317 = vmatprep.subr.mxu0 0.0
    %13318 = vmatpush1.msra.mxu0 0.0
    %13319 = vmatprep.subr.mxu0 0.0
    %13320 = vmatpush1.msra.mxu0 0.0
    %13321 = vmatprep.subr.mxu0 0.0
    %13322 = vmatpush1.msra.mxu0 0.0
    %13323 = vmatprep.subr.mxu0 0.0
    %13324 = vmatpush1.msra.mxu0 0.0
    %13325 = vmatprep.subr.mxu0 0.0
    %13326 = vmatpush1.msra.mxu0 0.0
    %13327 = vmatprep.subr.mxu0 0.0
    %13328 = vmatpush1.msra.mxu0 0.0
    %13329 = vmatprep.subr.mxu0 0.0
    %13330 = vmatpush1.msra.mxu0 0.0
    %13331 = vmatprep.subr.mxu0 0.0
    %13332 = vmatpush1.msra.mxu0 0.0
    %13333 = vmatprep.subr.mxu0 0.0
    %13334 = vmatpush1.msra.mxu0 0.0
    %13335 = vmatprep.subr.mxu0 0.0
    %13336 = vmatpush1.msra.mxu0 %v13303
    %13337 = vmatprep.subr.mxu0 0.0
    %13338 = vmatpush1.msra.mxu0 %v13302
    %13339 = vmatprep.subr.mxu0 0.0
    %13340 = vmatpush2.msra.mxu0 0.0
    %13341 = vmatprep.subr.mxu0 0.0
    %13342 = vmatpush2.msra.mxu0 0.0
    %13343 = vmatprep.subr.mxu0 0.0
    %13344 = vmatpush2.msra.mxu0 0.0
    %13345 = vmatprep.subr.mxu0 0.0
    %13346 = vmatpush2.msra.mxu0 0.0
    %13347 = vmatprep.subr.mxu0 0.0
    %13348 = vmatpush2.msra.mxu0 0.0
    %13349 = vmatprep.subr.mxu0 0.0
    %13350 = vmatpush2.msra.mxu0 0.0
    %13351 = vmatprep.subr.mxu0 0.0
    %13352 = vmatpush2.msra.mxu0 0.0
    %13353 = vmatprep.subr.mxu0 0.0
    %13354 = vmatpush2.msra.mxu0 0.0
    %13355 = vmatprep.subr.mxu0 0.0
    %13356 = vmatpush2.msra.mxu0 0.0
    %13357 = vmatprep.subr.mxu0 0.0
    %13358 = vmatpush2.msra.mxu0 0.0
    %13359 = vmatprep.subr.mxu0 0.0
    %13360 = vmatpush2.msra.mxu0 0.0
    %13361 = vmatprep.subr.mxu0 0.0
    %13362 = vmatpush2.msra.mxu0 0.0
    %13363 = vmatprep.subr.mxu0 0.0
    %13364 = vmatpush2.msra.mxu0 0.0
    %13365 = vmatprep.subr.mxu0 0.0
    %13366 = vmatpush2.msra.mxu0 0.0
    %13367 = vmatprep.subr.mxu0 0.0
    %13368 = vmatpush2.msra.mxu0 0.0
    %13369 = vmatprep.subr.mxu0 0.0
    %13370 = vmatpush2.msra.mxu0 0.0
    %13371 = vmatprep.mubr.f32.mxu0 0.0
    %13372 = vmatmul.mubr.f32.gmra.mxu0 %v13305
    %v13373 = vpop.f32.mrf.mxu0
    %v13374 = vadd.f32 0.0, %v13373
    %v13375 = vpop.f32.mrf.mxu0
    %13376 = vdwg.mxu0
    %v13377 = vadd.f32 %v13145, %v13374
    %v13378 = vmul.f32 %v13377, 0.0044444446
    %v13379 = vld [vmem:[%s13] sm:$0x1]
    %v13381 = vlaneseq
    %v13382 = vshrl.u32 %v13381, 7
    %v13383 = vsub.s32 0, %v13382
    %v13384 = vrot.slane %v13379, %v13383
    %v13386 = vadd.f32 %v13378, %v13384
    %vm13387 = vcmp.gt.f32.partialorder %v13386, 0.0
    %v13388 = vmul.f32 %v13386, 0.2
    %v13389 = vsel %vm13387, %v13386, %v13388
    %vm13390 = vcmask 58368
    %13391 = vst.msk [vmem:[#allocation2] sm:$0x3] %vm13390, %v13389
    // Predicated region
    $region58: #{regiond_forward.1} parent=1 // pred_check
      _
    $region59: #{regiond_forward.1} parent=1 // pred_check_branch
      %13393 = sbr.rel (0) target = $region61
    $region60: #{regiond_forward.1} parent=1 // pred_region
      %s13395 = ssub.s32 32, 32
      %13396 = vsyncadd [#allocation3], %s13395
      %s13398 = sshll.u32 [#allocation2], 4
      %s13399 = int_to_ptr.vmem [resolvable:$true] %s13398
      %13401 = dma.vmem_to_hbm [thread:$0]  %s13399, 32, %s14, [#allocation3]
    $region61: #{regiond_forward.1} parent=1 // pred_fallthru
      _
    // Predicated region
    $region62: #{regiond_forward.1} parent=1 // pred_check
      _
    $region63: #{regiond_forward.1} parent=1 // pred_check_branch
      %13403 = sbr.rel (0) target = $region65
    $region64: #{regiond_forward.1} parent=1 // pred_region
      %13404 = dma.done [#allocation3], 32
    $region65: #{regiond_forward.1} parent=1 // pred_fallthru
      _
    %13405 = vsyncpa [#allocation3], 1

</llo_original>
